<compile_context>
chip_gen: v6e
topology: v6e:2x2x1
jax: 0.10.0
libtpu: 0.0.40
codegen_flags: <defaults>
</compile_context>

<pallas_src>
import math

import numpy as np

import jax
import jax.numpy as jnp
from jax.experimental import pallas as pl
from jax.experimental.pallas import tpu as pltpu


# ----------------------------------------------------------------------------
# Fused kernel
# ----------------------------------------------------------------------------
def _make_fused_kernel(*, ct, ct2, ht, hw, w, btile):
    lanes = btile * hw
    inv_sqrt2 = 1.0 / math.sqrt(2.0)
    f32 = jnp.float32
    bf16 = jnp.bfloat16

    def kernel(x_ref, qmat_ref, lncols_ref, attcols_ref, ffncols_ref,
               smask_ref, hmask_ref, wqkv_ref, msh_ref, wpo_ref,
               wfi_ref, wfo_ref, o_ref):
        x = x_ref[...].astype(f32)                     # (CT, lanes), lanes=(b,h,w)
        qmat = qmat_ref[...]                           # (CT, CT) f32
        lnc = lncols_ref[...]                          # (CT, 7)  f32
        attc = attcols_ref[...]                        # (3CT,12) f32
        ffnc = ffncols_ref[...]                        # (CT2,29) f32
        smask = smask_ref[...]                         # (9, lanes) f32 border masks
        hmask = hmask_ref[...]                         # (CT, CT) 0/1 same-head mask

        ln1_w, ln1_b = lnc[:, 0:1], lnc[:, 1:2]
        ln2_w, ln2_b = lnc[:, 2:3], lnc[:, 3:4]
        b_po, b_fo = lnc[:, 4:5], lnc[:, 5:6]
        temp = lnc[:, 6:7]
        tabs = jnp.abs(temp)

        def layer_norm(a, wcol, bcol):
            # two-pass variance (no E[x^2]-mean^2 cancellation); qmat matmul = MXU
            mean = jnp.dot(qmat, a, preferred_element_type=f32)
            d = a - mean
            var = jnp.dot(qmat, d * d, preferred_element_type=f32)
            return d * jax.lax.rsqrt(var + 1e-5) * wcol + bcol

        def spatial_shift(v, tap):
            # zero-padded spatial (dh,dw)=(tap//3-1, tap%3-1) shift in lane space:
            # XLU roll + precomputed border mask (mask also kills cyclic wrap,
            # including wrap across batch elements packed along lanes).
            if tap == 4:
                return v
            s = (tap // 3 - 1) * w + (tap % 3 - 1)
            return pltpu.roll(v, shift=(-s) % lanes, axis=1) * smask[tap:tap + 1, :]

        # ---------------- norm1 ----------------
        xn = layer_norm(x, ln1_w, ln1_b)

        # ---------------- AttentionCTSF ----------------
        qkv = jnp.dot(wqkv_ref[...], xn.astype(bf16),
                      preferred_element_type=f32) + attc[:, 0:1]
        # depthwise (1,3,3) conv: streamed roll + masked per-row FMA (no matmuls)
        y = attc[:, 1:2] + spatial_shift(qkv, 0) * attc[:, 3:4]
        for tap in range(1, 9):
            y = y + spatial_shift(qkv, tap) * attc[:, 3 + tap:4 + tap]
        # einops shuffle + nn.Linear(8T,8T) + un-shuffle folded into one matmul.
        # Dense fold is only sensible while 3CT <= ~512; use grouped W_L above.
        qkv_lin = jnp.dot(msh_ref[...], y.astype(bf16),
                          preferred_element_type=f32) + attc[:, 2:3]

        q = qkv_lin[0:ct]
        k = qkv_lin[ct:2 * ct]
        v = qkv_lin[2 * ct:3 * ct]

        outs = []
        for bi in range(btile):                       # attention is per batch elem
            sl = slice(bi * hw, (bi + 1) * hw)
            q_b, k_b, v_b = q[:, sl], k[:, sl], v[:, sl]
            qn = q_b * jax.lax.rsqrt(
                jnp.maximum(jnp.sum(q_b * q_b, axis=-1, keepdims=True), 1e-24))
            kn = k_b * jax.lax.rsqrt(
                jnp.maximum(jnp.sum(k_b * k_b, axis=-1, keepdims=True), 1e-24))
            gram = jax.lax.dot_general(
                qn.astype(bf16), kn.astype(bf16), (((1,), (1,)), ((), ())),
                preferred_element_type=f32)           # (CT, CT), all heads at once
            # rows are L2-normalized -> |gram*temp| <= |temp|: subtract the bound
            # instead of a cross-lane max (softmax is shift-invariant per row),
            # and use a multiplicative 0/1 same-head mask.
            p = jnp.exp(gram * temp - tabs) * hmask
            o_b = jnp.dot(p.astype(bf16), v_b.astype(bf16),
                          preferred_element_type=f32)
            outs.append(o_b / jnp.sum(p, axis=-1, keepdims=True))
        att = outs[0] if btile == 1 else jnp.concatenate(outs, axis=1)

        att = jnp.dot(wpo_ref[...], att.astype(bf16),
                      preferred_element_type=f32) + b_po
        x_res = xn + att                 # torch: x = norm1(x); x = x + attn(x)

        # ---------------- norm2 + FeedForward ----------------
        xn2 = layer_norm(x_res, ln2_w, ln2_b)
        u = jnp.dot(wfi_ref[...], xn2.astype(bf16),
                    preferred_element_type=f32) + ffnc[:, 0:1]
        # depthwise 3x3x3 conv: lane roll (spatial) + +/-1 sublane roll (temporal);
        # the 27 per-row weight columns already carry the t-boundary mask.
        ud = ffnc[:, 1:2]
        for tap in range(9):
            sp = spatial_shift(u, tap)
            for kt in range(3):
                col = ffnc[:, 2 + tap * 3 + kt:3 + tap * 3 + kt]
                if kt == 1:
                    ud = ud + sp * col
                else:
                    ud = ud + pltpu.roll(sp, shift=(1 - kt) % ct2, axis=0) * col
        g1 = ud[0:ht]
        g2 = ud[ht:2 * ht]
        gated = (0.5 * g1 * (1.0 + jax.lax.erf(g1 * inv_sqrt2))) * g2   # exact GELU
        ff = jnp.dot(wfo_ref[...], gated.astype(bf16),
                     preferred_element_type=f32) + b_fo
        o_ref[...] = (xn2 + ff).astype(o_ref.dtype)   # torch: x = norm2(x); x+ffn(x)

    return kernel


def transformer_block_forward(x, kp):
    b, c, t, h, w = x.shape
    ct, hw = c * t, h * w
    ct2 = kp["w_fi"].shape[0]
    ht = kp["w_fo"].shape[1]

    # Batch tile so the lane (N) dimension is >= 128 where possible.
    divisors = [d for d in range(1, b + 1) if b % d == 0]
    cands = [d for d in divisors if d * hw >= 128]
    btile = min(cands) if cands else b
    lanes = btile * hw
    grid = (b // btile,)

    kernel = _make_fused_kernel(ct=ct, ct2=ct2, ht=ht, hw=hw, w=w, btile=btile)

    # Internal layout: sublanes = (channel, t), lanes = (batch, h, w).
    # The wrapper-side transpose is pure layout plumbing for lane-dense stores.
    x_l = x.reshape(b, ct, hw).transpose(1, 0, 2).reshape(ct, b * hw)
    smask = jnp.tile(kp["spat_mask"], (1, btile))     # period-hw border masks

    weights = [kp["qmat"], kp["ln_cols"], kp["att_cols"], kp["ffn_cols"],
               smask, kp["head_mask"], kp["w_qkv"], kp["m_shuffle"],
               kp["w_po"], kp["w_fi"], kp["w_fo"]]

    in_specs = ([pl.BlockSpec((ct, lanes), lambda i: (0, i))]
                + [pl.BlockSpec(a.shape, lambda i, nd=a.ndim: (0,) * nd)
                   for a in weights])

    wbytes = sum(int(np.prod(a.shape)) * a.dtype.itemsize for a in weights)
    mm_flops = 2 * b * hw * (8 * ct * ct + 3 * ct * ct + 9 * ct * ct
                             + 2 * ct * ct + ct * ct + ct2 * ct + ct * ht)
    cost = pl.CostEstimate(flops=int(mm_flops),
                           transcendentals=int(b * ct * ct + b * ht * hw),
                           bytes_accessed=int(2 * b * ct * hw * 4 + wbytes))
    # footprint-based VMEM budget (weights are tiny now that d_mats/l_mats are gone)
    vmem_limit = int(min(56 << 20,
                         max(16 << 20, 2 * wbytes + 32 * (3 * ct + ct2) * lanes * 4)))

    out = pl.pallas_call(
        kernel,
        out_shape=jax.ShapeDtypeStruct((ct, b * hw), x.dtype),
        grid=grid,
        in_specs=in_specs,
        out_specs=pl.BlockSpec((ct, lanes), lambda i: (0, i)),
        compiler_params=pltpu.CompilerParams(
            dimension_semantics=("parallel",),
            vmem_limit_bytes=vmem_limit),
        cost_estimate=cost,
    )(x_l, *weights)
    return out.reshape(ct, b, hw).transpose(1, 0, 2).reshape(b, c, t, h, w)


# ----------------------------------------------------------------------------
# One-time weight preprocessing (outside the jitted forward)
# ----------------------------------------------------------------------------
def prepare_kernel_params(params, *, dim, n_frames, h, w):
    bf16 = jnp.bfloat16
    T, C, HW = n_frames, dim, h * w
    CT = C * T
    g = 8
    c3 = 3 * dim
    n_c2 = c3 // g
    c2h = params["ffn_wdw"].shape[-1]                  # 2 * hidden
    heads = int(params["att_temp"].shape[0])
    d_head = CT // heads

    eye_t = np.eye(T, dtype=np.float32)

    def kron_conv(wmat, out_dtype):                    # (Cin,Cout) -> (Cout*T,Cin*T)
        return jnp.asarray(np.kron(np.asarray(wmat, np.float32).T, eye_t), out_dtype)

    def rows(vec):                                     # (C,) -> (C*T,) repeated on t
        return np.repeat(np.asarray(vec, np.float32), T)

    # LayerNorm channel-averaging matrix (block diagonal over t) — kept f32.
    qmat = jnp.asarray(np.kron(np.full((C, C), 1.0 / C, np.float32), eye_t))

    # Packed (CT,7) columns: ln1_w, ln1_b, ln2_w, ln2_b, b_po, b_fo, per-row temp.
    temp_col = np.repeat(np.asarray(params["att_temp"], np.float32).reshape(heads),
                         d_head)
    ln_cols = jnp.asarray(np.stack(
        [rows(params["ln1_w"]), rows(params["ln1_b"]),
         rows(params["ln2_w"]), rows(params["ln2_b"]),
         rows(params["att_bpo"]), rows(params["ffn_b_out"]), temp_col], axis=1))

    # Packed (3CT,12) columns: b_qkv, b_dw2, b_shuffle, then 9 dw(1,3,3) tap weights.
    b_shuffle = np.tile(np.asarray(params["att_bl"], np.float32), n_c2)
    att_wdw = np.asarray(params["att_wdw"], np.float32)          # (3, 3, 3C)
    att_cols = jnp.asarray(np.stack(
        [rows(params["att_b1"]), rows(params["att_bdw"]), b_shuffle]
        + [np.repeat(att_wdw[kh, kw, :], T) for kh in range(3) for kw in range(3)],
        axis=1))

    # Packed (CT2,29) columns: b_fi, b_fdw, then 27 dw3x3x3 per-row weights with the
    # temporal (t==0 / t==T-1) boundary mask folded in (col = 2 + (kh*3+kw)*3 + kt).
    ffn_wdw = np.asarray(params["ffn_wdw"], np.float32)          # (3,3,3, 2*hidden)
    tt_idx = np.tile(np.arange(T), c2h)
    ffn_cols = [rows(params["ffn_b_in"]), rows(params["ffn_bdw"])]
    for kh in range(3):
        for kw in range(3):
            for kt in range(3):
                col = np.repeat(ffn_wdw[kt, kh, kw, :], T)
                if kt == 0:
                    col = col * (tt_idx != 0)
                elif kt == 2:
                    col = col * (tt_idx != T - 1)
                ffn_cols.append(col)
    ffn_cols = jnp.asarray(np.stack(ffn_cols, axis=1).astype(np.float32))

    # (9, HW) spatial border masks for the lane rolls (tap = kh*3 + kw).
    smask = np.zeros((9, HW), np.float32)
    for kh in range(3):
        for kw in range(3):
            for hh in range(h):
                for ww in range(w):
                    if 0 <= hh + kh - 1 < h and 0 <= ww + kw - 1 < w:
                        smask[kh * 3 + kw, hh * w + ww] = 1.0

    # (CT, CT) 0/1 same-head mask for the fused full-matrix attention.
    head_id = np.arange(CT) // d_head
    head_mask = jnp.asarray((head_id[:, None] == head_id[None, :]).astype(np.float32))

    # Shuffle Rearrange + Linear + Rearrange-back folded into one (3CT,3CT) matrix.
    s_np = np.zeros((n_c2 * g * T, c3 * T), np.float32)
    for c2 in range(n_c2):
        for c1 in range(g):
            for tt in range(T):
                s_np[c2 * g * T + c1 * T + tt, (c1 * n_c2 + c2) * T + tt] = 1.0
    m_shuffle = np.kron(np.eye(n_c2, dtype=np.float32),
                        np.asarray(params["att_wl"], np.float32).T) @ s_np

    return dict(
        qmat=qmat,
        ln_cols=ln_cols,
        att_cols=att_cols,
        ffn_cols=ffn_cols,
        spat_mask=jnp.asarray(smask),
        head_mask=head_mask,
        w_qkv=kron_conv(params["att_w1"], bf16),
        m_shuffle=jnp.asarray(m_shuffle, bf16),
        w_po=kron_conv(params["att_wpo"], bf16),
        w_fi=kron_conv(params["ffn_w_in"], bf16),
        w_fo=kron_conv(params["ffn_w_out"], bf16),
    )


# ----------------------------------------------------------------------------
# deterministic parameter init (shapes per the module's __init__)
# ----------------------------------------------------------------------------
def init_params(key, dim, num_heads, n_frames, ffn_expansion_factor):
    g = 8
    hidden = int(dim * ffn_expansion_factor)
    c3 = dim * 3
    keys = jax.random.split(key, 14)

    def rnd(k, shape, scale=0.1):
        return scale * jax.random.normal(k, shape, jnp.float32)

    return dict(
        ln1_w=jnp.ones((dim,), jnp.float32), ln1_b=jnp.zeros((dim,), jnp.float32),
        ln2_w=jnp.ones((dim,), jnp.float32), ln2_b=jnp.zeros((dim,), jnp.float32),
        att_w1=rnd(keys[0], (dim, c3)), att_b1=rnd(keys[1], (c3,)),
        att_wdw=rnd(keys[2], (3, 3, c3)), att_bdw=rnd(keys[3], (c3,)),
        att_wl=rnd(keys[4], (g * n_frames, g * n_frames)),
        att_bl=rnd(keys[5], (g * n_frames,)),
        att_temp=jnp.ones((num_heads, 1, 1), jnp.float32),
        att_wpo=rnd(keys[6], (dim, dim)), att_bpo=rnd(keys[7], (dim,)),
        ffn_w_in=rnd(keys[8], (dim, 2 * hidden)), ffn_b_in=rnd(keys[9], (2 * hidden,)),
        ffn_wdw=rnd(keys[10], (3, 3, 3, 2 * hidden)), ffn_bdw=rnd(keys[11], (2 * hidden,)),
        ffn_w_out=rnd(keys[12], (hidden, dim)), ffn_b_out=rnd(keys[13], (dim,)),
    )


# ----------------------------------------------------------------------------
# pure-JAX reference (mirrors the PyTorch module) for self-checking
# ----------------------------------------------------------------------------
def transformer_block_reference(x, params, num_heads):
    b, c, t, h, w = x.shape
    g = 8
    c3 = 3 * c
    n_c2 = c3 // g

    def layernorm3d(v, gamma, beta):
        xt = jnp.transpose(v, (0, 2, 3, 4, 1))
        mu = jnp.mean(xt, axis=-1, keepdims=True)
        var = jnp.mean((xt - mu) ** 2, axis=-1, keepdims=True)
        y = (xt - mu) / jnp.sqrt(var + 1e-5) * gamma + beta
        return jnp.transpose(y, (0, 4, 1, 2, 3))

    def conv1x1(v, wmat, bias):
        return (jnp.einsum("bithw,io->bothw", v, wmat)
                + bias[None, :, None, None, None])

    def dwconv2d_ref(v, wk, bias):
        vp = jnp.pad(v, ((0, 0), (0, 0), (0, 0), (1, 1), (1, 1)))
        out = jnp.zeros_like(v)
        for kh in range(3):
            for kw in range(3):
                out = out + (vp[:, :, :, kh:kh + h, kw:kw + w]
                             * wk[kh, kw, :][None, :, None, None, None])
        return out + bias[None, :, None, None, None]

    def dwconv3d_ref(v, wk, bias):
        vp = jnp.pad(v, ((0, 0), (0, 0), (1, 1), (1, 1), (1, 1)))
        out = jnp.zeros_like(v)
        for kt in range(3):
            for kh in range(3):
                for kw in range(3):
                    out = out + (vp[:, :, kt:kt + t, kh:kh + h, kw:kw + w]
                                 * wk[kt, kh, kw, :][None, :, None, None, None])
        return out + bias[None, :, None, None, None]

    xn = layernorm3d(x, params["ln1_w"], params["ln1_b"])
    qkv = conv1x1(xn, params["att_w1"], params["att_b1"])
    qkv = dwconv2d_ref(qkv, params["att_wdw"], params["att_bdw"])
    z = qkv.reshape(b, g, n_c2, t, h, w)
    z = jnp.transpose(z, (0, 2, 4, 5, 1, 3)).reshape(b, n_c2, h, w, g * t)
    z = z @ params["att_wl"] + params["att_bl"]
    z = z.reshape(b, n_c2, h, w, g, t)
    z = jnp.transpose(z, (0, 1, 4, 5, 2, 3)).reshape(b, c3 * t, h, w)
    dct = c * t
    q, k, v = z[:, :dct], z[:, dct:2 * dct], z[:, 2 * dct:]
    cpt = c // num_heads

    def heads_split(a):
        return a.reshape(b, num_heads, cpt * t, h * w)

    q, k, v = heads_split(q), heads_split(k), heads_split(v)
    qn = q / jnp.maximum(jnp.linalg.norm(q, axis=-1, keepdims=True), 1e-12)
    kn = k / jnp.maximum(jnp.linalg.norm(k, axis=-1, keepdims=True), 1e-12)
    attn = jnp.einsum("bhdk,bhek->bhde", qn, kn) * params["att_temp"][None]
    attn = jax.nn.softmax(attn, axis=-1)
    o = jnp.einsum("bhde,bhek->bhdk", attn, v).reshape(b, c, t, h, w)
    o = conv1x1(o, params["att_wpo"], params["att_bpo"])
    x2 = xn + o

    xn2 = layernorm3d(x2, params["ln2_w"], params["ln2_b"])
    u = conv1x1(xn2, params["ffn_w_in"], params["ffn_b_in"])
    u = dwconv3d_ref(u, params["ffn_wdw"], params["ffn_bdw"])
    hid = params["ffn_w_out"].shape[0]
    gated = jax.nn.gelu(u[:, :hid], approximate=False) * u[:, hid:]
    out = conv1x1(gated, params["ffn_w_out"], params["ffn_b_out"])
    return xn2 + out


if __name__ == "__main__":
    key = jax.random.PRNGKey(0)
    k_param, k_x = jax.random.split(key)

    b, dim, t, h, w = 2, 8, 4, 8, 8      # t must equal n_frames for the shuffle Linear
    num_heads = 2
    ffn_expansion_factor = 2.0

    params = init_params(k_param, dim, num_heads, t, ffn_expansion_factor)
    kparams = prepare_kernel_params(params, dim=dim, n_frames=t, h=h, w=w)
    x = jax.random.normal(k_x, (b, dim, t, h, w), jnp.float32)

    fwd = jax.jit(transformer_block_forward)
    out = jax.block_until_ready(fwd(x, kparams))

    assert out.shape == (b, dim, t, h, w), out.shape
    assert bool(jnp.all(jnp.isfinite(out)))

    # self-check against a pure-JAX reference of the PyTorch module
    # (kernel uses bf16 matmul operands -> slightly looser tolerance than f32)
    with jax.default_matmul_precision("highest"):
        ref = jax.block_until_ready(transformer_block_reference(x, params, num_heads))
    err = float(jnp.max(jnp.abs(out - ref)))
    assert err < 5e-2, f"max abs err vs reference = {err}"

    print("KERNEL_OK")
</pallas_src>

<mosaic_0001>
module attributes {stable_mosaic.version = 11 : i64} {
  func.func @kernel(%arg0: i32, %arg1: memref<32x128xf32, #tpu.memory_space<vmem>>, %arg2: memref<32x32xf32, #tpu.memory_space<vmem>>, %arg3: memref<32x7xf32, #tpu.memory_space<vmem>>, %arg4: memref<96x12xf32, #tpu.memory_space<vmem>>, %arg5: memref<128x29xf32, #tpu.memory_space<vmem>>, %arg6: memref<9x128xf32, #tpu.memory_space<vmem>>, %arg7: memref<32x32xf32, #tpu.memory_space<vmem>>, %arg8: memref<96x32xbf16, #tpu.memory_space<vmem>>, %arg9: memref<96x96xbf16, #tpu.memory_space<vmem>>, %arg10: memref<32x32xbf16, #tpu.memory_space<vmem>>, %arg11: memref<128x32xbf16, #tpu.memory_space<vmem>>, %arg12: memref<32x64xbf16, #tpu.memory_space<vmem>>, %arg13: memref<32x128xf32, #tpu.memory_space<vmem>>) attributes {dimension_semantics = [#tpu.dimension_semantics<parallel>], iteration_bounds = array<i64: 1>, scalar_prefetch = 0 : i64, scratch_operands = 0 : i64, tpu.core_type = #tpu.core_type<tc>, window_params = [{transform_indices = @transform_0, window_bounds = array<i64: 32, 128>}, {pipeline_mode = #tpu.pipeline_mode<synchronous>, transform_indices = @transform_1, window_bounds = array<i64: 32, 32>}, {pipeline_mode = #tpu.pipeline_mode<synchronous>, transform_indices = @transform_2, window_bounds = array<i64: 32, 7>}, {pipeline_mode = #tpu.pipeline_mode<synchronous>, transform_indices = @transform_3, window_bounds = array<i64: 96, 12>}, {pipeline_mode = #tpu.pipeline_mode<synchronous>, transform_indices = @transform_4, window_bounds = array<i64: 128, 29>}, {pipeline_mode = #tpu.pipeline_mode<synchronous>, transform_indices = @transform_5, window_bounds = array<i64: 9, 128>}, {pipeline_mode = #tpu.pipeline_mode<synchronous>, transform_indices = @transform_6, window_bounds = array<i64: 32, 32>}, {pipeline_mode = #tpu.pipeline_mode<synchronous>, transform_indices = @transform_7, window_bounds = array<i64: 96, 32>}, {pipeline_mode = #tpu.pipeline_mode<synchronous>, transform_indices = @transform_8, window_bounds = array<i64: 96, 96>}, {pipeline_mode = #tpu.pipeline_mode<synchronous>, transform_indices = @transform_9, window_bounds = array<i64: 32, 32>}, {pipeline_mode = #tpu.pipeline_mode<synchronous>, transform_indices = @transform_10, window_bounds = array<i64: 128, 32>}, {pipeline_mode = #tpu.pipeline_mode<synchronous>, transform_indices = @transform_11, window_bounds = array<i64: 32, 64>}, {transform_indices = @transform_12, window_bounds = array<i64: 32, 128>}]} {
    %c0 = arith.constant 0 : index
    %c0_0 = arith.constant 0 : index
    %0 = vector.load %arg1[%c0, %c0_0] : memref<32x128xf32, #tpu.memory_space<vmem>>, vector<32x128xf32>
    %c0_1 = arith.constant 0 : index
    %c0_2 = arith.constant 0 : index
    %1 = vector.load %arg2[%c0_1, %c0_2] : memref<32x32xf32, #tpu.memory_space<vmem>>, vector<32x32xf32>
    %c0_3 = arith.constant 0 : index
    %c0_4 = arith.constant 0 : index
    %2 = vector.load %arg3[%c0_3, %c0_4] : memref<32x7xf32, #tpu.memory_space<vmem>>, vector<32x7xf32>
    %c0_5 = arith.constant 0 : index
    %c0_6 = arith.constant 0 : index
    %3 = vector.load %arg4[%c0_5, %c0_6] : memref<96x12xf32, #tpu.memory_space<vmem>>, vector<96x12xf32>
    %c0_7 = arith.constant 0 : index
    %c0_8 = arith.constant 0 : index
    %4 = vector.load %arg5[%c0_7, %c0_8] : memref<128x29xf32, #tpu.memory_space<vmem>>, vector<128x29xf32>
    %c0_9 = arith.constant 0 : index
    %c0_10 = arith.constant 0 : index
    %5 = vector.load %arg6[%c0_9, %c0_10] : memref<9x128xf32, #tpu.memory_space<vmem>>, vector<9x128xf32>
    %c0_11 = arith.constant 0 : index
    %c0_12 = arith.constant 0 : index
    %6 = vector.load %arg7[%c0_11, %c0_12] : memref<32x32xf32, #tpu.memory_space<vmem>>, vector<32x32xf32>
    %7 = vector.extract_strided_slice %2 {offsets = [0, 0], sizes = [32, 1], strides = [1, 1]} : vector<32x7xf32> to vector<32x1xf32>
    %8 = vector.extract_strided_slice %2 {offsets = [0, 1], sizes = [32, 1], strides = [1, 1]} : vector<32x7xf32> to vector<32x1xf32>
    %9 = vector.extract_strided_slice %2 {offsets = [0, 2], sizes = [32, 1], strides = [1, 1]} : vector<32x7xf32> to vector<32x1xf32>
    %10 = vector.extract_strided_slice %2 {offsets = [0, 3], sizes = [32, 1], strides = [1, 1]} : vector<32x7xf32> to vector<32x1xf32>
    %11 = vector.extract_strided_slice %2 {offsets = [0, 4], sizes = [32, 1], strides = [1, 1]} : vector<32x7xf32> to vector<32x1xf32>
    %12 = vector.extract_strided_slice %2 {offsets = [0, 5], sizes = [32, 1], strides = [1, 1]} : vector<32x7xf32> to vector<32x1xf32>
    %13 = vector.extract_strided_slice %2 {offsets = [0, 6], sizes = [32, 1], strides = [1, 1]} : vector<32x7xf32> to vector<32x1xf32>
    %14 = math.absf %13 : vector<32x1xf32>
    %cst = arith.constant dense<0.000000e+00> : vector<32x128xf32>
    %15 = tpu.matmul %1, %0, %cst {dimension_numbers = #tpu.dot_dimension_numbers<[1], [0], [0], [1], [0, 0, 1, 1], [], []>} : vector<32x32xf32>, vector<32x128xf32>, vector<32x128xf32> -> vector<32x128xf32>
    %16 = arith.subf %0, %15 : vector<32x128xf32>
    %17 = arith.mulf %16, %16 : vector<32x128xf32>
    %cst_13 = arith.constant dense<0.000000e+00> : vector<32x128xf32>
    %18 = tpu.matmul %1, %17, %cst_13 {dimension_numbers = #tpu.dot_dimension_numbers<[1], [0], [0], [1], [0, 0, 1, 1], [], []>} : vector<32x32xf32>, vector<32x128xf32>, vector<32x128xf32> -> vector<32x128xf32>
    %cst_14 = arith.constant 9.99999974E-6 : f32
    %19 = vector.broadcast %cst_14 : f32 to vector<32x128xf32>
    %20 = arith.addf %18, %19 : vector<32x128xf32>
    %21 = math.rsqrt %20 : vector<32x128xf32>
    %22 = arith.mulf %16, %21 : vector<32x128xf32>
    %23 = vector.broadcast %7 : vector<32x1xf32> to vector<32x128xf32>
    %24 = arith.mulf %22, %23 : vector<32x128xf32>
    %25 = vector.broadcast %8 : vector<32x1xf32> to vector<32x128xf32>
    %26 = arith.addf %24, %25 : vector<32x128xf32>
    %c0_15 = arith.constant 0 : index
    %c0_16 = arith.constant 0 : index
    %27 = vector.load %arg8[%c0_15, %c0_16] : memref<96x32xbf16, #tpu.memory_space<vmem>>, vector<96x32xbf16>
    %28 = arith.truncf %26 : vector<32x128xf32> to vector<32x128xbf16>
    %cst_17 = arith.constant dense<0.000000e+00> : vector<96x128xf32>
    %29 = tpu.matmul %27, %28, %cst_17 {dimension_numbers = #tpu.dot_dimension_numbers<[1], [0], [0], [1], [0, 0, 1, 1], [], []>} : vector<96x32xbf16>, vector<32x128xbf16>, vector<96x128xf32> -> vector<96x128xf32>
    %30 = vector.extract_strided_slice %3 {offsets = [0, 0], sizes = [96, 1], strides = [1, 1]} : vector<96x12xf32> to vector<96x1xf32>
    %31 = vector.broadcast %30 : vector<96x1xf32> to vector<96x128xf32>
    %32 = arith.addf %29, %31 : vector<96x128xf32>
    %33 = vector.extract_strided_slice %3 {offsets = [0, 1], sizes = [96, 1], strides = [1, 1]} : vector<96x12xf32> to vector<96x1xf32>
    %c9_i32 = arith.constant 9 : i32
    %34 = tpu.dynamic_rotate %32 by %c9_i32 dim 1 : vector<96x128xf32>, i32 -> vector<96x128xf32>
    %35 = vector.extract_strided_slice %5 {offsets = [0, 0], sizes = [1, 128], strides = [1, 1]} : vector<9x128xf32> to vector<1x128xf32>
    %36 = vector.broadcast %35 : vector<1x128xf32> to vector<96x128xf32>
    %37 = arith.mulf %34, %36 : vector<96x128xf32>
    %38 = vector.extract_strided_slice %3 {offsets = [0, 3], sizes = [96, 1], strides = [1, 1]} : vector<96x12xf32> to vector<96x1xf32>
    %39 = vector.broadcast %38 : vector<96x1xf32> to vector<96x128xf32>
    %40 = arith.mulf %37, %39 : vector<96x128xf32>
    %41 = vector.broadcast %33 : vector<96x1xf32> to vector<96x128xf32>
    %42 = arith.addf %41, %40 : vector<96x128xf32>
    %c8_i32 = arith.constant 8 : i32
    %43 = tpu.dynamic_rotate %32 by %c8_i32 dim 1 : vector<96x128xf32>, i32 -> vector<96x128xf32>
    %44 = vector.extract_strided_slice %5 {offsets = [1, 0], sizes = [1, 128], strides = [1, 1]} : vector<9x128xf32> to vector<1x128xf32>
    %45 = vector.broadcast %44 : vector<1x128xf32> to vector<96x128xf32>
    %46 = arith.mulf %43, %45 : vector<96x128xf32>
    %47 = vector.extract_strided_slice %3 {offsets = [0, 4], sizes = [96, 1], strides = [1, 1]} : vector<96x12xf32> to vector<96x1xf32>
    %48 = vector.broadcast %47 : vector<96x1xf32> to vector<96x128xf32>
    %49 = arith.mulf %46, %48 : vector<96x128xf32>
    %50 = arith.addf %42, %49 : vector<96x128xf32>
    %c7_i32 = arith.constant 7 : i32
    %51 = tpu.dynamic_rotate %32 by %c7_i32 dim 1 : vector<96x128xf32>, i32 -> vector<96x128xf32>
    %52 = vector.extract_strided_slice %5 {offsets = [2, 0], sizes = [1, 128], strides = [1, 1]} : vector<9x128xf32> to vector<1x128xf32>
    %53 = vector.broadcast %52 : vector<1x128xf32> to vector<96x128xf32>
    %54 = arith.mulf %51, %53 : vector<96x128xf32>
    %55 = vector.extract_strided_slice %3 {offsets = [0, 5], sizes = [96, 1], strides = [1, 1]} : vector<96x12xf32> to vector<96x1xf32>
    %56 = vector.broadcast %55 : vector<96x1xf32> to vector<96x128xf32>
    %57 = arith.mulf %54, %56 : vector<96x128xf32>
    %58 = arith.addf %50, %57 : vector<96x128xf32>
    %c1_i32 = arith.constant 1 : i32
    %59 = tpu.dynamic_rotate %32 by %c1_i32 dim 1 : vector<96x128xf32>, i32 -> vector<96x128xf32>
    %60 = vector.extract_strided_slice %5 {offsets = [3, 0], sizes = [1, 128], strides = [1, 1]} : vector<9x128xf32> to vector<1x128xf32>
    %61 = vector.broadcast %60 : vector<1x128xf32> to vector<96x128xf32>
    %62 = arith.mulf %59, %61 : vector<96x128xf32>
    %63 = vector.extract_strided_slice %3 {offsets = [0, 6], sizes = [96, 1], strides = [1, 1]} : vector<96x12xf32> to vector<96x1xf32>
    %64 = vector.broadcast %63 : vector<96x1xf32> to vector<96x128xf32>
    %65 = arith.mulf %62, %64 : vector<96x128xf32>
    %66 = arith.addf %58, %65 : vector<96x128xf32>
    %67 = vector.extract_strided_slice %3 {offsets = [0, 7], sizes = [96, 1], strides = [1, 1]} : vector<96x12xf32> to vector<96x1xf32>
    %68 = vector.broadcast %67 : vector<96x1xf32> to vector<96x128xf32>
    %69 = arith.mulf %32, %68 : vector<96x128xf32>
    %70 = arith.addf %66, %69 : vector<96x128xf32>
    %c127_i32 = arith.constant 127 : i32
    %71 = tpu.dynamic_rotate %32 by %c127_i32 dim 1 : vector<96x128xf32>, i32 -> vector<96x128xf32>
    %72 = vector.extract_strided_slice %5 {offsets = [5, 0], sizes = [1, 128], strides = [1, 1]} : vector<9x128xf32> to vector<1x128xf32>
    %73 = vector.broadcast %72 : vector<1x128xf32> to vector<96x128xf32>
    %74 = arith.mulf %71, %73 : vector<96x128xf32>
    %75 = vector.extract_strided_slice %3 {offsets = [0, 8], sizes = [96, 1], strides = [1, 1]} : vector<96x12xf32> to vector<96x1xf32>
    %76 = vector.broadcast %75 : vector<96x1xf32> to vector<96x128xf32>
    %77 = arith.mulf %74, %76 : vector<96x128xf32>
    %78 = arith.addf %70, %77 : vector<96x128xf32>
    %c121_i32 = arith.constant 121 : i32
    %79 = tpu.dynamic_rotate %32 by %c121_i32 dim 1 : vector<96x128xf32>, i32 -> vector<96x128xf32>
    %80 = vector.extract_strided_slice %5 {offsets = [6, 0], sizes = [1, 128], strides = [1, 1]} : vector<9x128xf32> to vector<1x128xf32>
    %81 = vector.broadcast %80 : vector<1x128xf32> to vector<96x128xf32>
    %82 = arith.mulf %79, %81 : vector<96x128xf32>
    %83 = vector.extract_strided_slice %3 {offsets = [0, 9], sizes = [96, 1], strides = [1, 1]} : vector<96x12xf32> to vector<96x1xf32>
    %84 = vector.broadcast %83 : vector<96x1xf32> to vector<96x128xf32>
    %85 = arith.mulf %82, %84 : vector<96x128xf32>
    %86 = arith.addf %78, %85 : vector<96x128xf32>
    %c120_i32 = arith.constant 120 : i32
    %87 = tpu.dynamic_rotate %32 by %c120_i32 dim 1 : vector<96x128xf32>, i32 -> vector<96x128xf32>
    %88 = vector.extract_strided_slice %5 {offsets = [7, 0], sizes = [1, 128], strides = [1, 1]} : vector<9x128xf32> to vector<1x128xf32>
    %89 = vector.broadcast %88 : vector<1x128xf32> to vector<96x128xf32>
    %90 = arith.mulf %87, %89 : vector<96x128xf32>
    %91 = vector.extract_strided_slice %3 {offsets = [0, 10], sizes = [96, 1], strides = [1, 1]} : vector<96x12xf32> to vector<96x1xf32>
    %92 = vector.broadcast %91 : vector<96x1xf32> to vector<96x128xf32>
    %93 = arith.mulf %90, %92 : vector<96x128xf32>
    %94 = arith.addf %86, %93 : vector<96x128xf32>
    %c119_i32 = arith.constant 119 : i32
    %95 = tpu.dynamic_rotate %32 by %c119_i32 dim 1 : vector<96x128xf32>, i32 -> vector<96x128xf32>
    %96 = vector.extract_strided_slice %5 {offsets = [8, 0], sizes = [1, 128], strides = [1, 1]} : vector<9x128xf32> to vector<1x128xf32>
    %97 = vector.broadcast %96 : vector<1x128xf32> to vector<96x128xf32>
    %98 = arith.mulf %95, %97 : vector<96x128xf32>
    %99 = vector.extract_strided_slice %3 {offsets = [0, 11], sizes = [96, 1], strides = [1, 1]} : vector<96x12xf32> to vector<96x1xf32>
    %100 = vector.broadcast %99 : vector<96x1xf32> to vector<96x128xf32>
    %101 = arith.mulf %98, %100 : vector<96x128xf32>
    %102 = arith.addf %94, %101 : vector<96x128xf32>
    %c0_18 = arith.constant 0 : index
    %c0_19 = arith.constant 0 : index
    %103 = vector.load %arg9[%c0_18, %c0_19] : memref<96x96xbf16, #tpu.memory_space<vmem>>, vector<96x96xbf16>
    %104 = arith.truncf %102 : vector<96x128xf32> to vector<96x128xbf16>
    %cst_20 = arith.constant dense<0.000000e+00> : vector<96x128xf32>
    %105 = tpu.matmul %103, %104, %cst_20 {dimension_numbers = #tpu.dot_dimension_numbers<[1], [0], [0], [1], [0, 0, 1, 1], [], []>} : vector<96x96xbf16>, vector<96x128xbf16>, vector<96x128xf32> -> vector<96x128xf32>
    %106 = vector.extract_strided_slice %3 {offsets = [0, 2], sizes = [96, 1], strides = [1, 1]} : vector<96x12xf32> to vector<96x1xf32>
    %107 = vector.broadcast %106 : vector<96x1xf32> to vector<96x128xf32>
    %108 = arith.addf %105, %107 : vector<96x128xf32>
    %109 = vector.extract_strided_slice %108 {offsets = [0, 0], sizes = [32, 128], strides = [1, 1]} : vector<96x128xf32> to vector<32x128xf32>
    %110 = vector.extract_strided_slice %108 {offsets = [32, 0], sizes = [32, 128], strides = [1, 1]} : vector<96x128xf32> to vector<32x128xf32>
    %111 = vector.extract_strided_slice %108 {offsets = [64, 0], sizes = [32, 128], strides = [1, 1]} : vector<96x128xf32> to vector<32x128xf32>
    %112 = vector.extract_strided_slice %109 {offsets = [0, 0], sizes = [32, 64], strides = [1, 1]} : vector<32x128xf32> to vector<32x64xf32>
    %113 = vector.extract_strided_slice %110 {offsets = [0, 0], sizes = [32, 64], strides = [1, 1]} : vector<32x128xf32> to vector<32x64xf32>
    %114 = vector.extract_strided_slice %111 {offsets = [0, 0], sizes = [32, 64], strides = [1, 1]} : vector<32x128xf32> to vector<32x64xf32>
    %115 = arith.mulf %112, %112 : vector<32x64xf32>
    %cst_21 = arith.constant dense<0.000000e+00> : vector<32xf32>
    %116 = vector.multi_reduction <add>, %115, %cst_21 [1] : vector<32x64xf32> to vector<32xf32>
    %117 = vector.shape_cast %116 : vector<32xf32> to vector<32x1xf32>
    %cst_22 = arith.constant 1.000000e-24 : f32
    %118 = vector.broadcast %cst_22 : f32 to vector<32x1xf32>
    %119 = arith.maximumf %117, %118 : vector<32x1xf32>
    %120 = math.rsqrt %119 : vector<32x1xf32>
    %121 = vector.broadcast %120 : vector<32x1xf32> to vector<32x64xf32>
    %122 = arith.mulf %112, %121 : vector<32x64xf32>
    %123 = arith.mulf %113, %113 : vector<32x64xf32>
    %cst_23 = arith.constant dense<0.000000e+00> : vector<32xf32>
    %124 = vector.multi_reduction <add>, %123, %cst_23 [1] : vector<32x64xf32> to vector<32xf32>
    %125 = vector.shape_cast %124 : vector<32xf32> to vector<32x1xf32>
    %cst_24 = arith.constant 1.000000e-24 : f32
    %126 = vector.broadcast %cst_24 : f32 to vector<32x1xf32>
    %127 = arith.maximumf %125, %126 : vector<32x1xf32>
    %128 = math.rsqrt %127 : vector<32x1xf32>
    %129 = vector.broadcast %128 : vector<32x1xf32> to vector<32x64xf32>
    %130 = arith.mulf %113, %129 : vector<32x64xf32>
    %131 = arith.truncf %122 : vector<32x64xf32> to vector<32x64xbf16>
    %132 = arith.truncf %130 : vector<32x64xf32> to vector<32x64xbf16>
    %cst_25 = arith.constant dense<0.000000e+00> : vector<32x32xf32>
    %133 = tpu.matmul %131, %132, %cst_25 {dimension_numbers = #tpu.dot_dimension_numbers<[1], [1], [0], [0], [0, 0, 1, 0], [], []>} : vector<32x64xbf16>, vector<32x64xbf16>, vector<32x32xf32> -> vector<32x32xf32>
    %134 = vector.broadcast %13 : vector<32x1xf32> to vector<32x32xf32>
    %135 = arith.mulf %133, %134 : vector<32x32xf32>
    %136 = vector.broadcast %14 : vector<32x1xf32> to vector<32x32xf32>
    %137 = arith.subf %135, %136 : vector<32x32xf32>
    %138 = math.exp %137 : vector<32x32xf32>
    %139 = arith.mulf %138, %6 : vector<32x32xf32>
    %140 = arith.truncf %139 : vector<32x32xf32> to vector<32x32xbf16>
    %141 = arith.truncf %114 : vector<32x64xf32> to vector<32x64xbf16>
    %cst_26 = arith.constant dense<0.000000e+00> : vector<32x64xf32>
    %142 = tpu.matmul %140, %141, %cst_26 {dimension_numbers = #tpu.dot_dimension_numbers<[1], [0], [0], [1], [0, 0, 1, 1], [], []>} : vector<32x32xbf16>, vector<32x64xbf16>, vector<32x64xf32> -> vector<32x64xf32>
    %cst_27 = arith.constant dense<0.000000e+00> : vector<32xf32>
    %143 = vector.multi_reduction <add>, %139, %cst_27 [1] : vector<32x32xf32> to vector<32xf32>
    %144 = vector.shape_cast %143 : vector<32xf32> to vector<32x1xf32>
    %145 = vector.broadcast %144 : vector<32x1xf32> to vector<32x64xf32>
    %146 = arith.divf %142, %145 : vector<32x64xf32>
    %147 = vector.extract_strided_slice %109 {offsets = [0, 64], sizes = [32, 64], strides = [1, 1]} : vector<32x128xf32> to vector<32x64xf32>
    %148 = vector.extract_strided_slice %110 {offsets = [0, 64], sizes = [32, 64], strides = [1, 1]} : vector<32x128xf32> to vector<32x64xf32>
    %149 = vector.extract_strided_slice %111 {offsets = [0, 64], sizes = [32, 64], strides = [1, 1]} : vector<32x128xf32> to vector<32x64xf32>
    %150 = arith.mulf %147, %147 : vector<32x64xf32>
    %cst_28 = arith.constant dense<0.000000e+00> : vector<32xf32>
    %151 = vector.multi_reduction <add>, %150, %cst_28 [1] : vector<32x64xf32> to vector<32xf32>
    %152 = vector.shape_cast %151 : vector<32xf32> to vector<32x1xf32>
    %cst_29 = arith.constant 1.000000e-24 : f32
    %153 = vector.broadcast %cst_29 : f32 to vector<32x1xf32>
    %154 = arith.maximumf %152, %153 : vector<32x1xf32>
    %155 = math.rsqrt %154 : vector<32x1xf32>
    %156 = vector.broadcast %155 : vector<32x1xf32> to vector<32x64xf32>
    %157 = arith.mulf %147, %156 : vector<32x64xf32>
    %158 = arith.mulf %148, %148 : vector<32x64xf32>
    %cst_30 = arith.constant dense<0.000000e+00> : vector<32xf32>
    %159 = vector.multi_reduction <add>, %158, %cst_30 [1] : vector<32x64xf32> to vector<32xf32>
    %160 = vector.shape_cast %159 : vector<32xf32> to vector<32x1xf32>
    %cst_31 = arith.constant 1.000000e-24 : f32
    %161 = vector.broadcast %cst_31 : f32 to vector<32x1xf32>
    %162 = arith.maximumf %160, %161 : vector<32x1xf32>
    %163 = math.rsqrt %162 : vector<32x1xf32>
    %164 = vector.broadcast %163 : vector<32x1xf32> to vector<32x64xf32>
    %165 = arith.mulf %148, %164 : vector<32x64xf32>
    %166 = arith.truncf %157 : vector<32x64xf32> to vector<32x64xbf16>
    %167 = arith.truncf %165 : vector<32x64xf32> to vector<32x64xbf16>
    %cst_32 = arith.constant dense<0.000000e+00> : vector<32x32xf32>
    %168 = tpu.matmul %166, %167, %cst_32 {dimension_numbers = #tpu.dot_dimension_numbers<[1], [1], [0], [0], [0, 0, 1, 0], [], []>} : vector<32x64xbf16>, vector<32x64xbf16>, vector<32x32xf32> -> vector<32x32xf32>
    %169 = vector.broadcast %13 : vector<32x1xf32> to vector<32x32xf32>
    %170 = arith.mulf %168, %169 : vector<32x32xf32>
    %171 = vector.broadcast %14 : vector<32x1xf32> to vector<32x32xf32>
    %172 = arith.subf %170, %171 : vector<32x32xf32>
    %173 = math.exp %172 : vector<32x32xf32>
    %174 = arith.mulf %173, %6 : vector<32x32xf32>
    %175 = arith.truncf %174 : vector<32x32xf32> to vector<32x32xbf16>
    %176 = arith.truncf %149 : vector<32x64xf32> to vector<32x64xbf16>
    %cst_33 = arith.constant dense<0.000000e+00> : vector<32x64xf32>
    %177 = tpu.matmul %175, %176, %cst_33 {dimension_numbers = #tpu.dot_dimension_numbers<[1], [0], [0], [1], [0, 0, 1, 1], [], []>} : vector<32x32xbf16>, vector<32x64xbf16>, vector<32x64xf32> -> vector<32x64xf32>
    %cst_34 = arith.constant dense<0.000000e+00> : vector<32xf32>
    %178 = vector.multi_reduction <add>, %174, %cst_34 [1] : vector<32x32xf32> to vector<32xf32>
    %179 = vector.shape_cast %178 : vector<32xf32> to vector<32x1xf32>
    %180 = vector.broadcast %179 : vector<32x1xf32> to vector<32x64xf32>
    %181 = arith.divf %177, %180 : vector<32x64xf32>
    %182 = tpu.concatenate %146, %181 in 1 : vector<32x64xf32>, vector<32x64xf32> -> vector<32x128xf32>
    %c0_35 = arith.constant 0 : index
    %c0_36 = arith.constant 0 : index
    %183 = vector.load %arg10[%c0_35, %c0_36] : memref<32x32xbf16, #tpu.memory_space<vmem>>, vector<32x32xbf16>
    %184 = arith.truncf %182 : vector<32x128xf32> to vector<32x128xbf16>
    %cst_37 = arith.constant dense<0.000000e+00> : vector<32x128xf32>
    %185 = tpu.matmul %183, %184, %cst_37 {dimension_numbers = #tpu.dot_dimension_numbers<[1], [0], [0], [1], [0, 0, 1, 1], [], []>} : vector<32x32xbf16>, vector<32x128xbf16>, vector<32x128xf32> -> vector<32x128xf32>
    %186 = vector.broadcast %11 : vector<32x1xf32> to vector<32x128xf32>
    %187 = arith.addf %185, %186 : vector<32x128xf32>
    %188 = arith.addf %26, %187 : vector<32x128xf32>
    %cst_38 = arith.constant dense<0.000000e+00> : vector<32x128xf32>
    %189 = tpu.matmul %1, %188, %cst_38 {dimension_numbers = #tpu.dot_dimension_numbers<[1], [0], [0], [1], [0, 0, 1, 1], [], []>} : vector<32x32xf32>, vector<32x128xf32>, vector<32x128xf32> -> vector<32x128xf32>
    %190 = arith.subf %188, %189 : vector<32x128xf32>
    %191 = arith.mulf %190, %190 : vector<32x128xf32>
    %cst_39 = arith.constant dense<0.000000e+00> : vector<32x128xf32>
    %192 = tpu.matmul %1, %191, %cst_39 {dimension_numbers = #tpu.dot_dimension_numbers<[1], [0], [0], [1], [0, 0, 1, 1], [], []>} : vector<32x32xf32>, vector<32x128xf32>, vector<32x128xf32> -> vector<32x128xf32>
    %cst_40 = arith.constant 9.99999974E-6 : f32
    %193 = vector.broadcast %cst_40 : f32 to vector<32x128xf32>
    %194 = arith.addf %192, %193 : vector<32x128xf32>
    %195 = math.rsqrt %194 : vector<32x128xf32>
    %196 = arith.mulf %190, %195 : vector<32x128xf32>
    %197 = vector.broadcast %9 : vector<32x1xf32> to vector<32x128xf32>
    %198 = arith.mulf %196, %197 : vector<32x128xf32>
    %199 = vector.broadcast %10 : vector<32x1xf32> to vector<32x128xf32>
    %200 = arith.addf %198, %199 : vector<32x128xf32>
    %c0_41 = arith.constant 0 : index
    %c0_42 = arith.constant 0 : index
    %201 = vector.load %arg11[%c0_41, %c0_42] : memref<128x32xbf16, #tpu.memory_space<vmem>>, vector<128x32xbf16>
    %202 = arith.truncf %200 : vector<32x128xf32> to vector<32x128xbf16>
    %cst_43 = arith.constant dense<0.000000e+00> : vector<128x128xf32>
    %203 = tpu.matmul %201, %202, %cst_43 {dimension_numbers = #tpu.dot_dimension_numbers<[1], [0], [0], [1], [0, 0, 1, 1], [], []>} : vector<128x32xbf16>, vector<32x128xbf16>, vector<128x128xf32> -> vector<128x128xf32>
    %204 = vector.extract_strided_slice %4 {offsets = [0, 0], sizes = [128, 1], strides = [1, 1]} : vector<128x29xf32> to vector<128x1xf32>
    %205 = vector.broadcast %204 : vector<128x1xf32> to vector<128x128xf32>
    %206 = arith.addf %203, %205 : vector<128x128xf32>
    %207 = vector.extract_strided_slice %4 {offsets = [0, 1], sizes = [128, 1], strides = [1, 1]} : vector<128x29xf32> to vector<128x1xf32>
    %c9_i32_44 = arith.constant 9 : i32
    %208 = tpu.dynamic_rotate %206 by %c9_i32_44 dim 1 : vector<128x128xf32>, i32 -> vector<128x128xf32>
    %209 = vector.extract_strided_slice %5 {offsets = [0, 0], sizes = [1, 128], strides = [1, 1]} : vector<9x128xf32> to vector<1x128xf32>
    %210 = vector.broadcast %209 : vector<1x128xf32> to vector<128x128xf32>
    %211 = arith.mulf %208, %210 : vector<128x128xf32>
    %212 = vector.extract_strided_slice %4 {offsets = [0, 2], sizes = [128, 1], strides = [1, 1]} : vector<128x29xf32> to vector<128x1xf32>
    %c1_i32_45 = arith.constant 1 : i32
    %213 = tpu.dynamic_rotate %211 by %c1_i32_45 dim 0 : vector<128x128xf32>, i32 -> vector<128x128xf32>
    %214 = vector.broadcast %212 : vector<128x1xf32> to vector<128x128xf32>
    %215 = arith.mulf %213, %214 : vector<128x128xf32>
    %216 = vector.broadcast %207 : vector<128x1xf32> to vector<128x128xf32>
    %217 = arith.addf %216, %215 : vector<128x128xf32>
    %218 = vector.extract_strided_slice %4 {offsets = [0, 3], sizes = [128, 1], strides = [1, 1]} : vector<128x29xf32> to vector<128x1xf32>
    %219 = vector.broadcast %218 : vector<128x1xf32> to vector<128x128xf32>
    %220 = arith.mulf %211, %219 : vector<128x128xf32>
    %221 = arith.addf %217, %220 : vector<128x128xf32>
    %222 = vector.extract_strided_slice %4 {offsets = [0, 4], sizes = [128, 1], strides = [1, 1]} : vector<128x29xf32> to vector<128x1xf32>
    %c127_i32_46 = arith.constant 127 : i32
    %223 = tpu.dynamic_rotate %211 by %c127_i32_46 dim 0 : vector<128x128xf32>, i32 -> vector<128x128xf32>
    %224 = vector.broadcast %222 : vector<128x1xf32> to vector<128x128xf32>
    %225 = arith.mulf %223, %224 : vector<128x128xf32>
    %226 = arith.addf %221, %225 : vector<128x128xf32>
    %c8_i32_47 = arith.constant 8 : i32
    %227 = tpu.dynamic_rotate %206 by %c8_i32_47 dim 1 : vector<128x128xf32>, i32 -> vector<128x128xf32>
    %228 = vector.extract_strided_slice %5 {offsets = [1, 0], sizes = [1, 128], strides = [1, 1]} : vector<9x128xf32> to vector<1x128xf32>
    %229 = vector.broadcast %228 : vector<1x128xf32> to vector<128x128xf32>
    %230 = arith.mulf %227, %229 : vector<128x128xf32>
    %231 = vector.extract_strided_slice %4 {offsets = [0, 5], sizes = [128, 1], strides = [1, 1]} : vector<128x29xf32> to vector<128x1xf32>
    %c1_i32_48 = arith.constant 1 : i32
    %232 = tpu.dynamic_rotate %230 by %c1_i32_48 dim 0 : vector<128x128xf32>, i32 -> vector<128x128xf32>
    %233 = vector.broadcast %231 : vector<128x1xf32> to vector<128x128xf32>
    %234 = arith.mulf %232, %233 : vector<128x128xf32>
    %235 = arith.addf %226, %234 : vector<128x128xf32>
    %236 = vector.extract_strided_slice %4 {offsets = [0, 6], sizes = [128, 1], strides = [1, 1]} : vector<128x29xf32> to vector<128x1xf32>
    %237 = vector.broadcast %236 : vector<128x1xf32> to vector<128x128xf32>
    %238 = arith.mulf %230, %237 : vector<128x128xf32>
    %239 = arith.addf %235, %238 : vector<128x128xf32>
    %240 = vector.extract_strided_slice %4 {offsets = [0, 7], sizes = [128, 1], strides = [1, 1]} : vector<128x29xf32> to vector<128x1xf32>
    %c127_i32_49 = arith.constant 127 : i32
    %241 = tpu.dynamic_rotate %230 by %c127_i32_49 dim 0 : vector<128x128xf32>, i32 -> vector<128x128xf32>
    %242 = vector.broadcast %240 : vector<128x1xf32> to vector<128x128xf32>
    %243 = arith.mulf %241, %242 : vector<128x128xf32>
    %244 = arith.addf %239, %243 : vector<128x128xf32>
    %c7_i32_50 = arith.constant 7 : i32
    %245 = tpu.dynamic_rotate %206 by %c7_i32_50 dim 1 : vector<128x128xf32>, i32 -> vector<128x128xf32>
    %246 = vector.extract_strided_slice %5 {offsets = [2, 0], sizes = [1, 128], strides = [1, 1]} : vector<9x128xf32> to vector<1x128xf32>
    %247 = vector.broadcast %246 : vector<1x128xf32> to vector<128x128xf32>
    %248 = arith.mulf %245, %247 : vector<128x128xf32>
    %249 = vector.extract_strided_slice %4 {offsets = [0, 8], sizes = [128, 1], strides = [1, 1]} : vector<128x29xf32> to vector<128x1xf32>
    %c1_i32_51 = arith.constant 1 : i32
    %250 = tpu.dynamic_rotate %248 by %c1_i32_51 dim 0 : vector<128x128xf32>, i32 -> vector<128x128xf32>
    %251 = vector.broadcast %249 : vector<128x1xf32> to vector<128x128xf32>
    %252 = arith.mulf %250, %251 : vector<128x128xf32>
    %253 = arith.addf %244, %252 : vector<128x128xf32>
    %254 = vector.extract_strided_slice %4 {offsets = [0, 9], sizes = [128, 1], strides = [1, 1]} : vector<128x29xf32> to vector<128x1xf32>
    %255 = vector.broadcast %254 : vector<128x1xf32> to vector<128x128xf32>
    %256 = arith.mulf %248, %255 : vector<128x128xf32>
    %257 = arith.addf %253, %256 : vector<128x128xf32>
    %258 = vector.extract_strided_slice %4 {offsets = [0, 10], sizes = [128, 1], strides = [1, 1]} : vector<128x29xf32> to vector<128x1xf32>
    %c127_i32_52 = arith.constant 127 : i32
    %259 = tpu.dynamic_rotate %248 by %c127_i32_52 dim 0 : vector<128x128xf32>, i32 -> vector<128x128xf32>
    %260 = vector.broadcast %258 : vector<128x1xf32> to vector<128x128xf32>
    %261 = arith.mulf %259, %260 : vector<128x128xf32>
    %262 = arith.addf %257, %261 : vector<128x128xf32>
    %c1_i32_53 = arith.constant 1 : i32
    %263 = tpu.dynamic_rotate %206 by %c1_i32_53 dim 1 : vector<128x128xf32>, i32 -> vector<128x128xf32>
    %264 = vector.extract_strided_slice %5 {offsets = [3, 0], sizes = [1, 128], strides = [1, 1]} : vector<9x128xf32> to vector<1x128xf32>
    %265 = vector.broadcast %264 : vector<1x128xf32> to vector<128x128xf32>
    %266 = arith.mulf %263, %265 : vector<128x128xf32>
    %267 = vector.extract_strided_slice %4 {offsets = [0, 11], sizes = [128, 1], strides = [1, 1]} : vector<128x29xf32> to vector<128x1xf32>
    %c1_i32_54 = arith.constant 1 : i32
    %268 = tpu.dynamic_rotate %266 by %c1_i32_54 dim 0 : vector<128x128xf32>, i32 -> vector<128x128xf32>
    %269 = vector.broadcast %267 : vector<128x1xf32> to vector<128x128xf32>
    %270 = arith.mulf %268, %269 : vector<128x128xf32>
    %271 = arith.addf %262, %270 : vector<128x128xf32>
    %272 = vector.extract_strided_slice %4 {offsets = [0, 12], sizes = [128, 1], strides = [1, 1]} : vector<128x29xf32> to vector<128x1xf32>
    %273 = vector.broadcast %272 : vector<128x1xf32> to vector<128x128xf32>
    %274 = arith.mulf %266, %273 : vector<128x128xf32>
    %275 = arith.addf %271, %274 : vector<128x128xf32>
    %276 = vector.extract_strided_slice %4 {offsets = [0, 13], sizes = [128, 1], strides = [1, 1]} : vector<128x29xf32> to vector<128x1xf32>
    %c127_i32_55 = arith.constant 127 : i32
    %277 = tpu.dynamic_rotate %266 by %c127_i32_55 dim 0 : vector<128x128xf32>, i32 -> vector<128x128xf32>
    %278 = vector.broadcast %276 : vector<128x1xf32> to vector<128x128xf32>
    %279 = arith.mulf %277, %278 : vector<128x128xf32>
    %280 = arith.addf %275, %279 : vector<128x128xf32>
    %281 = vector.extract_strided_slice %4 {offsets = [0, 14], sizes = [128, 1], strides = [1, 1]} : vector<128x29xf32> to vector<128x1xf32>
    %c1_i32_56 = arith.constant 1 : i32
    %282 = tpu.dynamic_rotate %206 by %c1_i32_56 dim 0 : vector<128x128xf32>, i32 -> vector<128x128xf32>
    %283 = vector.broadcast %281 : vector<128x1xf32> to vector<128x128xf32>
    %284 = arith.mulf %282, %283 : vector<128x128xf32>
    %285 = arith.addf %280, %284 : vector<128x128xf32>
    %286 = vector.extract_strided_slice %4 {offsets = [0, 15], sizes = [128, 1], strides = [1, 1]} : vector<128x29xf32> to vector<128x1xf32>
    %287 = vector.broadcast %286 : vector<128x1xf32> to vector<128x128xf32>
    %288 = arith.mulf %206, %287 : vector<128x128xf32>
    %289 = arith.addf %285, %288 : vector<128x128xf32>
    %290 = vector.extract_strided_slice %4 {offsets = [0, 16], sizes = [128, 1], strides = [1, 1]} : vector<128x29xf32> to vector<128x1xf32>
    %c127_i32_57 = arith.constant 127 : i32
    %291 = tpu.dynamic_rotate %206 by %c127_i32_57 dim 0 : vector<128x128xf32>, i32 -> vector<128x128xf32>
    %292 = vector.broadcast %290 : vector<128x1xf32> to vector<128x128xf32>
    %293 = arith.mulf %291, %292 : vector<128x128xf32>
    %294 = arith.addf %289, %293 : vector<128x128xf32>
    %c127_i32_58 = arith.constant 127 : i32
    %295 = tpu.dynamic_rotate %206 by %c127_i32_58 dim 1 : vector<128x128xf32>, i32 -> vector<128x128xf32>
    %296 = vector.extract_strided_slice %5 {offsets = [5, 0], sizes = [1, 128], strides = [1, 1]} : vector<9x128xf32> to vector<1x128xf32>
    %297 = vector.broadcast %296 : vector<1x128xf32> to vector<128x128xf32>
    %298 = arith.mulf %295, %297 : vector<128x128xf32>
    %299 = vector.extract_strided_slice %4 {offsets = [0, 17], sizes = [128, 1], strides = [1, 1]} : vector<128x29xf32> to vector<128x1xf32>
    %c1_i32_59 = arith.constant 1 : i32
    %300 = tpu.dynamic_rotate %298 by %c1_i32_59 dim 0 : vector<128x128xf32>, i32 -> vector<128x128xf32>
    %301 = vector.broadcast %299 : vector<128x1xf32> to vector<128x128xf32>
    %302 = arith.mulf %300, %301 : vector<128x128xf32>
    %303 = arith.addf %294, %302 : vector<128x128xf32>
    %304 = vector.extract_strided_slice %4 {offsets = [0, 18], sizes = [128, 1], strides = [1, 1]} : vector<128x29xf32> to vector<128x1xf32>
    %305 = vector.broadcast %304 : vector<128x1xf32> to vector<128x128xf32>
    %306 = arith.mulf %298, %305 : vector<128x128xf32>
    %307 = arith.addf %303, %306 : vector<128x128xf32>
    %308 = vector.extract_strided_slice %4 {offsets = [0, 19], sizes = [128, 1], strides = [1, 1]} : vector<128x29xf32> to vector<128x1xf32>
    %c127_i32_60 = arith.constant 127 : i32
    %309 = tpu.dynamic_rotate %298 by %c127_i32_60 dim 0 : vector<128x128xf32>, i32 -> vector<128x128xf32>
    %310 = vector.broadcast %308 : vector<128x1xf32> to vector<128x128xf32>
    %311 = arith.mulf %309, %310 : vector<128x128xf32>
    %312 = arith.addf %307, %311 : vector<128x128xf32>
    %c121_i32_61 = arith.constant 121 : i32
    %313 = tpu.dynamic_rotate %206 by %c121_i32_61 dim 1 : vector<128x128xf32>, i32 -> vector<128x128xf32>
    %314 = vector.extract_strided_slice %5 {offsets = [6, 0], sizes = [1, 128], strides = [1, 1]} : vector<9x128xf32> to vector<1x128xf32>
    %315 = vector.broadcast %314 : vector<1x128xf32> to vector<128x128xf32>
    %316 = arith.mulf %313, %315 : vector<128x128xf32>
    %317 = vector.extract_strided_slice %4 {offsets = [0, 20], sizes = [128, 1], strides = [1, 1]} : vector<128x29xf32> to vector<128x1xf32>
    %c1_i32_62 = arith.constant 1 : i32
    %318 = tpu.dynamic_rotate %316 by %c1_i32_62 dim 0 : vector<128x128xf32>, i32 -> vector<128x128xf32>
    %319 = vector.broadcast %317 : vector<128x1xf32> to vector<128x128xf32>
    %320 = arith.mulf %318, %319 : vector<128x128xf32>
    %321 = arith.addf %312, %320 : vector<128x128xf32>
    %322 = vector.extract_strided_slice %4 {offsets = [0, 21], sizes = [128, 1], strides = [1, 1]} : vector<128x29xf32> to vector<128x1xf32>
    %323 = vector.broadcast %322 : vector<128x1xf32> to vector<128x128xf32>
    %324 = arith.mulf %316, %323 : vector<128x128xf32>
    %325 = arith.addf %321, %324 : vector<128x128xf32>
    %326 = vector.extract_strided_slice %4 {offsets = [0, 22], sizes = [128, 1], strides = [1, 1]} : vector<128x29xf32> to vector<128x1xf32>
    %c127_i32_63 = arith.constant 127 : i32
    %327 = tpu.dynamic_rotate %316 by %c127_i32_63 dim 0 : vector<128x128xf32>, i32 -> vector<128x128xf32>
    %328 = vector.broadcast %326 : vector<128x1xf32> to vector<128x128xf32>
    %329 = arith.mulf %327, %328 : vector<128x128xf32>
    %330 = arith.addf %325, %329 : vector<128x128xf32>
    %c120_i32_64 = arith.constant 120 : i32
    %331 = tpu.dynamic_rotate %206 by %c120_i32_64 dim 1 : vector<128x128xf32>, i32 -> vector<128x128xf32>
    %332 = vector.extract_strided_slice %5 {offsets = [7, 0], sizes = [1, 128], strides = [1, 1]} : vector<9x128xf32> to vector<1x128xf32>
    %333 = vector.broadcast %332 : vector<1x128xf32> to vector<128x128xf32>
    %334 = arith.mulf %331, %333 : vector<128x128xf32>
    %335 = vector.extract_strided_slice %4 {offsets = [0, 23], sizes = [128, 1], strides = [1, 1]} : vector<128x29xf32> to vector<128x1xf32>
    %c1_i32_65 = arith.constant 1 : i32
    %336 = tpu.dynamic_rotate %334 by %c1_i32_65 dim 0 : vector<128x128xf32>, i32 -> vector<128x128xf32>
    %337 = vector.broadcast %335 : vector<128x1xf32> to vector<128x128xf32>
    %338 = arith.mulf %336, %337 : vector<128x128xf32>
    %339 = arith.addf %330, %338 : vector<128x128xf32>
    %340 = vector.extract_strided_slice %4 {offsets = [0, 24], sizes = [128, 1], strides = [1, 1]} : vector<128x29xf32> to vector<128x1xf32>
    %341 = vector.broadcast %340 : vector<128x1xf32> to vector<128x128xf32>
    %342 = arith.mulf %334, %341 : vector<128x128xf32>
    %343 = arith.addf %339, %342 : vector<128x128xf32>
    %344 = vector.extract_strided_slice %4 {offsets = [0, 25], sizes = [128, 1], strides = [1, 1]} : vector<128x29xf32> to vector<128x1xf32>
    %c127_i32_66 = arith.constant 127 : i32
    %345 = tpu.dynamic_rotate %334 by %c127_i32_66 dim 0 : vector<128x128xf32>, i32 -> vector<128x128xf32>
    %346 = vector.broadcast %344 : vector<128x1xf32> to vector<128x128xf32>
    %347 = arith.mulf %345, %346 : vector<128x128xf32>
    %348 = arith.addf %343, %347 : vector<128x128xf32>
    %c119_i32_67 = arith.constant 119 : i32
    %349 = tpu.dynamic_rotate %206 by %c119_i32_67 dim 1 : vector<128x128xf32>, i32 -> vector<128x128xf32>
    %350 = vector.extract_strided_slice %5 {offsets = [8, 0], sizes = [1, 128], strides = [1, 1]} : vector<9x128xf32> to vector<1x128xf32>
    %351 = vector.broadcast %350 : vector<1x128xf32> to vector<128x128xf32>
    %352 = arith.mulf %349, %351 : vector<128x128xf32>
    %353 = vector.extract_strided_slice %4 {offsets = [0, 26], sizes = [128, 1], strides = [1, 1]} : vector<128x29xf32> to vector<128x1xf32>
    %c1_i32_68 = arith.constant 1 : i32
    %354 = tpu.dynamic_rotate %352 by %c1_i32_68 dim 0 : vector<128x128xf32>, i32 -> vector<128x128xf32>
    %355 = vector.broadcast %353 : vector<128x1xf32> to vector<128x128xf32>
    %356 = arith.mulf %354, %355 : vector<128x128xf32>
    %357 = arith.addf %348, %356 : vector<128x128xf32>
    %358 = vector.extract_strided_slice %4 {offsets = [0, 27], sizes = [128, 1], strides = [1, 1]} : vector<128x29xf32> to vector<128x1xf32>
    %359 = vector.broadcast %358 : vector<128x1xf32> to vector<128x128xf32>
    %360 = arith.mulf %352, %359 : vector<128x128xf32>
    %361 = arith.addf %357, %360 : vector<128x128xf32>
    %362 = vector.extract_strided_slice %4 {offsets = [0, 28], sizes = [128, 1], strides = [1, 1]} : vector<128x29xf32> to vector<128x1xf32>
    %c127_i32_69 = arith.constant 127 : i32
    %363 = tpu.dynamic_rotate %352 by %c127_i32_69 dim 0 : vector<128x128xf32>, i32 -> vector<128x128xf32>
    %364 = vector.broadcast %362 : vector<128x1xf32> to vector<128x128xf32>
    %365 = arith.mulf %363, %364 : vector<128x128xf32>
    %366 = arith.addf %361, %365 : vector<128x128xf32>
    %367 = vector.extract_strided_slice %366 {offsets = [0, 0], sizes = [64, 128], strides = [1, 1]} : vector<128x128xf32> to vector<64x128xf32>
    %368 = vector.extract_strided_slice %366 {offsets = [64, 0], sizes = [64, 128], strides = [1, 1]} : vector<128x128xf32> to vector<64x128xf32>
    %cst_70 = arith.constant 5.000000e-01 : f32
    %369 = vector.broadcast %cst_70 : f32 to vector<64x128xf32>
    %370 = arith.mulf %369, %367 : vector<64x128xf32>
    %cst_71 = arith.constant 0.707106769 : f32
    %371 = vector.broadcast %cst_71 : f32 to vector<64x128xf32>
    %372 = arith.mulf %367, %371 : vector<64x128xf32>
    %373 = math.erf %372 : vector<64x128xf32>
    %cst_72 = arith.constant 1.000000e+00 : f32
    %374 = vector.broadcast %cst_72 : f32 to vector<64x128xf32>
    %375 = arith.addf %374, %373 : vector<64x128xf32>
    %376 = arith.mulf %370, %375 : vector<64x128xf32>
    %377 = arith.mulf %376, %368 : vector<64x128xf32>
    %c0_73 = arith.constant 0 : index
    %c0_74 = arith.constant 0 : index
    %378 = vector.load %arg12[%c0_73, %c0_74] : memref<32x64xbf16, #tpu.memory_space<vmem>>, vector<32x64xbf16>
    %379 = arith.truncf %377 : vector<64x128xf32> to vector<64x128xbf16>
    %cst_75 = arith.constant dense<0.000000e+00> : vector<32x128xf32>
    %380 = tpu.matmul %378, %379, %cst_75 {dimension_numbers = #tpu.dot_dimension_numbers<[1], [0], [0], [1], [0, 0, 1, 1], [], []>} : vector<32x64xbf16>, vector<64x128xbf16>, vector<32x128xf32> -> vector<32x128xf32>
    %381 = vector.broadcast %12 : vector<32x1xf32> to vector<32x128xf32>
    %382 = arith.addf %380, %381 : vector<32x128xf32>
    %383 = arith.addf %200, %382 : vector<32x128xf32>
    %c0_76 = arith.constant 0 : index
    %c0_77 = arith.constant 0 : index
    %384 = vector.load %arg13[%c0_76, %c0_77] : memref<32x128xf32, #tpu.memory_space<vmem>>, vector<32x128xf32>
    tpu.vector_store %arg13[%c0_76, %c0_77], %383 {strides = array<i32>} : memref<32x128xf32, #tpu.memory_space<vmem>>, vector<32x128xf32>,
    return
  }
  func.func @transform_0(%arg0: i32) -> (i32, i32) {
    %c0_i32 = arith.constant 0 : i32
    %c0_i32_0 = arith.constant 0 : i32
    return %c0_i32, %arg0 : i32, i32
  }
  func.func @transform_1(%arg0: i32) -> (i32, i32) {
    %c0_i32 = arith.constant 0 : i32
    %c0_i32_0 = arith.constant 0 : i32
    %c0_i32_1 = arith.constant 0 : i32
    return %c0_i32, %c0_i32_0 : i32, i32
  }
  func.func @transform_2(%arg0: i32) -> (i32, i32) {
    %c0_i32 = arith.constant 0 : i32
    %c0_i32_0 = arith.constant 0 : i32
    %c0_i32_1 = arith.constant 0 : i32
    return %c0_i32, %c0_i32_0 : i32, i32
  }
  func.func @transform_3(%arg0: i32) -> (i32, i32) {
    %c0_i32 = arith.constant 0 : i32
    %c0_i32_0 = arith.constant 0 : i32
    %c0_i32_1 = arith.constant 0 : i32
    return %c0_i32, %c0_i32_0 : i32, i32
  }
  func.func @transform_4(%arg0: i32) -> (i32, i32) {
    %c0_i32 = arith.constant 0 : i32
    %c0_i32_0 = arith.constant 0 : i32
    %c0_i32_1 = arith.constant 0 : i32
    return %c0_i32, %c0_i32_0 : i32, i32
  }
  func.func @transform_5(%arg0: i32) -> (i32, i32) {
    %c0_i32 = arith.constant 0 : i32
    %c0_i32_0 = arith.constant 0 : i32
    %c0_i32_1 = arith.constant 0 : i32
    return %c0_i32, %c0_i32_0 : i32, i32
  }
  func.func @transform_6(%arg0: i32) -> (i32, i32) {
    %c0_i32 = arith.constant 0 : i32
    %c0_i32_0 = arith.constant 0 : i32
    %c0_i32_1 = arith.constant 0 : i32
    return %c0_i32, %c0_i32_0 : i32, i32
  }
  func.func @transform_7(%arg0: i32) -> (i32, i32) {
    %c0_i32 = arith.constant 0 : i32
    %c0_i32_0 = arith.constant 0 : i32
    %c0_i32_1 = arith.constant 0 : i32
    return %c0_i32, %c0_i32_0 : i32, i32
  }
  func.func @transform_8(%arg0: i32) -> (i32, i32) {
    %c0_i32 = arith.constant 0 : i32
    %c0_i32_0 = arith.constant 0 : i32
    %c0_i32_1 = arith.constant 0 : i32
    return %c0_i32, %c0_i32_0 : i32, i32
  }
  func.func @transform_9(%arg0: i32) -> (i32, i32) {
    %c0_i32 = arith.constant 0 : i32
    %c0_i32_0 = arith.constant 0 : i32
    %c0_i32_1 = arith.constant 0 : i32
    return %c0_i32, %c0_i32_0 : i32, i32
  }
  func.func @transform_10(%arg0: i32) -> (i32, i32) {
    %c0_i32 = arith.constant 0 : i32
    %c0_i32_0 = arith.constant 0 : i32
    %c0_i32_1 = arith.constant 0 : i32
    return %c0_i32, %c0_i32_0 : i32, i32
  }
  func.func @transform_11(%arg0: i32) -> (i32, i32) {
    %c0_i32 = arith.constant 0 : i32
    %c0_i32_0 = arith.constant 0 : i32
    %c0_i32_1 = arith.constant 0 : i32
    return %c0_i32, %c0_i32_0 : i32, i32
  }
  func.func @transform_12(%arg0: i32) -> (i32, i32) {
    %c0_i32 = arith.constant 0 : i32
    %c0_i32_0 = arith.constant 0 : i32
    return %c0_i32, %arg0 : i32, i32
  }
}

</mosaic_0001>

<llo_original>
// kernel: tile.9
$region0: #{tile.9}
  %s0 = inlined_call_operand.vmem [shape: f32[9,2,64], index: 0, kind: input, shape index: {}]
  %s1 = inlined_call_operand.vmem [shape: f32[9,128], index: 1, kind: output, shape index: {}]
  $region1: #{tile.9} parent=0
    #allocation0 [shape = 'u8[36864]{0}', space=vmem, size = 0x9000, scoped, tag = 'scoped mem for input reshape']
    %s3 = sshll.u32 1, 2
    %s4 = ssub.s32 %s3, 1
    %s5 = smul.addr 2, 8
    %s6 = scalar_lea.vmem %s0, %s5
    %v7 = vld [vmem:[%s6] sm:%s4]
    %s8 = scalar_lea.vmem [#allocation0], 64
    %9 = vst [vmem:[%s8] sm:%s4] %v7
    %s10 = smul.addr 2, 7
    %s11 = scalar_lea.vmem %s0, %s10
    %v12 = vld [vmem:[%s11] sm:%s4]
    %s13 = scalar_lea.vmem [#allocation0], 56
    %14 = vst [vmem:[%s13] sm:%s4] %v12
    %s15 = smul.addr 2, 6
    %s16 = scalar_lea.vmem %s0, %s15
    %v17 = vld [vmem:[%s16] sm:%s4]
    %s18 = scalar_lea.vmem [#allocation0], 48
    %19 = vst [vmem:[%s18] sm:%s4] %v17
    %s20 = smul.addr 2, 5
    %s21 = scalar_lea.vmem %s0, %s20
    %v22 = vld [vmem:[%s21] sm:%s4]
    %s23 = scalar_lea.vmem [#allocation0], 40
    %24 = vst [vmem:[%s23] sm:%s4] %v22
    %s25 = smul.addr 2, 4
    %s26 = scalar_lea.vmem %s0, %s25
    %v27 = vld [vmem:[%s26] sm:%s4]
    %s28 = scalar_lea.vmem [#allocation0], 32
    %29 = vst [vmem:[%s28] sm:%s4] %v27
    %s30 = smul.addr 2, 3
    %s31 = scalar_lea.vmem %s0, %s30
    %v32 = vld [vmem:[%s31] sm:%s4]
    %s33 = scalar_lea.vmem [#allocation0], 24
    %34 = vst [vmem:[%s33] sm:%s4] %v32
    %s35 = smul.addr 2, 2
    %s36 = scalar_lea.vmem %s0, %s35
    %v37 = vld [vmem:[%s36] sm:%s4]
    %s38 = scalar_lea.vmem [#allocation0], 16
    %39 = vst [vmem:[%s38] sm:%s4] %v37
    %s40 = scalar_lea.vmem %s0, 2
    %v41 = vld [vmem:[%s40] sm:%s4]
    %s42 = scalar_lea.vmem [#allocation0], 8
    %43 = vst [vmem:[%s42] sm:%s4] %v41
    %v44 = vld [vmem:[%s0] sm:%s4]
    %45 = vst [vmem:[#allocation0] sm:%s4] %v44
    %v46 = vld [vmem:[#allocation0] ss:$8 sm:$0xf]
    %v47 = vld [vmem:[#allocation0] ss:$8 sm:$0xf0]
    %vm48 = vcmask 1047556
    %v49 = vsel %vm48, %v47, %v46
    %vm50 = vcmask 523264
    %51 = vst.msk [vmem:[%s1] sm:$0xff] %vm50, %v49
    %s52 = scalar_lea.vmem [#allocation0], 64
    %v53 = vld [vmem:[%s52] sm:$0x1]
    %vm54 = vcmask 523264
    %s55 = scalar_lea.vmem %s1, 8
    %56 = vst.msk [vmem:[%s55] sm:$0x1] %vm54, %v53
    %s57 = scalar_lea.vmem [#allocation0], 1
    %v58 = vld [vmem:[%s57] ss:$8 sm:$0xf]
    %s59 = scalar_lea.vmem [#allocation0], 1
    %v60 = vld [vmem:[%s59] ss:$8 sm:$0xf0]
    %vm61 = vcmask 1047556
    %v62 = vsel %vm61, %v60, %v58
    %63 = vrot.lane.b32.xlu0 %v62, 64
    %v64 = vpop.permute.xlu0 %63
    %vm65 = vcmask 1048064
    %66 = vst.msk [vmem:[%s1] sm:$0xff] %vm65, %v64
    %s67 = scalar_lea.vmem [#allocation0], 65
    %v68 = vld [vmem:[%s67] sm:$0x1]
    %69 = vrot.lane.b32.xlu0 %v68, 64
    %v70 = vpop.permute.xlu0 %69
    %vm71 = vcmask 1048064
    %s72 = scalar_lea.vmem %s1, 8
    %73 = vst.msk [vmem:[%s72] sm:$0x1] %vm71, %v70

// kernel: transformer_block_forward.1
$region0: #{transformer_block_forward.1}
  #allocation0 [shape = 'u32[]', space=smem, size = 0x4, offset = 0x4, fixed_abs, tag = 'smem constant byte address 0x4 - core index']
  #allocation1 [shape = 'u32[144,128]{1,0:T(1,128)}', space=vmem, size = 0x12000, scoped, tag = 'internal scratch']
  %s0 = inlined_call_operand.vmem [shape: f32[32,128], index: 0, kind: input, shape index: {}]
  %s1 = inlined_call_operand.vmem [shape: f32[32,32], index: 1, kind: input, shape index: {}]
  %s2 = inlined_call_operand.vmem [shape: f32[32,7], index: 2, kind: input, shape index: {}]
  %s3 = inlined_call_operand.vmem [shape: f32[96,12], index: 3, kind: input, shape index: {}]
  %s4 = inlined_call_operand.vmem [shape: f32[128,29], index: 4, kind: input, shape index: {}]
  %s5 = inlined_call_operand.vmem [shape: f32[9,128], index: 5, kind: input, shape index: {}]
  %s6 = inlined_call_operand.vmem [shape: f32[32,32], index: 6, kind: input, shape index: {}]
  %s7 = inlined_call_operand.vmem [shape: bf16[96,32], index: 7, kind: input, shape index: {}]
  %s8 = inlined_call_operand.vmem [shape: bf16[96,96], index: 8, kind: input, shape index: {}]
  %s9 = inlined_call_operand.vmem [shape: bf16[32,32], index: 9, kind: input, shape index: {}]
  %s10 = inlined_call_operand.vmem [shape: bf16[128,32], index: 10, kind: input, shape index: {}]
  %s11 = inlined_call_operand.vmem [shape: bf16[32,64], index: 11, kind: input, shape index: {}]
  %s12 = inlined_call_operand.vmem [shape: f32[32,128], index: 12, kind: output, shape index: {}]
  %s13 = sld [smem:[#allocation0]]
  $region58: #{transformer_block_forward.1} parent=0
    _
  %s15 = ssub.s32 1, %s13
  %s16 = scalar_select 0, %s15, %s13
  // Predicated region
  $region2: #{transformer_block_forward.1} parent=0 // pred_check
    _
  $region3: #{transformer_block_forward.1} parent=0 // pred_check_branch
    %18 = sbr.rel (0) target = $region5
  $region4: #{transformer_block_forward.1} parent=0 // pred_region
    _
  $region5: #{transformer_block_forward.1} parent=0 // pred_fallthru
    _
  // Predicated region
  $region6: #{transformer_block_forward.1} parent=0 // pred_check
    _
  $region7: #{transformer_block_forward.1} parent=0 // pred_check_branch
    %20 = sbr.rel (0) target = $region9
  $region8: #{transformer_block_forward.1} parent=0 // pred_region
    _
  $region9: #{transformer_block_forward.1} parent=0 // pred_fallthru
    _
  // Predicated region
  $region10: #{transformer_block_forward.1} parent=0 // pred_check
    _
  $region11: #{transformer_block_forward.1} parent=0 // pred_check_branch
    %22 = sbr.rel (0) target = $region13
  $region12: #{transformer_block_forward.1} parent=0 // pred_region
    _
  $region13: #{transformer_block_forward.1} parent=0 // pred_fallthru
    _
  // Predicated region
  $region14: #{transformer_block_forward.1} parent=0 // pred_check
    _
  $region15: #{transformer_block_forward.1} parent=0 // pred_check_branch
    %24 = sbr.rel (0) target = $region17
  $region16: #{transformer_block_forward.1} parent=0 // pred_region
    _
  $region17: #{transformer_block_forward.1} parent=0 // pred_fallthru
    _
  // Predicated region
  $region18: #{transformer_block_forward.1} parent=0 // pred_check
    _
  $region19: #{transformer_block_forward.1} parent=0 // pred_check_branch
    %26 = sbr.rel (0) target = $region21
  $region20: #{transformer_block_forward.1} parent=0 // pred_region
    _
  $region21: #{transformer_block_forward.1} parent=0 // pred_fallthru
    _
  // Predicated region
  $region22: #{transformer_block_forward.1} parent=0 // pred_check
    _
  $region23: #{transformer_block_forward.1} parent=0 // pred_check_branch
    %28 = sbr.rel (0) target = $region25
  $region24: #{transformer_block_forward.1} parent=0 // pred_region
    _
  $region25: #{transformer_block_forward.1} parent=0 // pred_fallthru
    _
  // Predicated region
  $region26: #{transformer_block_forward.1} parent=0 // pred_check
    _
  $region27: #{transformer_block_forward.1} parent=0 // pred_check_branch
    %30 = sbr.rel (0) target = $region29
  $region28: #{transformer_block_forward.1} parent=0 // pred_region
    _
  $region29: #{transformer_block_forward.1} parent=0 // pred_fallthru
    _
  // Predicated region
  $region30: #{transformer_block_forward.1} parent=0 // pred_check
    _
  $region31: #{transformer_block_forward.1} parent=0 // pred_check_branch
    %32 = sbr.rel (0) target = $region33
  $region32: #{transformer_block_forward.1} parent=0 // pred_region
    _
  $region33: #{transformer_block_forward.1} parent=0 // pred_fallthru
    _
  // Predicated region
  $region34: #{transformer_block_forward.1} parent=0 // pred_check
    _
  $region35: #{transformer_block_forward.1} parent=0 // pred_check_branch
    %34 = sbr.rel (0) target = $region37
  $region36: #{transformer_block_forward.1} parent=0 // pred_region
    _
  $region37: #{transformer_block_forward.1} parent=0 // pred_fallthru
    _
  // Predicated region
  $region38: #{transformer_block_forward.1} parent=0 // pred_check
    _
  $region39: #{transformer_block_forward.1} parent=0 // pred_check_branch
    %36 = sbr.rel (0) target = $region41
  $region40: #{transformer_block_forward.1} parent=0 // pred_region
    _
  $region41: #{transformer_block_forward.1} parent=0 // pred_fallthru
    _
  // Predicated region
  $region42: #{transformer_block_forward.1} parent=0 // pred_check
    _
  $region43: #{transformer_block_forward.1} parent=0 // pred_check_branch
    %38 = sbr.rel (0) target = $region45
  $region44: #{transformer_block_forward.1} parent=0 // pred_region
    _
  $region45: #{transformer_block_forward.1} parent=0 // pred_fallthru
    _
  // Predicated region
  $region46: #{transformer_block_forward.1} parent=0 // pred_check
    _
  $region47: #{transformer_block_forward.1} parent=0 // pred_check_branch
    %40 = sbr.rel (0) target = $region49
  $region48: #{transformer_block_forward.1} parent=0 // pred_region
    _
  $region49: #{transformer_block_forward.1} parent=0 // pred_fallthru
    _
  %v42 = vld [vmem:[%s0] sm:$0xff]
  %v43 = vld [vmem:[%s0 + $0x8] sm:$0xff]
  %v44 = vld [vmem:[%s0 + $0x10] sm:$0xff]
  %v45 = vld [vmem:[%s0 + $0x18] sm:$0xff]
  %v46 = vld [vmem:[%s1] sm:$0xff]
  %v47 = vld [vmem:[%s1 + $0x8] sm:$0xff]
  %v48 = vld [vmem:[%s1 + $0x10] sm:$0xff]
  %v49 = vld [vmem:[%s1 + $0x18] sm:$0xff]
  %v50 = vld [vmem:[%s2] sm:$0xff]
  %v51 = vld [vmem:[%s2 + $0x8] sm:$0xff]
  %v52 = vld [vmem:[%s2 + $0x10] sm:$0xff]
  %v53 = vld [vmem:[%s2 + $0x18] sm:$0xff]
  %v54 = vld [vmem:[%s3] sm:$0xff]
  %v55 = vld [vmem:[%s3 + $0x8] sm:$0xff]
  %v56 = vld [vmem:[%s3 + $0x10] sm:$0xff]
  %v57 = vld [vmem:[%s3 + $0x18] sm:$0xff]
  %v58 = vld [vmem:[%s3 + $0x20] sm:$0xff]
  %v59 = vld [vmem:[%s3 + $0x28] sm:$0xff]
  %v60 = vld [vmem:[%s3 + $0x30] sm:$0xff]
  %v61 = vld [vmem:[%s3 + $0x38] sm:$0xff]
  %v62 = vld [vmem:[%s3 + $0x40] sm:$0xff]
  %v63 = vld [vmem:[%s3 + $0x48] sm:$0xff]
  %v64 = vld [vmem:[%s3 + $0x50] sm:$0xff]
  %v65 = vld [vmem:[%s3 + $0x58] sm:$0xff]
  %v66 = vld [vmem:[%s4] sm:$0xff]
  %v67 = vld [vmem:[%s4 + $0x8] sm:$0xff]
  %v68 = vld [vmem:[%s4 + $0x10] sm:$0xff]
  %v69 = vld [vmem:[%s4 + $0x18] sm:$0xff]
  %v70 = vld [vmem:[%s4 + $0x20] sm:$0xff]
  %v71 = vld [vmem:[%s4 + $0x28] sm:$0xff]
  %v72 = vld [vmem:[%s4 + $0x30] sm:$0xff]
  %v73 = vld [vmem:[%s4 + $0x38] sm:$0xff]
  %v74 = vld [vmem:[%s4 + $0x40] sm:$0xff]
  %v75 = vld [vmem:[%s4 + $0x48] sm:$0xff]
  %v76 = vld [vmem:[%s4 + $0x50] sm:$0xff]
  %v77 = vld [vmem:[%s4 + $0x58] sm:$0xff]
  %v78 = vld [vmem:[%s4 + $0x60] sm:$0xff]
  %v79 = vld [vmem:[%s4 + $0x68] sm:$0xff]
  %v80 = vld [vmem:[%s4 + $0x70] sm:$0xff]
  %v81 = vld [vmem:[%s4 + $0x78] sm:$0xff]
  %v82 = vld [vmem:[%s5] sm:$0xff]
  %v83 = vld [vmem:[%s5 + $0x8] sm:$0x1]
  %v84 = vld [vmem:[%s6] sm:$0xff]
  %v85 = vld [vmem:[%s6 + $0x8] sm:$0xff]
  %v86 = vld [vmem:[%s6 + $0x10] sm:$0xff]
  %v87 = vld [vmem:[%s6 + $0x18] sm:$0xff]
  %v88 = vand.u32 2147483647, %v50
  %v89 = vand.u32 2147483647, %v51
  %v90 = vand.u32 2147483647, %v52
  %v91 = vand.u32 2147483647, %v53
  %vm92 = vcmask 261120
  %v94 = vsel %vm92, %v46, 0
  %v97 = vsel %vm92, %v47, 0
  %v100 = vsel %vm92, %v48, 0
  %v103 = vsel %vm92, %v49, 0
  %105 = vmatprep.subr.mxu0 0.0
  %106 = vmatpush1.msra.mxu0 0.0
  %107 = vmatprep.subr.mxu0 0.0
  %108 = vmatpush1.msra.mxu0 0.0
  %109 = vmatprep.subr.mxu0 0.0
  %110 = vmatpush1.msra.mxu0 0.0
  %111 = vmatprep.subr.mxu0 0.0
  %112 = vmatpush1.msra.mxu0 0.0
  %113 = vmatprep.subr.mxu0 0.0
  %114 = vmatpush1.msra.mxu0 0.0
  %115 = vmatprep.subr.mxu0 0.0
  %116 = vmatpush1.msra.mxu0 0.0
  %117 = vmatprep.subr.mxu0 0.0
  %118 = vmatpush1.msra.mxu0 0.0
  %119 = vmatprep.subr.mxu0 0.0
  %120 = vmatpush1.msra.mxu0 0.0
  %121 = vmatprep.subr.mxu0 0.0
  %122 = vmatpush1.msra.mxu0 0.0
  %123 = vmatprep.subr.mxu0 0.0
  %124 = vmatpush1.msra.mxu0 0.0
  %125 = vmatprep.subr.mxu0 0.0
  %126 = vmatpush1.msra.mxu0 0.0
  %127 = vmatprep.subr.mxu0 0.0
  %128 = vmatpush1.msra.mxu0 0.0
  %129 = vmatprep.subr.mxu0 0.0
  %130 = vmatpush1.msra.mxu0 %v45
  %131 = vmatprep.subr.mxu0 0.0
  %132 = vmatpush1.msra.mxu0 %v44
  %133 = vmatprep.subr.mxu0 0.0
  %134 = vmatpush1.msra.mxu0 %v43
  %135 = vmatprep.subr.mxu0 0.0
  %136 = vmatpush1.msra.mxu0 %v42
  %137 = vmatprep.subr.mxu0 0.0
  %138 = vmatpush2.msra.mxu0 0.0
  %139 = vmatprep.subr.mxu0 0.0
  %140 = vmatpush2.msra.mxu0 0.0
  %141 = vmatprep.subr.mxu0 0.0
  %142 = vmatpush2.msra.mxu0 0.0
  %143 = vmatprep.subr.mxu0 0.0
  %144 = vmatpush2.msra.mxu0 0.0
  %145 = vmatprep.subr.mxu0 0.0
  %146 = vmatpush2.msra.mxu0 0.0
  %147 = vmatprep.subr.mxu0 0.0
  %148 = vmatpush2.msra.mxu0 0.0
  %149 = vmatprep.subr.mxu0 0.0
  %150 = vmatpush2.msra.mxu0 0.0
  %151 = vmatprep.subr.mxu0 0.0
  %152 = vmatpush2.msra.mxu0 0.0
  %153 = vmatprep.subr.mxu0 0.0
  %154 = vmatpush2.msra.mxu0 0.0
  %155 = vmatprep.subr.mxu0 0.0
  %156 = vmatpush2.msra.mxu0 0.0
  %157 = vmatprep.subr.mxu0 0.0
  %158 = vmatpush2.msra.mxu0 0.0
  %159 = vmatprep.subr.mxu0 0.0
  %160 = vmatpush2.msra.mxu0 0.0
  %161 = vmatprep.subr.mxu0 0.0
  %162 = vmatpush2.msra.mxu0 0.0
  %163 = vmatprep.subr.mxu0 0.0
  %164 = vmatpush2.msra.mxu0 0.0
  %165 = vmatprep.subr.mxu0 0.0
  %166 = vmatpush2.msra.mxu0 0.0
  %167 = vmatprep.subr.mxu0 0.0
  %168 = vmatpush2.msra.mxu0 0.0
  %169 = vmatprep.mubr.f32.mxu0 0.0
  %170 = vmatmul.mubr.f32.gmra.mxu0 %v94
  %v171 = vpop.f32.mrf.mxu0
  %v172 = vadd.f32 0.0, %v171
  %v173 = vpop.f32.mrf.mxu0
  %174 = vmatprep.mubr.f32.mxu0 0.0
  %175 = vmatmul.mubr.f32.gmra.mxu0 %v97
  %v176 = vpop.f32.mrf.mxu0
  %v177 = vadd.f32 0.0, %v176
  %v178 = vpop.f32.mrf.mxu0
  %179 = vmatprep.mubr.f32.mxu0 0.0
  %180 = vmatmul.mubr.f32.gmra.mxu0 %v100
  %v181 = vpop.f32.mrf.mxu0
  %v182 = vadd.f32 0.0, %v181
  %v183 = vpop.f32.mrf.mxu0
  %184 = vmatprep.mubr.f32.mxu0 0.0
  %185 = vmatmul.mubr.f32.gmra.mxu0 %v103
  %v186 = vpop.f32.mrf.mxu0
  %v187 = vadd.f32 0.0, %v186
  %v188 = vpop.f32.mrf.mxu0
  %189 = vdwg.mxu0
  %v190 = vsub.f32 %v42, %v172
  %v191 = vsub.f32 %v43, %v177
  %v192 = vsub.f32 %v44, %v182
  %v193 = vsub.f32 %v45, %v187
  %v194 = vmul.f32 %v190, %v190
  %v195 = vmul.f32 %v191, %v191
  %v196 = vmul.f32 %v192, %v192
  %v197 = vmul.f32 %v193, %v193
  %198 = vmatprep.subr.mxu0 0.0
  %199 = vmatpush1.msra.mxu0 0.0
  %200 = vmatprep.subr.mxu0 0.0
  %201 = vmatpush1.msra.mxu0 0.0
  %202 = vmatprep.subr.mxu0 0.0
  %203 = vmatpush1.msra.mxu0 0.0
  %204 = vmatprep.subr.mxu0 0.0
  %205 = vmatpush1.msra.mxu0 0.0
  %206 = vmatprep.subr.mxu0 0.0
  %207 = vmatpush1.msra.mxu0 0.0
  %208 = vmatprep.subr.mxu0 0.0
  %209 = vmatpush1.msra.mxu0 0.0
  %210 = vmatprep.subr.mxu0 0.0
  %211 = vmatpush1.msra.mxu0 0.0
  %212 = vmatprep.subr.mxu0 0.0
  %213 = vmatpush1.msra.mxu0 0.0
  %214 = vmatprep.subr.mxu0 0.0
  %215 = vmatpush1.msra.mxu0 0.0
  %216 = vmatprep.subr.mxu0 0.0
  %217 = vmatpush1.msra.mxu0 0.0
  %218 = vmatprep.subr.mxu0 0.0
  %219 = vmatpush1.msra.mxu0 0.0
  %220 = vmatprep.subr.mxu0 0.0
  %221 = vmatpush1.msra.mxu0 0.0
  %222 = vmatprep.subr.mxu0 0.0
  %223 = vmatpush1.msra.mxu0 %v197
  %224 = vmatprep.subr.mxu0 0.0
  %225 = vmatpush1.msra.mxu0 %v196
  %226 = vmatprep.subr.mxu0 0.0
  %227 = vmatpush1.msra.mxu0 %v195
  %228 = vmatprep.subr.mxu0 0.0
  %229 = vmatpush1.msra.mxu0 %v194
  %230 = vmatprep.subr.mxu0 0.0
  %231 = vmatpush2.msra.mxu0 0.0
  %232 = vmatprep.subr.mxu0 0.0
  %233 = vmatpush2.msra.mxu0 0.0
  %234 = vmatprep.subr.mxu0 0.0
  %235 = vmatpush2.msra.mxu0 0.0
  %236 = vmatprep.subr.mxu0 0.0
  %237 = vmatpush2.msra.mxu0 0.0
  %238 = vmatprep.subr.mxu0 0.0
  %239 = vmatpush2.msra.mxu0 0.0
  %240 = vmatprep.subr.mxu0 0.0
  %241 = vmatpush2.msra.mxu0 0.0
  %242 = vmatprep.subr.mxu0 0.0
  %243 = vmatpush2.msra.mxu0 0.0
  %244 = vmatprep.subr.mxu0 0.0
  %245 = vmatpush2.msra.mxu0 0.0
  %246 = vmatprep.subr.mxu0 0.0
  %247 = vmatpush2.msra.mxu0 0.0
  %248 = vmatprep.subr.mxu0 0.0
  %249 = vmatpush2.msra.mxu0 0.0
  %250 = vmatprep.subr.mxu0 0.0
  %251 = vmatpush2.msra.mxu0 0.0
  %252 = vmatprep.subr.mxu0 0.0
  %253 = vmatpush2.msra.mxu0 0.0
  %254 = vmatprep.subr.mxu0 0.0
  %255 = vmatpush2.msra.mxu0 0.0
  %256 = vmatprep.subr.mxu0 0.0
  %257 = vmatpush2.msra.mxu0 0.0
  %258 = vmatprep.subr.mxu0 0.0
  %259 = vmatpush2.msra.mxu0 0.0
  %260 = vmatprep.subr.mxu0 0.0
  %261 = vmatpush2.msra.mxu0 0.0
  %262 = vmatprep.mubr.f32.mxu0 0.0
  %263 = vmatmul.mubr.f32.gmra.mxu0 %v94
  %v264 = vpop.f32.mrf.mxu0
  %v265 = vadd.f32 1e-05, %v264
  %v266 = vpop.f32.mrf.mxu0
  %267 = vmatprep.mubr.f32.mxu0 0.0
  %268 = vmatmul.mubr.f32.gmra.mxu0 %v97
  %v269 = vpop.f32.mrf.mxu0
  %v270 = vadd.f32 1e-05, %v269
  %v271 = vpop.f32.mrf.mxu0
  %272 = vmatprep.mubr.f32.mxu0 0.0
  %273 = vmatmul.mubr.f32.gmra.mxu0 %v100
  %v274 = vpop.f32.mrf.mxu0
  %v275 = vadd.f32 1e-05, %v274
  %v276 = vpop.f32.mrf.mxu0
  %277 = vmatprep.mubr.f32.mxu0 0.0
  %278 = vmatmul.mubr.f32.gmra.mxu0 %v103
  %v279 = vpop.f32.mrf.mxu0
  %v280 = vadd.f32 1e-05, %v279
  %v281 = vpop.f32.mrf.mxu0
  %282 = vdwg.mxu0
  %v283 = vrsqrt.pop %v265
  %v284 = vrsqrt.pop %v270
  %v285 = vrsqrt.pop %v275
  %v286 = vrsqrt.pop %v280
  %v287 = vmul.f32 %v190, %v283
  %v288 = vmul.f32 %v191, %v284
  %v289 = vmul.f32 %v192, %v285
  %v290 = vmul.f32 %v193, %v286
  %292 = vset.pattern.permute.xlu0 0
  %293 = vperm.xlu0 %292, %v50
  %v294 = vpop.permute.xlu0 %293
  %297 = vset.pattern.permute.xlu0 0
  %298 = vperm.xlu0 %297, %v51
  %v299 = vpop.permute.xlu0 %298
  %302 = vset.pattern.permute.xlu0 0
  %303 = vperm.xlu0 %302, %v52
  %v304 = vpop.permute.xlu0 %303
  %307 = vset.pattern.permute.xlu0 0
  %308 = vperm.xlu0 %307, %v53
  %v309 = vpop.permute.xlu0 %308
  %v311 = vmul.f32 %v287, %v294
  %v312 = vmul.f32 %v288, %v299
  %v313 = vmul.f32 %v289, %v304
  %v314 = vmul.f32 %v290, %v309
  %315 = vset.pattern.permute.xlu0 1
  %316 = vperm.xlu0 %315, %v50
  %v317 = vpop.permute.xlu0 %316
  %319 = vset.pattern.permute.xlu0 1
  %320 = vperm.xlu0 %319, %v51
  %v321 = vpop.permute.xlu0 %320
  %323 = vset.pattern.permute.xlu0 1
  %324 = vperm.xlu0 %323, %v52
  %v325 = vpop.permute.xlu0 %324
  %327 = vset.pattern.permute.xlu0 1
  %328 = vperm.xlu0 %327, %v53
  %v329 = vpop.permute.xlu0 %328
  %v331 = vadd.f32 %v311, %v317
  %v332 = vadd.f32 %v312, %v321
  %v333 = vadd.f32 %v313, %v325
  %v334 = vadd.f32 %v314, %v329
  %v335 = vld [vmem:[%s7] sm:$0xf]
  %v336 = vld [vmem:[%s7 + $0x4] sm:$0xf]
  %v337 = vld [vmem:[%s7 + $0x8] sm:$0xf]
  %v338 = vld [vmem:[%s7 + $0xc] sm:$0xf]
  %v339 = vld [vmem:[%s7 + $0x10] sm:$0xf]
  %v340 = vld [vmem:[%s7 + $0x14] sm:$0xf]
  %v341 = vld [vmem:[%s7 + $0x18] sm:$0xf]
  %v342 = vld [vmem:[%s7 + $0x1c] sm:$0xf]
  %v343 = vld [vmem:[%s7 + $0x20] sm:$0xf]
  %v344 = vld [vmem:[%s7 + $0x24] sm:$0xf]
  %v345 = vld [vmem:[%s7 + $0x28] sm:$0xf]
  %v346 = vld [vmem:[%s7 + $0x2c] sm:$0xf]
  %v347 = vpack.c.bf16 %v332, %v331
  %v348 = vpack.c.bf16 %v334, %v333
  %350 = vset.pattern.permute.xlu0 0
  %351 = vperm.xlu0 %350, %v54
  %v352 = vpop.permute.xlu0 %351
  %355 = vset.pattern.permute.xlu0 0
  %356 = vperm.xlu0 %355, %v55
  %v357 = vpop.permute.xlu0 %356
  %360 = vset.pattern.permute.xlu0 0
  %361 = vperm.xlu0 %360, %v56
  %v362 = vpop.permute.xlu0 %361
  %365 = vset.pattern.permute.xlu0 0
  %366 = vperm.xlu0 %365, %v57
  %v367 = vpop.permute.xlu0 %366
  %370 = vset.pattern.permute.xlu0 0
  %371 = vperm.xlu0 %370, %v58
  %v372 = vpop.permute.xlu0 %371
  %375 = vset.pattern.permute.xlu0 0
  %376 = vperm.xlu0 %375, %v59
  %v377 = vpop.permute.xlu0 %376
  %380 = vset.pattern.permute.xlu0 0
  %381 = vperm.xlu0 %380, %v60
  %v382 = vpop.permute.xlu0 %381
  %385 = vset.pattern.permute.xlu0 0
  %386 = vperm.xlu0 %385, %v61
  %v387 = vpop.permute.xlu0 %386
  %390 = vset.pattern.permute.xlu0 0
  %391 = vperm.xlu0 %390, %v62
  %v392 = vpop.permute.xlu0 %391
  %395 = vset.pattern.permute.xlu0 0
  %396 = vperm.xlu0 %395, %v63
  %v397 = vpop.permute.xlu0 %396
  %400 = vset.pattern.permute.xlu0 0
  %401 = vperm.xlu0 %400, %v64
  %v402 = vpop.permute.xlu0 %401
  %405 = vset.pattern.permute.xlu0 0
  %406 = vperm.xlu0 %405, %v65
  %v407 = vpop.permute.xlu0 %406
  %v421 = vunpack.c.l.b16 %v335
  %v422 = vunpack.c.l.b16 %v336
  %v423 = vunpack.c.l.b16 %v337
  %v424 = vunpack.c.l.b16 %v338
  %v425 = vunpack.c.l.b16 %v339
  %v426 = vunpack.c.l.b16 %v340
  %v427 = vunpack.c.l.b16 %v341
  %v428 = vunpack.c.l.b16 %v342
  %v429 = vunpack.c.l.b16 %v343
  %v430 = vunpack.c.l.b16 %v344
  %v431 = vunpack.c.l.b16 %v345
  %v432 = vunpack.c.l.b16 %v346
  %v433 = vpack.c.b16 %v422, %v421
  %v434 = vpack.c.b16 %v424, %v423
  %v435 = vpack.c.b16 %v426, %v425
  %v436 = vpack.c.b16 %v428, %v427
  %v437 = vpack.c.b16 %v430, %v429
  %v438 = vpack.c.b16 %v432, %v431
  %v440 = vsel %vm92, %v433, 0
  %v443 = vsel %vm92, %v434, 0
  %v446 = vsel %vm92, %v435, 0
  %v449 = vsel %vm92, %v436, 0
  %v452 = vsel %vm92, %v437, 0
  %v455 = vsel %vm92, %v438, 0
  %457 = vmatprep.subr.bf16.mxu0 0
  %458 = vmatpush1.bf16.msra.mxu0 0
  %459 = vmatprep.subr.bf16.mxu0 0
  %460 = vmatpush1.bf16.msra.mxu0 0
  %461 = vmatprep.subr.bf16.mxu0 0
  %462 = vmatpush1.bf16.msra.mxu0 0
  %463 = vmatprep.subr.bf16.mxu0 0
  %464 = vmatpush1.bf16.msra.mxu0 0
  %465 = vmatprep.subr.bf16.mxu0 0
  %466 = vmatpush1.bf16.msra.mxu0 0
  %467 = vmatprep.subr.bf16.mxu0 0
  %468 = vmatpush1.bf16.msra.mxu0 0
  %469 = vmatprep.subr.bf16.mxu0 0
  %470 = vmatpush1.bf16.msra.mxu0 %v348
  %471 = vmatprep.subr.bf16.mxu0 0
  %472 = vmatpush1.bf16.msra.mxu0 %v347
  %473 = vmatprep.subr.bf16.mxu0 0
  %474 = vmatpush2.bf16.msra.mxu0 0
  %475 = vmatprep.subr.bf16.mxu0 0
  %476 = vmatpush2.bf16.msra.mxu0 0
  %477 = vmatprep.subr.bf16.mxu0 0
  %478 = vmatpush2.bf16.msra.mxu0 0
  %479 = vmatprep.subr.bf16.mxu0 0
  %480 = vmatpush2.bf16.msra.mxu0 0
  %481 = vmatprep.subr.bf16.mxu0 0
  %482 = vmatpush2.bf16.msra.mxu0 0
  %483 = vmatprep.subr.bf16.mxu0 0
  %484 = vmatpush2.bf16.msra.mxu0 0
  %485 = vmatprep.subr.bf16.mxu0 0
  %486 = vmatpush2.bf16.msra.mxu0 0
  %487 = vmatprep.subr.bf16.mxu0 0
  %488 = vmatpush2.bf16.msra.mxu0 0
  %489 = vmatprep.mubr.bf16.mxu0 0
  %490 = vmatmul.mubr.bf16.gmra.mxu0 %v440
  %v491 = vpop.f32.mrf.mxu0
  %v492 = vadd.f32 %v352, %v491
  %v493 = vpop.f32.mrf.mxu0
  %v494 = vpop.f32.mrf.mxu0
  %v495 = vadd.f32 %v357, %v494
  %v496 = vpop.f32.mrf.mxu0
  %497 = vmatprep.mubr.bf16.mxu0 0
  %498 = vmatmul.mubr.bf16.gmra.mxu0 %v443
  %v499 = vpop.f32.mrf.mxu0
  %v500 = vadd.f32 %v362, %v499
  %v501 = vpop.f32.mrf.mxu0
  %v502 = vpop.f32.mrf.mxu0
  %v503 = vadd.f32 %v367, %v502
  %v504 = vpop.f32.mrf.mxu0
  %505 = vmatprep.mubr.bf16.mxu0 0
  %506 = vmatmul.mubr.bf16.gmra.mxu0 %v446
  %v507 = vpop.f32.mrf.mxu0
  %v508 = vadd.f32 %v372, %v507
  %v509 = vpop.f32.mrf.mxu0
  %v510 = vpop.f32.mrf.mxu0
  %v511 = vadd.f32 %v377, %v510
  %v512 = vpop.f32.mrf.mxu0
  %513 = vmatprep.mubr.bf16.mxu0 0
  %514 = vmatmul.mubr.bf16.gmra.mxu0 %v449
  %v515 = vpop.f32.mrf.mxu0
  %v516 = vadd.f32 %v382, %v515
  %v517 = vpop.f32.mrf.mxu0
  %v518 = vpop.f32.mrf.mxu0
  %v519 = vadd.f32 %v387, %v518
  %v520 = vpop.f32.mrf.mxu0
  %521 = vmatprep.mubr.bf16.mxu0 0
  %522 = vmatmul.mubr.bf16.gmra.mxu0 %v452
  %v523 = vpop.f32.mrf.mxu0
  %v524 = vadd.f32 %v392, %v523
  %v525 = vpop.f32.mrf.mxu0
  %v526 = vpop.f32.mrf.mxu0
  %v527 = vadd.f32 %v397, %v526
  %v528 = vpop.f32.mrf.mxu0
  %529 = vmatprep.mubr.bf16.mxu0 0
  %530 = vmatmul.mubr.bf16.gmra.mxu0 %v455
  %v531 = vpop.f32.mrf.mxu0
  %v532 = vadd.f32 %v402, %v531
  %v533 = vpop.f32.mrf.mxu0
  %v534 = vpop.f32.mrf.mxu0
  %v535 = vadd.f32 %v407, %v534
  %v536 = vpop.f32.mrf.mxu0
  %537 = vdwg.mxu0
  %538 = vrot.lane.b32.xlu0 %v492, 9
  %v539 = vpop.permute.xlu0 %538
  %540 = vrot.lane.b32.xlu0 %v495, 9
  %v541 = vpop.permute.xlu0 %540
  %542 = vrot.lane.b32.xlu0 %v500, 9
  %v543 = vpop.permute.xlu0 %542
  %544 = vrot.lane.b32.xlu0 %v503, 9
  %v545 = vpop.permute.xlu0 %544
  %546 = vrot.lane.b32.xlu0 %v508, 9
  %v547 = vpop.permute.xlu0 %546
  %548 = vrot.lane.b32.xlu0 %v511, 9
  %v549 = vpop.permute.xlu0 %548
  %550 = vrot.lane.b32.xlu0 %v516, 9
  %v551 = vpop.permute.xlu0 %550
  %552 = vrot.lane.b32.xlu0 %v519, 9
  %v553 = vpop.permute.xlu0 %552
  %554 = vrot.lane.b32.xlu0 %v524, 9
  %v555 = vpop.permute.xlu0 %554
  %556 = vrot.lane.b32.xlu0 %v527, 9
  %v557 = vpop.permute.xlu0 %556
  %558 = vrot.lane.b32.xlu0 %v532, 9
  %v559 = vpop.permute.xlu0 %558
  %560 = vrot.lane.b32.xlu0 %v535, 9
  %v561 = vpop.permute.xlu0 %560
  %v562 = vlaneseq
  %v563 = vshrl.u32 %v562, 7
  %v564 = vsub.s32 0, %v563
  %v565 = vrot.slane %v82, %v564
  %v566 = vmul.f32 %v539, %v565
  %v567 = vmul.f32 %v541, %v565
  %v568 = vmul.f32 %v543, %v565
  %v569 = vmul.f32 %v545, %v565
  %v570 = vmul.f32 %v547, %v565
  %v571 = vmul.f32 %v549, %v565
  %v572 = vmul.f32 %v551, %v565
  %v573 = vmul.f32 %v553, %v565
  %v574 = vmul.f32 %v555, %v565
  %v575 = vmul.f32 %v557, %v565
  %v576 = vmul.f32 %v559, %v565
  %v577 = vmul.f32 %v561, %v565
  %578 = vset.pattern.permute.xlu0 3
  %579 = vperm.xlu0 %578, %v54
  %v580 = vpop.permute.xlu0 %579
  %582 = vset.pattern.permute.xlu0 3
  %583 = vperm.xlu0 %582, %v55
  %v584 = vpop.permute.xlu0 %583
  %586 = vset.pattern.permute.xlu0 3
  %587 = vperm.xlu0 %586, %v56
  %v588 = vpop.permute.xlu0 %587
  %590 = vset.pattern.permute.xlu0 3
  %591 = vperm.xlu0 %590, %v57
  %v592 = vpop.permute.xlu0 %591
  %594 = vset.pattern.permute.xlu0 3
  %595 = vperm.xlu0 %594, %v58
  %v596 = vpop.permute.xlu0 %595
  %598 = vset.pattern.permute.xlu0 3
  %599 = vperm.xlu0 %598, %v59
  %v600 = vpop.permute.xlu0 %599
  %602 = vset.pattern.permute.xlu0 3
  %603 = vperm.xlu0 %602, %v60
  %v604 = vpop.permute.xlu0 %603
  %606 = vset.pattern.permute.xlu0 3
  %607 = vperm.xlu0 %606, %v61
  %v608 = vpop.permute.xlu0 %607
  %610 = vset.pattern.permute.xlu0 3
  %611 = vperm.xlu0 %610, %v62
  %v612 = vpop.permute.xlu0 %611
  %614 = vset.pattern.permute.xlu0 3
  %615 = vperm.xlu0 %614, %v63
  %v616 = vpop.permute.xlu0 %615
  %618 = vset.pattern.permute.xlu0 3
  %619 = vperm.xlu0 %618, %v64
  %v620 = vpop.permute.xlu0 %619
  %622 = vset.pattern.permute.xlu0 3
  %623 = vperm.xlu0 %622, %v65
  %v624 = vpop.permute.xlu0 %623
  %v626 = vmul.f32 %v566, %v580
  %v627 = vmul.f32 %v567, %v584
  %v628 = vmul.f32 %v568, %v588
  %v629 = vmul.f32 %v569, %v592
  %v630 = vmul.f32 %v570, %v596
  %v631 = vmul.f32 %v571, %v600
  %v632 = vmul.f32 %v572, %v604
  %v633 = vmul.f32 %v573, %v608
  %v634 = vmul.f32 %v574, %v612
  %v635 = vmul.f32 %v575, %v616
  %v636 = vmul.f32 %v576, %v620
  %v637 = vmul.f32 %v577, %v624
  %638 = vset.pattern.permute.xlu0 1
  %639 = vperm.xlu0 %638, %v54
  %v640 = vpop.permute.xlu0 %639
  %642 = vset.pattern.permute.xlu0 1
  %643 = vperm.xlu0 %642, %v55
  %v644 = vpop.permute.xlu0 %643
  %646 = vset.pattern.permute.xlu0 1
  %647 = vperm.xlu0 %646, %v56
  %v648 = vpop.permute.xlu0 %647
  %650 = vset.pattern.permute.xlu0 1
  %651 = vperm.xlu0 %650, %v57
  %v652 = vpop.permute.xlu0 %651
  %654 = vset.pattern.permute.xlu0 1
  %655 = vperm.xlu0 %654, %v58
  %v656 = vpop.permute.xlu0 %655
  %658 = vset.pattern.permute.xlu0 1
  %659 = vperm.xlu0 %658, %v59
  %v660 = vpop.permute.xlu0 %659
  %662 = vset.pattern.permute.xlu0 1
  %663 = vperm.xlu0 %662, %v60
  %v664 = vpop.permute.xlu0 %663
  %666 = vset.pattern.permute.xlu0 1
  %667 = vperm.xlu0 %666, %v61
  %v668 = vpop.permute.xlu0 %667
  %670 = vset.pattern.permute.xlu0 1
  %671 = vperm.xlu0 %670, %v62
  %v672 = vpop.permute.xlu0 %671
  %674 = vset.pattern.permute.xlu0 1
  %675 = vperm.xlu0 %674, %v63
  %v676 = vpop.permute.xlu0 %675
  %678 = vset.pattern.permute.xlu0 1
  %679 = vperm.xlu0 %678, %v64
  %v680 = vpop.permute.xlu0 %679
  %682 = vset.pattern.permute.xlu0 1
  %683 = vperm.xlu0 %682, %v65
  %v684 = vpop.permute.xlu0 %683
  %v686 = vadd.f32 %v640, %v626
  %v687 = vadd.f32 %v644, %v627
  %v688 = vadd.f32 %v648, %v628
  %v689 = vadd.f32 %v652, %v629
  %v690 = vadd.f32 %v656, %v630
  %v691 = vadd.f32 %v660, %v631
  %v692 = vadd.f32 %v664, %v632
  %v693 = vadd.f32 %v668, %v633
  %v694 = vadd.f32 %v672, %v634
  %v695 = vadd.f32 %v676, %v635
  %v696 = vadd.f32 %v680, %v636
  %v697 = vadd.f32 %v684, %v637
  %698 = vrot.lane.b32.xlu0 %v492, 8
  %v699 = vpop.permute.xlu0 %698
  %700 = vrot.lane.b32.xlu0 %v495, 8
  %v701 = vpop.permute.xlu0 %700
  %702 = vrot.lane.b32.xlu0 %v500, 8
  %v703 = vpop.permute.xlu0 %702
  %704 = vrot.lane.b32.xlu0 %v503, 8
  %v705 = vpop.permute.xlu0 %704
  %706 = vrot.lane.b32.xlu0 %v508, 8
  %v707 = vpop.permute.xlu0 %706
  %708 = vrot.lane.b32.xlu0 %v511, 8
  %v709 = vpop.permute.xlu0 %708
  %710 = vrot.lane.b32.xlu0 %v516, 8
  %v711 = vpop.permute.xlu0 %710
  %712 = vrot.lane.b32.xlu0 %v519, 8
  %v713 = vpop.permute.xlu0 %712
  %714 = vrot.lane.b32.xlu0 %v524, 8
  %v715 = vpop.permute.xlu0 %714
  %716 = vrot.lane.b32.xlu0 %v527, 8
  %v717 = vpop.permute.xlu0 %716
  %718 = vrot.lane.b32.xlu0 %v532, 8
  %v719 = vpop.permute.xlu0 %718
  %720 = vrot.lane.b32.xlu0 %v535, 8
  %v721 = vpop.permute.xlu0 %720
  %v722 = vlaneseq
  %v723 = vshrl.u32 %v722, 7
  %v724 = vsub.s32 1, %v723
  %v725 = vrot.slane %v82, %v724
  %v726 = vmul.f32 %v699, %v725
  %v727 = vmul.f32 %v701, %v725
  %v728 = vmul.f32 %v703, %v725
  %v729 = vmul.f32 %v705, %v725
  %v730 = vmul.f32 %v707, %v725
  %v731 = vmul.f32 %v709, %v725
  %v732 = vmul.f32 %v711, %v725
  %v733 = vmul.f32 %v713, %v725
  %v734 = vmul.f32 %v715, %v725
  %v735 = vmul.f32 %v717, %v725
  %v736 = vmul.f32 %v719, %v725
  %v737 = vmul.f32 %v721, %v725
  %738 = vset.pattern.permute.xlu0 4
  %739 = vperm.xlu0 %738, %v54
  %v740 = vpop.permute.xlu0 %739
  %742 = vset.pattern.permute.xlu0 4
  %743 = vperm.xlu0 %742, %v55
  %v744 = vpop.permute.xlu0 %743
  %746 = vset.pattern.permute.xlu0 4
  %747 = vperm.xlu0 %746, %v56
  %v748 = vpop.permute.xlu0 %747
  %750 = vset.pattern.permute.xlu0 4
  %751 = vperm.xlu0 %750, %v57
  %v752 = vpop.permute.xlu0 %751
  %754 = vset.pattern.permute.xlu0 4
  %755 = vperm.xlu0 %754, %v58
  %v756 = vpop.permute.xlu0 %755
  %758 = vset.pattern.permute.xlu0 4
  %759 = vperm.xlu0 %758, %v59
  %v760 = vpop.permute.xlu0 %759
  %762 = vset.pattern.permute.xlu0 4
  %763 = vperm.xlu0 %762, %v60
  %v764 = vpop.permute.xlu0 %763
  %766 = vset.pattern.permute.xlu0 4
  %767 = vperm.xlu0 %766, %v61
  %v768 = vpop.permute.xlu0 %767
  %770 = vset.pattern.permute.xlu0 4
  %771 = vperm.xlu0 %770, %v62
  %v772 = vpop.permute.xlu0 %771
  %774 = vset.pattern.permute.xlu0 4
  %775 = vperm.xlu0 %774, %v63
  %v776 = vpop.permute.xlu0 %775
  %778 = vset.pattern.permute.xlu0 4
  %779 = vperm.xlu0 %778, %v64
  %v780 = vpop.permute.xlu0 %779
  %782 = vset.pattern.permute.xlu0 4
  %783 = vperm.xlu0 %782, %v65
  %v784 = vpop.permute.xlu0 %783
  %v786 = vmul.f32 %v726, %v740
  %v787 = vmul.f32 %v727, %v744
  %v788 = vmul.f32 %v728, %v748
  %v789 = vmul.f32 %v729, %v752
  %v790 = vmul.f32 %v730, %v756
  %v791 = vmul.f32 %v731, %v760
  %v792 = vmul.f32 %v732, %v764
  %v793 = vmul.f32 %v733, %v768
  %v794 = vmul.f32 %v734, %v772
  %v795 = vmul.f32 %v735, %v776
  %v796 = vmul.f32 %v736, %v780
  %v797 = vmul.f32 %v737, %v784
  %v798 = vadd.f32 %v686, %v786
  %v799 = vadd.f32 %v687, %v787
  %v800 = vadd.f32 %v688, %v788
  %v801 = vadd.f32 %v689, %v789
  %v802 = vadd.f32 %v690, %v790
  %v803 = vadd.f32 %v691, %v791
  %v804 = vadd.f32 %v692, %v792
  %v805 = vadd.f32 %v693, %v793
  %v806 = vadd.f32 %v694, %v794
  %v807 = vadd.f32 %v695, %v795
  %v808 = vadd.f32 %v696, %v796
  %v809 = vadd.f32 %v697, %v797
  %810 = vrot.lane.b32.xlu0 %v492, 7
  %v811 = vpop.permute.xlu0 %810
  %812 = vrot.lane.b32.xlu0 %v495, 7
  %v813 = vpop.permute.xlu0 %812
  %814 = vrot.lane.b32.xlu0 %v500, 7
  %v815 = vpop.permute.xlu0 %814
  %816 = vrot.lane.b32.xlu0 %v503, 7
  %v817 = vpop.permute.xlu0 %816
  %818 = vrot.lane.b32.xlu0 %v508, 7
  %v819 = vpop.permute.xlu0 %818
  %820 = vrot.lane.b32.xlu0 %v511, 7
  %v821 = vpop.permute.xlu0 %820
  %822 = vrot.lane.b32.xlu0 %v516, 7
  %v823 = vpop.permute.xlu0 %822
  %824 = vrot.lane.b32.xlu0 %v519, 7
  %v825 = vpop.permute.xlu0 %824
  %826 = vrot.lane.b32.xlu0 %v524, 7
  %v827 = vpop.permute.xlu0 %826
  %828 = vrot.lane.b32.xlu0 %v527, 7
  %v829 = vpop.permute.xlu0 %828
  %830 = vrot.lane.b32.xlu0 %v532, 7
  %v831 = vpop.permute.xlu0 %830
  %832 = vrot.lane.b32.xlu0 %v535, 7
  %v833 = vpop.permute.xlu0 %832
  %v834 = vlaneseq
  %v835 = vshrl.u32 %v834, 7
  %v836 = vsub.s32 2, %v835
  %v837 = vrot.slane %v82, %v836
  %v838 = vmul.f32 %v811, %v837
  %v839 = vmul.f32 %v813, %v837
  %v840 = vmul.f32 %v815, %v837
  %v841 = vmul.f32 %v817, %v837
  %v842 = vmul.f32 %v819, %v837
  %v843 = vmul.f32 %v821, %v837
  %v844 = vmul.f32 %v823, %v837
  %v845 = vmul.f32 %v825, %v837
  %v846 = vmul.f32 %v827, %v837
  %v847 = vmul.f32 %v829, %v837
  %v848 = vmul.f32 %v831, %v837
  %v849 = vmul.f32 %v833, %v837
  %850 = vset.pattern.permute.xlu0 5
  %851 = vperm.xlu0 %850, %v54
  %v852 = vpop.permute.xlu0 %851
  %854 = vset.pattern.permute.xlu0 5
  %855 = vperm.xlu0 %854, %v55
  %v856 = vpop.permute.xlu0 %855
  %858 = vset.pattern.permute.xlu0 5
  %859 = vperm.xlu0 %858, %v56
  %v860 = vpop.permute.xlu0 %859
  %862 = vset.pattern.permute.xlu0 5
  %863 = vperm.xlu0 %862, %v57
  %v864 = vpop.permute.xlu0 %863
  %866 = vset.pattern.permute.xlu0 5
  %867 = vperm.xlu0 %866, %v58
  %v868 = vpop.permute.xlu0 %867
  %870 = vset.pattern.permute.xlu0 5
  %871 = vperm.xlu0 %870, %v59
  %v872 = vpop.permute.xlu0 %871
  %874 = vset.pattern.permute.xlu0 5
  %875 = vperm.xlu0 %874, %v60
  %v876 = vpop.permute.xlu0 %875
  %878 = vset.pattern.permute.xlu0 5
  %879 = vperm.xlu0 %878, %v61
  %v880 = vpop.permute.xlu0 %879
  %882 = vset.pattern.permute.xlu0 5
  %883 = vperm.xlu0 %882, %v62
  %v884 = vpop.permute.xlu0 %883
  %886 = vset.pattern.permute.xlu0 5
  %887 = vperm.xlu0 %886, %v63
  %v888 = vpop.permute.xlu0 %887
  %890 = vset.pattern.permute.xlu0 5
  %891 = vperm.xlu0 %890, %v64
  %v892 = vpop.permute.xlu0 %891
  %894 = vset.pattern.permute.xlu0 5
  %895 = vperm.xlu0 %894, %v65
  %v896 = vpop.permute.xlu0 %895
  %v898 = vmul.f32 %v838, %v852
  %v899 = vmul.f32 %v839, %v856
  %v900 = vmul.f32 %v840, %v860
  %v901 = vmul.f32 %v841, %v864
  %v902 = vmul.f32 %v842, %v868
  %v903 = vmul.f32 %v843, %v872
  %v904 = vmul.f32 %v844, %v876
  %v905 = vmul.f32 %v845, %v880
  %v906 = vmul.f32 %v846, %v884
  %v907 = vmul.f32 %v847, %v888
  %v908 = vmul.f32 %v848, %v892
  %v909 = vmul.f32 %v849, %v896
  %v910 = vadd.f32 %v798, %v898
  %v911 = vadd.f32 %v799, %v899
  %v912 = vadd.f32 %v800, %v900
  %v913 = vadd.f32 %v801, %v901
  %v914 = vadd.f32 %v802, %v902
  %v915 = vadd.f32 %v803, %v903
  %v916 = vadd.f32 %v804, %v904
  %v917 = vadd.f32 %v805, %v905
  %v918 = vadd.f32 %v806, %v906
  %v919 = vadd.f32 %v807, %v907
  %v920 = vadd.f32 %v808, %v908
  %v921 = vadd.f32 %v809, %v909
  %922 = vrot.lane.b32.xlu0 %v492, 1
  %v923 = vpop.permute.xlu0 %922
  %924 = vrot.lane.b32.xlu0 %v495, 1
  %v925 = vpop.permute.xlu0 %924
  %926 = vrot.lane.b32.xlu0 %v500, 1
  %v927 = vpop.permute.xlu0 %926
  %928 = vrot.lane.b32.xlu0 %v503, 1
  %v929 = vpop.permute.xlu0 %928
  %930 = vrot.lane.b32.xlu0 %v508, 1
  %v931 = vpop.permute.xlu0 %930
  %932 = vrot.lane.b32.xlu0 %v511, 1
  %v933 = vpop.permute.xlu0 %932
  %934 = vrot.lane.b32.xlu0 %v516, 1
  %v935 = vpop.permute.xlu0 %934
  %936 = vrot.lane.b32.xlu0 %v519, 1
  %v937 = vpop.permute.xlu0 %936
  %938 = vrot.lane.b32.xlu0 %v524, 1
  %v939 = vpop.permute.xlu0 %938
  %940 = vrot.lane.b32.xlu0 %v527, 1
  %v941 = vpop.permute.xlu0 %940
  %942 = vrot.lane.b32.xlu0 %v532, 1
  %v943 = vpop.permute.xlu0 %942
  %944 = vrot.lane.b32.xlu0 %v535, 1
  %v945 = vpop.permute.xlu0 %944
  %v946 = vlaneseq
  %v947 = vshrl.u32 %v946, 7
  %v948 = vsub.s32 3, %v947
  %v949 = vrot.slane %v82, %v948
  %v950 = vmul.f32 %v923, %v949
  %v951 = vmul.f32 %v925, %v949
  %v952 = vmul.f32 %v927, %v949
  %v953 = vmul.f32 %v929, %v949
  %v954 = vmul.f32 %v931, %v949
  %v955 = vmul.f32 %v933, %v949
  %v956 = vmul.f32 %v935, %v949
  %v957 = vmul.f32 %v937, %v949
  %v958 = vmul.f32 %v939, %v949
  %v959 = vmul.f32 %v941, %v949
  %v960 = vmul.f32 %v943, %v949
  %v961 = vmul.f32 %v945, %v949
  %962 = vset.pattern.permute.xlu0 6
  %963 = vperm.xlu0 %962, %v54
  %v964 = vpop.permute.xlu0 %963
  %966 = vset.pattern.permute.xlu0 6
  %967 = vperm.xlu0 %966, %v55
  %v968 = vpop.permute.xlu0 %967
  %970 = vset.pattern.permute.xlu0 6
  %971 = vperm.xlu0 %970, %v56
  %v972 = vpop.permute.xlu0 %971
  %974 = vset.pattern.permute.xlu0 6
  %975 = vperm.xlu0 %974, %v57
  %v976 = vpop.permute.xlu0 %975
  %978 = vset.pattern.permute.xlu0 6
  %979 = vperm.xlu0 %978, %v58
  %v980 = vpop.permute.xlu0 %979
  %982 = vset.pattern.permute.xlu0 6
  %983 = vperm.xlu0 %982, %v59
  %v984 = vpop.permute.xlu0 %983
  %986 = vset.pattern.permute.xlu0 6
  %987 = vperm.xlu0 %986, %v60
  %v988 = vpop.permute.xlu0 %987
  %990 = vset.pattern.permute.xlu0 6
  %991 = vperm.xlu0 %990, %v61
  %v992 = vpop.permute.xlu0 %991
  %994 = vset.pattern.permute.xlu0 6
  %995 = vperm.xlu0 %994, %v62
  %v996 = vpop.permute.xlu0 %995
  %998 = vset.pattern.permute.xlu0 6
  %999 = vperm.xlu0 %998, %v63
  %v1000 = vpop.permute.xlu0 %999
  %1002 = vset.pattern.permute.xlu0 6
  %1003 = vperm.xlu0 %1002, %v64
  %v1004 = vpop.permute.xlu0 %1003
  %1006 = vset.pattern.permute.xlu0 6
  %1007 = vperm.xlu0 %1006, %v65
  %v1008 = vpop.permute.xlu0 %1007
  %v1010 = vmul.f32 %v950, %v964
  %v1011 = vmul.f32 %v951, %v968
  %v1012 = vmul.f32 %v952, %v972
  %v1013 = vmul.f32 %v953, %v976
  %v1014 = vmul.f32 %v954, %v980
  %v1015 = vmul.f32 %v955, %v984
  %v1016 = vmul.f32 %v956, %v988
  %v1017 = vmul.f32 %v957, %v992
  %v1018 = vmul.f32 %v958, %v996
  %v1019 = vmul.f32 %v959, %v1000
  %v1020 = vmul.f32 %v960, %v1004
  %v1021 = vmul.f32 %v961, %v1008
  %v1022 = vadd.f32 %v910, %v1010
  %v1023 = vadd.f32 %v911, %v1011
  %v1024 = vadd.f32 %v912, %v1012
  %v1025 = vadd.f32 %v913, %v1013
  %v1026 = vadd.f32 %v914, %v1014
  %v1027 = vadd.f32 %v915, %v1015
  %v1028 = vadd.f32 %v916, %v1016
  %v1029 = vadd.f32 %v917, %v1017
  %v1030 = vadd.f32 %v918, %v1018
  %v1031 = vadd.f32 %v919, %v1019
  %v1032 = vadd.f32 %v920, %v1020
  %v1033 = vadd.f32 %v921, %v1021
  %1034 = vset.pattern.permute.xlu0 7
  %1035 = vperm.xlu0 %1034, %v54
  %v1036 = vpop.permute.xlu0 %1035
  %1038 = vset.pattern.permute.xlu0 7
  %1039 = vperm.xlu0 %1038, %v55
  %v1040 = vpop.permute.xlu0 %1039
  %1042 = vset.pattern.permute.xlu0 7
  %1043 = vperm.xlu0 %1042, %v56
  %v1044 = vpop.permute.xlu0 %1043
  %1046 = vset.pattern.permute.xlu0 7
  %1047 = vperm.xlu0 %1046, %v57
  %v1048 = vpop.permute.xlu0 %1047
  %1050 = vset.pattern.permute.xlu0 7
  %1051 = vperm.xlu0 %1050, %v58
  %v1052 = vpop.permute.xlu0 %1051
  %1054 = vset.pattern.permute.xlu0 7
  %1055 = vperm.xlu0 %1054, %v59
  %v1056 = vpop.permute.xlu0 %1055
  %1058 = vset.pattern.permute.xlu0 7
  %1059 = vperm.xlu0 %1058, %v60
  %v1060 = vpop.permute.xlu0 %1059
  %1062 = vset.pattern.permute.xlu0 7
  %1063 = vperm.xlu0 %1062, %v61
  %v1064 = vpop.permute.xlu0 %1063
  %1066 = vset.pattern.permute.xlu0 7
  %1067 = vperm.xlu0 %1066, %v62
  %v1068 = vpop.permute.xlu0 %1067
  %1070 = vset.pattern.permute.xlu0 7
  %1071 = vperm.xlu0 %1070, %v63
  %v1072 = vpop.permute.xlu0 %1071
  %1074 = vset.pattern.permute.xlu0 7
  %1075 = vperm.xlu0 %1074, %v64
  %v1076 = vpop.permute.xlu0 %1075
  %1078 = vset.pattern.permute.xlu0 7
  %1079 = vperm.xlu0 %1078, %v65
  %v1080 = vpop.permute.xlu0 %1079
  %v1082 = vmul.f32 %v492, %v1036
  %v1083 = vmul.f32 %v495, %v1040
  %v1084 = vmul.f32 %v500, %v1044
  %v1085 = vmul.f32 %v503, %v1048
  %v1086 = vmul.f32 %v508, %v1052
  %v1087 = vmul.f32 %v511, %v1056
  %v1088 = vmul.f32 %v516, %v1060
  %v1089 = vmul.f32 %v519, %v1064
  %v1090 = vmul.f32 %v524, %v1068
  %v1091 = vmul.f32 %v527, %v1072
  %v1092 = vmul.f32 %v532, %v1076
  %v1093 = vmul.f32 %v535, %v1080
  %v1094 = vadd.f32 %v1022, %v1082
  %v1095 = vadd.f32 %v1023, %v1083
  %v1096 = vadd.f32 %v1024, %v1084
  %v1097 = vadd.f32 %v1025, %v1085
  %v1098 = vadd.f32 %v1026, %v1086
  %v1099 = vadd.f32 %v1027, %v1087
  %v1100 = vadd.f32 %v1028, %v1088
  %v1101 = vadd.f32 %v1029, %v1089
  %v1102 = vadd.f32 %v1030, %v1090
  %v1103 = vadd.f32 %v1031, %v1091
  %v1104 = vadd.f32 %v1032, %v1092
  %v1105 = vadd.f32 %v1033, %v1093
  %1106 = vrot.lane.b32.xlu0 %v492, 127
  %v1107 = vpop.permute.xlu0 %1106
  %1108 = vrot.lane.b32.xlu0 %v495, 127
  %v1109 = vpop.permute.xlu0 %1108
  %1110 = vrot.lane.b32.xlu0 %v500, 127
  %v1111 = vpop.permute.xlu0 %1110
  %1112 = vrot.lane.b32.xlu0 %v503, 127
  %v1113 = vpop.permute.xlu0 %1112
  %1114 = vrot.lane.b32.xlu0 %v508, 127
  %v1115 = vpop.permute.xlu0 %1114
  %1116 = vrot.lane.b32.xlu0 %v511, 127
  %v1117 = vpop.permute.xlu0 %1116
  %1118 = vrot.lane.b32.xlu0 %v516, 127
  %v1119 = vpop.permute.xlu0 %1118
  %1120 = vrot.lane.b32.xlu0 %v519, 127
  %v1121 = vpop.permute.xlu0 %1120
  %1122 = vrot.lane.b32.xlu0 %v524, 127
  %v1123 = vpop.permute.xlu0 %1122
  %1124 = vrot.lane.b32.xlu0 %v527, 127
  %v1125 = vpop.permute.xlu0 %1124
  %1126 = vrot.lane.b32.xlu0 %v532, 127
  %v1127 = vpop.permute.xlu0 %1126
  %1128 = vrot.lane.b32.xlu0 %v535, 127
  %v1129 = vpop.permute.xlu0 %1128
  %v1130 = vlaneseq
  %v1131 = vshrl.u32 %v1130, 7
  %v1132 = vsub.s32 5, %v1131
  %v1133 = vrot.slane %v82, %v1132
  %v1134 = vmul.f32 %v1107, %v1133
  %v1135 = vmul.f32 %v1109, %v1133
  %v1136 = vmul.f32 %v1111, %v1133
  %v1137 = vmul.f32 %v1113, %v1133
  %v1138 = vmul.f32 %v1115, %v1133
  %v1139 = vmul.f32 %v1117, %v1133
  %v1140 = vmul.f32 %v1119, %v1133
  %v1141 = vmul.f32 %v1121, %v1133
  %v1142 = vmul.f32 %v1123, %v1133
  %v1143 = vmul.f32 %v1125, %v1133
  %v1144 = vmul.f32 %v1127, %v1133
  %v1145 = vmul.f32 %v1129, %v1133
  %1146 = vset.pattern.permute.xlu0 8
  %1147 = vperm.xlu0 %1146, %v54
  %v1148 = vpop.permute.xlu0 %1147
  %1150 = vset.pattern.permute.xlu0 8
  %1151 = vperm.xlu0 %1150, %v55
  %v1152 = vpop.permute.xlu0 %1151
  %1154 = vset.pattern.permute.xlu0 8
  %1155 = vperm.xlu0 %1154, %v56
  %v1156 = vpop.permute.xlu0 %1155
  %1158 = vset.pattern.permute.xlu0 8
  %1159 = vperm.xlu0 %1158, %v57
  %v1160 = vpop.permute.xlu0 %1159
  %1162 = vset.pattern.permute.xlu0 8
  %1163 = vperm.xlu0 %1162, %v58
  %v1164 = vpop.permute.xlu0 %1163
  %1166 = vset.pattern.permute.xlu0 8
  %1167 = vperm.xlu0 %1166, %v59
  %v1168 = vpop.permute.xlu0 %1167
  %1170 = vset.pattern.permute.xlu0 8
  %1171 = vperm.xlu0 %1170, %v60
  %v1172 = vpop.permute.xlu0 %1171
  %1174 = vset.pattern.permute.xlu0 8
  %1175 = vperm.xlu0 %1174, %v61
  %v1176 = vpop.permute.xlu0 %1175
  %1178 = vset.pattern.permute.xlu0 8
  %1179 = vperm.xlu0 %1178, %v62
  %v1180 = vpop.permute.xlu0 %1179
  %1182 = vset.pattern.permute.xlu0 8
  %1183 = vperm.xlu0 %1182, %v63
  %v1184 = vpop.permute.xlu0 %1183
  %1186 = vset.pattern.permute.xlu0 8
  %1187 = vperm.xlu0 %1186, %v64
  %v1188 = vpop.permute.xlu0 %1187
  %1190 = vset.pattern.permute.xlu0 8
  %1191 = vperm.xlu0 %1190, %v65
  %v1192 = vpop.permute.xlu0 %1191
  %v1194 = vmul.f32 %v1134, %v1148
  %v1195 = vmul.f32 %v1135, %v1152
  %v1196 = vmul.f32 %v1136, %v1156
  %v1197 = vmul.f32 %v1137, %v1160
  %v1198 = vmul.f32 %v1138, %v1164
  %v1199 = vmul.f32 %v1139, %v1168
  %v1200 = vmul.f32 %v1140, %v1172
  %v1201 = vmul.f32 %v1141, %v1176
  %v1202 = vmul.f32 %v1142, %v1180
  %v1203 = vmul.f32 %v1143, %v1184
  %v1204 = vmul.f32 %v1144, %v1188
  %v1205 = vmul.f32 %v1145, %v1192
  %v1206 = vadd.f32 %v1094, %v1194
  %v1207 = vadd.f32 %v1095, %v1195
  %v1208 = vadd.f32 %v1096, %v1196
  %v1209 = vadd.f32 %v1097, %v1197
  %v1210 = vadd.f32 %v1098, %v1198
  %v1211 = vadd.f32 %v1099, %v1199
  %v1212 = vadd.f32 %v1100, %v1200
  %v1213 = vadd.f32 %v1101, %v1201
  %v1214 = vadd.f32 %v1102, %v1202
  %v1215 = vadd.f32 %v1103, %v1203
  %v1216 = vadd.f32 %v1104, %v1204
  %v1217 = vadd.f32 %v1105, %v1205
  %1218 = vrot.lane.b32.xlu0 %v492, 121
  %v1219 = vpop.permute.xlu0 %1218
  %1220 = vrot.lane.b32.xlu0 %v495, 121
  %v1221 = vpop.permute.xlu0 %1220
  %1222 = vrot.lane.b32.xlu0 %v500, 121
  %v1223 = vpop.permute.xlu0 %1222
  %1224 = vrot.lane.b32.xlu0 %v503, 121
  %v1225 = vpop.permute.xlu0 %1224
  %1226 = vrot.lane.b32.xlu0 %v508, 121
  %v1227 = vpop.permute.xlu0 %1226
  %1228 = vrot.lane.b32.xlu0 %v511, 121
  %v1229 = vpop.permute.xlu0 %1228
  %1230 = vrot.lane.b32.xlu0 %v516, 121
  %v1231 = vpop.permute.xlu0 %1230
  %1232 = vrot.lane.b32.xlu0 %v519, 121
  %v1233 = vpop.permute.xlu0 %1232
  %1234 = vrot.lane.b32.xlu0 %v524, 121
  %v1235 = vpop.permute.xlu0 %1234
  %1236 = vrot.lane.b32.xlu0 %v527, 121
  %v1237 = vpop.permute.xlu0 %1236
  %1238 = vrot.lane.b32.xlu0 %v532, 121
  %v1239 = vpop.permute.xlu0 %1238
  %1240 = vrot.lane.b32.xlu0 %v535, 121
  %v1241 = vpop.permute.xlu0 %1240
  %v1242 = vlaneseq
  %v1243 = vshrl.u32 %v1242, 7
  %v1244 = vsub.s32 6, %v1243
  %v1245 = vrot.slane %v82, %v1244
  %v1246 = vmul.f32 %v1219, %v1245
  %v1247 = vmul.f32 %v1221, %v1245
  %v1248 = vmul.f32 %v1223, %v1245
  %v1249 = vmul.f32 %v1225, %v1245
  %v1250 = vmul.f32 %v1227, %v1245
  %v1251 = vmul.f32 %v1229, %v1245
  %v1252 = vmul.f32 %v1231, %v1245
  %v1253 = vmul.f32 %v1233, %v1245
  %v1254 = vmul.f32 %v1235, %v1245
  %v1255 = vmul.f32 %v1237, %v1245
  %v1256 = vmul.f32 %v1239, %v1245
  %v1257 = vmul.f32 %v1241, %v1245
  %1258 = vset.pattern.permute.xlu0 9
  %1259 = vperm.xlu0 %1258, %v54
  %v1260 = vpop.permute.xlu0 %1259
  %1262 = vset.pattern.permute.xlu0 9
  %1263 = vperm.xlu0 %1262, %v55
  %v1264 = vpop.permute.xlu0 %1263
  %1266 = vset.pattern.permute.xlu0 9
  %1267 = vperm.xlu0 %1266, %v56
  %v1268 = vpop.permute.xlu0 %1267
  %1270 = vset.pattern.permute.xlu0 9
  %1271 = vperm.xlu0 %1270, %v57
  %v1272 = vpop.permute.xlu0 %1271
  %1274 = vset.pattern.permute.xlu0 9
  %1275 = vperm.xlu0 %1274, %v58
  %v1276 = vpop.permute.xlu0 %1275
  %1278 = vset.pattern.permute.xlu0 9
  %1279 = vperm.xlu0 %1278, %v59
  %v1280 = vpop.permute.xlu0 %1279
  %1282 = vset.pattern.permute.xlu0 9
  %1283 = vperm.xlu0 %1282, %v60
  %v1284 = vpop.permute.xlu0 %1283
  %1286 = vset.pattern.permute.xlu0 9
  %1287 = vperm.xlu0 %1286, %v61
  %v1288 = vpop.permute.xlu0 %1287
  %1290 = vset.pattern.permute.xlu0 9
  %1291 = vperm.xlu0 %1290, %v62
  %v1292 = vpop.permute.xlu0 %1291
  %1294 = vset.pattern.permute.xlu0 9
  %1295 = vperm.xlu0 %1294, %v63
  %v1296 = vpop.permute.xlu0 %1295
  %1298 = vset.pattern.permute.xlu0 9
  %1299 = vperm.xlu0 %1298, %v64
  %v1300 = vpop.permute.xlu0 %1299
  %1302 = vset.pattern.permute.xlu0 9
  %1303 = vperm.xlu0 %1302, %v65
  %v1304 = vpop.permute.xlu0 %1303
  %v1306 = vmul.f32 %v1246, %v1260
  %v1307 = vmul.f32 %v1247, %v1264
  %v1308 = vmul.f32 %v1248, %v1268
  %v1309 = vmul.f32 %v1249, %v1272
  %v1310 = vmul.f32 %v1250, %v1276
  %v1311 = vmul.f32 %v1251, %v1280
  %v1312 = vmul.f32 %v1252, %v1284
  %v1313 = vmul.f32 %v1253, %v1288
  %v1314 = vmul.f32 %v1254, %v1292
  %v1315 = vmul.f32 %v1255, %v1296
  %v1316 = vmul.f32 %v1256, %v1300
  %v1317 = vmul.f32 %v1257, %v1304
  %v1318 = vadd.f32 %v1206, %v1306
  %v1319 = vadd.f32 %v1207, %v1307
  %v1320 = vadd.f32 %v1208, %v1308
  %v1321 = vadd.f32 %v1209, %v1309
  %v1322 = vadd.f32 %v1210, %v1310
  %v1323 = vadd.f32 %v1211, %v1311
  %v1324 = vadd.f32 %v1212, %v1312
  %v1325 = vadd.f32 %v1213, %v1313
  %v1326 = vadd.f32 %v1214, %v1314
  %v1327 = vadd.f32 %v1215, %v1315
  %v1328 = vadd.f32 %v1216, %v1316
  %v1329 = vadd.f32 %v1217, %v1317
  %1330 = vrot.lane.b32.xlu0 %v492, 120
  %v1331 = vpop.permute.xlu0 %1330
  %1332 = vrot.lane.b32.xlu0 %v495, 120
  %v1333 = vpop.permute.xlu0 %1332
  %1334 = vrot.lane.b32.xlu0 %v500, 120
  %v1335 = vpop.permute.xlu0 %1334
  %1336 = vrot.lane.b32.xlu0 %v503, 120
  %v1337 = vpop.permute.xlu0 %1336
  %1338 = vrot.lane.b32.xlu0 %v508, 120
  %v1339 = vpop.permute.xlu0 %1338
  %1340 = vrot.lane.b32.xlu0 %v511, 120
  %v1341 = vpop.permute.xlu0 %1340
  %1342 = vrot.lane.b32.xlu0 %v516, 120
  %v1343 = vpop.permute.xlu0 %1342
  %1344 = vrot.lane.b32.xlu0 %v519, 120
  %v1345 = vpop.permute.xlu0 %1344
  %1346 = vrot.lane.b32.xlu0 %v524, 120
  %v1347 = vpop.permute.xlu0 %1346
  %1348 = vrot.lane.b32.xlu0 %v527, 120
  %v1349 = vpop.permute.xlu0 %1348
  %1350 = vrot.lane.b32.xlu0 %v532, 120
  %v1351 = vpop.permute.xlu0 %1350
  %1352 = vrot.lane.b32.xlu0 %v535, 120
  %v1353 = vpop.permute.xlu0 %1352
  %v1354 = vlaneseq
  %v1355 = vshrl.u32 %v1354, 7
  %v1356 = vsub.s32 7, %v1355
  %v1357 = vrot.slane %v82, %v1356
  %v1358 = vmul.f32 %v1331, %v1357
  %v1359 = vmul.f32 %v1333, %v1357
  %v1360 = vmul.f32 %v1335, %v1357
  %v1361 = vmul.f32 %v1337, %v1357
  %v1362 = vmul.f32 %v1339, %v1357
  %v1363 = vmul.f32 %v1341, %v1357
  %v1364 = vmul.f32 %v1343, %v1357
  %v1365 = vmul.f32 %v1345, %v1357
  %v1366 = vmul.f32 %v1347, %v1357
  %v1367 = vmul.f32 %v1349, %v1357
  %v1368 = vmul.f32 %v1351, %v1357
  %v1369 = vmul.f32 %v1353, %v1357
  %1370 = vset.pattern.permute.xlu0 10
  %1371 = vperm.xlu0 %1370, %v54
  %v1372 = vpop.permute.xlu0 %1371
  %1374 = vset.pattern.permute.xlu0 10
  %1375 = vperm.xlu0 %1374, %v55
  %v1376 = vpop.permute.xlu0 %1375
  %1378 = vset.pattern.permute.xlu0 10
  %1379 = vperm.xlu0 %1378, %v56
  %v1380 = vpop.permute.xlu0 %1379
  %1382 = vset.pattern.permute.xlu0 10
  %1383 = vperm.xlu0 %1382, %v57
  %v1384 = vpop.permute.xlu0 %1383
  %1386 = vset.pattern.permute.xlu0 10
  %1387 = vperm.xlu0 %1386, %v58
  %v1388 = vpop.permute.xlu0 %1387
  %1390 = vset.pattern.permute.xlu0 10
  %1391 = vperm.xlu0 %1390, %v59
  %v1392 = vpop.permute.xlu0 %1391
  %1394 = vset.pattern.permute.xlu0 10
  %1395 = vperm.xlu0 %1394, %v60
  %v1396 = vpop.permute.xlu0 %1395
  %1398 = vset.pattern.permute.xlu0 10
  %1399 = vperm.xlu0 %1398, %v61
  %v1400 = vpop.permute.xlu0 %1399
  %1402 = vset.pattern.permute.xlu0 10
  %1403 = vperm.xlu0 %1402, %v62
  %v1404 = vpop.permute.xlu0 %1403
  %1406 = vset.pattern.permute.xlu0 10
  %1407 = vperm.xlu0 %1406, %v63
  %v1408 = vpop.permute.xlu0 %1407
  %1410 = vset.pattern.permute.xlu0 10
  %1411 = vperm.xlu0 %1410, %v64
  %v1412 = vpop.permute.xlu0 %1411
  %1414 = vset.pattern.permute.xlu0 10
  %1415 = vperm.xlu0 %1414, %v65
  %v1416 = vpop.permute.xlu0 %1415
  %v1418 = vmul.f32 %v1358, %v1372
  %v1419 = vmul.f32 %v1359, %v1376
  %v1420 = vmul.f32 %v1360, %v1380
  %v1421 = vmul.f32 %v1361, %v1384
  %v1422 = vmul.f32 %v1362, %v1388
  %v1423 = vmul.f32 %v1363, %v1392
  %v1424 = vmul.f32 %v1364, %v1396
  %v1425 = vmul.f32 %v1365, %v1400
  %v1426 = vmul.f32 %v1366, %v1404
  %v1427 = vmul.f32 %v1367, %v1408
  %v1428 = vmul.f32 %v1368, %v1412
  %v1429 = vmul.f32 %v1369, %v1416
  %v1430 = vadd.f32 %v1318, %v1418
  %v1431 = vadd.f32 %v1319, %v1419
  %v1432 = vadd.f32 %v1320, %v1420
  %v1433 = vadd.f32 %v1321, %v1421
  %v1434 = vadd.f32 %v1322, %v1422
  %v1435 = vadd.f32 %v1323, %v1423
  %v1436 = vadd.f32 %v1324, %v1424
  %v1437 = vadd.f32 %v1325, %v1425
  %v1438 = vadd.f32 %v1326, %v1426
  %v1439 = vadd.f32 %v1327, %v1427
  %v1440 = vadd.f32 %v1328, %v1428
  %v1441 = vadd.f32 %v1329, %v1429
  %1442 = vrot.lane.b32.xlu0 %v492, 119
  %v1443 = vpop.permute.xlu0 %1442
  %1444 = vrot.lane.b32.xlu0 %v495, 119
  %v1445 = vpop.permute.xlu0 %1444
  %1446 = vrot.lane.b32.xlu0 %v500, 119
  %v1447 = vpop.permute.xlu0 %1446
  %1448 = vrot.lane.b32.xlu0 %v503, 119
  %v1449 = vpop.permute.xlu0 %1448
  %1450 = vrot.lane.b32.xlu0 %v508, 119
  %v1451 = vpop.permute.xlu0 %1450
  %1452 = vrot.lane.b32.xlu0 %v511, 119
  %v1453 = vpop.permute.xlu0 %1452
  %1454 = vrot.lane.b32.xlu0 %v516, 119
  %v1455 = vpop.permute.xlu0 %1454
  %1456 = vrot.lane.b32.xlu0 %v519, 119
  %v1457 = vpop.permute.xlu0 %1456
  %1458 = vrot.lane.b32.xlu0 %v524, 119
  %v1459 = vpop.permute.xlu0 %1458
  %1460 = vrot.lane.b32.xlu0 %v527, 119
  %v1461 = vpop.permute.xlu0 %1460
  %1462 = vrot.lane.b32.xlu0 %v532, 119
  %v1463 = vpop.permute.xlu0 %1462
  %1464 = vrot.lane.b32.xlu0 %v535, 119
  %v1465 = vpop.permute.xlu0 %1464
  %v1466 = vlaneseq
  %v1467 = vshrl.u32 %v1466, 7
  %v1468 = vsub.s32 0, %v1467
  %v1469 = vrot.slane %v83, %v1468
  %v1470 = vmul.f32 %v1443, %v1469
  %v1471 = vmul.f32 %v1445, %v1469
  %v1472 = vmul.f32 %v1447, %v1469
  %v1473 = vmul.f32 %v1449, %v1469
  %v1474 = vmul.f32 %v1451, %v1469
  %v1475 = vmul.f32 %v1453, %v1469
  %v1476 = vmul.f32 %v1455, %v1469
  %v1477 = vmul.f32 %v1457, %v1469
  %v1478 = vmul.f32 %v1459, %v1469
  %v1479 = vmul.f32 %v1461, %v1469
  %v1480 = vmul.f32 %v1463, %v1469
  %v1481 = vmul.f32 %v1465, %v1469
  %1482 = vset.pattern.permute.xlu0 11
  %1483 = vperm.xlu0 %1482, %v54
  %v1484 = vpop.permute.xlu0 %1483
  %1486 = vset.pattern.permute.xlu0 11
  %1487 = vperm.xlu0 %1486, %v55
  %v1488 = vpop.permute.xlu0 %1487
  %1490 = vset.pattern.permute.xlu0 11
  %1491 = vperm.xlu0 %1490, %v56
  %v1492 = vpop.permute.xlu0 %1491
  %1494 = vset.pattern.permute.xlu0 11
  %1495 = vperm.xlu0 %1494, %v57
  %v1496 = vpop.permute.xlu0 %1495
  %1498 = vset.pattern.permute.xlu0 11
  %1499 = vperm.xlu0 %1498, %v58
  %v1500 = vpop.permute.xlu0 %1499
  %1502 = vset.pattern.permute.xlu0 11
  %1503 = vperm.xlu0 %1502, %v59
  %v1504 = vpop.permute.xlu0 %1503
  %1506 = vset.pattern.permute.xlu0 11
  %1507 = vperm.xlu0 %1506, %v60
  %v1508 = vpop.permute.xlu0 %1507
  %1510 = vset.pattern.permute.xlu0 11
  %1511 = vperm.xlu0 %1510, %v61
  %v1512 = vpop.permute.xlu0 %1511
  %1514 = vset.pattern.permute.xlu0 11
  %1515 = vperm.xlu0 %1514, %v62
  %v1516 = vpop.permute.xlu0 %1515
  %1518 = vset.pattern.permute.xlu0 11
  %1519 = vperm.xlu0 %1518, %v63
  %v1520 = vpop.permute.xlu0 %1519
  %1522 = vset.pattern.permute.xlu0 11
  %1523 = vperm.xlu0 %1522, %v64
  %v1524 = vpop.permute.xlu0 %1523
  %1526 = vset.pattern.permute.xlu0 11
  %1527 = vperm.xlu0 %1526, %v65
  %v1528 = vpop.permute.xlu0 %1527
  %v1530 = vmul.f32 %v1470, %v1484
  %v1531 = vmul.f32 %v1471, %v1488
  %v1532 = vmul.f32 %v1472, %v1492
  %v1533 = vmul.f32 %v1473, %v1496
  %v1534 = vmul.f32 %v1474, %v1500
  %v1535 = vmul.f32 %v1475, %v1504
  %v1536 = vmul.f32 %v1476, %v1508
  %v1537 = vmul.f32 %v1477, %v1512
  %v1538 = vmul.f32 %v1478, %v1516
  %v1539 = vmul.f32 %v1479, %v1520
  %v1540 = vmul.f32 %v1480, %v1524
  %v1541 = vmul.f32 %v1481, %v1528
  %v1542 = vadd.f32 %v1430, %v1530
  %v1543 = vadd.f32 %v1431, %v1531
  %v1544 = vadd.f32 %v1432, %v1532
  %v1545 = vadd.f32 %v1433, %v1533
  %v1546 = vadd.f32 %v1434, %v1534
  %v1547 = vadd.f32 %v1435, %v1535
  %v1548 = vadd.f32 %v1436, %v1536
  %v1549 = vadd.f32 %v1437, %v1537
  %v1550 = vadd.f32 %v1438, %v1538
  %v1551 = vadd.f32 %v1439, %v1539
  %v1552 = vadd.f32 %v1440, %v1540
  %v1553 = vadd.f32 %v1441, %v1541
  %v1554 = vld [vmem:[%s8] sm:$0xf]
  %v1555 = vld [vmem:[%s8 + $0x4] sm:$0xf]
  %v1556 = vld [vmem:[%s8 + $0x8] sm:$0xf]
  %v1557 = vld [vmem:[%s8 + $0xc] sm:$0xf]
  %v1558 = vld [vmem:[%s8 + $0x10] sm:$0xf]
  %v1559 = vld [vmem:[%s8 + $0x14] sm:$0xf]
  %v1560 = vld [vmem:[%s8 + $0x18] sm:$0xf]
  %v1561 = vld [vmem:[%s8 + $0x1c] sm:$0xf]
  %v1562 = vld [vmem:[%s8 + $0x20] sm:$0xf]
  %v1563 = vld [vmem:[%s8 + $0x24] sm:$0xf]
  %v1564 = vld [vmem:[%s8 + $0x28] sm:$0xf]
  %v1565 = vld [vmem:[%s8 + $0x2c] sm:$0xf]
  %v1566 = vpack.c.bf16 %v1543, %v1542
  %v1567 = vpack.c.bf16 %v1545, %v1544
  %v1568 = vpack.c.bf16 %v1547, %v1546
  %v1569 = vpack.c.bf16 %v1549, %v1548
  %v1570 = vpack.c.bf16 %v1551, %v1550
  %v1571 = vpack.c.bf16 %v1553, %v1552
  %1572 = vset.pattern.permute.xlu0 2
  %1573 = vperm.xlu0 %1572, %v54
  %v1574 = vpop.permute.xlu0 %1573
  %1576 = vset.pattern.permute.xlu0 2
  %1577 = vperm.xlu0 %1576, %v55
  %v1578 = vpop.permute.xlu0 %1577
  %1580 = vset.pattern.permute.xlu0 2
  %1581 = vperm.xlu0 %1580, %v56
  %v1582 = vpop.permute.xlu0 %1581
  %1584 = vset.pattern.permute.xlu0 2
  %1585 = vperm.xlu0 %1584, %v57
  %v1586 = vpop.permute.xlu0 %1585
  %1588 = vset.pattern.permute.xlu0 2
  %1589 = vperm.xlu0 %1588, %v58
  %v1590 = vpop.permute.xlu0 %1589
  %1592 = vset.pattern.permute.xlu0 2
  %1593 = vperm.xlu0 %1592, %v59
  %v1594 = vpop.permute.xlu0 %1593
  %1596 = vset.pattern.permute.xlu0 2
  %1597 = vperm.xlu0 %1596, %v60
  %v1598 = vpop.permute.xlu0 %1597
  %1600 = vset.pattern.permute.xlu0 2
  %1601 = vperm.xlu0 %1600, %v61
  %v1602 = vpop.permute.xlu0 %1601
  %1604 = vset.pattern.permute.xlu0 2
  %1605 = vperm.xlu0 %1604, %v62
  %v1606 = vpop.permute.xlu0 %1605
  %1608 = vset.pattern.permute.xlu0 2
  %1609 = vperm.xlu0 %1608, %v63
  %v1610 = vpop.permute.xlu0 %1609
  %1612 = vset.pattern.permute.xlu0 2
  %1613 = vperm.xlu0 %1612, %v64
  %v1614 = vpop.permute.xlu0 %1613
  %1616 = vset.pattern.permute.xlu0 2
  %1617 = vperm.xlu0 %1616, %v65
  %v1618 = vpop.permute.xlu0 %1617
  %v1632 = vunpack.c.l.b16 %v1554
  %v1633 = vunpack.c.l.b16 %v1555
  %v1634 = vunpack.c.l.b16 %v1556
  %v1635 = vunpack.c.l.b16 %v1557
  %v1636 = vunpack.c.l.b16 %v1558
  %v1637 = vunpack.c.l.b16 %v1559
  %v1638 = vunpack.c.l.b16 %v1560
  %v1639 = vunpack.c.l.b16 %v1561
  %v1640 = vunpack.c.l.b16 %v1562
  %v1641 = vunpack.c.l.b16 %v1563
  %v1642 = vunpack.c.l.b16 %v1564
  %v1643 = vunpack.c.l.b16 %v1565
  %v1644 = vpack.c.b16 %v1633, %v1632
  %v1645 = vpack.c.b16 %v1635, %v1634
  %v1646 = vpack.c.b16 %v1637, %v1636
  %v1647 = vpack.c.b16 %v1639, %v1638
  %v1648 = vpack.c.b16 %v1641, %v1640
  %v1649 = vpack.c.b16 %v1643, %v1642
  %vm1650 = vcmask 785408
  %v1652 = vsel %vm1650, %v1644, 0
  %v1655 = vsel %vm1650, %v1645, 0
  %v1658 = vsel %vm1650, %v1646, 0
  %v1661 = vsel %vm1650, %v1647, 0
  %v1664 = vsel %vm1650, %v1648, 0
  %v1667 = vsel %vm1650, %v1649, 0
  %1669 = vmatprep.subr.bf16.mxu0 0
  %1670 = vmatpush1.bf16.msra.mxu0 0
  %1671 = vmatprep.subr.bf16.mxu0 0
  %1672 = vmatpush1.bf16.msra.mxu0 0
  %1673 = vmatprep.subr.bf16.mxu0 0
  %1674 = vmatpush1.bf16.msra.mxu0 %v1571
  %1675 = vmatprep.subr.bf16.mxu0 0
  %1676 = vmatpush1.bf16.msra.mxu0 %v1570
  %1677 = vmatprep.subr.bf16.mxu0 0
  %1678 = vmatpush1.bf16.msra.mxu0 %v1569
  %1679 = vmatprep.subr.bf16.mxu0 0
  %1680 = vmatpush1.bf16.msra.mxu0 %v1568
  %1681 = vmatprep.subr.bf16.mxu0 0
  %1682 = vmatpush1.bf16.msra.mxu0 %v1567
  %1683 = vmatprep.subr.bf16.mxu0 0
  %1684 = vmatpush1.bf16.msra.mxu0 %v1566
  %1685 = vmatprep.subr.bf16.mxu0 0
  %1686 = vmatpush2.bf16.msra.mxu0 0
  %1687 = vmatprep.subr.bf16.mxu0 0
  %1688 = vmatpush2.bf16.msra.mxu0 0
  %1689 = vmatprep.subr.bf16.mxu0 0
  %1690 = vmatpush2.bf16.msra.mxu0 0
  %1691 = vmatprep.subr.bf16.mxu0 0
  %1692 = vmatpush2.bf16.msra.mxu0 0
  %1693 = vmatprep.subr.bf16.mxu0 0
  %1694 = vmatpush2.bf16.msra.mxu0 0
  %1695 = vmatprep.subr.bf16.mxu0 0
  %1696 = vmatpush2.bf16.msra.mxu0 0
  %1697 = vmatprep.subr.bf16.mxu0 0
  %1698 = vmatpush2.bf16.msra.mxu0 0
  %1699 = vmatprep.subr.bf16.mxu0 0
  %1700 = vmatpush2.bf16.msra.mxu0 0
  %1701 = vmatprep.mubr.bf16.mxu0 0
  %1702 = vmatmul.mubr.bf16.gmra.mxu0 %v1652
  %v1703 = vpop.f32.mrf.mxu0
  %v1704 = vadd.f32 %v1574, %v1703
  %v1705 = vpop.f32.mrf.mxu0
  %v1706 = vpop.f32.mrf.mxu0
  %v1707 = vadd.f32 %v1578, %v1706
  %v1708 = vpop.f32.mrf.mxu0
  %1709 = vmatprep.mubr.bf16.mxu0 0
  %1710 = vmatmul.mubr.bf16.gmra.mxu0 %v1655
  %v1711 = vpop.f32.mrf.mxu0
  %v1712 = vadd.f32 %v1582, %v1711
  %v1713 = vpop.f32.mrf.mxu0
  %v1714 = vpop.f32.mrf.mxu0
  %v1715 = vadd.f32 %v1586, %v1714
  %v1716 = vpop.f32.mrf.mxu0
  %1717 = vmatprep.mubr.bf16.mxu0 0
  %1718 = vmatmul.mubr.bf16.gmra.mxu0 %v1658
  %v1719 = vpop.f32.mrf.mxu0
  %v1720 = vadd.f32 %v1590, %v1719
  %v1721 = vpop.f32.mrf.mxu0
  %v1722 = vpop.f32.mrf.mxu0
  %v1723 = vadd.f32 %v1594, %v1722
  %v1724 = vpop.f32.mrf.mxu0
  %1725 = vmatprep.mubr.bf16.mxu0 0
  %1726 = vmatmul.mubr.bf16.gmra.mxu0 %v1661
  %v1727 = vpop.f32.mrf.mxu0
  %v1728 = vadd.f32 %v1598, %v1727
  %v1729 = vpop.f32.mrf.mxu0
  %v1730 = vpop.f32.mrf.mxu0
  %v1731 = vadd.f32 %v1602, %v1730
  %v1732 = vpop.f32.mrf.mxu0
  %1733 = vmatprep.mubr.bf16.mxu0 0
  %1734 = vmatmul.mubr.bf16.gmra.mxu0 %v1664
  %v1735 = vpop.f32.mrf.mxu0
  %v1736 = vadd.f32 %v1606, %v1735
  %v1737 = vpop.f32.mrf.mxu0
  %v1738 = vpop.f32.mrf.mxu0
  %v1739 = vadd.f32 %v1610, %v1738
  %v1740 = vpop.f32.mrf.mxu0
  %1741 = vmatprep.mubr.bf16.mxu0 0
  %1742 = vmatmul.mubr.bf16.gmra.mxu0 %v1667
  %v1743 = vpop.f32.mrf.mxu0
  %v1744 = vadd.f32 %v1614, %v1743
  %v1745 = vpop.f32.mrf.mxu0
  %v1746 = vpop.f32.mrf.mxu0
  %v1747 = vadd.f32 %v1618, %v1746
  %v1748 = vpop.f32.mrf.mxu0
  %1749 = vdwg.mxu0
  %v1750 = vmul.f32 %v1704, %v1704
  %v1751 = vmul.f32 %v1707, %v1707
  %v1752 = vmul.f32 %v1712, %v1712
  %v1753 = vmul.f32 %v1715, %v1715
  %vm1754 = vcmask 523264
  %v1755 = vsel %vm1754, %v1750, 0.0
  %1756 = vadd.xlane.f32.xlu0 %v1755
  %v1757 = vpop.xlane.xlu0 %1756
  %v1758 = vsel %vm1754, %v1751, 0.0
  %1759 = vadd.xlane.f32.xlu0 %v1758
  %v1760 = vpop.xlane.xlu0 %1759
  %v1761 = vsel %vm1754, %v1752, 0.0
  %1762 = vadd.xlane.f32.xlu0 %v1761
  %v1763 = vpop.xlane.xlu0 %1762
  %v1764 = vsel %vm1754, %v1753, 0.0
  %1765 = vadd.xlane.f32.xlu0 %v1764
  %v1766 = vpop.xlane.xlu0 %1765
  %v1767 = vmax.f32 %v1757, 1e-24
  %v1768 = vmax.f32 %v1760, 1e-24
  %v1769 = vmax.f32 %v1763, 1e-24
  %v1770 = vmax.f32 %v1766, 1e-24
  %v1771 = vrsqrt.pop %v1767
  %v1772 = vrsqrt.pop %v1768
  %v1773 = vrsqrt.pop %v1769
  %v1774 = vrsqrt.pop %v1770
  %v1775 = vmul.f32 %v1704, %v1771
  %v1776 = vmul.f32 %v1707, %v1772
  %v1777 = vmul.f32 %v1712, %v1773
  %v1778 = vmul.f32 %v1715, %v1774
  %v1779 = vmul.f32 %v1720, %v1720
  %v1780 = vmul.f32 %v1723, %v1723
  %v1781 = vmul.f32 %v1728, %v1728
  %v1782 = vmul.f32 %v1731, %v1731
  %v1783 = vsel %vm1754, %v1779, 0.0
  %1784 = vadd.xlane.f32.xlu0 %v1783
  %v1785 = vpop.xlane.xlu0 %1784
  %v1786 = vsel %vm1754, %v1780, 0.0
  %1787 = vadd.xlane.f32.xlu0 %v1786
  %v1788 = vpop.xlane.xlu0 %1787
  %v1789 = vsel %vm1754, %v1781, 0.0
  %1790 = vadd.xlane.f32.xlu0 %v1789
  %v1791 = vpop.xlane.xlu0 %1790
  %v1792 = vsel %vm1754, %v1782, 0.0
  %1793 = vadd.xlane.f32.xlu0 %v1792
  %v1794 = vpop.xlane.xlu0 %1793
  %v1795 = vmax.f32 %v1785, 1e-24
  %v1796 = vmax.f32 %v1788, 1e-24
  %v1797 = vmax.f32 %v1791, 1e-24
  %v1798 = vmax.f32 %v1794, 1e-24
  %v1799 = vrsqrt.pop %v1795
  %v1800 = vrsqrt.pop %v1796
  %v1801 = vrsqrt.pop %v1797
  %v1802 = vrsqrt.pop %v1798
  %v1803 = vmul.f32 %v1720, %v1799
  %v1804 = vmul.f32 %v1723, %v1800
  %v1805 = vmul.f32 %v1728, %v1801
  %v1806 = vmul.f32 %v1731, %v1802
  %v1807 = vpack.c.bf16 %v1776, %v1775
  %v1808 = vpack.c.bf16 %v1778, %v1777
  %v1809 = vpack.c.bf16 %v1804, %v1803
  %v1810 = vpack.c.bf16 %v1806, %v1805
  %v1812 = vsel %vm1754, %v1807, 0
  %v1815 = vsel %vm1754, %v1808, 0
  %v1818 = vsel %vm1754, %v1809, 0
  %v1821 = vsel %vm1754, %v1810, 0
  %1823 = vmatprep.subr.bf16.mxu0 0
  %1824 = vmatpush1.bf16.xpose.msra.mxu0 0
  %1825 = vmatprep.subr.bf16.mxu0 0
  %1826 = vmatpush1.bf16.xpose.msra.mxu0 0
  %1827 = vmatprep.subr.bf16.mxu0 0
  %1828 = vmatpush1.bf16.xpose.msra.mxu0 0
  %1829 = vmatprep.subr.bf16.mxu0 0
  %1830 = vmatpush1.bf16.xpose.msra.mxu0 0
  %1831 = vmatprep.subr.bf16.mxu0 0
  %1832 = vmatpush1.bf16.xpose.msra.mxu0 0
  %1833 = vmatprep.subr.bf16.mxu0 0
  %1834 = vmatpush1.bf16.xpose.msra.mxu0 0
  %1835 = vmatprep.subr.bf16.mxu0 0
  %1836 = vmatpush1.bf16.xpose.msra.mxu0 %v1821
  %1837 = vmatprep.subr.bf16.mxu0 0
  %1838 = vmatpush1.bf16.xpose.msra.mxu0 %v1818
  %1839 = vmatprep.subr.bf16.mxu0 0
  %1840 = vmatpush2.bf16.xpose.msra.mxu0 0
  %1841 = vmatprep.subr.bf16.mxu0 0
  %1842 = vmatpush2.bf16.xpose.msra.mxu0 0
  %1843 = vmatprep.subr.bf16.mxu0 0
  %1844 = vmatpush2.bf16.xpose.msra.mxu0 0
  %1845 = vmatprep.subr.bf16.mxu0 0
  %1846 = vmatpush2.bf16.xpose.msra.mxu0 0
  %1847 = vmatprep.subr.bf16.mxu0 0
  %1848 = vmatpush2.bf16.xpose.msra.mxu0 0
  %1849 = vmatprep.subr.bf16.mxu0 0
  %1850 = vmatpush2.bf16.xpose.msra.mxu0 0
  %1851 = vmatprep.subr.bf16.mxu0 0
  %1852 = vmatpush2.bf16.xpose.msra.mxu0 0
  %1853 = vmatprep.subr.bf16.mxu0 0
  %1854 = vmatpush2.bf16.xpose.msra.mxu0 0
  %1855 = vmatprep.mubr.bf16.mxu0 0
  %1856 = vmatmul.mubr.bf16.gmra.mxu0 %v1812
  %v1857 = vpop.f32.mrf.mxu0
  %v1858 = vadd.f32 0.0, %v1857
  %v1859 = vpop.f32.mrf.mxu0
  %v1860 = vpop.f32.mrf.mxu0
  %v1861 = vadd.f32 0.0, %v1860
  %v1862 = vpop.f32.mrf.mxu0
  %1863 = vmatprep.mubr.bf16.mxu0 0
  %1864 = vmatmul.mubr.bf16.gmra.mxu0 %v1815
  %v1865 = vpop.f32.mrf.mxu0
  %v1866 = vadd.f32 0.0, %v1865
  %v1867 = vpop.f32.mrf.mxu0
  %v1868 = vpop.f32.mrf.mxu0
  %v1869 = vadd.f32 0.0, %v1868
  %v1870 = vpop.f32.mrf.mxu0
  %1871 = vdwg.mxu0
  %1872 = vset.pattern.permute.xlu0 6
  %1873 = vperm.xlu0 %1872, %v50
  %v1874 = vpop.permute.xlu0 %1873
  %1876 = vset.pattern.permute.xlu0 6
  %1877 = vperm.xlu0 %1876, %v51
  %v1878 = vpop.permute.xlu0 %1877
  %1880 = vset.pattern.permute.xlu0 6
  %1881 = vperm.xlu0 %1880, %v52
  %v1882 = vpop.permute.xlu0 %1881
  %1884 = vset.pattern.permute.xlu0 6
  %1885 = vperm.xlu0 %1884, %v53
  %v1886 = vpop.permute.xlu0 %1885
  %v1888 = vmul.f32 %v1858, %v1874
  %v1889 = vmul.f32 %v1861, %v1878
  %v1890 = vmul.f32 %v1866, %v1882
  %v1891 = vmul.f32 %v1869, %v1886
  %1893 = vset.pattern.permute.xlu0 6
  %1894 = vperm.xlu0 %1893, %v88
  %v1895 = vpop.permute.xlu0 %1894
  %1898 = vset.pattern.permute.xlu0 6
  %1899 = vperm.xlu0 %1898, %v89
  %v1900 = vpop.permute.xlu0 %1899
  %1903 = vset.pattern.permute.xlu0 6
  %1904 = vperm.xlu0 %1903, %v90
  %v1905 = vpop.permute.xlu0 %1904
  %1908 = vset.pattern.permute.xlu0 6
  %1909 = vperm.xlu0 %1908, %v91
  %v1910 = vpop.permute.xlu0 %1909
  %v1912 = vsub.f32 %v1888, %v1895
  %v1913 = vsub.f32 %v1889, %v1900
  %v1914 = vsub.f32 %v1890, %v1905
  %v1915 = vsub.f32 %v1891, %v1910
  %v1916 = vmul.f32 %v1912, 1.442695
  %v1917 = vpow.pop %v1916
  %v1918 = vmul.f32 %v1913, 1.442695
  %v1919 = vpow.pop %v1918
  %v1920 = vmul.f32 %v1914, 1.442695
  %v1921 = vpow.pop %v1920
  %v1922 = vmul.f32 %v1915, 1.442695
  %v1923 = vpow.pop %v1922
  %v1924 = vmul.f32 %v1917, %v84
  %v1925 = vmul.f32 %v1919, %v85
  %v1926 = vmul.f32 %v1921, %v86
  %v1927 = vmul.f32 %v1923, %v87
  %v1928 = vpack.c.bf16 %v1925, %v1924
  %v1929 = vpack.c.bf16 %v1927, %v1926
  %v1930 = vpack.c.bf16 %v1739, %v1736
  %v1931 = vpack.c.bf16 %v1747, %v1744
  %v1933 = vsel %vm92, %v1928, 0
  %v1936 = vsel %vm92, %v1929, 0
  %1938 = vmatprep.subr.bf16.mxu0 0
  %1939 = vmatpush1.bf16.msra.mxu0 0
  %1940 = vmatprep.subr.bf16.mxu0 0
  %1941 = vmatpush1.bf16.msra.mxu0 0
  %1942 = vmatprep.subr.bf16.mxu0 0
  %1943 = vmatpush1.bf16.msra.mxu0 0
  %1944 = vmatprep.subr.bf16.mxu0 0
  %1945 = vmatpush1.bf16.msra.mxu0 0
  %1946 = vmatprep.subr.bf16.mxu0 0
  %1947 = vmatpush1.bf16.msra.mxu0 0
  %1948 = vmatprep.subr.bf16.mxu0 0
  %1949 = vmatpush1.bf16.msra.mxu0 0
  %1950 = vmatprep.subr.bf16.mxu0 0
  %1951 = vmatpush1.bf16.msra.mxu0 %v1931
  %1952 = vmatprep.subr.bf16.mxu0 0
  %1953 = vmatpush1.bf16.msra.mxu0 %v1930
  %1954 = vmatprep.subr.bf16.mxu0 0
  %1955 = vmatpush2.bf16.msra.mxu0 0
  %1956 = vmatprep.subr.bf16.mxu0 0
  %1957 = vmatpush2.bf16.msra.mxu0 0
  %1958 = vmatprep.subr.bf16.mxu0 0
  %1959 = vmatpush2.bf16.msra.mxu0 0
  %1960 = vmatprep.subr.bf16.mxu0 0
  %1961 = vmatpush2.bf16.msra.mxu0 0
  %1962 = vmatprep.subr.bf16.mxu0 0
  %1963 = vmatpush2.bf16.msra.mxu0 0
  %1964 = vmatprep.subr.bf16.mxu0 0
  %1965 = vmatpush2.bf16.msra.mxu0 0
  %1966 = vmatprep.subr.bf16.mxu0 0
  %1967 = vmatpush2.bf16.msra.mxu0 0
  %1968 = vmatprep.subr.bf16.mxu0 0
  %1969 = vmatpush2.bf16.msra.mxu0 0
  %1970 = vmatprep.mubr.bf16.mxu0 0
  %1971 = vmatmul.mubr.bf16.gmra.mxu0 %v1933
  %v1972 = vpop.f32.mrf.mxu0
  %v1973 = vadd.f32 0.0, %v1972
  %v1974 = vpop.f32.mrf.mxu0
  %v1975 = vpop.f32.mrf.mxu0
  %v1976 = vadd.f32 0.0, %v1975
  %v1977 = vpop.f32.mrf.mxu0
  %1978 = vmatprep.mubr.bf16.mxu0 0
  %1979 = vmatmul.mubr.bf16.gmra.mxu0 %v1936
  %v1980 = vpop.f32.mrf.mxu0
  %v1981 = vadd.f32 0.0, %v1980
  %v1982 = vpop.f32.mrf.mxu0
  %v1983 = vpop.f32.mrf.mxu0
  %v1984 = vadd.f32 0.0, %v1983
  %v1985 = vpop.f32.mrf.mxu0
  %1986 = vdwg.mxu0
  %v1987 = vsel %vm92, %v1924, 0.0
  %1988 = vadd.xlane.f32.xlu0 %v1987
  %v1989 = vpop.xlane.xlu0 %1988
  %v1990 = vsel %vm92, %v1925, 0.0
  %1991 = vadd.xlane.f32.xlu0 %v1990
  %v1992 = vpop.xlane.xlu0 %1991
  %v1993 = vsel %vm92, %v1926, 0.0
  %1994 = vadd.xlane.f32.xlu0 %v1993
  %v1995 = vpop.xlane.xlu0 %1994
  %v1996 = vsel %vm92, %v1927, 0.0
  %1997 = vadd.xlane.f32.xlu0 %v1996
  %v1998 = vpop.xlane.xlu0 %1997
  %v1999 = vrcp.pop %v1989
  %v2000 = vmul.f32 %v1973, %v1999
  %v2001 = vrcp.pop %v1992
  %v2002 = vmul.f32 %v1976, %v2001
  %v2003 = vrcp.pop %v1995
  %v2004 = vmul.f32 %v1981, %v2003
  %v2005 = vrcp.pop %v1998
  %v2006 = vmul.f32 %v1984, %v2005
  %2011 = vrot.lane.b32.xlu0 %v1750, 64
  %v2012 = vpop.permute.xlu0 %2011
  %2013 = vrot.lane.b32.xlu0 %v1751, 64
  %v2014 = vpop.permute.xlu0 %2013
  %2015 = vrot.lane.b32.xlu0 %v1752, 64
  %v2016 = vpop.permute.xlu0 %2015
  %2017 = vrot.lane.b32.xlu0 %v1753, 64
  %v2018 = vpop.permute.xlu0 %2017
  %v2023 = vsel %vm1754, %v2012, 0.0
  %2024 = vadd.xlane.f32.xlu0 %v2023
  %v2025 = vpop.xlane.xlu0 %2024
  %v2026 = vsel %vm1754, %v2014, 0.0
  %2027 = vadd.xlane.f32.xlu0 %v2026
  %v2028 = vpop.xlane.xlu0 %2027
  %v2029 = vsel %vm1754, %v2016, 0.0
  %2030 = vadd.xlane.f32.xlu0 %v2029
  %v2031 = vpop.xlane.xlu0 %2030
  %v2032 = vsel %vm1754, %v2018, 0.0
  %2033 = vadd.xlane.f32.xlu0 %v2032
  %v2034 = vpop.xlane.xlu0 %2033
  %v2035 = vmax.f32 %v2025, 1e-24
  %v2036 = vmax.f32 %v2028, 1e-24
  %v2037 = vmax.f32 %v2031, 1e-24
  %v2038 = vmax.f32 %v2034, 1e-24
  %v2039 = vrsqrt.pop %v2035
  %v2040 = vrsqrt.pop %v2036
  %v2041 = vrsqrt.pop %v2037
  %v2042 = vrsqrt.pop %v2038
  %v2043 = vmul.f32 %v1704, %v2039
  %v2044 = vmul.f32 %v1707, %v2040
  %v2045 = vmul.f32 %v1712, %v2041
  %v2046 = vmul.f32 %v1715, %v2042
  %2051 = vrot.lane.b32.xlu0 %v1779, 64
  %v2052 = vpop.permute.xlu0 %2051
  %2053 = vrot.lane.b32.xlu0 %v1780, 64
  %v2054 = vpop.permute.xlu0 %2053
  %2055 = vrot.lane.b32.xlu0 %v1781, 64
  %v2056 = vpop.permute.xlu0 %2055
  %2057 = vrot.lane.b32.xlu0 %v1782, 64
  %v2058 = vpop.permute.xlu0 %2057
  %v2063 = vsel %vm1754, %v2052, 0.0
  %2064 = vadd.xlane.f32.xlu0 %v2063
  %v2065 = vpop.xlane.xlu0 %2064
  %v2066 = vsel %vm1754, %v2054, 0.0
  %2067 = vadd.xlane.f32.xlu0 %v2066
  %v2068 = vpop.xlane.xlu0 %2067
  %v2069 = vsel %vm1754, %v2056, 0.0
  %2070 = vadd.xlane.f32.xlu0 %v2069
  %v2071 = vpop.xlane.xlu0 %2070
  %v2072 = vsel %vm1754, %v2058, 0.0
  %2073 = vadd.xlane.f32.xlu0 %v2072
  %v2074 = vpop.xlane.xlu0 %2073
  %v2075 = vmax.f32 %v2065, 1e-24
  %v2076 = vmax.f32 %v2068, 1e-24
  %v2077 = vmax.f32 %v2071, 1e-24
  %v2078 = vmax.f32 %v2074, 1e-24
  %v2079 = vrsqrt.pop %v2075
  %v2080 = vrsqrt.pop %v2076
  %v2081 = vrsqrt.pop %v2077
  %v2082 = vrsqrt.pop %v2078
  %v2083 = vmul.f32 %v1720, %v2079
  %v2084 = vmul.f32 %v1723, %v2080
  %v2085 = vmul.f32 %v1728, %v2081
  %v2086 = vmul.f32 %v1731, %v2082
  %v2087 = vpack.c.bf16 %v2044, %v2043
  %v2088 = vpack.c.bf16 %v2046, %v2045
  %v2089 = vpack.c.bf16 %v2084, %v2083
  %v2090 = vpack.c.bf16 %v2086, %v2085
  %2093 = vrot.lane.b32.xlu0 %v2087, 64
  %v2094 = vpop.permute.xlu0 %2093
  %2095 = vrot.lane.b32.xlu0 %v2088, 64
  %v2096 = vpop.permute.xlu0 %2095
  %2099 = vrot.lane.b32.xlu0 %v2089, 64
  %v2100 = vpop.permute.xlu0 %2099
  %2101 = vrot.lane.b32.xlu0 %v2090, 64
  %v2102 = vpop.permute.xlu0 %2101
  %v2104 = vsel %vm1754, %v2094, 0
  %v2107 = vsel %vm1754, %v2096, 0
  %v2110 = vsel %vm1754, %v2100, 0
  %v2113 = vsel %vm1754, %v2102, 0
  %2115 = vmatprep.subr.bf16.mxu0 0
  %2116 = vmatpush1.bf16.xpose.msra.mxu0 0
  %2117 = vmatprep.subr.bf16.mxu0 0
  %2118 = vmatpush1.bf16.xpose.msra.mxu0 0
  %2119 = vmatprep.subr.bf16.mxu0 0
  %2120 = vmatpush1.bf16.xpose.msra.mxu0 0
  %2121 = vmatprep.subr.bf16.mxu0 0
  %2122 = vmatpush1.bf16.xpose.msra.mxu0 0
  %2123 = vmatprep.subr.bf16.mxu0 0
  %2124 = vmatpush1.bf16.xpose.msra.mxu0 0
  %2125 = vmatprep.subr.bf16.mxu0 0
  %2126 = vmatpush1.bf16.xpose.msra.mxu0 0
  %2127 = vmatprep.subr.bf16.mxu0 0
  %2128 = vmatpush1.bf16.xpose.msra.mxu0 %v2113
  %2129 = vmatprep.subr.bf16.mxu0 0
  %2130 = vmatpush1.bf16.xpose.msra.mxu0 %v2110
  %2131 = vmatprep.subr.bf16.mxu0 0
  %2132 = vmatpush2.bf16.xpose.msra.mxu0 0
  %2133 = vmatprep.subr.bf16.mxu0 0
  %2134 = vmatpush2.bf16.xpose.msra.mxu0 0
  %2135 = vmatprep.subr.bf16.mxu0 0
  %2136 = vmatpush2.bf16.xpose.msra.mxu0 0
  %2137 = vmatprep.subr.bf16.mxu0 0
  %2138 = vmatpush2.bf16.xpose.msra.mxu0 0
  %2139 = vmatprep.subr.bf16.mxu0 0
  %2140 = vmatpush2.bf16.xpose.msra.mxu0 0
  %2141 = vmatprep.subr.bf16.mxu0 0
  %2142 = vmatpush2.bf16.xpose.msra.mxu0 0
  %2143 = vmatprep.subr.bf16.mxu0 0
  %2144 = vmatpush2.bf16.xpose.msra.mxu0 0
  %2145 = vmatprep.subr.bf16.mxu0 0
  %2146 = vmatpush2.bf16.xpose.msra.mxu0 0
  %2147 = vmatprep.mubr.bf16.mxu0 0
  %2148 = vmatmul.mubr.bf16.gmra.mxu0 %v2104
  %v2149 = vpop.f32.mrf.mxu0
  %v2150 = vadd.f32 0.0, %v2149
  %v2151 = vpop.f32.mrf.mxu0
  %v2152 = vpop.f32.mrf.mxu0
  %v2153 = vadd.f32 0.0, %v2152
  %v2154 = vpop.f32.mrf.mxu0
  %2155 = vmatprep.mubr.bf16.mxu0 0
  %2156 = vmatmul.mubr.bf16.gmra.mxu0 %v2107
  %v2157 = vpop.f32.mrf.mxu0
  %v2158 = vadd.f32 0.0, %v2157
  %v2159 = vpop.f32.mrf.mxu0
  %v2160 = vpop.f32.mrf.mxu0
  %v2161 = vadd.f32 0.0, %v2160
  %v2162 = vpop.f32.mrf.mxu0
  %2163 = vdwg.mxu0
  %v2164 = vmul.f32 %v2150, %v1874
  %v2165 = vmul.f32 %v2153, %v1878
  %v2166 = vmul.f32 %v2158, %v1882
  %v2167 = vmul.f32 %v2161, %v1886
  %v2168 = vsub.f32 %v2164, %v1895
  %v2169 = vsub.f32 %v2165, %v1900
  %v2170 = vsub.f32 %v2166, %v1905
  %v2171 = vsub.f32 %v2167, %v1910
  %v2172 = vmul.f32 %v2168, 1.442695
  %v2173 = vpow.pop %v2172
  %v2174 = vmul.f32 %v2169, 1.442695
  %v2175 = vpow.pop %v2174
  %v2176 = vmul.f32 %v2170, 1.442695
  %v2177 = vpow.pop %v2176
  %v2178 = vmul.f32 %v2171, 1.442695
  %v2179 = vpow.pop %v2178
  %v2180 = vmul.f32 %v2173, %v84
  %v2181 = vmul.f32 %v2175, %v85
  %v2182 = vmul.f32 %v2177, %v86
  %v2183 = vmul.f32 %v2179, %v87
  %v2184 = vpack.c.bf16 %v2181, %v2180
  %v2185 = vpack.c.bf16 %v2183, %v2182
  %2188 = vrot.lane.b32.xlu0 %v1930, 64
  %v2189 = vpop.permute.xlu0 %2188
  %2190 = vrot.lane.b32.xlu0 %v1931, 64
  %v2191 = vpop.permute.xlu0 %2190
  %v2195 = vsel %vm92, %v2184, 0
  %v2198 = vsel %vm92, %v2185, 0
  %2200 = vmatprep.subr.bf16.mxu0 0
  %2201 = vmatpush1.bf16.msra.mxu0 0
  %2202 = vmatprep.subr.bf16.mxu0 0
  %2203 = vmatpush1.bf16.msra.mxu0 0
  %2204 = vmatprep.subr.bf16.mxu0 0
  %2205 = vmatpush1.bf16.msra.mxu0 0
  %2206 = vmatprep.subr.bf16.mxu0 0
  %2207 = vmatpush1.bf16.msra.mxu0 0
  %2208 = vmatprep.subr.bf16.mxu0 0
  %2209 = vmatpush1.bf16.msra.mxu0 0
  %2210 = vmatprep.subr.bf16.mxu0 0
  %2211 = vmatpush1.bf16.msra.mxu0 0
  %2212 = vmatprep.subr.bf16.mxu0 0
  %2213 = vmatpush1.bf16.msra.mxu0 %v2191
  %2214 = vmatprep.subr.bf16.mxu0 0
  %2215 = vmatpush1.bf16.msra.mxu0 %v2189
  %2216 = vmatprep.subr.bf16.mxu0 0
  %2217 = vmatpush2.bf16.msra.mxu0 0
  %2218 = vmatprep.subr.bf16.mxu0 0
  %2219 = vmatpush2.bf16.msra.mxu0 0
  %2220 = vmatprep.subr.bf16.mxu0 0
  %2221 = vmatpush2.bf16.msra.mxu0 0
  %2222 = vmatprep.subr.bf16.mxu0 0
  %2223 = vmatpush2.bf16.msra.mxu0 0
  %2224 = vmatprep.subr.bf16.mxu0 0
  %2225 = vmatpush2.bf16.msra.mxu0 0
  %2226 = vmatprep.subr.bf16.mxu0 0
  %2227 = vmatpush2.bf16.msra.mxu0 0
  %2228 = vmatprep.subr.bf16.mxu0 0
  %2229 = vmatpush2.bf16.msra.mxu0 0
  %2230 = vmatprep.subr.bf16.mxu0 0
  %2231 = vmatpush2.bf16.msra.mxu0 0
  %2232 = vmatprep.mubr.bf16.mxu0 0
  %2233 = vmatmul.mubr.bf16.gmra.mxu0 %v2195
  %v2234 = vpop.f32.mrf.mxu0
  %v2235 = vadd.f32 0.0, %v2234
  %v2236 = vpop.f32.mrf.mxu0
  %v2237 = vpop.f32.mrf.mxu0
  %v2238 = vadd.f32 0.0, %v2237
  %v2239 = vpop.f32.mrf.mxu0
  %2240 = vmatprep.mubr.bf16.mxu0 0
  %2241 = vmatmul.mubr.bf16.gmra.mxu0 %v2198
  %v2242 = vpop.f32.mrf.mxu0
  %v2243 = vadd.f32 0.0, %v2242
  %v2244 = vpop.f32.mrf.mxu0
  %v2245 = vpop.f32.mrf.mxu0
  %v2246 = vadd.f32 0.0, %v2245
  %v2247 = vpop.f32.mrf.mxu0
  %2248 = vdwg.mxu0
  %v2249 = vsel %vm92, %v2180, 0.0
  %2250 = vadd.xlane.f32.xlu0 %v2249
  %v2251 = vpop.xlane.xlu0 %2250
  %v2252 = vsel %vm92, %v2181, 0.0
  %2253 = vadd.xlane.f32.xlu0 %v2252
  %v2254 = vpop.xlane.xlu0 %2253
  %v2255 = vsel %vm92, %v2182, 0.0
  %2256 = vadd.xlane.f32.xlu0 %v2255
  %v2257 = vpop.xlane.xlu0 %2256
  %v2258 = vsel %vm92, %v2183, 0.0
  %2259 = vadd.xlane.f32.xlu0 %v2258
  %v2260 = vpop.xlane.xlu0 %2259
  %v2261 = vrcp.pop %v2251
  %v2262 = vmul.f32 %v2235, %v2261
  %v2263 = vrcp.pop %v2254
  %v2264 = vmul.f32 %v2238, %v2263
  %v2265 = vrcp.pop %v2257
  %v2266 = vmul.f32 %v2243, %v2265
  %v2267 = vrcp.pop %v2260
  %v2268 = vmul.f32 %v2246, %v2267
  %2273 = vrot.lane.b32.xlu0 %v2262, 64
  %v2274 = vpop.permute.xlu0 %2273
  %2275 = vrot.lane.b32.xlu0 %v2264, 64
  %v2276 = vpop.permute.xlu0 %2275
  %2277 = vrot.lane.b32.xlu0 %v2266, 64
  %v2278 = vpop.permute.xlu0 %2277
  %2279 = vrot.lane.b32.xlu0 %v2268, 64
  %v2280 = vpop.permute.xlu0 %2279
  %v2285 = vsel %vm1754, %v2000, %v2274
  %v2286 = vsel %vm1754, %v2002, %v2276
  %v2287 = vsel %vm1754, %v2004, %v2278
  %v2288 = vsel %vm1754, %v2006, %v2280
  %v2289 = vld [vmem:[%s9] sm:$0xf]
  %v2290 = vld [vmem:[%s9 + $0x4] sm:$0xf]
  %v2291 = vld [vmem:[%s9 + $0x8] sm:$0xf]
  %v2292 = vld [vmem:[%s9 + $0xc] sm:$0xf]
  %v2293 = vpack.c.bf16 %v2286, %v2285
  %v2294 = vpack.c.bf16 %v2288, %v2287
  %2295 = vset.pattern.permute.xlu0 4
  %2296 = vperm.xlu0 %2295, %v50
  %v2297 = vpop.permute.xlu0 %2296
  %2299 = vset.pattern.permute.xlu0 4
  %2300 = vperm.xlu0 %2299, %v51
  %v2301 = vpop.permute.xlu0 %2300
  %2303 = vset.pattern.permute.xlu0 4
  %2304 = vperm.xlu0 %2303, %v52
  %v2305 = vpop.permute.xlu0 %2304
  %2307 = vset.pattern.permute.xlu0 4
  %2308 = vperm.xlu0 %2307, %v53
  %v2309 = vpop.permute.xlu0 %2308
  %v2315 = vunpack.c.l.b16 %v2289
  %v2316 = vunpack.c.l.b16 %v2290
  %v2317 = vunpack.c.l.b16 %v2291
  %v2318 = vunpack.c.l.b16 %v2292
  %v2319 = vpack.c.b16 %v2316, %v2315
  %v2320 = vpack.c.b16 %v2318, %v2317
  %v2322 = vsel %vm92, %v2319, 0
  %v2325 = vsel %vm92, %v2320, 0
  %2327 = vmatprep.subr.bf16.mxu0 0
  %2328 = vmatpush1.bf16.msra.mxu0 0
  %2329 = vmatprep.subr.bf16.mxu0 0
  %2330 = vmatpush1.bf16.msra.mxu0 0
  %2331 = vmatprep.subr.bf16.mxu0 0
  %2332 = vmatpush1.bf16.msra.mxu0 0
  %2333 = vmatprep.subr.bf16.mxu0 0
  %2334 = vmatpush1.bf16.msra.mxu0 0
  %2335 = vmatprep.subr.bf16.mxu0 0
  %2336 = vmatpush1.bf16.msra.mxu0 0
  %2337 = vmatprep.subr.bf16.mxu0 0
  %2338 = vmatpush1.bf16.msra.mxu0 0
  %2339 = vmatprep.subr.bf16.mxu0 0
  %2340 = vmatpush1.bf16.msra.mxu0 %v2294
  %2341 = vmatprep.subr.bf16.mxu0 0
  %2342 = vmatpush1.bf16.msra.mxu0 %v2293
  %2343 = vmatprep.subr.bf16.mxu0 0
  %2344 = vmatpush2.bf16.msra.mxu0 0
  %2345 = vmatprep.subr.bf16.mxu0 0
  %2346 = vmatpush2.bf16.msra.mxu0 0
  %2347 = vmatprep.subr.bf16.mxu0 0
  %2348 = vmatpush2.bf16.msra.mxu0 0
  %2349 = vmatprep.subr.bf16.mxu0 0
  %2350 = vmatpush2.bf16.msra.mxu0 0
  %2351 = vmatprep.subr.bf16.mxu0 0
  %2352 = vmatpush2.bf16.msra.mxu0 0
  %2353 = vmatprep.subr.bf16.mxu0 0
  %2354 = vmatpush2.bf16.msra.mxu0 0
  %2355 = vmatprep.subr.bf16.mxu0 0
  %2356 = vmatpush2.bf16.msra.mxu0 0
  %2357 = vmatprep.subr.bf16.mxu0 0
  %2358 = vmatpush2.bf16.msra.mxu0 0
  %2359 = vmatprep.mubr.bf16.mxu0 0
  %2360 = vmatmul.mubr.bf16.gmra.mxu0 %v2322
  %v2361 = vpop.f32.mrf.mxu0
  %v2362 = vadd.f32 %v2297, %v2361
  %v2363 = vpop.f32.mrf.mxu0
  %v2364 = vpop.f32.mrf.mxu0
  %v2365 = vadd.f32 %v2301, %v2364
  %v2366 = vpop.f32.mrf.mxu0
  %2367 = vmatprep.mubr.bf16.mxu0 0
  %2368 = vmatmul.mubr.bf16.gmra.mxu0 %v2325
  %v2369 = vpop.f32.mrf.mxu0
  %v2370 = vadd.f32 %v2305, %v2369
  %v2371 = vpop.f32.mrf.mxu0
  %v2372 = vpop.f32.mrf.mxu0
  %v2373 = vadd.f32 %v2309, %v2372
  %v2374 = vpop.f32.mrf.mxu0
  %2375 = vdwg.mxu0
  %v2376 = vadd.f32 %v331, %v2362
  %v2377 = vadd.f32 %v332, %v2365
  %v2378 = vadd.f32 %v333, %v2370
  %v2379 = vadd.f32 %v334, %v2373
  %2380 = vmatprep.subr.mxu0 0.0
  %2381 = vmatpush1.msra.mxu0 0.0
  %2382 = vmatprep.subr.mxu0 0.0
  %2383 = vmatpush1.msra.mxu0 0.0
  %2384 = vmatprep.subr.mxu0 0.0
  %2385 = vmatpush1.msra.mxu0 0.0
  %2386 = vmatprep.subr.mxu0 0.0
  %2387 = vmatpush1.msra.mxu0 0.0
  %2388 = vmatprep.subr.mxu0 0.0
  %2389 = vmatpush1.msra.mxu0 0.0
  %2390 = vmatprep.subr.mxu0 0.0
  %2391 = vmatpush1.msra.mxu0 0.0
  %2392 = vmatprep.subr.mxu0 0.0
  %2393 = vmatpush1.msra.mxu0 0.0
  %2394 = vmatprep.subr.mxu0 0.0
  %2395 = vmatpush1.msra.mxu0 0.0
  %2396 = vmatprep.subr.mxu0 0.0
  %2397 = vmatpush1.msra.mxu0 0.0
  %2398 = vmatprep.subr.mxu0 0.0
  %2399 = vmatpush1.msra.mxu0 0.0
  %2400 = vmatprep.subr.mxu0 0.0
  %2401 = vmatpush1.msra.mxu0 0.0
  %2402 = vmatprep.subr.mxu0 0.0
  %2403 = vmatpush1.msra.mxu0 0.0
  %2404 = vmatprep.subr.mxu0 0.0
  %2405 = vmatpush1.msra.mxu0 %v2379
  %2406 = vmatprep.subr.mxu0 0.0
  %2407 = vmatpush1.msra.mxu0 %v2378
  %2408 = vmatprep.subr.mxu0 0.0
  %2409 = vmatpush1.msra.mxu0 %v2377
  %2410 = vmatprep.subr.mxu0 0.0
  %2411 = vmatpush1.msra.mxu0 %v2376
  %2412 = vmatprep.subr.mxu0 0.0
  %2413 = vmatpush2.msra.mxu0 0.0
  %2414 = vmatprep.subr.mxu0 0.0
  %2415 = vmatpush2.msra.mxu0 0.0
  %2416 = vmatprep.subr.mxu0 0.0
  %2417 = vmatpush2.msra.mxu0 0.0
  %2418 = vmatprep.subr.mxu0 0.0
  %2419 = vmatpush2.msra.mxu0 0.0
  %2420 = vmatprep.subr.mxu0 0.0
  %2421 = vmatpush2.msra.mxu0 0.0
  %2422 = vmatprep.subr.mxu0 0.0
  %2423 = vmatpush2.msra.mxu0 0.0
  %2424 = vmatprep.subr.mxu0 0.0
  %2425 = vmatpush2.msra.mxu0 0.0
  %2426 = vmatprep.subr.mxu0 0.0
  %2427 = vmatpush2.msra.mxu0 0.0
  %2428 = vmatprep.subr.mxu0 0.0
  %2429 = vmatpush2.msra.mxu0 0.0
  %2430 = vmatprep.subr.mxu0 0.0
  %2431 = vmatpush2.msra.mxu0 0.0
  %2432 = vmatprep.subr.mxu0 0.0
  %2433 = vmatpush2.msra.mxu0 0.0
  %2434 = vmatprep.subr.mxu0 0.0
  %2435 = vmatpush2.msra.mxu0 0.0
  %2436 = vmatprep.subr.mxu0 0.0
  %2437 = vmatpush2.msra.mxu0 0.0
  %2438 = vmatprep.subr.mxu0 0.0
  %2439 = vmatpush2.msra.mxu0 0.0
  %2440 = vmatprep.subr.mxu0 0.0
  %2441 = vmatpush2.msra.mxu0 0.0
  %2442 = vmatprep.subr.mxu0 0.0
  %2443 = vmatpush2.msra.mxu0 0.0
  %2444 = vmatprep.mubr.f32.mxu0 0.0
  %2445 = vmatmul.mubr.f32.gmra.mxu0 %v94
  %v2446 = vpop.f32.mrf.mxu0
  %v2447 = vadd.f32 0.0, %v2446
  %v2448 = vpop.f32.mrf.mxu0
  %2449 = vmatprep.mubr.f32.mxu0 0.0
  %2450 = vmatmul.mubr.f32.gmra.mxu0 %v97
  %v2451 = vpop.f32.mrf.mxu0
  %v2452 = vadd.f32 0.0, %v2451
  %v2453 = vpop.f32.mrf.mxu0
  %2454 = vmatprep.mubr.f32.mxu0 0.0
  %2455 = vmatmul.mubr.f32.gmra.mxu0 %v100
  %v2456 = vpop.f32.mrf.mxu0
  %v2457 = vadd.f32 0.0, %v2456
  %v2458 = vpop.f32.mrf.mxu0
  %2459 = vmatprep.mubr.f32.mxu0 0.0
  %2460 = vmatmul.mubr.f32.gmra.mxu0 %v103
  %v2461 = vpop.f32.mrf.mxu0
  %v2462 = vadd.f32 0.0, %v2461
  %v2463 = vpop.f32.mrf.mxu0
  %2464 = vdwg.mxu0
  %v2465 = vsub.f32 %v2376, %v2447
  %v2466 = vsub.f32 %v2377, %v2452
  %v2467 = vsub.f32 %v2378, %v2457
  %v2468 = vsub.f32 %v2379, %v2462
  %v2469 = vmul.f32 %v2465, %v2465
  %v2470 = vmul.f32 %v2466, %v2466
  %v2471 = vmul.f32 %v2467, %v2467
  %v2472 = vmul.f32 %v2468, %v2468
  %2473 = vmatprep.subr.mxu0 0.0
  %2474 = vmatpush1.msra.mxu0 0.0
  %2475 = vmatprep.subr.mxu0 0.0
  %2476 = vmatpush1.msra.mxu0 0.0
  %2477 = vmatprep.subr.mxu0 0.0
  %2478 = vmatpush1.msra.mxu0 0.0
  %2479 = vmatprep.subr.mxu0 0.0
  %2480 = vmatpush1.msra.mxu0 0.0
  %2481 = vmatprep.subr.mxu0 0.0
  %2482 = vmatpush1.msra.mxu0 0.0
  %2483 = vmatprep.subr.mxu0 0.0
  %2484 = vmatpush1.msra.mxu0 0.0
  %2485 = vmatprep.subr.mxu0 0.0
  %2486 = vmatpush1.msra.mxu0 0.0
  %2487 = vmatprep.subr.mxu0 0.0
  %2488 = vmatpush1.msra.mxu0 0.0
  %2489 = vmatprep.subr.mxu0 0.0
  %2490 = vmatpush1.msra.mxu0 0.0
  %2491 = vmatprep.subr.mxu0 0.0
  %2492 = vmatpush1.msra.mxu0 0.0
  %2493 = vmatprep.subr.mxu0 0.0
  %2494 = vmatpush1.msra.mxu0 0.0
  %2495 = vmatprep.subr.mxu0 0.0
  %2496 = vmatpush1.msra.mxu0 0.0
  %2497 = vmatprep.subr.mxu0 0.0
  %2498 = vmatpush1.msra.mxu0 %v2472
  %2499 = vmatprep.subr.mxu0 0.0
  %2500 = vmatpush1.msra.mxu0 %v2471
  %2501 = vmatprep.subr.mxu0 0.0
  %2502 = vmatpush1.msra.mxu0 %v2470
  %2503 = vmatprep.subr.mxu0 0.0
  %2504 = vmatpush1.msra.mxu0 %v2469
  %2505 = vmatprep.subr.mxu0 0.0
  %2506 = vmatpush2.msra.mxu0 0.0
  %2507 = vmatprep.subr.mxu0 0.0
  %2508 = vmatpush2.msra.mxu0 0.0
  %2509 = vmatprep.subr.mxu0 0.0
  %2510 = vmatpush2.msra.mxu0 0.0
  %2511 = vmatprep.subr.mxu0 0.0
  %2512 = vmatpush2.msra.mxu0 0.0
  %2513 = vmatprep.subr.mxu0 0.0
  %2514 = vmatpush2.msra.mxu0 0.0
  %2515 = vmatprep.subr.mxu0 0.0
  %2516 = vmatpush2.msra.mxu0 0.0
  %2517 = vmatprep.subr.mxu0 0.0
  %2518 = vmatpush2.msra.mxu0 0.0
  %2519 = vmatprep.subr.mxu0 0.0
  %2520 = vmatpush2.msra.mxu0 0.0
  %2521 = vmatprep.subr.mxu0 0.0
  %2522 = vmatpush2.msra.mxu0 0.0
  %2523 = vmatprep.subr.mxu0 0.0
  %2524 = vmatpush2.msra.mxu0 0.0
  %2525 = vmatprep.subr.mxu0 0.0
  %2526 = vmatpush2.msra.mxu0 0.0
  %2527 = vmatprep.subr.mxu0 0.0
  %2528 = vmatpush2.msra.mxu0 0.0
  %2529 = vmatprep.subr.mxu0 0.0
  %2530 = vmatpush2.msra.mxu0 0.0
  %2531 = vmatprep.subr.mxu0 0.0
  %2532 = vmatpush2.msra.mxu0 0.0
  %2533 = vmatprep.subr.mxu0 0.0
  %2534 = vmatpush2.msra.mxu0 0.0
  %2535 = vmatprep.subr.mxu0 0.0
  %2536 = vmatpush2.msra.mxu0 0.0
  %2537 = vmatprep.mubr.f32.mxu0 0.0
  %2538 = vmatmul.mubr.f32.gmra.mxu0 %v94
  %v2539 = vpop.f32.mrf.mxu0
  %v2540 = vadd.f32 1e-05, %v2539
  %v2541 = vpop.f32.mrf.mxu0
  %2542 = vmatprep.mubr.f32.mxu0 0.0
  %2543 = vmatmul.mubr.f32.gmra.mxu0 %v97
  %v2544 = vpop.f32.mrf.mxu0
  %v2545 = vadd.f32 1e-05, %v2544
  %v2546 = vpop.f32.mrf.mxu0
  %2547 = vmatprep.mubr.f32.mxu0 0.0
  %2548 = vmatmul.mubr.f32.gmra.mxu0 %v100
  %v2549 = vpop.f32.mrf.mxu0
  %v2550 = vadd.f32 1e-05, %v2549
  %v2551 = vpop.f32.mrf.mxu0
  %2552 = vmatprep.mubr.f32.mxu0 0.0
  %2553 = vmatmul.mubr.f32.gmra.mxu0 %v103
  %v2554 = vpop.f32.mrf.mxu0
  %v2555 = vadd.f32 1e-05, %v2554
  %v2556 = vpop.f32.mrf.mxu0
  %2557 = vdwg.mxu0
  %v2558 = vrsqrt.pop %v2540
  %v2559 = vrsqrt.pop %v2545
  %v2560 = vrsqrt.pop %v2550
  %v2561 = vrsqrt.pop %v2555
  %v2562 = vmul.f32 %v2465, %v2558
  %v2563 = vmul.f32 %v2466, %v2559
  %v2564 = vmul.f32 %v2467, %v2560
  %v2565 = vmul.f32 %v2468, %v2561
  %2566 = vset.pattern.permute.xlu0 2
  %2567 = vperm.xlu0 %2566, %v50
  %v2568 = vpop.permute.xlu0 %2567
  %2570 = vset.pattern.permute.xlu0 2
  %2571 = vperm.xlu0 %2570, %v51
  %v2572 = vpop.permute.xlu0 %2571
  %2574 = vset.pattern.permute.xlu0 2
  %2575 = vperm.xlu0 %2574, %v52
  %v2576 = vpop.permute.xlu0 %2575
  %2578 = vset.pattern.permute.xlu0 2
  %2579 = vperm.xlu0 %2578, %v53
  %v2580 = vpop.permute.xlu0 %2579
  %v2582 = vmul.f32 %v2562, %v2568
  %v2583 = vmul.f32 %v2563, %v2572
  %v2584 = vmul.f32 %v2564, %v2576
  %v2585 = vmul.f32 %v2565, %v2580
  %2586 = vset.pattern.permute.xlu0 3
  %2587 = vperm.xlu0 %2586, %v50
  %v2588 = vpop.permute.xlu0 %2587
  %2590 = vset.pattern.permute.xlu0 3
  %2591 = vperm.xlu0 %2590, %v51
  %v2592 = vpop.permute.xlu0 %2591
  %2594 = vset.pattern.permute.xlu0 3
  %2595 = vperm.xlu0 %2594, %v52
  %v2596 = vpop.permute.xlu0 %2595
  %2598 = vset.pattern.permute.xlu0 3
  %2599 = vperm.xlu0 %2598, %v53
  %v2600 = vpop.permute.xlu0 %2599
  %v2602 = vadd.f32 %v2582, %v2588
  %v2603 = vadd.f32 %v2583, %v2592
  %v2604 = vadd.f32 %v2584, %v2596
  %v2605 = vadd.f32 %v2585, %v2600
  %v2606 = vld [vmem:[%s10] sm:$0xf]
  %v2607 = vld [vmem:[%s10 + $0x4] sm:$0xf]
  %v2608 = vld [vmem:[%s10 + $0x8] sm:$0xf]
  %v2609 = vld [vmem:[%s10 + $0xc] sm:$0xf]
  %v2610 = vld [vmem:[%s10 + $0x10] sm:$0xf]
  %v2611 = vld [vmem:[%s10 + $0x14] sm:$0xf]
  %v2612 = vld [vmem:[%s10 + $0x18] sm:$0xf]
  %v2613 = vld [vmem:[%s10 + $0x1c] sm:$0xf]
  %v2614 = vld [vmem:[%s10 + $0x20] sm:$0xf]
  %v2615 = vld [vmem:[%s10 + $0x24] sm:$0xf]
  %v2616 = vld [vmem:[%s10 + $0x28] sm:$0xf]
  %v2617 = vld [vmem:[%s10 + $0x2c] sm:$0xf]
  %v2618 = vld [vmem:[%s10 + $0x30] sm:$0xf]
  %v2619 = vld [vmem:[%s10 + $0x34] sm:$0xf]
  %v2620 = vld [vmem:[%s10 + $0x38] sm:$0xf]
  %v2621 = vld [vmem:[%s10 + $0x3c] sm:$0xf]
  %v2622 = vpack.c.bf16 %v2603, %v2602
  %v2623 = vpack.c.bf16 %v2605, %v2604
  %2625 = vset.pattern.permute.xlu0 0
  %2626 = vperm.xlu0 %2625, %v66
  %v2627 = vpop.permute.xlu0 %2626
  %2630 = vset.pattern.permute.xlu0 0
  %2631 = vperm.xlu0 %2630, %v67
  %v2632 = vpop.permute.xlu0 %2631
  %2635 = vset.pattern.permute.xlu0 0
  %2636 = vperm.xlu0 %2635, %v68
  %v2637 = vpop.permute.xlu0 %2636
  %2640 = vset.pattern.permute.xlu0 0
  %2641 = vperm.xlu0 %2640, %v69
  %v2642 = vpop.permute.xlu0 %2641
  %2645 = vset.pattern.permute.xlu0 0
  %2646 = vperm.xlu0 %2645, %v70
  %v2647 = vpop.permute.xlu0 %2646
  %2650 = vset.pattern.permute.xlu0 0
  %2651 = vperm.xlu0 %2650, %v71
  %v2652 = vpop.permute.xlu0 %2651
  %2655 = vset.pattern.permute.xlu0 0
  %2656 = vperm.xlu0 %2655, %v72
  %v2657 = vpop.permute.xlu0 %2656
  %2660 = vset.pattern.permute.xlu0 0
  %2661 = vperm.xlu0 %2660, %v73
  %v2662 = vpop.permute.xlu0 %2661
  %2665 = vset.pattern.permute.xlu0 0
  %2666 = vperm.xlu0 %2665, %v74
  %v2667 = vpop.permute.xlu0 %2666
  %2670 = vset.pattern.permute.xlu0 0
  %2671 = vperm.xlu0 %2670, %v75
  %v2672 = vpop.permute.xlu0 %2671
  %2675 = vset.pattern.permute.xlu0 0
  %2676 = vperm.xlu0 %2675, %v76
  %v2677 = vpop.permute.xlu0 %2676
  %2680 = vset.pattern.permute.xlu0 0
  %2681 = vperm.xlu0 %2680, %v77
  %v2682 = vpop.permute.xlu0 %2681
  %2685 = vset.pattern.permute.xlu0 0
  %2686 = vperm.xlu0 %2685, %v78
  %v2687 = vpop.permute.xlu0 %2686
  %2690 = vset.pattern.permute.xlu0 0
  %2691 = vperm.xlu0 %2690, %v79
  %v2692 = vpop.permute.xlu0 %2691
  %2695 = vset.pattern.permute.xlu0 0
  %2696 = vperm.xlu0 %2695, %v80
  %v2697 = vpop.permute.xlu0 %2696
  %2700 = vset.pattern.permute.xlu0 0
  %2701 = vperm.xlu0 %2700, %v81
  %v2702 = vpop.permute.xlu0 %2701
  %v2720 = vunpack.c.l.b16 %v2606
  %v2721 = vunpack.c.l.b16 %v2607
  %v2722 = vunpack.c.l.b16 %v2608
  %v2723 = vunpack.c.l.b16 %v2609
  %v2724 = vunpack.c.l.b16 %v2610
  %v2725 = vunpack.c.l.b16 %v2611
  %v2726 = vunpack.c.l.b16 %v2612
  %v2727 = vunpack.c.l.b16 %v2613
  %v2728 = vunpack.c.l.b16 %v2614
  %v2729 = vunpack.c.l.b16 %v2615
  %v2730 = vunpack.c.l.b16 %v2616
  %v2731 = vunpack.c.l.b16 %v2617
  %v2732 = vunpack.c.l.b16 %v2618
  %v2733 = vunpack.c.l.b16 %v2619
  %v2734 = vunpack.c.l.b16 %v2620
  %v2735 = vunpack.c.l.b16 %v2621
  %v2736 = vpack.c.b16 %v2721, %v2720
  %v2737 = vpack.c.b16 %v2723, %v2722
  %v2738 = vpack.c.b16 %v2725, %v2724
  %v2739 = vpack.c.b16 %v2727, %v2726
  %v2740 = vpack.c.b16 %v2729, %v2728
  %v2741 = vpack.c.b16 %v2731, %v2730
  %v2742 = vpack.c.b16 %v2733, %v2732
  %v2743 = vpack.c.b16 %v2735, %v2734
  %v2745 = vsel %vm92, %v2736, 0
  %v2748 = vsel %vm92, %v2737, 0
  %v2751 = vsel %vm92, %v2738, 0
  %v2754 = vsel %vm92, %v2739, 0
  %v2757 = vsel %vm92, %v2740, 0
  %v2760 = vsel %vm92, %v2741, 0
  %v2763 = vsel %vm92, %v2742, 0
  %v2766 = vsel %vm92, %v2743, 0
  %2768 = vmatprep.subr.bf16.mxu0 0
  %2769 = vmatpush1.bf16.msra.mxu0 0
  %2770 = vmatprep.subr.bf16.mxu0 0
  %2771 = vmatpush1.bf16.msra.mxu0 0
  %2772 = vmatprep.subr.bf16.mxu0 0
  %2773 = vmatpush1.bf16.msra.mxu0 0
  %2774 = vmatprep.subr.bf16.mxu0 0
  %2775 = vmatpush1.bf16.msra.mxu0 0
  %2776 = vmatprep.subr.bf16.mxu0 0
  %2777 = vmatpush1.bf16.msra.mxu0 0
  %2778 = vmatprep.subr.bf16.mxu0 0
  %2779 = vmatpush1.bf16.msra.mxu0 0
  %2780 = vmatprep.subr.bf16.mxu0 0
  %2781 = vmatpush1.bf16.msra.mxu0 %v2623
  %2782 = vmatprep.subr.bf16.mxu0 0
  %2783 = vmatpush1.bf16.msra.mxu0 %v2622
  %2784 = vmatprep.subr.bf16.mxu0 0
  %2785 = vmatpush2.bf16.msra.mxu0 0
  %2786 = vmatprep.subr.bf16.mxu0 0
  %2787 = vmatpush2.bf16.msra.mxu0 0
  %2788 = vmatprep.subr.bf16.mxu0 0
  %2789 = vmatpush2.bf16.msra.mxu0 0
  %2790 = vmatprep.subr.bf16.mxu0 0
  %2791 = vmatpush2.bf16.msra.mxu0 0
  %2792 = vmatprep.subr.bf16.mxu0 0
  %2793 = vmatpush2.bf16.msra.mxu0 0
  %2794 = vmatprep.subr.bf16.mxu0 0
  %2795 = vmatpush2.bf16.msra.mxu0 0
  %2796 = vmatprep.subr.bf16.mxu0 0
  %2797 = vmatpush2.bf16.msra.mxu0 0
  %2798 = vmatprep.subr.bf16.mxu0 0
  %2799 = vmatpush2.bf16.msra.mxu0 0
  %2800 = vmatprep.mubr.bf16.mxu0 0
  %2801 = vmatmul.mubr.bf16.gmra.mxu0 %v2745
  %v2802 = vpop.f32.mrf.mxu0
  %v2803 = vadd.f32 %v2627, %v2802
  %v2804 = vpop.f32.mrf.mxu0
  %v2805 = vpop.f32.mrf.mxu0
  %v2806 = vadd.f32 %v2632, %v2805
  %v2807 = vpop.f32.mrf.mxu0
  %2808 = vmatprep.mubr.bf16.mxu0 0
  %2809 = vmatmul.mubr.bf16.gmra.mxu0 %v2748
  %v2810 = vpop.f32.mrf.mxu0
  %v2811 = vadd.f32 %v2637, %v2810
  %v2812 = vpop.f32.mrf.mxu0
  %v2813 = vpop.f32.mrf.mxu0
  %v2814 = vadd.f32 %v2642, %v2813
  %v2815 = vpop.f32.mrf.mxu0
  %2816 = vmatprep.mubr.bf16.mxu0 0
  %2817 = vmatmul.mubr.bf16.gmra.mxu0 %v2751
  %v2818 = vpop.f32.mrf.mxu0
  %v2819 = vadd.f32 %v2647, %v2818
  %v2820 = vpop.f32.mrf.mxu0
  %v2821 = vpop.f32.mrf.mxu0
  %v2822 = vadd.f32 %v2652, %v2821
  %v2823 = vpop.f32.mrf.mxu0
  %2824 = vmatprep.mubr.bf16.mxu0 0
  %2825 = vmatmul.mubr.bf16.gmra.mxu0 %v2754
  %v2826 = vpop.f32.mrf.mxu0
  %v2827 = vadd.f32 %v2657, %v2826
  %v2828 = vpop.f32.mrf.mxu0
  %v2829 = vpop.f32.mrf.mxu0
  %v2830 = vadd.f32 %v2662, %v2829
  %v2831 = vpop.f32.mrf.mxu0
  %2832 = vmatprep.mubr.bf16.mxu0 0
  %2833 = vmatmul.mubr.bf16.gmra.mxu0 %v2757
  %v2834 = vpop.f32.mrf.mxu0
  %v2835 = vadd.f32 %v2667, %v2834
  %v2836 = vpop.f32.mrf.mxu0
  %v2837 = vpop.f32.mrf.mxu0
  %v2838 = vadd.f32 %v2672, %v2837
  %v2839 = vpop.f32.mrf.mxu0
  %2840 = vmatprep.mubr.bf16.mxu0 0
  %2841 = vmatmul.mubr.bf16.gmra.mxu0 %v2760
  %v2842 = vpop.f32.mrf.mxu0
  %v2843 = vadd.f32 %v2677, %v2842
  %v2844 = vpop.f32.mrf.mxu0
  %v2845 = vpop.f32.mrf.mxu0
  %v2846 = vadd.f32 %v2682, %v2845
  %v2847 = vpop.f32.mrf.mxu0
  %2848 = vmatprep.mubr.bf16.mxu0 0
  %2849 = vmatmul.mubr.bf16.gmra.mxu0 %v2763
  %v2850 = vpop.f32.mrf.mxu0
  %v2851 = vadd.f32 %v2687, %v2850
  %v2852 = vpop.f32.mrf.mxu0
  %v2853 = vpop.f32.mrf.mxu0
  %v2854 = vadd.f32 %v2692, %v2853
  %v2855 = vpop.f32.mrf.mxu0
  %2856 = vmatprep.mubr.bf16.mxu0 0
  %2857 = vmatmul.mubr.bf16.gmra.mxu0 %v2766
  %v2858 = vpop.f32.mrf.mxu0
  %v2859 = vadd.f32 %v2697, %v2858
  %v2860 = vpop.f32.mrf.mxu0
  %v2861 = vpop.f32.mrf.mxu0
  %v2862 = vadd.f32 %v2702, %v2861
  %v2863 = vpop.f32.mrf.mxu0
  %2864 = vdwg.mxu0
  %2865 = vrot.lane.b32.xlu0 %v2803, 9
  %v2866 = vpop.permute.xlu0 %2865
  %2867 = vrot.lane.b32.xlu0 %v2806, 9
  %v2868 = vpop.permute.xlu0 %2867
  %2869 = vrot.lane.b32.xlu0 %v2811, 9
  %v2870 = vpop.permute.xlu0 %2869
  %2871 = vrot.lane.b32.xlu0 %v2814, 9
  %v2872 = vpop.permute.xlu0 %2871
  %2873 = vrot.lane.b32.xlu0 %v2819, 9
  %v2874 = vpop.permute.xlu0 %2873
  %2875 = vrot.lane.b32.xlu0 %v2822, 9
  %v2876 = vpop.permute.xlu0 %2875
  %2877 = vrot.lane.b32.xlu0 %v2827, 9
  %v2878 = vpop.permute.xlu0 %2877
  %2879 = vrot.lane.b32.xlu0 %v2830, 9
  %v2880 = vpop.permute.xlu0 %2879
  %2881 = vrot.lane.b32.xlu0 %v2835, 9
  %v2882 = vpop.permute.xlu0 %2881
  %2883 = vrot.lane.b32.xlu0 %v2838, 9
  %v2884 = vpop.permute.xlu0 %2883
  %2885 = vrot.lane.b32.xlu0 %v2843, 9
  %v2886 = vpop.permute.xlu0 %2885
  %2887 = vrot.lane.b32.xlu0 %v2846, 9
  %v2888 = vpop.permute.xlu0 %2887
  %2889 = vrot.lane.b32.xlu0 %v2851, 9
  %v2890 = vpop.permute.xlu0 %2889
  %2891 = vrot.lane.b32.xlu0 %v2854, 9
  %v2892 = vpop.permute.xlu0 %2891
  %2893 = vrot.lane.b32.xlu0 %v2859, 9
  %v2894 = vpop.permute.xlu0 %2893
  %2895 = vrot.lane.b32.xlu0 %v2862, 9
  %v2896 = vpop.permute.xlu0 %2895
  %v2897 = vmul.f32 %v2866, %v565
  %v2898 = vmul.f32 %v2868, %v565
  %v2899 = vmul.f32 %v2870, %v565
  %v2900 = vmul.f32 %v2872, %v565
  %v2901 = vmul.f32 %v2874, %v565
  %v2902 = vmul.f32 %v2876, %v565
  %v2903 = vmul.f32 %v2878, %v565
  %v2904 = vmul.f32 %v2880, %v565
  %v2905 = vmul.f32 %v2882, %v565
  %v2906 = vmul.f32 %v2884, %v565
  %v2907 = vmul.f32 %v2886, %v565
  %v2908 = vmul.f32 %v2888, %v565
  %v2909 = vmul.f32 %v2890, %v565
  %v2910 = vmul.f32 %v2892, %v565
  %v2911 = vmul.f32 %v2894, %v565
  %v2912 = vmul.f32 %v2896, %v565
  %v2913 = vrot.slane %v2897, 7
  %v2914 = vrot.slane %v2898, 7
  %v2915 = vrot.slane %v2899, 7
  %v2916 = vrot.slane %v2900, 7
  %v2917 = vrot.slane %v2901, 7
  %v2918 = vrot.slane %v2902, 7
  %v2919 = vrot.slane %v2903, 7
  %v2920 = vrot.slane %v2904, 7
  %v2921 = vrot.slane %v2905, 7
  %v2922 = vrot.slane %v2906, 7
  %v2923 = vrot.slane %v2907, 7
  %v2924 = vrot.slane %v2908, 7
  %v2925 = vrot.slane %v2909, 7
  %v2926 = vrot.slane %v2910, 7
  %v2927 = vrot.slane %v2911, 7
  %v2928 = vrot.slane %v2912, 7
  %v2929 = vlaneseq
  %v2930 = vshrl.u32 %v2929, 7
  %vm2931 = vcmp.lt.s32.totalorder %v2930, 1
  %v2932 = vsel %vm2931, %v2927, %v2928
  %v2933 = vsel %vm2931, %v2926, %v2927
  %v2934 = vsel %vm2931, %v2925, %v2926
  %v2935 = vsel %vm2931, %v2924, %v2925
  %v2936 = vsel %vm2931, %v2923, %v2924
  %v2937 = vsel %vm2931, %v2922, %v2923
  %v2938 = vsel %vm2931, %v2921, %v2922
  %v2939 = vsel %vm2931, %v2920, %v2921
  %v2940 = vsel %vm2931, %v2919, %v2920
  %v2941 = vsel %vm2931, %v2918, %v2919
  %v2942 = vsel %vm2931, %v2917, %v2918
  %v2943 = vsel %vm2931, %v2916, %v2917
  %v2944 = vsel %vm2931, %v2915, %v2916
  %v2945 = vsel %vm2931, %v2914, %v2915
  %v2946 = vsel %vm2931, %v2913, %v2914
  %v2947 = vsel %vm2931, %v2928, %v2913
  %2948 = vset.pattern.permute.xlu0 2
  %2949 = vperm.xlu0 %2948, %v66
  %v2950 = vpop.permute.xlu0 %2949
  %2952 = vset.pattern.permute.xlu0 2
  %2953 = vperm.xlu0 %2952, %v67
  %v2954 = vpop.permute.xlu0 %2953
  %2956 = vset.pattern.permute.xlu0 2
  %2957 = vperm.xlu0 %2956, %v68
  %v2958 = vpop.permute.xlu0 %2957
  %2960 = vset.pattern.permute.xlu0 2
  %2961 = vperm.xlu0 %2960, %v69
  %v2962 = vpop.permute.xlu0 %2961
  %2964 = vset.pattern.permute.xlu0 2
  %2965 = vperm.xlu0 %2964, %v70
  %v2966 = vpop.permute.xlu0 %2965
  %2968 = vset.pattern.permute.xlu0 2
  %2969 = vperm.xlu0 %2968, %v71
  %v2970 = vpop.permute.xlu0 %2969
  %2972 = vset.pattern.permute.xlu0 2
  %2973 = vperm.xlu0 %2972, %v72
  %v2974 = vpop.permute.xlu0 %2973
  %2976 = vset.pattern.permute.xlu0 2
  %2977 = vperm.xlu0 %2976, %v73
  %v2978 = vpop.permute.xlu0 %2977
  %2980 = vset.pattern.permute.xlu0 2
  %2981 = vperm.xlu0 %2980, %v74
  %v2982 = vpop.permute.xlu0 %2981
  %2984 = vset.pattern.permute.xlu0 2
  %2985 = vperm.xlu0 %2984, %v75
  %v2986 = vpop.permute.xlu0 %2985
  %2988 = vset.pattern.permute.xlu0 2
  %2989 = vperm.xlu0 %2988, %v76
  %v2990 = vpop.permute.xlu0 %2989
  %2992 = vset.pattern.permute.xlu0 2
  %2993 = vperm.xlu0 %2992, %v77
  %v2994 = vpop.permute.xlu0 %2993
  %2996 = vset.pattern.permute.xlu0 2
  %2997 = vperm.xlu0 %2996, %v78
  %v2998 = vpop.permute.xlu0 %2997
  %3000 = vset.pattern.permute.xlu0 2
  %3001 = vperm.xlu0 %3000, %v79
  %v3002 = vpop.permute.xlu0 %3001
  %3004 = vset.pattern.permute.xlu0 2
  %3005 = vperm.xlu0 %3004, %v80
  %v3006 = vpop.permute.xlu0 %3005
  %3008 = vset.pattern.permute.xlu0 2
  %3009 = vperm.xlu0 %3008, %v81
  %v3010 = vpop.permute.xlu0 %3009
  %v3012 = vmul.f32 %v2947, %v2950
  %v3013 = vmul.f32 %v2946, %v2954
  %v3014 = vmul.f32 %v2945, %v2958
  %v3015 = vmul.f32 %v2944, %v2962
  %v3016 = vmul.f32 %v2943, %v2966
  %v3017 = vmul.f32 %v2942, %v2970
  %v3018 = vmul.f32 %v2941, %v2974
  %v3019 = vmul.f32 %v2940, %v2978
  %v3020 = vmul.f32 %v2939, %v2982
  %v3021 = vmul.f32 %v2938, %v2986
  %v3022 = vmul.f32 %v2937, %v2990
  %v3023 = vmul.f32 %v2936, %v2994
  %v3024 = vmul.f32 %v2935, %v2998
  %v3025 = vmul.f32 %v2934, %v3002
  %v3026 = vmul.f32 %v2933, %v3006
  %v3027 = vmul.f32 %v2932, %v3010
  %3028 = vset.pattern.permute.xlu0 1
  %3029 = vperm.xlu0 %3028, %v66
  %v3030 = vpop.permute.xlu0 %3029
  %3032 = vset.pattern.permute.xlu0 1
  %3033 = vperm.xlu0 %3032, %v67
  %v3034 = vpop.permute.xlu0 %3033
  %3036 = vset.pattern.permute.xlu0 1
  %3037 = vperm.xlu0 %3036, %v68
  %v3038 = vpop.permute.xlu0 %3037
  %3040 = vset.pattern.permute.xlu0 1
  %3041 = vperm.xlu0 %3040, %v69
  %v3042 = vpop.permute.xlu0 %3041
  %3044 = vset.pattern.permute.xlu0 1
  %3045 = vperm.xlu0 %3044, %v70
  %v3046 = vpop.permute.xlu0 %3045
  %3048 = vset.pattern.permute.xlu0 1
  %3049 = vperm.xlu0 %3048, %v71
  %v3050 = vpop.permute.xlu0 %3049
  %3052 = vset.pattern.permute.xlu0 1
  %3053 = vperm.xlu0 %3052, %v72
  %v3054 = vpop.permute.xlu0 %3053
  %3056 = vset.pattern.permute.xlu0 1
  %3057 = vperm.xlu0 %3056, %v73
  %v3058 = vpop.permute.xlu0 %3057
  %3060 = vset.pattern.permute.xlu0 1
  %3061 = vperm.xlu0 %3060, %v74
  %v3062 = vpop.permute.xlu0 %3061
  %3064 = vset.pattern.permute.xlu0 1
  %3065 = vperm.xlu0 %3064, %v75
  %v3066 = vpop.permute.xlu0 %3065
  %3068 = vset.pattern.permute.xlu0 1
  %3069 = vperm.xlu0 %3068, %v76
  %v3070 = vpop.permute.xlu0 %3069
  %3072 = vset.pattern.permute.xlu0 1
  %3073 = vperm.xlu0 %3072, %v77
  %v3074 = vpop.permute.xlu0 %3073
  %3076 = vset.pattern.permute.xlu0 1
  %3077 = vperm.xlu0 %3076, %v78
  %v3078 = vpop.permute.xlu0 %3077
  %3080 = vset.pattern.permute.xlu0 1
  %3081 = vperm.xlu0 %3080, %v79
  %v3082 = vpop.permute.xlu0 %3081
  %3084 = vset.pattern.permute.xlu0 1
  %3085 = vperm.xlu0 %3084, %v80
  %v3086 = vpop.permute.xlu0 %3085
  %3088 = vset.pattern.permute.xlu0 1
  %3089 = vperm.xlu0 %3088, %v81
  %v3090 = vpop.permute.xlu0 %3089
  %v3092 = vadd.f32 %v3030, %v3012
  %v3093 = vadd.f32 %v3034, %v3013
  %v3094 = vadd.f32 %v3038, %v3014
  %v3095 = vadd.f32 %v3042, %v3015
  %v3096 = vadd.f32 %v3046, %v3016
  %v3097 = vadd.f32 %v3050, %v3017
  %v3098 = vadd.f32 %v3054, %v3018
  %v3099 = vadd.f32 %v3058, %v3019
  %v3100 = vadd.f32 %v3062, %v3020
  %v3101 = vadd.f32 %v3066, %v3021
  %v3102 = vadd.f32 %v3070, %v3022
  %v3103 = vadd.f32 %v3074, %v3023
  %v3104 = vadd.f32 %v3078, %v3024
  %v3105 = vadd.f32 %v3082, %v3025
  %v3106 = vadd.f32 %v3086, %v3026
  %v3107 = vadd.f32 %v3090, %v3027
  %3108 = vset.pattern.permute.xlu0 3
  %3109 = vperm.xlu0 %3108, %v66
  %v3110 = vpop.permute.xlu0 %3109
  %3112 = vset.pattern.permute.xlu0 3
  %3113 = vperm.xlu0 %3112, %v67
  %v3114 = vpop.permute.xlu0 %3113
  %3116 = vset.pattern.permute.xlu0 3
  %3117 = vperm.xlu0 %3116, %v68
  %v3118 = vpop.permute.xlu0 %3117
  %3120 = vset.pattern.permute.xlu0 3
  %3121 = vperm.xlu0 %3120, %v69
  %v3122 = vpop.permute.xlu0 %3121
  %3124 = vset.pattern.permute.xlu0 3
  %3125 = vperm.xlu0 %3124, %v70
  %v3126 = vpop.permute.xlu0 %3125
  %3128 = vset.pattern.permute.xlu0 3
  %3129 = vperm.xlu0 %3128, %v71
  %v3130 = vpop.permute.xlu0 %3129
  %3132 = vset.pattern.permute.xlu0 3
  %3133 = vperm.xlu0 %3132, %v72
  %v3134 = vpop.permute.xlu0 %3133
  %3136 = vset.pattern.permute.xlu0 3
  %3137 = vperm.xlu0 %3136, %v73
  %v3138 = vpop.permute.xlu0 %3137
  %3140 = vset.pattern.permute.xlu0 3
  %3141 = vperm.xlu0 %3140, %v74
  %v3142 = vpop.permute.xlu0 %3141
  %3144 = vset.pattern.permute.xlu0 3
  %3145 = vperm.xlu0 %3144, %v75
  %v3146 = vpop.permute.xlu0 %3145
  %3148 = vset.pattern.permute.xlu0 3
  %3149 = vperm.xlu0 %3148, %v76
  %v3150 = vpop.permute.xlu0 %3149
  %3152 = vset.pattern.permute.xlu0 3
  %3153 = vperm.xlu0 %3152, %v77
  %v3154 = vpop.permute.xlu0 %3153
  %3156 = vset.pattern.permute.xlu0 3
  %3157 = vperm.xlu0 %3156, %v78
  %v3158 = vpop.permute.xlu0 %3157
  %3160 = vset.pattern.permute.xlu0 3
  %3161 = vperm.xlu0 %3160, %v79
  %v3162 = vpop.permute.xlu0 %3161
  %3164 = vset.pattern.permute.xlu0 3
  %3165 = vperm.xlu0 %3164, %v80
  %v3166 = vpop.permute.xlu0 %3165
  %3168 = vset.pattern.permute.xlu0 3
  %3169 = vperm.xlu0 %3168, %v81
  %v3170 = vpop.permute.xlu0 %3169
  %v3172 = vmul.f32 %v2897, %v3110
  %v3173 = vmul.f32 %v2898, %v3114
  %v3174 = vmul.f32 %v2899, %v3118
  %v3175 = vmul.f32 %v2900, %v3122
  %v3176 = vmul.f32 %v2901, %v3126
  %v3177 = vmul.f32 %v2902, %v3130
  %v3178 = vmul.f32 %v2903, %v3134
  %v3179 = vmul.f32 %v2904, %v3138
  %v3180 = vmul.f32 %v2905, %v3142
  %v3181 = vmul.f32 %v2906, %v3146
  %v3182 = vmul.f32 %v2907, %v3150
  %v3183 = vmul.f32 %v2908, %v3154
  %v3184 = vmul.f32 %v2909, %v3158
  %v3185 = vmul.f32 %v2910, %v3162
  %v3186 = vmul.f32 %v2911, %v3166
  %v3187 = vmul.f32 %v2912, %v3170
  %v3188 = vadd.f32 %v3092, %v3172
  %v3189 = vadd.f32 %v3093, %v3173
  %v3190 = vadd.f32 %v3094, %v3174
  %v3191 = vadd.f32 %v3095, %v3175
  %v3192 = vadd.f32 %v3096, %v3176
  %v3193 = vadd.f32 %v3097, %v3177
  %v3194 = vadd.f32 %v3098, %v3178
  %v3195 = vadd.f32 %v3099, %v3179
  %v3196 = vadd.f32 %v3100, %v3180
  %v3197 = vadd.f32 %v3101, %v3181
  %v3198 = vadd.f32 %v3102, %v3182
  %v3199 = vadd.f32 %v3103, %v3183
  %v3200 = vadd.f32 %v3104, %v3184
  %v3201 = vadd.f32 %v3105, %v3185
  %v3202 = vadd.f32 %v3106, %v3186
  %v3203 = vadd.f32 %v3107, %v3187
  %v3204 = vrot.slane %v2897, 1
  %v3205 = vrot.slane %v2898, 1
  %v3206 = vrot.slane %v2899, 1
  %v3207 = vrot.slane %v2900, 1
  %v3208 = vrot.slane %v2901, 1
  %v3209 = vrot.slane %v2902, 1
  %v3210 = vrot.slane %v2903, 1
  %v3211 = vrot.slane %v2904, 1
  %v3212 = vrot.slane %v2905, 1
  %v3213 = vrot.slane %v2906, 1
  %v3214 = vrot.slane %v2907, 1
  %v3215 = vrot.slane %v2908, 1
  %v3216 = vrot.slane %v2909, 1
  %v3217 = vrot.slane %v2910, 1
  %v3218 = vrot.slane %v2911, 1
  %v3219 = vrot.slane %v2912, 1
  %vm3220 = vcmp.lt.s32.totalorder %v2930, 7
  %v3221 = vsel %vm3220, %v3218, %v3219
  %v3222 = vsel %vm3220, %v3217, %v3218
  %v3223 = vsel %vm3220, %v3216, %v3217
  %v3224 = vsel %vm3220, %v3215, %v3216
  %v3225 = vsel %vm3220, %v3214, %v3215
  %v3226 = vsel %vm3220, %v3213, %v3214
  %v3227 = vsel %vm3220, %v3212, %v3213
  %v3228 = vsel %vm3220, %v3211, %v3212
  %v3229 = vsel %vm3220, %v3210, %v3211
  %v3230 = vsel %vm3220, %v3209, %v3210
  %v3231 = vsel %vm3220, %v3208, %v3209
  %v3232 = vsel %vm3220, %v3207, %v3208
  %v3233 = vsel %vm3220, %v3206, %v3207
  %v3234 = vsel %vm3220, %v3205, %v3206
  %v3235 = vsel %vm3220, %v3204, %v3205
  %v3236 = vsel %vm3220, %v3219, %v3204
  %3237 = vset.pattern.permute.xlu0 4
  %3238 = vperm.xlu0 %3237, %v66
  %v3239 = vpop.permute.xlu0 %3238
  %3241 = vset.pattern.permute.xlu0 4
  %3242 = vperm.xlu0 %3241, %v67
  %v3243 = vpop.permute.xlu0 %3242
  %3245 = vset.pattern.permute.xlu0 4
  %3246 = vperm.xlu0 %3245, %v68
  %v3247 = vpop.permute.xlu0 %3246
  %3249 = vset.pattern.permute.xlu0 4
  %3250 = vperm.xlu0 %3249, %v69
  %v3251 = vpop.permute.xlu0 %3250
  %3253 = vset.pattern.permute.xlu0 4
  %3254 = vperm.xlu0 %3253, %v70
  %v3255 = vpop.permute.xlu0 %3254
  %3257 = vset.pattern.permute.xlu0 4
  %3258 = vperm.xlu0 %3257, %v71
  %v3259 = vpop.permute.xlu0 %3258
  %3261 = vset.pattern.permute.xlu0 4
  %3262 = vperm.xlu0 %3261, %v72
  %v3263 = vpop.permute.xlu0 %3262
  %3265 = vset.pattern.permute.xlu0 4
  %3266 = vperm.xlu0 %3265, %v73
  %v3267 = vpop.permute.xlu0 %3266
  %3269 = vset.pattern.permute.xlu0 4
  %3270 = vperm.xlu0 %3269, %v74
  %v3271 = vpop.permute.xlu0 %3270
  %3273 = vset.pattern.permute.xlu0 4
  %3274 = vperm.xlu0 %3273, %v75
  %v3275 = vpop.permute.xlu0 %3274
  %3277 = vset.pattern.permute.xlu0 4
  %3278 = vperm.xlu0 %3277, %v76
  %v3279 = vpop.permute.xlu0 %3278
  %3281 = vset.pattern.permute.xlu0 4
  %3282 = vperm.xlu0 %3281, %v77
  %v3283 = vpop.permute.xlu0 %3282
  %3285 = vset.pattern.permute.xlu0 4
  %3286 = vperm.xlu0 %3285, %v78
  %v3287 = vpop.permute.xlu0 %3286
  %3289 = vset.pattern.permute.xlu0 4
  %3290 = vperm.xlu0 %3289, %v79
  %v3291 = vpop.permute.xlu0 %3290
  %3293 = vset.pattern.permute.xlu0 4
  %3294 = vperm.xlu0 %3293, %v80
  %v3295 = vpop.permute.xlu0 %3294
  %3297 = vset.pattern.permute.xlu0 4
  %3298 = vperm.xlu0 %3297, %v81
  %v3299 = vpop.permute.xlu0 %3298
  %v3301 = vmul.f32 %v3235, %v3239
  %v3302 = vmul.f32 %v3234, %v3243
  %v3303 = vmul.f32 %v3233, %v3247
  %v3304 = vmul.f32 %v3232, %v3251
  %v3305 = vmul.f32 %v3231, %v3255
  %v3306 = vmul.f32 %v3230, %v3259
  %v3307 = vmul.f32 %v3229, %v3263
  %v3308 = vmul.f32 %v3228, %v3267
  %v3309 = vmul.f32 %v3227, %v3271
  %v3310 = vmul.f32 %v3226, %v3275
  %v3311 = vmul.f32 %v3225, %v3279
  %v3312 = vmul.f32 %v3224, %v3283
  %v3313 = vmul.f32 %v3223, %v3287
  %v3314 = vmul.f32 %v3222, %v3291
  %v3315 = vmul.f32 %v3221, %v3295
  %v3316 = vmul.f32 %v3236, %v3299
  %v3317 = vadd.f32 %v3188, %v3301
  %v3318 = vadd.f32 %v3189, %v3302
  %v3319 = vadd.f32 %v3190, %v3303
  %v3320 = vadd.f32 %v3191, %v3304
  %v3321 = vadd.f32 %v3192, %v3305
  %v3322 = vadd.f32 %v3193, %v3306
  %v3323 = vadd.f32 %v3194, %v3307
  %v3324 = vadd.f32 %v3195, %v3308
  %v3325 = vadd.f32 %v3196, %v3309
  %v3326 = vadd.f32 %v3197, %v3310
  %v3327 = vadd.f32 %v3198, %v3311
  %v3328 = vadd.f32 %v3199, %v3312
  %v3329 = vadd.f32 %v3200, %v3313
  %v3330 = vadd.f32 %v3201, %v3314
  %v3331 = vadd.f32 %v3202, %v3315
  %v3332 = vadd.f32 %v3203, %v3316
  %3333 = vrot.lane.b32.xlu0 %v2803, 8
  %v3334 = vpop.permute.xlu0 %3333
  %3335 = vrot.lane.b32.xlu0 %v2806, 8
  %v3336 = vpop.permute.xlu0 %3335
  %3337 = vrot.lane.b32.xlu0 %v2811, 8
  %v3338 = vpop.permute.xlu0 %3337
  %3339 = vrot.lane.b32.xlu0 %v2814, 8
  %v3340 = vpop.permute.xlu0 %3339
  %3341 = vrot.lane.b32.xlu0 %v2819, 8
  %v3342 = vpop.permute.xlu0 %3341
  %3343 = vrot.lane.b32.xlu0 %v2822, 8
  %v3344 = vpop.permute.xlu0 %3343
  %3345 = vrot.lane.b32.xlu0 %v2827, 8
  %v3346 = vpop.permute.xlu0 %3345
  %3347 = vrot.lane.b32.xlu0 %v2830, 8
  %v3348 = vpop.permute.xlu0 %3347
  %3349 = vrot.lane.b32.xlu0 %v2835, 8
  %v3350 = vpop.permute.xlu0 %3349
  %3351 = vrot.lane.b32.xlu0 %v2838, 8
  %v3352 = vpop.permute.xlu0 %3351
  %3353 = vrot.lane.b32.xlu0 %v2843, 8
  %v3354 = vpop.permute.xlu0 %3353
  %3355 = vrot.lane.b32.xlu0 %v2846, 8
  %v3356 = vpop.permute.xlu0 %3355
  %3357 = vrot.lane.b32.xlu0 %v2851, 8
  %v3358 = vpop.permute.xlu0 %3357
  %3359 = vrot.lane.b32.xlu0 %v2854, 8
  %v3360 = vpop.permute.xlu0 %3359
  %3361 = vrot.lane.b32.xlu0 %v2859, 8
  %v3362 = vpop.permute.xlu0 %3361
  %3363 = vrot.lane.b32.xlu0 %v2862, 8
  %v3364 = vpop.permute.xlu0 %3363
  %v3365 = vmul.f32 %v3334, %v725
  %v3366 = vmul.f32 %v3336, %v725
  %v3367 = vmul.f32 %v3338, %v725
  %v3368 = vmul.f32 %v3340, %v725
  %v3369 = vmul.f32 %v3342, %v725
  %v3370 = vmul.f32 %v3344, %v725
  %v3371 = vmul.f32 %v3346, %v725
  %v3372 = vmul.f32 %v3348, %v725
  %v3373 = vmul.f32 %v3350, %v725
  %v3374 = vmul.f32 %v3352, %v725
  %v3375 = vmul.f32 %v3354, %v725
  %v3376 = vmul.f32 %v3356, %v725
  %v3377 = vmul.f32 %v3358, %v725
  %v3378 = vmul.f32 %v3360, %v725
  %v3379 = vmul.f32 %v3362, %v725
  %v3380 = vmul.f32 %v3364, %v725
  %v3381 = vrot.slane %v3365, 7
  %v3382 = vrot.slane %v3366, 7
  %v3383 = vrot.slane %v3367, 7
  %v3384 = vrot.slane %v3368, 7
  %v3385 = vrot.slane %v3369, 7
  %v3386 = vrot.slane %v3370, 7
  %v3387 = vrot.slane %v3371, 7
  %v3388 = vrot.slane %v3372, 7
  %v3389 = vrot.slane %v3373, 7
  %v3390 = vrot.slane %v3374, 7
  %v3391 = vrot.slane %v3375, 7
  %v3392 = vrot.slane %v3376, 7
  %v3393 = vrot.slane %v3377, 7
  %v3394 = vrot.slane %v3378, 7
  %v3395 = vrot.slane %v3379, 7
  %v3396 = vrot.slane %v3380, 7
  %v3397 = vsel %vm2931, %v3395, %v3396
  %v3398 = vsel %vm2931, %v3394, %v3395
  %v3399 = vsel %vm2931, %v3393, %v3394
  %v3400 = vsel %vm2931, %v3392, %v3393
  %v3401 = vsel %vm2931, %v3391, %v3392
  %v3402 = vsel %vm2931, %v3390, %v3391
  %v3403 = vsel %vm2931, %v3389, %v3390
  %v3404 = vsel %vm2931, %v3388, %v3389
  %v3405 = vsel %vm2931, %v3387, %v3388
  %v3406 = vsel %vm2931, %v3386, %v3387
  %v3407 = vsel %vm2931, %v3385, %v3386
  %v3408 = vsel %vm2931, %v3384, %v3385
  %v3409 = vsel %vm2931, %v3383, %v3384
  %v3410 = vsel %vm2931, %v3382, %v3383
  %v3411 = vsel %vm2931, %v3381, %v3382
  %v3412 = vsel %vm2931, %v3396, %v3381
  %3413 = vset.pattern.permute.xlu0 5
  %3414 = vperm.xlu0 %3413, %v66
  %v3415 = vpop.permute.xlu0 %3414
  %3417 = vset.pattern.permute.xlu0 5
  %3418 = vperm.xlu0 %3417, %v67
  %v3419 = vpop.permute.xlu0 %3418
  %3421 = vset.pattern.permute.xlu0 5
  %3422 = vperm.xlu0 %3421, %v68
  %v3423 = vpop.permute.xlu0 %3422
  %3425 = vset.pattern.permute.xlu0 5
  %3426 = vperm.xlu0 %3425, %v69
  %v3427 = vpop.permute.xlu0 %3426
  %3429 = vset.pattern.permute.xlu0 5
  %3430 = vperm.xlu0 %3429, %v70
  %v3431 = vpop.permute.xlu0 %3430
  %3433 = vset.pattern.permute.xlu0 5
  %3434 = vperm.xlu0 %3433, %v71
  %v3435 = vpop.permute.xlu0 %3434
  %3437 = vset.pattern.permute.xlu0 5
  %3438 = vperm.xlu0 %3437, %v72
  %v3439 = vpop.permute.xlu0 %3438
  %3441 = vset.pattern.permute.xlu0 5
  %3442 = vperm.xlu0 %3441, %v73
  %v3443 = vpop.permute.xlu0 %3442
  %3445 = vset.pattern.permute.xlu0 5
  %3446 = vperm.xlu0 %3445, %v74
  %v3447 = vpop.permute.xlu0 %3446
  %3449 = vset.pattern.permute.xlu0 5
  %3450 = vperm.xlu0 %3449, %v75
  %v3451 = vpop.permute.xlu0 %3450
  %3453 = vset.pattern.permute.xlu0 5
  %3454 = vperm.xlu0 %3453, %v76
  %v3455 = vpop.permute.xlu0 %3454
  %3457 = vset.pattern.permute.xlu0 5
  %3458 = vperm.xlu0 %3457, %v77
  %v3459 = vpop.permute.xlu0 %3458
  %3461 = vset.pattern.permute.xlu0 5
  %3462 = vperm.xlu0 %3461, %v78
  %v3463 = vpop.permute.xlu0 %3462
  %3465 = vset.pattern.permute.xlu0 5
  %3466 = vperm.xlu0 %3465, %v79
  %v3467 = vpop.permute.xlu0 %3466
  %3469 = vset.pattern.permute.xlu0 5
  %3470 = vperm.xlu0 %3469, %v80
  %v3471 = vpop.permute.xlu0 %3470
  %3473 = vset.pattern.permute.xlu0 5
  %3474 = vperm.xlu0 %3473, %v81
  %v3475 = vpop.permute.xlu0 %3474
  %v3477 = vmul.f32 %v3412, %v3415
  %v3478 = vmul.f32 %v3411, %v3419
  %v3479 = vmul.f32 %v3410, %v3423
  %v3480 = vmul.f32 %v3409, %v3427
  %v3481 = vmul.f32 %v3408, %v3431
  %v3482 = vmul.f32 %v3407, %v3435
  %v3483 = vmul.f32 %v3406, %v3439
  %v3484 = vmul.f32 %v3405, %v3443
  %v3485 = vmul.f32 %v3404, %v3447
  %v3486 = vmul.f32 %v3403, %v3451
  %v3487 = vmul.f32 %v3402, %v3455
  %v3488 = vmul.f32 %v3401, %v3459
  %v3489 = vmul.f32 %v3400, %v3463
  %v3490 = vmul.f32 %v3399, %v3467
  %v3491 = vmul.f32 %v3398, %v3471
  %v3492 = vmul.f32 %v3397, %v3475
  %v3493 = vadd.f32 %v3317, %v3477
  %v3494 = vadd.f32 %v3318, %v3478
  %v3495 = vadd.f32 %v3319, %v3479
  %v3496 = vadd.f32 %v3320, %v3480
  %v3497 = vadd.f32 %v3321, %v3481
  %v3498 = vadd.f32 %v3322, %v3482
  %v3499 = vadd.f32 %v3323, %v3483
  %v3500 = vadd.f32 %v3324, %v3484
  %v3501 = vadd.f32 %v3325, %v3485
  %v3502 = vadd.f32 %v3326, %v3486
  %v3503 = vadd.f32 %v3327, %v3487
  %v3504 = vadd.f32 %v3328, %v3488
  %v3505 = vadd.f32 %v3329, %v3489
  %v3506 = vadd.f32 %v3330, %v3490
  %v3507 = vadd.f32 %v3331, %v3491
  %v3508 = vadd.f32 %v3332, %v3492
  %3509 = vset.pattern.permute.xlu0 6
  %3510 = vperm.xlu0 %3509, %v66
  %v3511 = vpop.permute.xlu0 %3510
  %3513 = vset.pattern.permute.xlu0 6
  %3514 = vperm.xlu0 %3513, %v67
  %v3515 = vpop.permute.xlu0 %3514
  %3517 = vset.pattern.permute.xlu0 6
  %3518 = vperm.xlu0 %3517, %v68
  %v3519 = vpop.permute.xlu0 %3518
  %3521 = vset.pattern.permute.xlu0 6
  %3522 = vperm.xlu0 %3521, %v69
  %v3523 = vpop.permute.xlu0 %3522
  %3525 = vset.pattern.permute.xlu0 6
  %3526 = vperm.xlu0 %3525, %v70
  %v3527 = vpop.permute.xlu0 %3526
  %3529 = vset.pattern.permute.xlu0 6
  %3530 = vperm.xlu0 %3529, %v71
  %v3531 = vpop.permute.xlu0 %3530
  %3533 = vset.pattern.permute.xlu0 6
  %3534 = vperm.xlu0 %3533, %v72
  %v3535 = vpop.permute.xlu0 %3534
  %3537 = vset.pattern.permute.xlu0 6
  %3538 = vperm.xlu0 %3537, %v73
  %v3539 = vpop.permute.xlu0 %3538
  %3541 = vset.pattern.permute.xlu0 6
  %3542 = vperm.xlu0 %3541, %v74
  %v3543 = vpop.permute.xlu0 %3542
  %3545 = vset.pattern.permute.xlu0 6
  %3546 = vperm.xlu0 %3545, %v75
  %v3547 = vpop.permute.xlu0 %3546
  %3549 = vset.pattern.permute.xlu0 6
  %3550 = vperm.xlu0 %3549, %v76
  %v3551 = vpop.permute.xlu0 %3550
  %3553 = vset.pattern.permute.xlu0 6
  %3554 = vperm.xlu0 %3553, %v77
  %v3555 = vpop.permute.xlu0 %3554
  %3557 = vset.pattern.permute.xlu0 6
  %3558 = vperm.xlu0 %3557, %v78
  %v3559 = vpop.permute.xlu0 %3558
  %3561 = vset.pattern.permute.xlu0 6
  %3562 = vperm.xlu0 %3561, %v79
  %v3563 = vpop.permute.xlu0 %3562
  %3565 = vset.pattern.permute.xlu0 6
  %3566 = vperm.xlu0 %3565, %v80
  %v3567 = vpop.permute.xlu0 %3566
  %3569 = vset.pattern.permute.xlu0 6
  %3570 = vperm.xlu0 %3569, %v81
  %v3571 = vpop.permute.xlu0 %3570
  %v3573 = vmul.f32 %v3365, %v3511
  %v3574 = vmul.f32 %v3366, %v3515
  %v3575 = vmul.f32 %v3367, %v3519
  %v3576 = vmul.f32 %v3368, %v3523
  %v3577 = vmul.f32 %v3369, %v3527
  %v3578 = vmul.f32 %v3370, %v3531
  %v3579 = vmul.f32 %v3371, %v3535
  %v3580 = vmul.f32 %v3372, %v3539
  %v3581 = vmul.f32 %v3373, %v3543
  %v3582 = vmul.f32 %v3374, %v3547
  %v3583 = vmul.f32 %v3375, %v3551
  %v3584 = vmul.f32 %v3376, %v3555
  %v3585 = vmul.f32 %v3377, %v3559
  %v3586 = vmul.f32 %v3378, %v3563
  %v3587 = vmul.f32 %v3379, %v3567
  %v3588 = vmul.f32 %v3380, %v3571
  %v3589 = vadd.f32 %v3493, %v3573
  %v3590 = vadd.f32 %v3494, %v3574
  %v3591 = vadd.f32 %v3495, %v3575
  %v3592 = vadd.f32 %v3496, %v3576
  %v3593 = vadd.f32 %v3497, %v3577
  %v3594 = vadd.f32 %v3498, %v3578
  %v3595 = vadd.f32 %v3499, %v3579
  %v3596 = vadd.f32 %v3500, %v3580
  %v3597 = vadd.f32 %v3501, %v3581
  %v3598 = vadd.f32 %v3502, %v3582
  %v3599 = vadd.f32 %v3503, %v3583
  %v3600 = vadd.f32 %v3504, %v3584
  %v3601 = vadd.f32 %v3505, %v3585
  %v3602 = vadd.f32 %v3506, %v3586
  %v3603 = vadd.f32 %v3507, %v3587
  %v3604 = vadd.f32 %v3508, %v3588
  %v3605 = vrot.slane %v3365, 1
  %v3606 = vrot.slane %v3366, 1
  %v3607 = vrot.slane %v3367, 1
  %v3608 = vrot.slane %v3368, 1
  %v3609 = vrot.slane %v3369, 1
  %v3610 = vrot.slane %v3370, 1
  %v3611 = vrot.slane %v3371, 1
  %v3612 = vrot.slane %v3372, 1
  %v3613 = vrot.slane %v3373, 1
  %v3614 = vrot.slane %v3374, 1
  %v3615 = vrot.slane %v3375, 1
  %v3616 = vrot.slane %v3376, 1
  %v3617 = vrot.slane %v3377, 1
  %v3618 = vrot.slane %v3378, 1
  %v3619 = vrot.slane %v3379, 1
  %v3620 = vrot.slane %v3380, 1
  %v3621 = vsel %vm3220, %v3619, %v3620
  %v3622 = vsel %vm3220, %v3618, %v3619
  %v3623 = vsel %vm3220, %v3617, %v3618
  %v3624 = vsel %vm3220, %v3616, %v3617
  %v3625 = vsel %vm3220, %v3615, %v3616
  %v3626 = vsel %vm3220, %v3614, %v3615
  %v3627 = vsel %vm3220, %v3613, %v3614
  %v3628 = vsel %vm3220, %v3612, %v3613
  %v3629 = vsel %vm3220, %v3611, %v3612
  %v3630 = vsel %vm3220, %v3610, %v3611
  %v3631 = vsel %vm3220, %v3609, %v3610
  %v3632 = vsel %vm3220, %v3608, %v3609
  %v3633 = vsel %vm3220, %v3607, %v3608
  %v3634 = vsel %vm3220, %v3606, %v3607
  %v3635 = vsel %vm3220, %v3605, %v3606
  %v3636 = vsel %vm3220, %v3620, %v3605
  %3637 = vset.pattern.permute.xlu0 7
  %3638 = vperm.xlu0 %3637, %v66
  %v3639 = vpop.permute.xlu0 %3638
  %3641 = vset.pattern.permute.xlu0 7
  %3642 = vperm.xlu0 %3641, %v67
  %v3643 = vpop.permute.xlu0 %3642
  %3645 = vset.pattern.permute.xlu0 7
  %3646 = vperm.xlu0 %3645, %v68
  %v3647 = vpop.permute.xlu0 %3646
  %3649 = vset.pattern.permute.xlu0 7
  %3650 = vperm.xlu0 %3649, %v69
  %v3651 = vpop.permute.xlu0 %3650
  %3653 = vset.pattern.permute.xlu0 7
  %3654 = vperm.xlu0 %3653, %v70
  %v3655 = vpop.permute.xlu0 %3654
  %3657 = vset.pattern.permute.xlu0 7
  %3658 = vperm.xlu0 %3657, %v71
  %v3659 = vpop.permute.xlu0 %3658
  %3661 = vset.pattern.permute.xlu0 7
  %3662 = vperm.xlu0 %3661, %v72
  %v3663 = vpop.permute.xlu0 %3662
  %3665 = vset.pattern.permute.xlu0 7
  %3666 = vperm.xlu0 %3665, %v73
  %v3667 = vpop.permute.xlu0 %3666
  %3669 = vset.pattern.permute.xlu0 7
  %3670 = vperm.xlu0 %3669, %v74
  %v3671 = vpop.permute.xlu0 %3670
  %3673 = vset.pattern.permute.xlu0 7
  %3674 = vperm.xlu0 %3673, %v75
  %v3675 = vpop.permute.xlu0 %3674
  %3677 = vset.pattern.permute.xlu0 7
  %3678 = vperm.xlu0 %3677, %v76
  %v3679 = vpop.permute.xlu0 %3678
  %3681 = vset.pattern.permute.xlu0 7
  %3682 = vperm.xlu0 %3681, %v77
  %v3683 = vpop.permute.xlu0 %3682
  %3685 = vset.pattern.permute.xlu0 7
  %3686 = vperm.xlu0 %3685, %v78
  %v3687 = vpop.permute.xlu0 %3686
  %3689 = vset.pattern.permute.xlu0 7
  %3690 = vperm.xlu0 %3689, %v79
  %v3691 = vpop.permute.xlu0 %3690
  %3693 = vset.pattern.permute.xlu0 7
  %3694 = vperm.xlu0 %3693, %v80
  %v3695 = vpop.permute.xlu0 %3694
  %3697 = vset.pattern.permute.xlu0 7
  %3698 = vperm.xlu0 %3697, %v81
  %v3699 = vpop.permute.xlu0 %3698
  %v3701 = vmul.f32 %v3635, %v3639
  %v3702 = vmul.f32 %v3634, %v3643
  %v3703 = vmul.f32 %v3633, %v3647
  %v3704 = vmul.f32 %v3632, %v3651
  %v3705 = vmul.f32 %v3631, %v3655
  %v3706 = vmul.f32 %v3630, %v3659
  %v3707 = vmul.f32 %v3629, %v3663
  %v3708 = vmul.f32 %v3628, %v3667
  %v3709 = vmul.f32 %v3627, %v3671
  %v3710 = vmul.f32 %v3626, %v3675
  %v3711 = vmul.f32 %v3625, %v3679
  %v3712 = vmul.f32 %v3624, %v3683
  %v3713 = vmul.f32 %v3623, %v3687
  %v3714 = vmul.f32 %v3622, %v3691
  %v3715 = vmul.f32 %v3621, %v3695
  %v3716 = vmul.f32 %v3636, %v3699
  %v3717 = vadd.f32 %v3589, %v3701
  %v3718 = vadd.f32 %v3590, %v3702
  %v3719 = vadd.f32 %v3591, %v3703
  %v3720 = vadd.f32 %v3592, %v3704
  %v3721 = vadd.f32 %v3593, %v3705
  %v3722 = vadd.f32 %v3594, %v3706
  %v3723 = vadd.f32 %v3595, %v3707
  %v3724 = vadd.f32 %v3596, %v3708
  %v3725 = vadd.f32 %v3597, %v3709
  %v3726 = vadd.f32 %v3598, %v3710
  %v3727 = vadd.f32 %v3599, %v3711
  %v3728 = vadd.f32 %v3600, %v3712
  %v3729 = vadd.f32 %v3601, %v3713
  %v3730 = vadd.f32 %v3602, %v3714
  %v3731 = vadd.f32 %v3603, %v3715
  %v3732 = vadd.f32 %v3604, %v3716
  %3733 = vrot.lane.b32.xlu0 %v2803, 7
  %v3734 = vpop.permute.xlu0 %3733
  %3735 = vrot.lane.b32.xlu0 %v2806, 7
  %v3736 = vpop.permute.xlu0 %3735
  %3737 = vrot.lane.b32.xlu0 %v2811, 7
  %v3738 = vpop.permute.xlu0 %3737
  %3739 = vrot.lane.b32.xlu0 %v2814, 7
  %v3740 = vpop.permute.xlu0 %3739
  %3741 = vrot.lane.b32.xlu0 %v2819, 7
  %v3742 = vpop.permute.xlu0 %3741
  %3743 = vrot.lane.b32.xlu0 %v2822, 7
  %v3744 = vpop.permute.xlu0 %3743
  %3745 = vrot.lane.b32.xlu0 %v2827, 7
  %v3746 = vpop.permute.xlu0 %3745
  %3747 = vrot.lane.b32.xlu0 %v2830, 7
  %v3748 = vpop.permute.xlu0 %3747
  %3749 = vrot.lane.b32.xlu0 %v2835, 7
  %v3750 = vpop.permute.xlu0 %3749
  %3751 = vrot.lane.b32.xlu0 %v2838, 7
  %v3752 = vpop.permute.xlu0 %3751
  %3753 = vrot.lane.b32.xlu0 %v2843, 7
  %v3754 = vpop.permute.xlu0 %3753
  %3755 = vrot.lane.b32.xlu0 %v2846, 7
  %v3756 = vpop.permute.xlu0 %3755
  %3757 = vrot.lane.b32.xlu0 %v2851, 7
  %v3758 = vpop.permute.xlu0 %3757
  %3759 = vrot.lane.b32.xlu0 %v2854, 7
  %v3760 = vpop.permute.xlu0 %3759
  %3761 = vrot.lane.b32.xlu0 %v2859, 7
  %v3762 = vpop.permute.xlu0 %3761
  %3763 = vrot.lane.b32.xlu0 %v2862, 7
  %v3764 = vpop.permute.xlu0 %3763
  %v3765 = vmul.f32 %v3734, %v837
  %v3766 = vmul.f32 %v3736, %v837
  %v3767 = vmul.f32 %v3738, %v837
  %v3768 = vmul.f32 %v3740, %v837
  %v3769 = vmul.f32 %v3742, %v837
  %v3770 = vmul.f32 %v3744, %v837
  %v3771 = vmul.f32 %v3746, %v837
  %v3772 = vmul.f32 %v3748, %v837
  %v3773 = vmul.f32 %v3750, %v837
  %v3774 = vmul.f32 %v3752, %v837
  %v3775 = vmul.f32 %v3754, %v837
  %v3776 = vmul.f32 %v3756, %v837
  %v3777 = vmul.f32 %v3758, %v837
  %v3778 = vmul.f32 %v3760, %v837
  %v3779 = vmul.f32 %v3762, %v837
  %v3780 = vmul.f32 %v3764, %v837
  %v3781 = vrot.slane %v3765, 7
  %v3782 = vrot.slane %v3766, 7
  %v3783 = vrot.slane %v3767, 7
  %v3784 = vrot.slane %v3768, 7
  %v3785 = vrot.slane %v3769, 7
  %v3786 = vrot.slane %v3770, 7
  %v3787 = vrot.slane %v3771, 7
  %v3788 = vrot.slane %v3772, 7
  %v3789 = vrot.slane %v3773, 7
  %v3790 = vrot.slane %v3774, 7
  %v3791 = vrot.slane %v3775, 7
  %v3792 = vrot.slane %v3776, 7
  %v3793 = vrot.slane %v3777, 7
  %v3794 = vrot.slane %v3778, 7
  %v3795 = vrot.slane %v3779, 7
  %v3796 = vrot.slane %v3780, 7
  %v3797 = vsel %vm2931, %v3795, %v3796
  %v3798 = vsel %vm2931, %v3794, %v3795
  %v3799 = vsel %vm2931, %v3793, %v3794
  %v3800 = vsel %vm2931, %v3792, %v3793
  %v3801 = vsel %vm2931, %v3791, %v3792
  %v3802 = vsel %vm2931, %v3790, %v3791
  %v3803 = vsel %vm2931, %v3789, %v3790
  %v3804 = vsel %vm2931, %v3788, %v3789
  %v3805 = vsel %vm2931, %v3787, %v3788
  %v3806 = vsel %vm2931, %v3786, %v3787
  %v3807 = vsel %vm2931, %v3785, %v3786
  %v3808 = vsel %vm2931, %v3784, %v3785
  %v3809 = vsel %vm2931, %v3783, %v3784
  %v3810 = vsel %vm2931, %v3782, %v3783
  %v3811 = vsel %vm2931, %v3781, %v3782
  %v3812 = vsel %vm2931, %v3796, %v3781
  %3813 = vset.pattern.permute.xlu0 8
  %3814 = vperm.xlu0 %3813, %v66
  %v3815 = vpop.permute.xlu0 %3814
  %3817 = vset.pattern.permute.xlu0 8
  %3818 = vperm.xlu0 %3817, %v67
  %v3819 = vpop.permute.xlu0 %3818
  %3821 = vset.pattern.permute.xlu0 8
  %3822 = vperm.xlu0 %3821, %v68
  %v3823 = vpop.permute.xlu0 %3822
  %3825 = vset.pattern.permute.xlu0 8
  %3826 = vperm.xlu0 %3825, %v69
  %v3827 = vpop.permute.xlu0 %3826
  %3829 = vset.pattern.permute.xlu0 8
  %3830 = vperm.xlu0 %3829, %v70
  %v3831 = vpop.permute.xlu0 %3830
  %3833 = vset.pattern.permute.xlu0 8
  %3834 = vperm.xlu0 %3833, %v71
  %v3835 = vpop.permute.xlu0 %3834
  %3837 = vset.pattern.permute.xlu0 8
  %3838 = vperm.xlu0 %3837, %v72
  %v3839 = vpop.permute.xlu0 %3838
  %3841 = vset.pattern.permute.xlu0 8
  %3842 = vperm.xlu0 %3841, %v73
  %v3843 = vpop.permute.xlu0 %3842
  %3845 = vset.pattern.permute.xlu0 8
  %3846 = vperm.xlu0 %3845, %v74
  %v3847 = vpop.permute.xlu0 %3846
  %3849 = vset.pattern.permute.xlu0 8
  %3850 = vperm.xlu0 %3849, %v75
  %v3851 = vpop.permute.xlu0 %3850
  %3853 = vset.pattern.permute.xlu0 8
  %3854 = vperm.xlu0 %3853, %v76
  %v3855 = vpop.permute.xlu0 %3854
  %3857 = vset.pattern.permute.xlu0 8
  %3858 = vperm.xlu0 %3857, %v77
  %v3859 = vpop.permute.xlu0 %3858
  %3861 = vset.pattern.permute.xlu0 8
  %3862 = vperm.xlu0 %3861, %v78
  %v3863 = vpop.permute.xlu0 %3862
  %3865 = vset.pattern.permute.xlu0 8
  %3866 = vperm.xlu0 %3865, %v79
  %v3867 = vpop.permute.xlu0 %3866
  %3869 = vset.pattern.permute.xlu0 8
  %3870 = vperm.xlu0 %3869, %v80
  %v3871 = vpop.permute.xlu0 %3870
  %3873 = vset.pattern.permute.xlu0 8
  %3874 = vperm.xlu0 %3873, %v81
  %v3875 = vpop.permute.xlu0 %3874
  %v3877 = vmul.f32 %v3812, %v3815
  %v3878 = vmul.f32 %v3811, %v3819
  %v3879 = vmul.f32 %v3810, %v3823
  %v3880 = vmul.f32 %v3809, %v3827
  %v3881 = vmul.f32 %v3808, %v3831
  %v3882 = vmul.f32 %v3807, %v3835
  %v3883 = vmul.f32 %v3806, %v3839
  %v3884 = vmul.f32 %v3805, %v3843
  %v3885 = vmul.f32 %v3804, %v3847
  %v3886 = vmul.f32 %v3803, %v3851
  %v3887 = vmul.f32 %v3802, %v3855
  %v3888 = vmul.f32 %v3801, %v3859
  %v3889 = vmul.f32 %v3800, %v3863
  %v3890 = vmul.f32 %v3799, %v3867
  %v3891 = vmul.f32 %v3798, %v3871
  %v3892 = vmul.f32 %v3797, %v3875
  %v3893 = vadd.f32 %v3717, %v3877
  %v3894 = vadd.f32 %v3718, %v3878
  %v3895 = vadd.f32 %v3719, %v3879
  %v3896 = vadd.f32 %v3720, %v3880
  %v3897 = vadd.f32 %v3721, %v3881
  %v3898 = vadd.f32 %v3722, %v3882
  %v3899 = vadd.f32 %v3723, %v3883
  %v3900 = vadd.f32 %v3724, %v3884
  %v3901 = vadd.f32 %v3725, %v3885
  %v3902 = vadd.f32 %v3726, %v3886
  %v3903 = vadd.f32 %v3727, %v3887
  %v3904 = vadd.f32 %v3728, %v3888
  %v3905 = vadd.f32 %v3729, %v3889
  %v3906 = vadd.f32 %v3730, %v3890
  %v3907 = vadd.f32 %v3731, %v3891
  %v3908 = vadd.f32 %v3732, %v3892
  %3909 = vset.pattern.permute.xlu0 9
  %3910 = vperm.xlu0 %3909, %v66
  %v3911 = vpop.permute.xlu0 %3910
  %3913 = vset.pattern.permute.xlu0 9
  %3914 = vperm.xlu0 %3913, %v67
  %v3915 = vpop.permute.xlu0 %3914
  %3917 = vset.pattern.permute.xlu0 9
  %3918 = vperm.xlu0 %3917, %v68
  %v3919 = vpop.permute.xlu0 %3918
  %3921 = vset.pattern.permute.xlu0 9
  %3922 = vperm.xlu0 %3921, %v69
  %v3923 = vpop.permute.xlu0 %3922
  %3925 = vset.pattern.permute.xlu0 9
  %3926 = vperm.xlu0 %3925, %v70
  %v3927 = vpop.permute.xlu0 %3926
  %3929 = vset.pattern.permute.xlu0 9
  %3930 = vperm.xlu0 %3929, %v71
  %v3931 = vpop.permute.xlu0 %3930
  %3933 = vset.pattern.permute.xlu0 9
  %3934 = vperm.xlu0 %3933, %v72
  %v3935 = vpop.permute.xlu0 %3934
  %3937 = vset.pattern.permute.xlu0 9
  %3938 = vperm.xlu0 %3937, %v73
  %v3939 = vpop.permute.xlu0 %3938
  %3941 = vset.pattern.permute.xlu0 9
  %3942 = vperm.xlu0 %3941, %v74
  %v3943 = vpop.permute.xlu0 %3942
  %3945 = vset.pattern.permute.xlu0 9
  %3946 = vperm.xlu0 %3945, %v75
  %v3947 = vpop.permute.xlu0 %3946
  %3949 = vset.pattern.permute.xlu0 9
  %3950 = vperm.xlu0 %3949, %v76
  %v3951 = vpop.permute.xlu0 %3950
  %3953 = vset.pattern.permute.xlu0 9
  %3954 = vperm.xlu0 %3953, %v77
  %v3955 = vpop.permute.xlu0 %3954
  %3957 = vset.pattern.permute.xlu0 9
  %3958 = vperm.xlu0 %3957, %v78
  %v3959 = vpop.permute.xlu0 %3958
  %3961 = vset.pattern.permute.xlu0 9
  %3962 = vperm.xlu0 %3961, %v79
  %v3963 = vpop.permute.xlu0 %3962
  %3965 = vset.pattern.permute.xlu0 9
  %3966 = vperm.xlu0 %3965, %v80
  %v3967 = vpop.permute.xlu0 %3966
  %3969 = vset.pattern.permute.xlu0 9
  %3970 = vperm.xlu0 %3969, %v81
  %v3971 = vpop.permute.xlu0 %3970
  %v3973 = vmul.f32 %v3765, %v3911
  %v3974 = vmul.f32 %v3766, %v3915
  %v3975 = vmul.f32 %v3767, %v3919
  %v3976 = vmul.f32 %v3768, %v3923
  %v3977 = vmul.f32 %v3769, %v3927
  %v3978 = vmul.f32 %v3770, %v3931
  %v3979 = vmul.f32 %v3771, %v3935
  %v3980 = vmul.f32 %v3772, %v3939
  %v3981 = vmul.f32 %v3773, %v3943
  %v3982 = vmul.f32 %v3774, %v3947
  %v3983 = vmul.f32 %v3775, %v3951
  %v3984 = vmul.f32 %v3776, %v3955
  %v3985 = vmul.f32 %v3777, %v3959
  %v3986 = vmul.f32 %v3778, %v3963
  %v3987 = vmul.f32 %v3779, %v3967
  %v3988 = vmul.f32 %v3780, %v3971
  %v3989 = vadd.f32 %v3893, %v3973
  %v3990 = vadd.f32 %v3894, %v3974
  %v3991 = vadd.f32 %v3895, %v3975
  %v3992 = vadd.f32 %v3896, %v3976
  %v3993 = vadd.f32 %v3897, %v3977
  %v3994 = vadd.f32 %v3898, %v3978
  %v3995 = vadd.f32 %v3899, %v3979
  %v3996 = vadd.f32 %v3900, %v3980
  %v3997 = vadd.f32 %v3901, %v3981
  %v3998 = vadd.f32 %v3902, %v3982
  %v3999 = vadd.f32 %v3903, %v3983
  %v4000 = vadd.f32 %v3904, %v3984
  %v4001 = vadd.f32 %v3905, %v3985
  %v4002 = vadd.f32 %v3906, %v3986
  %v4003 = vadd.f32 %v3907, %v3987
  %v4004 = vadd.f32 %v3908, %v3988
  %v4005 = vrot.slane %v3765, 1
  %v4006 = vrot.slane %v3766, 1
  %v4007 = vrot.slane %v3767, 1
  %v4008 = vrot.slane %v3768, 1
  %v4009 = vrot.slane %v3769, 1
  %v4010 = vrot.slane %v3770, 1
  %v4011 = vrot.slane %v3771, 1
  %v4012 = vrot.slane %v3772, 1
  %v4013 = vrot.slane %v3773, 1
  %v4014 = vrot.slane %v3774, 1
  %v4015 = vrot.slane %v3775, 1
  %v4016 = vrot.slane %v3776, 1
  %v4017 = vrot.slane %v3777, 1
  %v4018 = vrot.slane %v3778, 1
  %v4019 = vrot.slane %v3779, 1
  %v4020 = vrot.slane %v3780, 1
  %v4021 = vsel %vm3220, %v4019, %v4020
  %v4022 = vsel %vm3220, %v4018, %v4019
  %v4023 = vsel %vm3220, %v4017, %v4018
  %v4024 = vsel %vm3220, %v4016, %v4017
  %v4025 = vsel %vm3220, %v4015, %v4016
  %v4026 = vsel %vm3220, %v4014, %v4015
  %v4027 = vsel %vm3220, %v4013, %v4014
  %v4028 = vsel %vm3220, %v4012, %v4013
  %v4029 = vsel %vm3220, %v4011, %v4012
  %v4030 = vsel %vm3220, %v4010, %v4011
  %v4031 = vsel %vm3220, %v4009, %v4010
  %v4032 = vsel %vm3220, %v4008, %v4009
  %v4033 = vsel %vm3220, %v4007, %v4008
  %v4034 = vsel %vm3220, %v4006, %v4007
  %v4035 = vsel %vm3220, %v4005, %v4006
  %v4036 = vsel %vm3220, %v4020, %v4005
  %4037 = vset.pattern.permute.xlu0 10
  %4038 = vperm.xlu0 %4037, %v66
  %v4039 = vpop.permute.xlu0 %4038
  %4041 = vset.pattern.permute.xlu0 10
  %4042 = vperm.xlu0 %4041, %v67
  %v4043 = vpop.permute.xlu0 %4042
  %4045 = vset.pattern.permute.xlu0 10
  %4046 = vperm.xlu0 %4045, %v68
  %v4047 = vpop.permute.xlu0 %4046
  %4049 = vset.pattern.permute.xlu0 10
  %4050 = vperm.xlu0 %4049, %v69
  %v4051 = vpop.permute.xlu0 %4050
  %4053 = vset.pattern.permute.xlu0 10
  %4054 = vperm.xlu0 %4053, %v70
  %v4055 = vpop.permute.xlu0 %4054
  %4057 = vset.pattern.permute.xlu0 10
  %4058 = vperm.xlu0 %4057, %v71
  %v4059 = vpop.permute.xlu0 %4058
  %4061 = vset.pattern.permute.xlu0 10
  %4062 = vperm.xlu0 %4061, %v72
  %v4063 = vpop.permute.xlu0 %4062
  %4065 = vset.pattern.permute.xlu0 10
  %4066 = vperm.xlu0 %4065, %v73
  %v4067 = vpop.permute.xlu0 %4066
  %4069 = vset.pattern.permute.xlu0 10
  %4070 = vperm.xlu0 %4069, %v74
  %v4071 = vpop.permute.xlu0 %4070
  %4073 = vset.pattern.permute.xlu0 10
  %4074 = vperm.xlu0 %4073, %v75
  %v4075 = vpop.permute.xlu0 %4074
  %4077 = vset.pattern.permute.xlu0 10
  %4078 = vperm.xlu0 %4077, %v76
  %v4079 = vpop.permute.xlu0 %4078
  %4081 = vset.pattern.permute.xlu0 10
  %4082 = vperm.xlu0 %4081, %v77
  %v4083 = vpop.permute.xlu0 %4082
  %4085 = vset.pattern.permute.xlu0 10
  %4086 = vperm.xlu0 %4085, %v78
  %v4087 = vpop.permute.xlu0 %4086
  %4089 = vset.pattern.permute.xlu0 10
  %4090 = vperm.xlu0 %4089, %v79
  %v4091 = vpop.permute.xlu0 %4090
  %4093 = vset.pattern.permute.xlu0 10
  %4094 = vperm.xlu0 %4093, %v80
  %v4095 = vpop.permute.xlu0 %4094
  %4097 = vset.pattern.permute.xlu0 10
  %4098 = vperm.xlu0 %4097, %v81
  %v4099 = vpop.permute.xlu0 %4098
  %v4101 = vmul.f32 %v4035, %v4039
  %v4102 = vmul.f32 %v4034, %v4043
  %v4103 = vmul.f32 %v4033, %v4047
  %v4104 = vmul.f32 %v4032, %v4051
  %v4105 = vmul.f32 %v4031, %v4055
  %v4106 = vmul.f32 %v4030, %v4059
  %v4107 = vmul.f32 %v4029, %v4063
  %v4108 = vmul.f32 %v4028, %v4067
  %v4109 = vmul.f32 %v4027, %v4071
  %v4110 = vmul.f32 %v4026, %v4075
  %v4111 = vmul.f32 %v4025, %v4079
  %v4112 = vmul.f32 %v4024, %v4083
  %v4113 = vmul.f32 %v4023, %v4087
  %v4114 = vmul.f32 %v4022, %v4091
  %v4115 = vmul.f32 %v4021, %v4095
  %v4116 = vmul.f32 %v4036, %v4099
  %v4117 = vadd.f32 %v3989, %v4101
  %v4118 = vadd.f32 %v3990, %v4102
  %v4119 = vadd.f32 %v3991, %v4103
  %v4120 = vadd.f32 %v3992, %v4104
  %v4121 = vadd.f32 %v3993, %v4105
  %v4122 = vadd.f32 %v3994, %v4106
  %v4123 = vadd.f32 %v3995, %v4107
  %v4124 = vadd.f32 %v3996, %v4108
  %v4125 = vadd.f32 %v3997, %v4109
  %v4126 = vadd.f32 %v3998, %v4110
  %v4127 = vadd.f32 %v3999, %v4111
  %v4128 = vadd.f32 %v4000, %v4112
  %v4129 = vadd.f32 %v4001, %v4113
  %v4130 = vadd.f32 %v4002, %v4114
  %v4131 = vadd.f32 %v4003, %v4115
  %v4132 = vadd.f32 %v4004, %v4116
  %4133 = vrot.lane.b32.xlu0 %v2803, 1
  %v4134 = vpop.permute.xlu0 %4133
  %4135 = vrot.lane.b32.xlu0 %v2806, 1
  %v4136 = vpop.permute.xlu0 %4135
  %4137 = vrot.lane.b32.xlu0 %v2811, 1
  %v4138 = vpop.permute.xlu0 %4137
  %4139 = vrot.lane.b32.xlu0 %v2814, 1
  %v4140 = vpop.permute.xlu0 %4139
  %4141 = vrot.lane.b32.xlu0 %v2819, 1
  %v4142 = vpop.permute.xlu0 %4141
  %4143 = vrot.lane.b32.xlu0 %v2822, 1
  %v4144 = vpop.permute.xlu0 %4143
  %4145 = vrot.lane.b32.xlu0 %v2827, 1
  %v4146 = vpop.permute.xlu0 %4145
  %4147 = vrot.lane.b32.xlu0 %v2830, 1
  %v4148 = vpop.permute.xlu0 %4147
  %4149 = vrot.lane.b32.xlu0 %v2835, 1
  %v4150 = vpop.permute.xlu0 %4149
  %4151 = vrot.lane.b32.xlu0 %v2838, 1
  %v4152 = vpop.permute.xlu0 %4151
  %4153 = vrot.lane.b32.xlu0 %v2843, 1
  %v4154 = vpop.permute.xlu0 %4153
  %4155 = vrot.lane.b32.xlu0 %v2846, 1
  %v4156 = vpop.permute.xlu0 %4155
  %4157 = vrot.lane.b32.xlu0 %v2851, 1
  %v4158 = vpop.permute.xlu0 %4157
  %4159 = vrot.lane.b32.xlu0 %v2854, 1
  %v4160 = vpop.permute.xlu0 %4159
  %4161 = vrot.lane.b32.xlu0 %v2859, 1
  %v4162 = vpop.permute.xlu0 %4161
  %4163 = vrot.lane.b32.xlu0 %v2862, 1
  %v4164 = vpop.permute.xlu0 %4163
  %v4165 = vmul.f32 %v4134, %v949
  %v4166 = vmul.f32 %v4136, %v949
  %v4167 = vmul.f32 %v4138, %v949
  %v4168 = vmul.f32 %v4140, %v949
  %v4169 = vmul.f32 %v4142, %v949
  %v4170 = vmul.f32 %v4144, %v949
  %v4171 = vmul.f32 %v4146, %v949
  %v4172 = vmul.f32 %v4148, %v949
  %v4173 = vmul.f32 %v4150, %v949
  %v4174 = vmul.f32 %v4152, %v949
  %v4175 = vmul.f32 %v4154, %v949
  %v4176 = vmul.f32 %v4156, %v949
  %v4177 = vmul.f32 %v4158, %v949
  %v4178 = vmul.f32 %v4160, %v949
  %v4179 = vmul.f32 %v4162, %v949
  %v4180 = vmul.f32 %v4164, %v949
  %v4181 = vrot.slane %v4165, 7
  %v4182 = vrot.slane %v4166, 7
  %v4183 = vrot.slane %v4167, 7
  %v4184 = vrot.slane %v4168, 7
  %v4185 = vrot.slane %v4169, 7
  %v4186 = vrot.slane %v4170, 7
  %v4187 = vrot.slane %v4171, 7
  %v4188 = vrot.slane %v4172, 7
  %v4189 = vrot.slane %v4173, 7
  %v4190 = vrot.slane %v4174, 7
  %v4191 = vrot.slane %v4175, 7
  %v4192 = vrot.slane %v4176, 7
  %v4193 = vrot.slane %v4177, 7
  %v4194 = vrot.slane %v4178, 7
  %v4195 = vrot.slane %v4179, 7
  %v4196 = vrot.slane %v4180, 7
  %v4197 = vsel %vm2931, %v4195, %v4196
  %v4198 = vsel %vm2931, %v4194, %v4195
  %v4199 = vsel %vm2931, %v4193, %v4194
  %v4200 = vsel %vm2931, %v4192, %v4193
  %v4201 = vsel %vm2931, %v4191, %v4192
  %v4202 = vsel %vm2931, %v4190, %v4191
  %v4203 = vsel %vm2931, %v4189, %v4190
  %v4204 = vsel %vm2931, %v4188, %v4189
  %v4205 = vsel %vm2931, %v4187, %v4188
  %v4206 = vsel %vm2931, %v4186, %v4187
  %v4207 = vsel %vm2931, %v4185, %v4186
  %v4208 = vsel %vm2931, %v4184, %v4185
  %v4209 = vsel %vm2931, %v4183, %v4184
  %v4210 = vsel %vm2931, %v4182, %v4183
  %v4211 = vsel %vm2931, %v4181, %v4182
  %v4212 = vsel %vm2931, %v4196, %v4181
  %4213 = vset.pattern.permute.xlu0 11
  %4214 = vperm.xlu0 %4213, %v66
  %v4215 = vpop.permute.xlu0 %4214
  %4217 = vset.pattern.permute.xlu0 11
  %4218 = vperm.xlu0 %4217, %v67
  %v4219 = vpop.permute.xlu0 %4218
  %4221 = vset.pattern.permute.xlu0 11
  %4222 = vperm.xlu0 %4221, %v68
  %v4223 = vpop.permute.xlu0 %4222
  %4225 = vset.pattern.permute.xlu0 11
  %4226 = vperm.xlu0 %4225, %v69
  %v4227 = vpop.permute.xlu0 %4226
  %4229 = vset.pattern.permute.xlu0 11
  %4230 = vperm.xlu0 %4229, %v70
  %v4231 = vpop.permute.xlu0 %4230
  %4233 = vset.pattern.permute.xlu0 11
  %4234 = vperm.xlu0 %4233, %v71
  %v4235 = vpop.permute.xlu0 %4234
  %4237 = vset.pattern.permute.xlu0 11
  %4238 = vperm.xlu0 %4237, %v72
  %v4239 = vpop.permute.xlu0 %4238
  %4241 = vset.pattern.permute.xlu0 11
  %4242 = vperm.xlu0 %4241, %v73
  %v4243 = vpop.permute.xlu0 %4242
  %4245 = vset.pattern.permute.xlu0 11
  %4246 = vperm.xlu0 %4245, %v74
  %v4247 = vpop.permute.xlu0 %4246
  %4249 = vset.pattern.permute.xlu0 11
  %4250 = vperm.xlu0 %4249, %v75
  %v4251 = vpop.permute.xlu0 %4250
  %4253 = vset.pattern.permute.xlu0 11
  %4254 = vperm.xlu0 %4253, %v76
  %v4255 = vpop.permute.xlu0 %4254
  %4257 = vset.pattern.permute.xlu0 11
  %4258 = vperm.xlu0 %4257, %v77
  %v4259 = vpop.permute.xlu0 %4258
  %4261 = vset.pattern.permute.xlu0 11
  %4262 = vperm.xlu0 %4261, %v78
  %v4263 = vpop.permute.xlu0 %4262
  %4265 = vset.pattern.permute.xlu0 11
  %4266 = vperm.xlu0 %4265, %v79
  %v4267 = vpop.permute.xlu0 %4266
  %4269 = vset.pattern.permute.xlu0 11
  %4270 = vperm.xlu0 %4269, %v80
  %v4271 = vpop.permute.xlu0 %4270
  %4273 = vset.pattern.permute.xlu0 11
  %4274 = vperm.xlu0 %4273, %v81
  %v4275 = vpop.permute.xlu0 %4274
  %v4277 = vmul.f32 %v4212, %v4215
  %v4278 = vmul.f32 %v4211, %v4219
  %v4279 = vmul.f32 %v4210, %v4223
  %v4280 = vmul.f32 %v4209, %v4227
  %v4281 = vmul.f32 %v4208, %v4231
  %v4282 = vmul.f32 %v4207, %v4235
  %v4283 = vmul.f32 %v4206, %v4239
  %v4284 = vmul.f32 %v4205, %v4243
  %v4285 = vmul.f32 %v4204, %v4247
  %v4286 = vmul.f32 %v4203, %v4251
  %v4287 = vmul.f32 %v4202, %v4255
  %v4288 = vmul.f32 %v4201, %v4259
  %v4289 = vmul.f32 %v4200, %v4263
  %v4290 = vmul.f32 %v4199, %v4267
  %v4291 = vmul.f32 %v4198, %v4271
  %v4292 = vmul.f32 %v4197, %v4275
  %v4293 = vadd.f32 %v4117, %v4277
  %v4294 = vadd.f32 %v4118, %v4278
  %v4295 = vadd.f32 %v4119, %v4279
  %v4296 = vadd.f32 %v4120, %v4280
  %v4297 = vadd.f32 %v4121, %v4281
  %v4298 = vadd.f32 %v4122, %v4282
  %v4299 = vadd.f32 %v4123, %v4283
  %v4300 = vadd.f32 %v4124, %v4284
  %v4301 = vadd.f32 %v4125, %v4285
  %v4302 = vadd.f32 %v4126, %v4286
  %v4303 = vadd.f32 %v4127, %v4287
  %v4304 = vadd.f32 %v4128, %v4288
  %v4305 = vadd.f32 %v4129, %v4289
  %v4306 = vadd.f32 %v4130, %v4290
  %v4307 = vadd.f32 %v4131, %v4291
  %v4308 = vadd.f32 %v4132, %v4292
  %4309 = vset.pattern.permute.xlu0 12
  %4310 = vperm.xlu0 %4309, %v66
  %v4311 = vpop.permute.xlu0 %4310
  %4313 = vset.pattern.permute.xlu0 12
  %4314 = vperm.xlu0 %4313, %v67
  %v4315 = vpop.permute.xlu0 %4314
  %4317 = vset.pattern.permute.xlu0 12
  %4318 = vperm.xlu0 %4317, %v68
  %v4319 = vpop.permute.xlu0 %4318
  %4321 = vset.pattern.permute.xlu0 12
  %4322 = vperm.xlu0 %4321, %v69
  %v4323 = vpop.permute.xlu0 %4322
  %4325 = vset.pattern.permute.xlu0 12
  %4326 = vperm.xlu0 %4325, %v70
  %v4327 = vpop.permute.xlu0 %4326
  %4329 = vset.pattern.permute.xlu0 12
  %4330 = vperm.xlu0 %4329, %v71
  %v4331 = vpop.permute.xlu0 %4330
  %4333 = vset.pattern.permute.xlu0 12
  %4334 = vperm.xlu0 %4333, %v72
  %v4335 = vpop.permute.xlu0 %4334
  %4337 = vset.pattern.permute.xlu0 12
  %4338 = vperm.xlu0 %4337, %v73
  %v4339 = vpop.permute.xlu0 %4338
  %4341 = vset.pattern.permute.xlu0 12
  %4342 = vperm.xlu0 %4341, %v74
  %v4343 = vpop.permute.xlu0 %4342
  %4345 = vset.pattern.permute.xlu0 12
  %4346 = vperm.xlu0 %4345, %v75
  %v4347 = vpop.permute.xlu0 %4346
  %4349 = vset.pattern.permute.xlu0 12
  %4350 = vperm.xlu0 %4349, %v76
  %v4351 = vpop.permute.xlu0 %4350
  %4353 = vset.pattern.permute.xlu0 12
  %4354 = vperm.xlu0 %4353, %v77
  %v4355 = vpop.permute.xlu0 %4354
  %4357 = vset.pattern.permute.xlu0 12
  %4358 = vperm.xlu0 %4357, %v78
  %v4359 = vpop.permute.xlu0 %4358
  %4361 = vset.pattern.permute.xlu0 12
  %4362 = vperm.xlu0 %4361, %v79
  %v4363 = vpop.permute.xlu0 %4362
  %4365 = vset.pattern.permute.xlu0 12
  %4366 = vperm.xlu0 %4365, %v80
  %v4367 = vpop.permute.xlu0 %4366
  %4369 = vset.pattern.permute.xlu0 12
  %4370 = vperm.xlu0 %4369, %v81
  %v4371 = vpop.permute.xlu0 %4370
  %v4373 = vmul.f32 %v4165, %v4311
  %v4374 = vmul.f32 %v4166, %v4315
  %v4375 = vmul.f32 %v4167, %v4319
  %v4376 = vmul.f32 %v4168, %v4323
  %v4377 = vmul.f32 %v4169, %v4327
  %v4378 = vmul.f32 %v4170, %v4331
  %v4379 = vmul.f32 %v4171, %v4335
  %v4380 = vmul.f32 %v4172, %v4339
  %v4381 = vmul.f32 %v4173, %v4343
  %v4382 = vmul.f32 %v4174, %v4347
  %v4383 = vmul.f32 %v4175, %v4351
  %v4384 = vmul.f32 %v4176, %v4355
  %v4385 = vmul.f32 %v4177, %v4359
  %v4386 = vmul.f32 %v4178, %v4363
  %v4387 = vmul.f32 %v4179, %v4367
  %v4388 = vmul.f32 %v4180, %v4371
  %v4389 = vadd.f32 %v4293, %v4373
  %v4390 = vadd.f32 %v4294, %v4374
  %v4391 = vadd.f32 %v4295, %v4375
  %v4392 = vadd.f32 %v4296, %v4376
  %v4393 = vadd.f32 %v4297, %v4377
  %v4394 = vadd.f32 %v4298, %v4378
  %v4395 = vadd.f32 %v4299, %v4379
  %v4396 = vadd.f32 %v4300, %v4380
  %v4397 = vadd.f32 %v4301, %v4381
  %v4398 = vadd.f32 %v4302, %v4382
  %v4399 = vadd.f32 %v4303, %v4383
  %v4400 = vadd.f32 %v4304, %v4384
  %v4401 = vadd.f32 %v4305, %v4385
  %v4402 = vadd.f32 %v4306, %v4386
  %v4403 = vadd.f32 %v4307, %v4387
  %v4404 = vadd.f32 %v4308, %v4388
  %v4405 = vrot.slane %v4165, 1
  %v4406 = vrot.slane %v4166, 1
  %v4407 = vrot.slane %v4167, 1
  %v4408 = vrot.slane %v4168, 1
  %v4409 = vrot.slane %v4169, 1
  %v4410 = vrot.slane %v4170, 1
  %v4411 = vrot.slane %v4171, 1
  %v4412 = vrot.slane %v4172, 1
  %v4413 = vrot.slane %v4173, 1
  %v4414 = vrot.slane %v4174, 1
  %v4415 = vrot.slane %v4175, 1
  %v4416 = vrot.slane %v4176, 1
  %v4417 = vrot.slane %v4177, 1
  %v4418 = vrot.slane %v4178, 1
  %v4419 = vrot.slane %v4179, 1
  %v4420 = vrot.slane %v4180, 1
  %v4421 = vsel %vm3220, %v4419, %v4420
  %v4422 = vsel %vm3220, %v4418, %v4419
  %v4423 = vsel %vm3220, %v4417, %v4418
  %v4424 = vsel %vm3220, %v4416, %v4417
  %v4425 = vsel %vm3220, %v4415, %v4416
  %v4426 = vsel %vm3220, %v4414, %v4415
  %v4427 = vsel %vm3220, %v4413, %v4414
  %v4428 = vsel %vm3220, %v4412, %v4413
  %v4429 = vsel %vm3220, %v4411, %v4412
  %v4430 = vsel %vm3220, %v4410, %v4411
  %v4431 = vsel %vm3220, %v4409, %v4410
  %v4432 = vsel %vm3220, %v4408, %v4409
  %v4433 = vsel %vm3220, %v4407, %v4408
  %v4434 = vsel %vm3220, %v4406, %v4407
  %v4435 = vsel %vm3220, %v4405, %v4406
  %v4436 = vsel %vm3220, %v4420, %v4405
  %4437 = vset.pattern.permute.xlu0 13
  %4438 = vperm.xlu0 %4437, %v66
  %v4439 = vpop.permute.xlu0 %4438
  %4441 = vset.pattern.permute.xlu0 13
  %4442 = vperm.xlu0 %4441, %v67
  %v4443 = vpop.permute.xlu0 %4442
  %4445 = vset.pattern.permute.xlu0 13
  %4446 = vperm.xlu0 %4445, %v68
  %v4447 = vpop.permute.xlu0 %4446
  %4449 = vset.pattern.permute.xlu0 13
  %4450 = vperm.xlu0 %4449, %v69
  %v4451 = vpop.permute.xlu0 %4450
  %4453 = vset.pattern.permute.xlu0 13
  %4454 = vperm.xlu0 %4453, %v70
  %v4455 = vpop.permute.xlu0 %4454
  %4457 = vset.pattern.permute.xlu0 13
  %4458 = vperm.xlu0 %4457, %v71
  %v4459 = vpop.permute.xlu0 %4458
  %4461 = vset.pattern.permute.xlu0 13
  %4462 = vperm.xlu0 %4461, %v72
  %v4463 = vpop.permute.xlu0 %4462
  %4465 = vset.pattern.permute.xlu0 13
  %4466 = vperm.xlu0 %4465, %v73
  %v4467 = vpop.permute.xlu0 %4466
  %4469 = vset.pattern.permute.xlu0 13
  %4470 = vperm.xlu0 %4469, %v74
  %v4471 = vpop.permute.xlu0 %4470
  %4473 = vset.pattern.permute.xlu0 13
  %4474 = vperm.xlu0 %4473, %v75
  %v4475 = vpop.permute.xlu0 %4474
  %4477 = vset.pattern.permute.xlu0 13
  %4478 = vperm.xlu0 %4477, %v76
  %v4479 = vpop.permute.xlu0 %4478
  %4481 = vset.pattern.permute.xlu0 13
  %4482 = vperm.xlu0 %4481, %v77
  %v4483 = vpop.permute.xlu0 %4482
  %4485 = vset.pattern.permute.xlu0 13
  %4486 = vperm.xlu0 %4485, %v78
  %v4487 = vpop.permute.xlu0 %4486
  %4489 = vset.pattern.permute.xlu0 13
  %4490 = vperm.xlu0 %4489, %v79
  %v4491 = vpop.permute.xlu0 %4490
  %4493 = vset.pattern.permute.xlu0 13
  %4494 = vperm.xlu0 %4493, %v80
  %v4495 = vpop.permute.xlu0 %4494
  %4497 = vset.pattern.permute.xlu0 13
  %4498 = vperm.xlu0 %4497, %v81
  %v4499 = vpop.permute.xlu0 %4498
  %v4501 = vmul.f32 %v4435, %v4439
  %v4502 = vmul.f32 %v4434, %v4443
  %v4503 = vmul.f32 %v4433, %v4447
  %v4504 = vmul.f32 %v4432, %v4451
  %v4505 = vmul.f32 %v4431, %v4455
  %v4506 = vmul.f32 %v4430, %v4459
  %v4507 = vmul.f32 %v4429, %v4463
  %v4508 = vmul.f32 %v4428, %v4467
  %v4509 = vmul.f32 %v4427, %v4471
  %v4510 = vmul.f32 %v4426, %v4475
  %v4511 = vmul.f32 %v4425, %v4479
  %v4512 = vmul.f32 %v4424, %v4483
  %v4513 = vmul.f32 %v4423, %v4487
  %v4514 = vmul.f32 %v4422, %v4491
  %v4515 = vmul.f32 %v4421, %v4495
  %v4516 = vmul.f32 %v4436, %v4499
  %v4517 = vadd.f32 %v4389, %v4501
  %v4518 = vadd.f32 %v4390, %v4502
  %v4519 = vadd.f32 %v4391, %v4503
  %v4520 = vadd.f32 %v4392, %v4504
  %v4521 = vadd.f32 %v4393, %v4505
  %v4522 = vadd.f32 %v4394, %v4506
  %v4523 = vadd.f32 %v4395, %v4507
  %v4524 = vadd.f32 %v4396, %v4508
  %v4525 = vadd.f32 %v4397, %v4509
  %v4526 = vadd.f32 %v4398, %v4510
  %v4527 = vadd.f32 %v4399, %v4511
  %v4528 = vadd.f32 %v4400, %v4512
  %v4529 = vadd.f32 %v4401, %v4513
  %v4530 = vadd.f32 %v4402, %v4514
  %v4531 = vadd.f32 %v4403, %v4515
  %v4532 = vadd.f32 %v4404, %v4516
  %v4533 = vrot.slane %v2803, 7
  %v4534 = vrot.slane %v2806, 7
  %v4535 = vrot.slane %v2811, 7
  %v4536 = vrot.slane %v2814, 7
  %v4537 = vrot.slane %v2819, 7
  %v4538 = vrot.slane %v2822, 7
  %v4539 = vrot.slane %v2827, 7
  %v4540 = vrot.slane %v2830, 7
  %v4541 = vrot.slane %v2835, 7
  %v4542 = vrot.slane %v2838, 7
  %v4543 = vrot.slane %v2843, 7
  %v4544 = vrot.slane %v2846, 7
  %v4545 = vrot.slane %v2851, 7
  %v4546 = vrot.slane %v2854, 7
  %v4547 = vrot.slane %v2859, 7
  %v4548 = vrot.slane %v2862, 7
  %v4549 = vsel %vm2931, %v4547, %v4548
  %v4550 = vsel %vm2931, %v4546, %v4547
  %v4551 = vsel %vm2931, %v4545, %v4546
  %v4552 = vsel %vm2931, %v4544, %v4545
  %v4553 = vsel %vm2931, %v4543, %v4544
  %v4554 = vsel %vm2931, %v4542, %v4543
  %v4555 = vsel %vm2931, %v4541, %v4542
  %v4556 = vsel %vm2931, %v4540, %v4541
  %v4557 = vsel %vm2931, %v4539, %v4540
  %v4558 = vsel %vm2931, %v4538, %v4539
  %v4559 = vsel %vm2931, %v4537, %v4538
  %v4560 = vsel %vm2931, %v4536, %v4537
  %v4561 = vsel %vm2931, %v4535, %v4536
  %v4562 = vsel %vm2931, %v4534, %v4535
  %v4563 = vsel %vm2931, %v4533, %v4534
  %v4564 = vsel %vm2931, %v4548, %v4533
  %4565 = vset.pattern.permute.xlu0 14
  %4566 = vperm.xlu0 %4565, %v66
  %v4567 = vpop.permute.xlu0 %4566
  %4569 = vset.pattern.permute.xlu0 14
  %4570 = vperm.xlu0 %4569, %v67
  %v4571 = vpop.permute.xlu0 %4570
  %4573 = vset.pattern.permute.xlu0 14
  %4574 = vperm.xlu0 %4573, %v68
  %v4575 = vpop.permute.xlu0 %4574
  %4577 = vset.pattern.permute.xlu0 14
  %4578 = vperm.xlu0 %4577, %v69
  %v4579 = vpop.permute.xlu0 %4578
  %4581 = vset.pattern.permute.xlu0 14
  %4582 = vperm.xlu0 %4581, %v70
  %v4583 = vpop.permute.xlu0 %4582
  %4585 = vset.pattern.permute.xlu0 14
  %4586 = vperm.xlu0 %4585, %v71
  %v4587 = vpop.permute.xlu0 %4586
  %4589 = vset.pattern.permute.xlu0 14
  %4590 = vperm.xlu0 %4589, %v72
  %v4591 = vpop.permute.xlu0 %4590
  %4593 = vset.pattern.permute.xlu0 14
  %4594 = vperm.xlu0 %4593, %v73
  %v4595 = vpop.permute.xlu0 %4594
  %4597 = vset.pattern.permute.xlu0 14
  %4598 = vperm.xlu0 %4597, %v74
  %v4599 = vpop.permute.xlu0 %4598
  %4601 = vset.pattern.permute.xlu0 14
  %4602 = vperm.xlu0 %4601, %v75
  %v4603 = vpop.permute.xlu0 %4602
  %4605 = vset.pattern.permute.xlu0 14
  %4606 = vperm.xlu0 %4605, %v76
  %v4607 = vpop.permute.xlu0 %4606
  %4609 = vset.pattern.permute.xlu0 14
  %4610 = vperm.xlu0 %4609, %v77
  %v4611 = vpop.permute.xlu0 %4610
  %4613 = vset.pattern.permute.xlu0 14
  %4614 = vperm.xlu0 %4613, %v78
  %v4615 = vpop.permute.xlu0 %4614
  %4617 = vset.pattern.permute.xlu0 14
  %4618 = vperm.xlu0 %4617, %v79
  %v4619 = vpop.permute.xlu0 %4618
  %4621 = vset.pattern.permute.xlu0 14
  %4622 = vperm.xlu0 %4621, %v80
  %v4623 = vpop.permute.xlu0 %4622
  %4625 = vset.pattern.permute.xlu0 14
  %4626 = vperm.xlu0 %4625, %v81
  %v4627 = vpop.permute.xlu0 %4626
  %v4629 = vmul.f32 %v4564, %v4567
  %v4630 = vmul.f32 %v4563, %v4571
  %v4631 = vmul.f32 %v4562, %v4575
  %v4632 = vmul.f32 %v4561, %v4579
  %v4633 = vmul.f32 %v4560, %v4583
  %v4634 = vmul.f32 %v4559, %v4587
  %v4635 = vmul.f32 %v4558, %v4591
  %v4636 = vmul.f32 %v4557, %v4595
  %v4637 = vmul.f32 %v4556, %v4599
  %v4638 = vmul.f32 %v4555, %v4603
  %v4639 = vmul.f32 %v4554, %v4607
  %v4640 = vmul.f32 %v4553, %v4611
  %v4641 = vmul.f32 %v4552, %v4615
  %v4642 = vmul.f32 %v4551, %v4619
  %v4643 = vmul.f32 %v4550, %v4623
  %v4644 = vmul.f32 %v4549, %v4627
  %v4645 = vadd.f32 %v4517, %v4629
  %v4646 = vadd.f32 %v4518, %v4630
  %v4647 = vadd.f32 %v4519, %v4631
  %v4648 = vadd.f32 %v4520, %v4632
  %v4649 = vadd.f32 %v4521, %v4633
  %v4650 = vadd.f32 %v4522, %v4634
  %v4651 = vadd.f32 %v4523, %v4635
  %v4652 = vadd.f32 %v4524, %v4636
  %v4653 = vadd.f32 %v4525, %v4637
  %v4654 = vadd.f32 %v4526, %v4638
  %v4655 = vadd.f32 %v4527, %v4639
  %v4656 = vadd.f32 %v4528, %v4640
  %v4657 = vadd.f32 %v4529, %v4641
  %v4658 = vadd.f32 %v4530, %v4642
  %v4659 = vadd.f32 %v4531, %v4643
  %v4660 = vadd.f32 %v4532, %v4644
  %4661 = vset.pattern.permute.xlu0 15
  %4662 = vperm.xlu0 %4661, %v66
  %v4663 = vpop.permute.xlu0 %4662
  %4665 = vset.pattern.permute.xlu0 15
  %4666 = vperm.xlu0 %4665, %v67
  %v4667 = vpop.permute.xlu0 %4666
  %4669 = vset.pattern.permute.xlu0 15
  %4670 = vperm.xlu0 %4669, %v68
  %v4671 = vpop.permute.xlu0 %4670
  %4673 = vset.pattern.permute.xlu0 15
  %4674 = vperm.xlu0 %4673, %v69
  %v4675 = vpop.permute.xlu0 %4674
  %4677 = vset.pattern.permute.xlu0 15
  %4678 = vperm.xlu0 %4677, %v70
  %v4679 = vpop.permute.xlu0 %4678
  %4681 = vset.pattern.permute.xlu0 15
  %4682 = vperm.xlu0 %4681, %v71
  %v4683 = vpop.permute.xlu0 %4682
  %4685 = vset.pattern.permute.xlu0 15
  %4686 = vperm.xlu0 %4685, %v72
  %v4687 = vpop.permute.xlu0 %4686
  %4689 = vset.pattern.permute.xlu0 15
  %4690 = vperm.xlu0 %4689, %v73
  %v4691 = vpop.permute.xlu0 %4690
  %4693 = vset.pattern.permute.xlu0 15
  %4694 = vperm.xlu0 %4693, %v74
  %v4695 = vpop.permute.xlu0 %4694
  %4697 = vset.pattern.permute.xlu0 15
  %4698 = vperm.xlu0 %4697, %v75
  %v4699 = vpop.permute.xlu0 %4698
  %4701 = vset.pattern.permute.xlu0 15
  %4702 = vperm.xlu0 %4701, %v76
  %v4703 = vpop.permute.xlu0 %4702
  %4705 = vset.pattern.permute.xlu0 15
  %4706 = vperm.xlu0 %4705, %v77
  %v4707 = vpop.permute.xlu0 %4706
  %4709 = vset.pattern.permute.xlu0 15
  %4710 = vperm.xlu0 %4709, %v78
  %v4711 = vpop.permute.xlu0 %4710
  %4713 = vset.pattern.permute.xlu0 15
  %4714 = vperm.xlu0 %4713, %v79
  %v4715 = vpop.permute.xlu0 %4714
  %4717 = vset.pattern.permute.xlu0 15
  %4718 = vperm.xlu0 %4717, %v80
  %v4719 = vpop.permute.xlu0 %4718
  %4721 = vset.pattern.permute.xlu0 15
  %4722 = vperm.xlu0 %4721, %v81
  %v4723 = vpop.permute.xlu0 %4722
  %v4725 = vmul.f32 %v2803, %v4663
  %v4726 = vmul.f32 %v2806, %v4667
  %v4727 = vmul.f32 %v2811, %v4671
  %v4728 = vmul.f32 %v2814, %v4675
  %v4729 = vmul.f32 %v2819, %v4679
  %v4730 = vmul.f32 %v2822, %v4683
  %v4731 = vmul.f32 %v2827, %v4687
  %v4732 = vmul.f32 %v2830, %v4691
  %v4733 = vmul.f32 %v2835, %v4695
  %v4734 = vmul.f32 %v2838, %v4699
  %v4735 = vmul.f32 %v2843, %v4703
  %v4736 = vmul.f32 %v2846, %v4707
  %v4737 = vmul.f32 %v2851, %v4711
  %v4738 = vmul.f32 %v2854, %v4715
  %v4739 = vmul.f32 %v2859, %v4719
  %v4740 = vmul.f32 %v2862, %v4723
  %v4741 = vadd.f32 %v4645, %v4725
  %v4742 = vadd.f32 %v4646, %v4726
  %v4743 = vadd.f32 %v4647, %v4727
  %v4744 = vadd.f32 %v4648, %v4728
  %v4745 = vadd.f32 %v4649, %v4729
  %v4746 = vadd.f32 %v4650, %v4730
  %v4747 = vadd.f32 %v4651, %v4731
  %v4748 = vadd.f32 %v4652, %v4732
  %v4749 = vadd.f32 %v4653, %v4733
  %v4750 = vadd.f32 %v4654, %v4734
  %v4751 = vadd.f32 %v4655, %v4735
  %v4752 = vadd.f32 %v4656, %v4736
  %v4753 = vadd.f32 %v4657, %v4737
  %v4754 = vadd.f32 %v4658, %v4738
  %v4755 = vadd.f32 %v4659, %v4739
  %v4756 = vadd.f32 %v4660, %v4740
  %v4757 = vrot.slane %v2803, 1
  %v4758 = vrot.slane %v2806, 1
  %v4759 = vrot.slane %v2811, 1
  %v4760 = vrot.slane %v2814, 1
  %v4761 = vrot.slane %v2819, 1
  %v4762 = vrot.slane %v2822, 1
  %v4763 = vrot.slane %v2827, 1
  %v4764 = vrot.slane %v2830, 1
  %v4765 = vrot.slane %v2835, 1
  %v4766 = vrot.slane %v2838, 1
  %v4767 = vrot.slane %v2843, 1
  %v4768 = vrot.slane %v2846, 1
  %v4769 = vrot.slane %v2851, 1
  %v4770 = vrot.slane %v2854, 1
  %v4771 = vrot.slane %v2859, 1
  %v4772 = vrot.slane %v2862, 1
  %v4773 = vsel %vm3220, %v4771, %v4772
  %v4774 = vsel %vm3220, %v4770, %v4771
  %v4775 = vsel %vm3220, %v4769, %v4770
  %v4776 = vsel %vm3220, %v4768, %v4769
  %v4777 = vsel %vm3220, %v4767, %v4768
  %v4778 = vsel %vm3220, %v4766, %v4767
  %v4779 = vsel %vm3220, %v4765, %v4766
  %v4780 = vsel %vm3220, %v4764, %v4765
  %v4781 = vsel %vm3220, %v4763, %v4764
  %v4782 = vsel %vm3220, %v4762, %v4763
  %v4783 = vsel %vm3220, %v4761, %v4762
  %v4784 = vsel %vm3220, %v4760, %v4761
  %v4785 = vsel %vm3220, %v4759, %v4760
  %v4786 = vsel %vm3220, %v4758, %v4759
  %v4787 = vsel %vm3220, %v4757, %v4758
  %v4788 = vsel %vm3220, %v4772, %v4757
  %4789 = vset.pattern.permute.xlu0 16
  %4790 = vperm.xlu0 %4789, %v66
  %v4791 = vpop.permute.xlu0 %4790
  %4793 = vset.pattern.permute.xlu0 16
  %4794 = vperm.xlu0 %4793, %v67
  %v4795 = vpop.permute.xlu0 %4794
  %4797 = vset.pattern.permute.xlu0 16
  %4798 = vperm.xlu0 %4797, %v68
  %v4799 = vpop.permute.xlu0 %4798
  %4801 = vset.pattern.permute.xlu0 16
  %4802 = vperm.xlu0 %4801, %v69
  %v4803 = vpop.permute.xlu0 %4802
  %4805 = vset.pattern.permute.xlu0 16
  %4806 = vperm.xlu0 %4805, %v70
  %v4807 = vpop.permute.xlu0 %4806
  %4809 = vset.pattern.permute.xlu0 16
  %4810 = vperm.xlu0 %4809, %v71
  %v4811 = vpop.permute.xlu0 %4810
  %4813 = vset.pattern.permute.xlu0 16
  %4814 = vperm.xlu0 %4813, %v72
  %v4815 = vpop.permute.xlu0 %4814
  %4817 = vset.pattern.permute.xlu0 16
  %4818 = vperm.xlu0 %4817, %v73
  %v4819 = vpop.permute.xlu0 %4818
  %4821 = vset.pattern.permute.xlu0 16
  %4822 = vperm.xlu0 %4821, %v74
  %v4823 = vpop.permute.xlu0 %4822
  %4825 = vset.pattern.permute.xlu0 16
  %4826 = vperm.xlu0 %4825, %v75
  %v4827 = vpop.permute.xlu0 %4826
  %4829 = vset.pattern.permute.xlu0 16
  %4830 = vperm.xlu0 %4829, %v76
  %v4831 = vpop.permute.xlu0 %4830
  %4833 = vset.pattern.permute.xlu0 16
  %4834 = vperm.xlu0 %4833, %v77
  %v4835 = vpop.permute.xlu0 %4834
  %4837 = vset.pattern.permute.xlu0 16
  %4838 = vperm.xlu0 %4837, %v78
  %v4839 = vpop.permute.xlu0 %4838
  %4841 = vset.pattern.permute.xlu0 16
  %4842 = vperm.xlu0 %4841, %v79
  %v4843 = vpop.permute.xlu0 %4842
  %4845 = vset.pattern.permute.xlu0 16
  %4846 = vperm.xlu0 %4845, %v80
  %v4847 = vpop.permute.xlu0 %4846
  %4849 = vset.pattern.permute.xlu0 16
  %4850 = vperm.xlu0 %4849, %v81
  %v4851 = vpop.permute.xlu0 %4850
  %v4853 = vmul.f32 %v4787, %v4791
  %v4854 = vmul.f32 %v4786, %v4795
  %v4855 = vmul.f32 %v4785, %v4799
  %v4856 = vmul.f32 %v4784, %v4803
  %v4857 = vmul.f32 %v4783, %v4807
  %v4858 = vmul.f32 %v4782, %v4811
  %v4859 = vmul.f32 %v4781, %v4815
  %v4860 = vmul.f32 %v4780, %v4819
  %v4861 = vmul.f32 %v4779, %v4823
  %v4862 = vmul.f32 %v4778, %v4827
  %v4863 = vmul.f32 %v4777, %v4831
  %v4864 = vmul.f32 %v4776, %v4835
  %v4865 = vmul.f32 %v4775, %v4839
  %v4866 = vmul.f32 %v4774, %v4843
  %v4867 = vmul.f32 %v4773, %v4847
  %v4868 = vmul.f32 %v4788, %v4851
  %v4869 = vadd.f32 %v4741, %v4853
  %v4870 = vadd.f32 %v4742, %v4854
  %v4871 = vadd.f32 %v4743, %v4855
  %v4872 = vadd.f32 %v4744, %v4856
  %v4873 = vadd.f32 %v4745, %v4857
  %v4874 = vadd.f32 %v4746, %v4858
  %v4875 = vadd.f32 %v4747, %v4859
  %v4876 = vadd.f32 %v4748, %v4860
  %v4877 = vadd.f32 %v4749, %v4861
  %v4878 = vadd.f32 %v4750, %v4862
  %v4879 = vadd.f32 %v4751, %v4863
  %v4880 = vadd.f32 %v4752, %v4864
  %v4881 = vadd.f32 %v4753, %v4865
  %v4882 = vadd.f32 %v4754, %v4866
  %v4883 = vadd.f32 %v4755, %v4867
  %v4884 = vadd.f32 %v4756, %v4868
  %4885 = vrot.lane.b32.xlu0 %v2803, 127
  %v4886 = vpop.permute.xlu0 %4885
  %4887 = vrot.lane.b32.xlu0 %v2806, 127
  %v4888 = vpop.permute.xlu0 %4887
  %4889 = vrot.lane.b32.xlu0 %v2811, 127
  %v4890 = vpop.permute.xlu0 %4889
  %4891 = vrot.lane.b32.xlu0 %v2814, 127
  %v4892 = vpop.permute.xlu0 %4891
  %4893 = vrot.lane.b32.xlu0 %v2819, 127
  %v4894 = vpop.permute.xlu0 %4893
  %4895 = vrot.lane.b32.xlu0 %v2822, 127
  %v4896 = vpop.permute.xlu0 %4895
  %4897 = vrot.lane.b32.xlu0 %v2827, 127
  %v4898 = vpop.permute.xlu0 %4897
  %4899 = vrot.lane.b32.xlu0 %v2830, 127
  %v4900 = vpop.permute.xlu0 %4899
  %4901 = vrot.lane.b32.xlu0 %v2835, 127
  %v4902 = vpop.permute.xlu0 %4901
  %4903 = vrot.lane.b32.xlu0 %v2838, 127
  %v4904 = vpop.permute.xlu0 %4903
  %4905 = vrot.lane.b32.xlu0 %v2843, 127
  %v4906 = vpop.permute.xlu0 %4905
  %4907 = vrot.lane.b32.xlu0 %v2846, 127
  %v4908 = vpop.permute.xlu0 %4907
  %4909 = vrot.lane.b32.xlu0 %v2851, 127
  %v4910 = vpop.permute.xlu0 %4909
  %4911 = vrot.lane.b32.xlu0 %v2854, 127
  %v4912 = vpop.permute.xlu0 %4911
  %4913 = vrot.lane.b32.xlu0 %v2859, 127
  %v4914 = vpop.permute.xlu0 %4913
  %4915 = vrot.lane.b32.xlu0 %v2862, 127
  %v4916 = vpop.permute.xlu0 %4915
  %v4917 = vmul.f32 %v4886, %v1133
  %v4918 = vmul.f32 %v4888, %v1133
  %v4919 = vmul.f32 %v4890, %v1133
  %v4920 = vmul.f32 %v4892, %v1133
  %v4921 = vmul.f32 %v4894, %v1133
  %v4922 = vmul.f32 %v4896, %v1133
  %v4923 = vmul.f32 %v4898, %v1133
  %v4924 = vmul.f32 %v4900, %v1133
  %v4925 = vmul.f32 %v4902, %v1133
  %v4926 = vmul.f32 %v4904, %v1133
  %v4927 = vmul.f32 %v4906, %v1133
  %v4928 = vmul.f32 %v4908, %v1133
  %v4929 = vmul.f32 %v4910, %v1133
  %v4930 = vmul.f32 %v4912, %v1133
  %v4931 = vmul.f32 %v4914, %v1133
  %v4932 = vmul.f32 %v4916, %v1133
  %v4933 = vrot.slane %v4917, 7
  %v4934 = vrot.slane %v4918, 7
  %v4935 = vrot.slane %v4919, 7
  %v4936 = vrot.slane %v4920, 7
  %v4937 = vrot.slane %v4921, 7
  %v4938 = vrot.slane %v4922, 7
  %v4939 = vrot.slane %v4923, 7
  %v4940 = vrot.slane %v4924, 7
  %v4941 = vrot.slane %v4925, 7
  %v4942 = vrot.slane %v4926, 7
  %v4943 = vrot.slane %v4927, 7
  %v4944 = vrot.slane %v4928, 7
  %v4945 = vrot.slane %v4929, 7
  %v4946 = vrot.slane %v4930, 7
  %v4947 = vrot.slane %v4931, 7
  %v4948 = vrot.slane %v4932, 7
  %v4949 = vsel %vm2931, %v4947, %v4948
  %v4950 = vsel %vm2931, %v4946, %v4947
  %v4951 = vsel %vm2931, %v4945, %v4946
  %v4952 = vsel %vm2931, %v4944, %v4945
  %v4953 = vsel %vm2931, %v4943, %v4944
  %v4954 = vsel %vm2931, %v4942, %v4943
  %v4955 = vsel %vm2931, %v4941, %v4942
  %v4956 = vsel %vm2931, %v4940, %v4941
  %v4957 = vsel %vm2931, %v4939, %v4940
  %v4958 = vsel %vm2931, %v4938, %v4939
  %v4959 = vsel %vm2931, %v4937, %v4938
  %v4960 = vsel %vm2931, %v4936, %v4937
  %v4961 = vsel %vm2931, %v4935, %v4936
  %v4962 = vsel %vm2931, %v4934, %v4935
  %v4963 = vsel %vm2931, %v4933, %v4934
  %v4964 = vsel %vm2931, %v4948, %v4933
  %4965 = vset.pattern.permute.xlu0 17
  %4966 = vperm.xlu0 %4965, %v66
  %v4967 = vpop.permute.xlu0 %4966
  %4969 = vset.pattern.permute.xlu0 17
  %4970 = vperm.xlu0 %4969, %v67
  %v4971 = vpop.permute.xlu0 %4970
  %4973 = vset.pattern.permute.xlu0 17
  %4974 = vperm.xlu0 %4973, %v68
  %v4975 = vpop.permute.xlu0 %4974
  %4977 = vset.pattern.permute.xlu0 17
  %4978 = vperm.xlu0 %4977, %v69
  %v4979 = vpop.permute.xlu0 %4978
  %4981 = vset.pattern.permute.xlu0 17
  %4982 = vperm.xlu0 %4981, %v70
  %v4983 = vpop.permute.xlu0 %4982
  %4985 = vset.pattern.permute.xlu0 17
  %4986 = vperm.xlu0 %4985, %v71
  %v4987 = vpop.permute.xlu0 %4986
  %4989 = vset.pattern.permute.xlu0 17
  %4990 = vperm.xlu0 %4989, %v72
  %v4991 = vpop.permute.xlu0 %4990
  %4993 = vset.pattern.permute.xlu0 17
  %4994 = vperm.xlu0 %4993, %v73
  %v4995 = vpop.permute.xlu0 %4994
  %4997 = vset.pattern.permute.xlu0 17
  %4998 = vperm.xlu0 %4997, %v74
  %v4999 = vpop.permute.xlu0 %4998
  %5001 = vset.pattern.permute.xlu0 17
  %5002 = vperm.xlu0 %5001, %v75
  %v5003 = vpop.permute.xlu0 %5002
  %5005 = vset.pattern.permute.xlu0 17
  %5006 = vperm.xlu0 %5005, %v76
  %v5007 = vpop.permute.xlu0 %5006
  %5009 = vset.pattern.permute.xlu0 17
  %5010 = vperm.xlu0 %5009, %v77
  %v5011 = vpop.permute.xlu0 %5010
  %5013 = vset.pattern.permute.xlu0 17
  %5014 = vperm.xlu0 %5013, %v78
  %v5015 = vpop.permute.xlu0 %5014
  %5017 = vset.pattern.permute.xlu0 17
  %5018 = vperm.xlu0 %5017, %v79
  %v5019 = vpop.permute.xlu0 %5018
  %5021 = vset.pattern.permute.xlu0 17
  %5022 = vperm.xlu0 %5021, %v80
  %v5023 = vpop.permute.xlu0 %5022
  %5025 = vset.pattern.permute.xlu0 17
  %5026 = vperm.xlu0 %5025, %v81
  %v5027 = vpop.permute.xlu0 %5026
  %v5029 = vmul.f32 %v4964, %v4967
  %v5030 = vmul.f32 %v4963, %v4971
  %v5031 = vmul.f32 %v4962, %v4975
  %v5032 = vmul.f32 %v4961, %v4979
  %v5033 = vmul.f32 %v4960, %v4983
  %v5034 = vmul.f32 %v4959, %v4987
  %v5035 = vmul.f32 %v4958, %v4991
  %v5036 = vmul.f32 %v4957, %v4995
  %v5037 = vmul.f32 %v4956, %v4999
  %v5038 = vmul.f32 %v4955, %v5003
  %v5039 = vmul.f32 %v4954, %v5007
  %v5040 = vmul.f32 %v4953, %v5011
  %v5041 = vmul.f32 %v4952, %v5015
  %v5042 = vmul.f32 %v4951, %v5019
  %v5043 = vmul.f32 %v4950, %v5023
  %v5044 = vmul.f32 %v4949, %v5027
  %v5045 = vadd.f32 %v4869, %v5029
  %v5046 = vadd.f32 %v4870, %v5030
  %v5047 = vadd.f32 %v4871, %v5031
  %v5048 = vadd.f32 %v4872, %v5032
  %v5049 = vadd.f32 %v4873, %v5033
  %v5050 = vadd.f32 %v4874, %v5034
  %v5051 = vadd.f32 %v4875, %v5035
  %v5052 = vadd.f32 %v4876, %v5036
  %v5053 = vadd.f32 %v4877, %v5037
  %v5054 = vadd.f32 %v4878, %v5038
  %v5055 = vadd.f32 %v4879, %v5039
  %v5056 = vadd.f32 %v4880, %v5040
  %v5057 = vadd.f32 %v4881, %v5041
  %v5058 = vadd.f32 %v4882, %v5042
  %v5059 = vadd.f32 %v4883, %v5043
  %v5060 = vadd.f32 %v4884, %v5044
  %5061 = vset.pattern.permute.xlu0 18
  %5062 = vperm.xlu0 %5061, %v66
  %v5063 = vpop.permute.xlu0 %5062
  %5065 = vset.pattern.permute.xlu0 18
  %5066 = vperm.xlu0 %5065, %v67
  %v5067 = vpop.permute.xlu0 %5066
  %5069 = vset.pattern.permute.xlu0 18
  %5070 = vperm.xlu0 %5069, %v68
  %v5071 = vpop.permute.xlu0 %5070
  %5073 = vset.pattern.permute.xlu0 18
  %5074 = vperm.xlu0 %5073, %v69
  %v5075 = vpop.permute.xlu0 %5074
  %5077 = vset.pattern.permute.xlu0 18
  %5078 = vperm.xlu0 %5077, %v70
  %v5079 = vpop.permute.xlu0 %5078
  %5081 = vset.pattern.permute.xlu0 18
  %5082 = vperm.xlu0 %5081, %v71
  %v5083 = vpop.permute.xlu0 %5082
  %5085 = vset.pattern.permute.xlu0 18
  %5086 = vperm.xlu0 %5085, %v72
  %v5087 = vpop.permute.xlu0 %5086
  %5089 = vset.pattern.permute.xlu0 18
  %5090 = vperm.xlu0 %5089, %v73
  %v5091 = vpop.permute.xlu0 %5090
  %5093 = vset.pattern.permute.xlu0 18
  %5094 = vperm.xlu0 %5093, %v74
  %v5095 = vpop.permute.xlu0 %5094
  %5097 = vset.pattern.permute.xlu0 18
  %5098 = vperm.xlu0 %5097, %v75
  %v5099 = vpop.permute.xlu0 %5098
  %5101 = vset.pattern.permute.xlu0 18
  %5102 = vperm.xlu0 %5101, %v76
  %v5103 = vpop.permute.xlu0 %5102
  %5105 = vset.pattern.permute.xlu0 18
  %5106 = vperm.xlu0 %5105, %v77
  %v5107 = vpop.permute.xlu0 %5106
  %5109 = vset.pattern.permute.xlu0 18
  %5110 = vperm.xlu0 %5109, %v78
  %v5111 = vpop.permute.xlu0 %5110
  %5113 = vset.pattern.permute.xlu0 18
  %5114 = vperm.xlu0 %5113, %v79
  %v5115 = vpop.permute.xlu0 %5114
  %5117 = vset.pattern.permute.xlu0 18
  %5118 = vperm.xlu0 %5117, %v80
  %v5119 = vpop.permute.xlu0 %5118
  %5121 = vset.pattern.permute.xlu0 18
  %5122 = vperm.xlu0 %5121, %v81
  %v5123 = vpop.permute.xlu0 %5122
  %v5125 = vmul.f32 %v4917, %v5063
  %v5126 = vmul.f32 %v4918, %v5067
  %v5127 = vmul.f32 %v4919, %v5071
  %v5128 = vmul.f32 %v4920, %v5075
  %v5129 = vmul.f32 %v4921, %v5079
  %v5130 = vmul.f32 %v4922, %v5083
  %v5131 = vmul.f32 %v4923, %v5087
  %v5132 = vmul.f32 %v4924, %v5091
  %v5133 = vmul.f32 %v4925, %v5095
  %v5134 = vmul.f32 %v4926, %v5099
  %v5135 = vmul.f32 %v4927, %v5103
  %v5136 = vmul.f32 %v4928, %v5107
  %v5137 = vmul.f32 %v4929, %v5111
  %v5138 = vmul.f32 %v4930, %v5115
  %v5139 = vmul.f32 %v4931, %v5119
  %v5140 = vmul.f32 %v4932, %v5123
  %v5141 = vadd.f32 %v5045, %v5125
  %v5142 = vadd.f32 %v5046, %v5126
  %v5143 = vadd.f32 %v5047, %v5127
  %v5144 = vadd.f32 %v5048, %v5128
  %v5145 = vadd.f32 %v5049, %v5129
  %v5146 = vadd.f32 %v5050, %v5130
  %v5147 = vadd.f32 %v5051, %v5131
  %v5148 = vadd.f32 %v5052, %v5132
  %v5149 = vadd.f32 %v5053, %v5133
  %v5150 = vadd.f32 %v5054, %v5134
  %v5151 = vadd.f32 %v5055, %v5135
  %v5152 = vadd.f32 %v5056, %v5136
  %v5153 = vadd.f32 %v5057, %v5137
  %v5154 = vadd.f32 %v5058, %v5138
  %v5155 = vadd.f32 %v5059, %v5139
  %v5156 = vadd.f32 %v5060, %v5140
  %v5157 = vrot.slane %v4917, 1
  %v5158 = vrot.slane %v4918, 1
  %v5159 = vrot.slane %v4919, 1
  %v5160 = vrot.slane %v4920, 1
  %v5161 = vrot.slane %v4921, 1
  %v5162 = vrot.slane %v4922, 1
  %v5163 = vrot.slane %v4923, 1
  %v5164 = vrot.slane %v4924, 1
  %v5165 = vrot.slane %v4925, 1
  %v5166 = vrot.slane %v4926, 1
  %v5167 = vrot.slane %v4927, 1
  %v5168 = vrot.slane %v4928, 1
  %v5169 = vrot.slane %v4929, 1
  %v5170 = vrot.slane %v4930, 1
  %v5171 = vrot.slane %v4931, 1
  %v5172 = vrot.slane %v4932, 1
  %v5173 = vsel %vm3220, %v5171, %v5172
  %v5174 = vsel %vm3220, %v5170, %v5171
  %v5175 = vsel %vm3220, %v5169, %v5170
  %v5176 = vsel %vm3220, %v5168, %v5169
  %v5177 = vsel %vm3220, %v5167, %v5168
  %v5178 = vsel %vm3220, %v5166, %v5167
  %v5179 = vsel %vm3220, %v5165, %v5166
  %v5180 = vsel %vm3220, %v5164, %v5165
  %v5181 = vsel %vm3220, %v5163, %v5164
  %v5182 = vsel %vm3220, %v5162, %v5163
  %v5183 = vsel %vm3220, %v5161, %v5162
  %v5184 = vsel %vm3220, %v5160, %v5161
  %v5185 = vsel %vm3220, %v5159, %v5160
  %v5186 = vsel %vm3220, %v5158, %v5159
  %v5187 = vsel %vm3220, %v5157, %v5158
  %v5188 = vsel %vm3220, %v5172, %v5157
  %5189 = vset.pattern.permute.xlu0 19
  %5190 = vperm.xlu0 %5189, %v66
  %v5191 = vpop.permute.xlu0 %5190
  %5193 = vset.pattern.permute.xlu0 19
  %5194 = vperm.xlu0 %5193, %v67
  %v5195 = vpop.permute.xlu0 %5194
  %5197 = vset.pattern.permute.xlu0 19
  %5198 = vperm.xlu0 %5197, %v68
  %v5199 = vpop.permute.xlu0 %5198
  %5201 = vset.pattern.permute.xlu0 19
  %5202 = vperm.xlu0 %5201, %v69
  %v5203 = vpop.permute.xlu0 %5202
  %5205 = vset.pattern.permute.xlu0 19
  %5206 = vperm.xlu0 %5205, %v70
  %v5207 = vpop.permute.xlu0 %5206
  %5209 = vset.pattern.permute.xlu0 19
  %5210 = vperm.xlu0 %5209, %v71
  %v5211 = vpop.permute.xlu0 %5210
  %5213 = vset.pattern.permute.xlu0 19
  %5214 = vperm.xlu0 %5213, %v72
  %v5215 = vpop.permute.xlu0 %5214
  %5217 = vset.pattern.permute.xlu0 19
  %5218 = vperm.xlu0 %5217, %v73
  %v5219 = vpop.permute.xlu0 %5218
  %5221 = vset.pattern.permute.xlu0 19
  %5222 = vperm.xlu0 %5221, %v74
  %v5223 = vpop.permute.xlu0 %5222
  %5225 = vset.pattern.permute.xlu0 19
  %5226 = vperm.xlu0 %5225, %v75
  %v5227 = vpop.permute.xlu0 %5226
  %5229 = vset.pattern.permute.xlu0 19
  %5230 = vperm.xlu0 %5229, %v76
  %v5231 = vpop.permute.xlu0 %5230
  %5233 = vset.pattern.permute.xlu0 19
  %5234 = vperm.xlu0 %5233, %v77
  %v5235 = vpop.permute.xlu0 %5234
  %5237 = vset.pattern.permute.xlu0 19
  %5238 = vperm.xlu0 %5237, %v78
  %v5239 = vpop.permute.xlu0 %5238
  %5241 = vset.pattern.permute.xlu0 19
  %5242 = vperm.xlu0 %5241, %v79
  %v5243 = vpop.permute.xlu0 %5242
  %5245 = vset.pattern.permute.xlu0 19
  %5246 = vperm.xlu0 %5245, %v80
  %v5247 = vpop.permute.xlu0 %5246
  %5249 = vset.pattern.permute.xlu0 19
  %5250 = vperm.xlu0 %5249, %v81
  %v5251 = vpop.permute.xlu0 %5250
  %v5253 = vmul.f32 %v5187, %v5191
  %v5254 = vmul.f32 %v5186, %v5195
  %v5255 = vmul.f32 %v5185, %v5199
  %v5256 = vmul.f32 %v5184, %v5203
  %v5257 = vmul.f32 %v5183, %v5207
  %v5258 = vmul.f32 %v5182, %v5211
  %v5259 = vmul.f32 %v5181, %v5215
  %v5260 = vmul.f32 %v5180, %v5219
  %v5261 = vmul.f32 %v5179, %v5223
  %v5262 = vmul.f32 %v5178, %v5227
  %v5263 = vmul.f32 %v5177, %v5231
  %v5264 = vmul.f32 %v5176, %v5235
  %v5265 = vmul.f32 %v5175, %v5239
  %v5266 = vmul.f32 %v5174, %v5243
  %v5267 = vmul.f32 %v5173, %v5247
  %v5268 = vmul.f32 %v5188, %v5251
  %v5269 = vadd.f32 %v5141, %v5253
  %v5270 = vadd.f32 %v5142, %v5254
  %v5271 = vadd.f32 %v5143, %v5255
  %v5272 = vadd.f32 %v5144, %v5256
  %v5273 = vadd.f32 %v5145, %v5257
  %v5274 = vadd.f32 %v5146, %v5258
  %v5275 = vadd.f32 %v5147, %v5259
  %v5276 = vadd.f32 %v5148, %v5260
  %v5277 = vadd.f32 %v5149, %v5261
  %v5278 = vadd.f32 %v5150, %v5262
  %v5279 = vadd.f32 %v5151, %v5263
  %v5280 = vadd.f32 %v5152, %v5264
  %v5281 = vadd.f32 %v5153, %v5265
  %v5282 = vadd.f32 %v5154, %v5266
  %v5283 = vadd.f32 %v5155, %v5267
  %v5284 = vadd.f32 %v5156, %v5268
  %5285 = vrot.lane.b32.xlu0 %v2803, 121
  %v5286 = vpop.permute.xlu0 %5285
  %5287 = vrot.lane.b32.xlu0 %v2806, 121
  %v5288 = vpop.permute.xlu0 %5287
  %5289 = vrot.lane.b32.xlu0 %v2811, 121
  %v5290 = vpop.permute.xlu0 %5289
  %5291 = vrot.lane.b32.xlu0 %v2814, 121
  %v5292 = vpop.permute.xlu0 %5291
  %5293 = vrot.lane.b32.xlu0 %v2819, 121
  %v5294 = vpop.permute.xlu0 %5293
  %5295 = vrot.lane.b32.xlu0 %v2822, 121
  %v5296 = vpop.permute.xlu0 %5295
  %5297 = vrot.lane.b32.xlu0 %v2827, 121
  %v5298 = vpop.permute.xlu0 %5297
  %5299 = vrot.lane.b32.xlu0 %v2830, 121
  %v5300 = vpop.permute.xlu0 %5299
  %5301 = vrot.lane.b32.xlu0 %v2835, 121
  %v5302 = vpop.permute.xlu0 %5301
  %5303 = vrot.lane.b32.xlu0 %v2838, 121
  %v5304 = vpop.permute.xlu0 %5303
  %5305 = vrot.lane.b32.xlu0 %v2843, 121
  %v5306 = vpop.permute.xlu0 %5305
  %5307 = vrot.lane.b32.xlu0 %v2846, 121
  %v5308 = vpop.permute.xlu0 %5307
  %5309 = vrot.lane.b32.xlu0 %v2851, 121
  %v5310 = vpop.permute.xlu0 %5309
  %5311 = vrot.lane.b32.xlu0 %v2854, 121
  %v5312 = vpop.permute.xlu0 %5311
  %5313 = vrot.lane.b32.xlu0 %v2859, 121
  %v5314 = vpop.permute.xlu0 %5313
  %5315 = vrot.lane.b32.xlu0 %v2862, 121
  %v5316 = vpop.permute.xlu0 %5315
  %v5317 = vmul.f32 %v5286, %v1245
  %v5318 = vmul.f32 %v5288, %v1245
  %v5319 = vmul.f32 %v5290, %v1245
  %v5320 = vmul.f32 %v5292, %v1245
  %v5321 = vmul.f32 %v5294, %v1245
  %v5322 = vmul.f32 %v5296, %v1245
  %v5323 = vmul.f32 %v5298, %v1245
  %v5324 = vmul.f32 %v5300, %v1245
  %v5325 = vmul.f32 %v5302, %v1245
  %v5326 = vmul.f32 %v5304, %v1245
  %v5327 = vmul.f32 %v5306, %v1245
  %v5328 = vmul.f32 %v5308, %v1245
  %v5329 = vmul.f32 %v5310, %v1245
  %v5330 = vmul.f32 %v5312, %v1245
  %v5331 = vmul.f32 %v5314, %v1245
  %v5332 = vmul.f32 %v5316, %v1245
  %v5333 = vrot.slane %v5317, 7
  %v5334 = vrot.slane %v5318, 7
  %v5335 = vrot.slane %v5319, 7
  %v5336 = vrot.slane %v5320, 7
  %v5337 = vrot.slane %v5321, 7
  %v5338 = vrot.slane %v5322, 7
  %v5339 = vrot.slane %v5323, 7
  %v5340 = vrot.slane %v5324, 7
  %v5341 = vrot.slane %v5325, 7
  %v5342 = vrot.slane %v5326, 7
  %v5343 = vrot.slane %v5327, 7
  %v5344 = vrot.slane %v5328, 7
  %v5345 = vrot.slane %v5329, 7
  %v5346 = vrot.slane %v5330, 7
  %v5347 = vrot.slane %v5331, 7
  %v5348 = vrot.slane %v5332, 7
  %v5349 = vsel %vm2931, %v5347, %v5348
  %v5350 = vsel %vm2931, %v5346, %v5347
  %v5351 = vsel %vm2931, %v5345, %v5346
  %v5352 = vsel %vm2931, %v5344, %v5345
  %v5353 = vsel %vm2931, %v5343, %v5344
  %v5354 = vsel %vm2931, %v5342, %v5343
  %v5355 = vsel %vm2931, %v5341, %v5342
  %v5356 = vsel %vm2931, %v5340, %v5341
  %v5357 = vsel %vm2931, %v5339, %v5340
  %v5358 = vsel %vm2931, %v5338, %v5339
  %v5359 = vsel %vm2931, %v5337, %v5338
  %v5360 = vsel %vm2931, %v5336, %v5337
  %v5361 = vsel %vm2931, %v5335, %v5336
  %v5362 = vsel %vm2931, %v5334, %v5335
  %v5363 = vsel %vm2931, %v5333, %v5334
  %v5364 = vsel %vm2931, %v5348, %v5333
  %5365 = vset.pattern.permute.xlu0 20
  %5366 = vperm.xlu0 %5365, %v66
  %v5367 = vpop.permute.xlu0 %5366
  %5369 = vset.pattern.permute.xlu0 20
  %5370 = vperm.xlu0 %5369, %v67
  %v5371 = vpop.permute.xlu0 %5370
  %5373 = vset.pattern.permute.xlu0 20
  %5374 = vperm.xlu0 %5373, %v68
  %v5375 = vpop.permute.xlu0 %5374
  %5377 = vset.pattern.permute.xlu0 20
  %5378 = vperm.xlu0 %5377, %v69
  %v5379 = vpop.permute.xlu0 %5378
  %5381 = vset.pattern.permute.xlu0 20
  %5382 = vperm.xlu0 %5381, %v70
  %v5383 = vpop.permute.xlu0 %5382
  %5385 = vset.pattern.permute.xlu0 20
  %5386 = vperm.xlu0 %5385, %v71
  %v5387 = vpop.permute.xlu0 %5386
  %5389 = vset.pattern.permute.xlu0 20
  %5390 = vperm.xlu0 %5389, %v72
  %v5391 = vpop.permute.xlu0 %5390
  %5393 = vset.pattern.permute.xlu0 20
  %5394 = vperm.xlu0 %5393, %v73
  %v5395 = vpop.permute.xlu0 %5394
  %5397 = vset.pattern.permute.xlu0 20
  %5398 = vperm.xlu0 %5397, %v74
  %v5399 = vpop.permute.xlu0 %5398
  %5401 = vset.pattern.permute.xlu0 20
  %5402 = vperm.xlu0 %5401, %v75
  %v5403 = vpop.permute.xlu0 %5402
  %5405 = vset.pattern.permute.xlu0 20
  %5406 = vperm.xlu0 %5405, %v76
  %v5407 = vpop.permute.xlu0 %5406
  %5409 = vset.pattern.permute.xlu0 20
  %5410 = vperm.xlu0 %5409, %v77
  %v5411 = vpop.permute.xlu0 %5410
  %5413 = vset.pattern.permute.xlu0 20
  %5414 = vperm.xlu0 %5413, %v78
  %v5415 = vpop.permute.xlu0 %5414
  %5417 = vset.pattern.permute.xlu0 20
  %5418 = vperm.xlu0 %5417, %v79
  %v5419 = vpop.permute.xlu0 %5418
  %5421 = vset.pattern.permute.xlu0 20
  %5422 = vperm.xlu0 %5421, %v80
  %v5423 = vpop.permute.xlu0 %5422
  %5425 = vset.pattern.permute.xlu0 20
  %5426 = vperm.xlu0 %5425, %v81
  %v5427 = vpop.permute.xlu0 %5426
  %v5429 = vmul.f32 %v5364, %v5367
  %v5430 = vmul.f32 %v5363, %v5371
  %v5431 = vmul.f32 %v5362, %v5375
  %v5432 = vmul.f32 %v5361, %v5379
  %v5433 = vmul.f32 %v5360, %v5383
  %v5434 = vmul.f32 %v5359, %v5387
  %v5435 = vmul.f32 %v5358, %v5391
  %v5436 = vmul.f32 %v5357, %v5395
  %v5437 = vmul.f32 %v5356, %v5399
  %v5438 = vmul.f32 %v5355, %v5403
  %v5439 = vmul.f32 %v5354, %v5407
  %v5440 = vmul.f32 %v5353, %v5411
  %v5441 = vmul.f32 %v5352, %v5415
  %v5442 = vmul.f32 %v5351, %v5419
  %v5443 = vmul.f32 %v5350, %v5423
  %v5444 = vmul.f32 %v5349, %v5427
  %v5445 = vadd.f32 %v5269, %v5429
  %v5446 = vadd.f32 %v5270, %v5430
  %v5447 = vadd.f32 %v5271, %v5431
  %v5448 = vadd.f32 %v5272, %v5432
  %v5449 = vadd.f32 %v5273, %v5433
  %v5450 = vadd.f32 %v5274, %v5434
  %v5451 = vadd.f32 %v5275, %v5435
  %v5452 = vadd.f32 %v5276, %v5436
  %v5453 = vadd.f32 %v5277, %v5437
  %v5454 = vadd.f32 %v5278, %v5438
  %v5455 = vadd.f32 %v5279, %v5439
  %v5456 = vadd.f32 %v5280, %v5440
  %v5457 = vadd.f32 %v5281, %v5441
  %v5458 = vadd.f32 %v5282, %v5442
  %v5459 = vadd.f32 %v5283, %v5443
  %v5460 = vadd.f32 %v5284, %v5444
  %5461 = vset.pattern.permute.xlu0 21
  %5462 = vperm.xlu0 %5461, %v66
  %v5463 = vpop.permute.xlu0 %5462
  %5465 = vset.pattern.permute.xlu0 21
  %5466 = vperm.xlu0 %5465, %v67
  %v5467 = vpop.permute.xlu0 %5466
  %5469 = vset.pattern.permute.xlu0 21
  %5470 = vperm.xlu0 %5469, %v68
  %v5471 = vpop.permute.xlu0 %5470
  %5473 = vset.pattern.permute.xlu0 21
  %5474 = vperm.xlu0 %5473, %v69
  %v5475 = vpop.permute.xlu0 %5474
  %5477 = vset.pattern.permute.xlu0 21
  %5478 = vperm.xlu0 %5477, %v70
  %v5479 = vpop.permute.xlu0 %5478
  %5481 = vset.pattern.permute.xlu0 21
  %5482 = vperm.xlu0 %5481, %v71
  %v5483 = vpop.permute.xlu0 %5482
  %5485 = vset.pattern.permute.xlu0 21
  %5486 = vperm.xlu0 %5485, %v72
  %v5487 = vpop.permute.xlu0 %5486
  %5489 = vset.pattern.permute.xlu0 21
  %5490 = vperm.xlu0 %5489, %v73
  %v5491 = vpop.permute.xlu0 %5490
  %5493 = vset.pattern.permute.xlu0 21
  %5494 = vperm.xlu0 %5493, %v74
  %v5495 = vpop.permute.xlu0 %5494
  %5497 = vset.pattern.permute.xlu0 21
  %5498 = vperm.xlu0 %5497, %v75
  %v5499 = vpop.permute.xlu0 %5498
  %5501 = vset.pattern.permute.xlu0 21
  %5502 = vperm.xlu0 %5501, %v76
  %v5503 = vpop.permute.xlu0 %5502
  %5505 = vset.pattern.permute.xlu0 21
  %5506 = vperm.xlu0 %5505, %v77
  %v5507 = vpop.permute.xlu0 %5506
  %5509 = vset.pattern.permute.xlu0 21
  %5510 = vperm.xlu0 %5509, %v78
  %v5511 = vpop.permute.xlu0 %5510
  %5513 = vset.pattern.permute.xlu0 21
  %5514 = vperm.xlu0 %5513, %v79
  %v5515 = vpop.permute.xlu0 %5514
  %5517 = vset.pattern.permute.xlu0 21
  %5518 = vperm.xlu0 %5517, %v80
  %v5519 = vpop.permute.xlu0 %5518
  %5521 = vset.pattern.permute.xlu0 21
  %5522 = vperm.xlu0 %5521, %v81
  %v5523 = vpop.permute.xlu0 %5522
  %v5525 = vmul.f32 %v5317, %v5463
  %v5526 = vmul.f32 %v5318, %v5467
  %v5527 = vmul.f32 %v5319, %v5471
  %v5528 = vmul.f32 %v5320, %v5475
  %v5529 = vmul.f32 %v5321, %v5479
  %v5530 = vmul.f32 %v5322, %v5483
  %v5531 = vmul.f32 %v5323, %v5487
  %v5532 = vmul.f32 %v5324, %v5491
  %v5533 = vmul.f32 %v5325, %v5495
  %v5534 = vmul.f32 %v5326, %v5499
  %v5535 = vmul.f32 %v5327, %v5503
  %v5536 = vmul.f32 %v5328, %v5507
  %v5537 = vmul.f32 %v5329, %v5511
  %v5538 = vmul.f32 %v5330, %v5515
  %v5539 = vmul.f32 %v5331, %v5519
  %v5540 = vmul.f32 %v5332, %v5523
  %v5541 = vadd.f32 %v5445, %v5525
  %v5542 = vadd.f32 %v5446, %v5526
  %v5543 = vadd.f32 %v5447, %v5527
  %v5544 = vadd.f32 %v5448, %v5528
  %v5545 = vadd.f32 %v5449, %v5529
  %v5546 = vadd.f32 %v5450, %v5530
  %v5547 = vadd.f32 %v5451, %v5531
  %v5548 = vadd.f32 %v5452, %v5532
  %v5549 = vadd.f32 %v5453, %v5533
  %v5550 = vadd.f32 %v5454, %v5534
  %v5551 = vadd.f32 %v5455, %v5535
  %v5552 = vadd.f32 %v5456, %v5536
  %v5553 = vadd.f32 %v5457, %v5537
  %v5554 = vadd.f32 %v5458, %v5538
  %v5555 = vadd.f32 %v5459, %v5539
  %v5556 = vadd.f32 %v5460, %v5540
  %v5557 = vrot.slane %v5317, 1
  %v5558 = vrot.slane %v5318, 1
  %v5559 = vrot.slane %v5319, 1
  %v5560 = vrot.slane %v5320, 1
  %v5561 = vrot.slane %v5321, 1
  %v5562 = vrot.slane %v5322, 1
  %v5563 = vrot.slane %v5323, 1
  %v5564 = vrot.slane %v5324, 1
  %v5565 = vrot.slane %v5325, 1
  %v5566 = vrot.slane %v5326, 1
  %v5567 = vrot.slane %v5327, 1
  %v5568 = vrot.slane %v5328, 1
  %v5569 = vrot.slane %v5329, 1
  %v5570 = vrot.slane %v5330, 1
  %v5571 = vrot.slane %v5331, 1
  %v5572 = vrot.slane %v5332, 1
  %v5573 = vsel %vm3220, %v5571, %v5572
  %v5574 = vsel %vm3220, %v5570, %v5571
  %v5575 = vsel %vm3220, %v5569, %v5570
  %v5576 = vsel %vm3220, %v5568, %v5569
  %v5577 = vsel %vm3220, %v5567, %v5568
  %v5578 = vsel %vm3220, %v5566, %v5567
  %v5579 = vsel %vm3220, %v5565, %v5566
  %v5580 = vsel %vm3220, %v5564, %v5565
  %v5581 = vsel %vm3220, %v5563, %v5564
  %v5582 = vsel %vm3220, %v5562, %v5563
  %v5583 = vsel %vm3220, %v5561, %v5562
  %v5584 = vsel %vm3220, %v5560, %v5561
  %v5585 = vsel %vm3220, %v5559, %v5560
  %v5586 = vsel %vm3220, %v5558, %v5559
  %v5587 = vsel %vm3220, %v5557, %v5558
  %v5588 = vsel %vm3220, %v5572, %v5557
  %5589 = vset.pattern.permute.xlu0 22
  %5590 = vperm.xlu0 %5589, %v66
  %v5591 = vpop.permute.xlu0 %5590
  %5593 = vset.pattern.permute.xlu0 22
  %5594 = vperm.xlu0 %5593, %v67
  %v5595 = vpop.permute.xlu0 %5594
  %5597 = vset.pattern.permute.xlu0 22
  %5598 = vperm.xlu0 %5597, %v68
  %v5599 = vpop.permute.xlu0 %5598
  %5601 = vset.pattern.permute.xlu0 22
  %5602 = vperm.xlu0 %5601, %v69
  %v5603 = vpop.permute.xlu0 %5602
  %5605 = vset.pattern.permute.xlu0 22
  %5606 = vperm.xlu0 %5605, %v70
  %v5607 = vpop.permute.xlu0 %5606
  %5609 = vset.pattern.permute.xlu0 22
  %5610 = vperm.xlu0 %5609, %v71
  %v5611 = vpop.permute.xlu0 %5610
  %5613 = vset.pattern.permute.xlu0 22
  %5614 = vperm.xlu0 %5613, %v72
  %v5615 = vpop.permute.xlu0 %5614
  %5617 = vset.pattern.permute.xlu0 22
  %5618 = vperm.xlu0 %5617, %v73
  %v5619 = vpop.permute.xlu0 %5618
  %5621 = vset.pattern.permute.xlu0 22
  %5622 = vperm.xlu0 %5621, %v74
  %v5623 = vpop.permute.xlu0 %5622
  %5625 = vset.pattern.permute.xlu0 22
  %5626 = vperm.xlu0 %5625, %v75
  %v5627 = vpop.permute.xlu0 %5626
  %5629 = vset.pattern.permute.xlu0 22
  %5630 = vperm.xlu0 %5629, %v76
  %v5631 = vpop.permute.xlu0 %5630
  %5633 = vset.pattern.permute.xlu0 22
  %5634 = vperm.xlu0 %5633, %v77
  %v5635 = vpop.permute.xlu0 %5634
  %5637 = vset.pattern.permute.xlu0 22
  %5638 = vperm.xlu0 %5637, %v78
  %v5639 = vpop.permute.xlu0 %5638
  %5641 = vset.pattern.permute.xlu0 22
  %5642 = vperm.xlu0 %5641, %v79
  %v5643 = vpop.permute.xlu0 %5642
  %5645 = vset.pattern.permute.xlu0 22
  %5646 = vperm.xlu0 %5645, %v80
  %v5647 = vpop.permute.xlu0 %5646
  %5649 = vset.pattern.permute.xlu0 22
  %5650 = vperm.xlu0 %5649, %v81
  %v5651 = vpop.permute.xlu0 %5650
  %v5653 = vmul.f32 %v5587, %v5591
  %v5654 = vmul.f32 %v5586, %v5595
  %v5655 = vmul.f32 %v5585, %v5599
  %v5656 = vmul.f32 %v5584, %v5603
  %v5657 = vmul.f32 %v5583, %v5607
  %v5658 = vmul.f32 %v5582, %v5611
  %v5659 = vmul.f32 %v5581, %v5615
  %v5660 = vmul.f32 %v5580, %v5619
  %v5661 = vmul.f32 %v5579, %v5623
  %v5662 = vmul.f32 %v5578, %v5627
  %v5663 = vmul.f32 %v5577, %v5631
  %v5664 = vmul.f32 %v5576, %v5635
  %v5665 = vmul.f32 %v5575, %v5639
  %v5666 = vmul.f32 %v5574, %v5643
  %v5667 = vmul.f32 %v5573, %v5647
  %v5668 = vmul.f32 %v5588, %v5651
  %v5669 = vadd.f32 %v5541, %v5653
  %v5670 = vadd.f32 %v5542, %v5654
  %v5671 = vadd.f32 %v5543, %v5655
  %v5672 = vadd.f32 %v5544, %v5656
  %v5673 = vadd.f32 %v5545, %v5657
  %v5674 = vadd.f32 %v5546, %v5658
  %v5675 = vadd.f32 %v5547, %v5659
  %v5676 = vadd.f32 %v5548, %v5660
  %v5677 = vadd.f32 %v5549, %v5661
  %v5678 = vadd.f32 %v5550, %v5662
  %v5679 = vadd.f32 %v5551, %v5663
  %v5680 = vadd.f32 %v5552, %v5664
  %v5681 = vadd.f32 %v5553, %v5665
  %v5682 = vadd.f32 %v5554, %v5666
  %v5683 = vadd.f32 %v5555, %v5667
  %v5684 = vadd.f32 %v5556, %v5668
  %5685 = vrot.lane.b32.xlu0 %v2803, 120
  %v5686 = vpop.permute.xlu0 %5685
  %5687 = vrot.lane.b32.xlu0 %v2806, 120
  %v5688 = vpop.permute.xlu0 %5687
  %5689 = vrot.lane.b32.xlu0 %v2811, 120
  %v5690 = vpop.permute.xlu0 %5689
  %5691 = vrot.lane.b32.xlu0 %v2814, 120
  %v5692 = vpop.permute.xlu0 %5691
  %5693 = vrot.lane.b32.xlu0 %v2819, 120
  %v5694 = vpop.permute.xlu0 %5693
  %5695 = vrot.lane.b32.xlu0 %v2822, 120
  %v5696 = vpop.permute.xlu0 %5695
  %5697 = vrot.lane.b32.xlu0 %v2827, 120
  %v5698 = vpop.permute.xlu0 %5697
  %5699 = vrot.lane.b32.xlu0 %v2830, 120
  %v5700 = vpop.permute.xlu0 %5699
  %5701 = vrot.lane.b32.xlu0 %v2835, 120
  %v5702 = vpop.permute.xlu0 %5701
  %5703 = vrot.lane.b32.xlu0 %v2838, 120
  %v5704 = vpop.permute.xlu0 %5703
  %5705 = vrot.lane.b32.xlu0 %v2843, 120
  %v5706 = vpop.permute.xlu0 %5705
  %5707 = vrot.lane.b32.xlu0 %v2846, 120
  %v5708 = vpop.permute.xlu0 %5707
  %5709 = vrot.lane.b32.xlu0 %v2851, 120
  %v5710 = vpop.permute.xlu0 %5709
  %5711 = vrot.lane.b32.xlu0 %v2854, 120
  %v5712 = vpop.permute.xlu0 %5711
  %5713 = vrot.lane.b32.xlu0 %v2859, 120
  %v5714 = vpop.permute.xlu0 %5713
  %5715 = vrot.lane.b32.xlu0 %v2862, 120
  %v5716 = vpop.permute.xlu0 %5715
  %v5717 = vmul.f32 %v5686, %v1357
  %v5718 = vmul.f32 %v5688, %v1357
  %v5719 = vmul.f32 %v5690, %v1357
  %v5720 = vmul.f32 %v5692, %v1357
  %v5721 = vmul.f32 %v5694, %v1357
  %v5722 = vmul.f32 %v5696, %v1357
  %v5723 = vmul.f32 %v5698, %v1357
  %v5724 = vmul.f32 %v5700, %v1357
  %v5725 = vmul.f32 %v5702, %v1357
  %v5726 = vmul.f32 %v5704, %v1357
  %v5727 = vmul.f32 %v5706, %v1357
  %v5728 = vmul.f32 %v5708, %v1357
  %v5729 = vmul.f32 %v5710, %v1357
  %v5730 = vmul.f32 %v5712, %v1357
  %v5731 = vmul.f32 %v5714, %v1357
  %v5732 = vmul.f32 %v5716, %v1357
  %v5733 = vrot.slane %v5717, 7
  %v5734 = vrot.slane %v5718, 7
  %v5735 = vrot.slane %v5719, 7
  %v5736 = vrot.slane %v5720, 7
  %v5737 = vrot.slane %v5721, 7
  %v5738 = vrot.slane %v5722, 7
  %v5739 = vrot.slane %v5723, 7
  %v5740 = vrot.slane %v5724, 7
  %v5741 = vrot.slane %v5725, 7
  %v5742 = vrot.slane %v5726, 7
  %v5743 = vrot.slane %v5727, 7
  %v5744 = vrot.slane %v5728, 7
  %v5745 = vrot.slane %v5729, 7
  %v5746 = vrot.slane %v5730, 7
  %v5747 = vrot.slane %v5731, 7
  %v5748 = vrot.slane %v5732, 7
  %v5749 = vsel %vm2931, %v5747, %v5748
  %v5750 = vsel %vm2931, %v5746, %v5747
  %v5751 = vsel %vm2931, %v5745, %v5746
  %v5752 = vsel %vm2931, %v5744, %v5745
  %v5753 = vsel %vm2931, %v5743, %v5744
  %v5754 = vsel %vm2931, %v5742, %v5743
  %v5755 = vsel %vm2931, %v5741, %v5742
  %v5756 = vsel %vm2931, %v5740, %v5741
  %v5757 = vsel %vm2931, %v5739, %v5740
  %v5758 = vsel %vm2931, %v5738, %v5739
  %v5759 = vsel %vm2931, %v5737, %v5738
  %v5760 = vsel %vm2931, %v5736, %v5737
  %v5761 = vsel %vm2931, %v5735, %v5736
  %v5762 = vsel %vm2931, %v5734, %v5735
  %v5763 = vsel %vm2931, %v5733, %v5734
  %v5764 = vsel %vm2931, %v5748, %v5733
  %5765 = vset.pattern.permute.xlu0 23
  %5766 = vperm.xlu0 %5765, %v66
  %v5767 = vpop.permute.xlu0 %5766
  %5769 = vset.pattern.permute.xlu0 23
  %5770 = vperm.xlu0 %5769, %v67
  %v5771 = vpop.permute.xlu0 %5770
  %5773 = vset.pattern.permute.xlu0 23
  %5774 = vperm.xlu0 %5773, %v68
  %v5775 = vpop.permute.xlu0 %5774
  %5777 = vset.pattern.permute.xlu0 23
  %5778 = vperm.xlu0 %5777, %v69
  %v5779 = vpop.permute.xlu0 %5778
  %5781 = vset.pattern.permute.xlu0 23
  %5782 = vperm.xlu0 %5781, %v70
  %v5783 = vpop.permute.xlu0 %5782
  %5785 = vset.pattern.permute.xlu0 23
  %5786 = vperm.xlu0 %5785, %v71
  %v5787 = vpop.permute.xlu0 %5786
  %5789 = vset.pattern.permute.xlu0 23
  %5790 = vperm.xlu0 %5789, %v72
  %v5791 = vpop.permute.xlu0 %5790
  %5793 = vset.pattern.permute.xlu0 23
  %5794 = vperm.xlu0 %5793, %v73
  %v5795 = vpop.permute.xlu0 %5794
  %5797 = vset.pattern.permute.xlu0 23
  %5798 = vperm.xlu0 %5797, %v74
  %v5799 = vpop.permute.xlu0 %5798
  %5801 = vset.pattern.permute.xlu0 23
  %5802 = vperm.xlu0 %5801, %v75
  %v5803 = vpop.permute.xlu0 %5802
  %5805 = vset.pattern.permute.xlu0 23
  %5806 = vperm.xlu0 %5805, %v76
  %v5807 = vpop.permute.xlu0 %5806
  %5809 = vset.pattern.permute.xlu0 23
  %5810 = vperm.xlu0 %5809, %v77
  %v5811 = vpop.permute.xlu0 %5810
  %5813 = vset.pattern.permute.xlu0 23
  %5814 = vperm.xlu0 %5813, %v78
  %v5815 = vpop.permute.xlu0 %5814
  %5817 = vset.pattern.permute.xlu0 23
  %5818 = vperm.xlu0 %5817, %v79
  %v5819 = vpop.permute.xlu0 %5818
  %5821 = vset.pattern.permute.xlu0 23
  %5822 = vperm.xlu0 %5821, %v80
  %v5823 = vpop.permute.xlu0 %5822
  %5825 = vset.pattern.permute.xlu0 23
  %5826 = vperm.xlu0 %5825, %v81
  %v5827 = vpop.permute.xlu0 %5826
  %v5829 = vmul.f32 %v5764, %v5767
  %v5830 = vmul.f32 %v5763, %v5771
  %v5831 = vmul.f32 %v5762, %v5775
  %v5832 = vmul.f32 %v5761, %v5779
  %v5833 = vmul.f32 %v5760, %v5783
  %v5834 = vmul.f32 %v5759, %v5787
  %v5835 = vmul.f32 %v5758, %v5791
  %v5836 = vmul.f32 %v5757, %v5795
  %v5837 = vmul.f32 %v5756, %v5799
  %v5838 = vmul.f32 %v5755, %v5803
  %v5839 = vmul.f32 %v5754, %v5807
  %v5840 = vmul.f32 %v5753, %v5811
  %v5841 = vmul.f32 %v5752, %v5815
  %v5842 = vmul.f32 %v5751, %v5819
  %v5843 = vmul.f32 %v5750, %v5823
  %v5844 = vmul.f32 %v5749, %v5827
  %v5845 = vadd.f32 %v5669, %v5829
  %v5846 = vadd.f32 %v5670, %v5830
  %v5847 = vadd.f32 %v5671, %v5831
  %v5848 = vadd.f32 %v5672, %v5832
  %v5849 = vadd.f32 %v5673, %v5833
  %v5850 = vadd.f32 %v5674, %v5834
  %v5851 = vadd.f32 %v5675, %v5835
  %v5852 = vadd.f32 %v5676, %v5836
  %v5853 = vadd.f32 %v5677, %v5837
  %v5854 = vadd.f32 %v5678, %v5838
  %v5855 = vadd.f32 %v5679, %v5839
  %v5856 = vadd.f32 %v5680, %v5840
  %v5857 = vadd.f32 %v5681, %v5841
  %v5858 = vadd.f32 %v5682, %v5842
  %v5859 = vadd.f32 %v5683, %v5843
  %v5860 = vadd.f32 %v5684, %v5844
  %5861 = vset.pattern.permute.xlu0 24
  %5862 = vperm.xlu0 %5861, %v66
  %v5863 = vpop.permute.xlu0 %5862
  %5865 = vset.pattern.permute.xlu0 24
  %5866 = vperm.xlu0 %5865, %v67
  %v5867 = vpop.permute.xlu0 %5866
  %5869 = vset.pattern.permute.xlu0 24
  %5870 = vperm.xlu0 %5869, %v68
  %v5871 = vpop.permute.xlu0 %5870
  %5873 = vset.pattern.permute.xlu0 24
  %5874 = vperm.xlu0 %5873, %v69
  %v5875 = vpop.permute.xlu0 %5874
  %5877 = vset.pattern.permute.xlu0 24
  %5878 = vperm.xlu0 %5877, %v70
  %v5879 = vpop.permute.xlu0 %5878
  %5881 = vset.pattern.permute.xlu0 24
  %5882 = vperm.xlu0 %5881, %v71
  %v5883 = vpop.permute.xlu0 %5882
  %5885 = vset.pattern.permute.xlu0 24
  %5886 = vperm.xlu0 %5885, %v72
  %v5887 = vpop.permute.xlu0 %5886
  %5889 = vset.pattern.permute.xlu0 24
  %5890 = vperm.xlu0 %5889, %v73
  %v5891 = vpop.permute.xlu0 %5890
  %5893 = vset.pattern.permute.xlu0 24
  %5894 = vperm.xlu0 %5893, %v74
  %v5895 = vpop.permute.xlu0 %5894
  %5897 = vset.pattern.permute.xlu0 24
  %5898 = vperm.xlu0 %5897, %v75
  %v5899 = vpop.permute.xlu0 %5898
  %5901 = vset.pattern.permute.xlu0 24
  %5902 = vperm.xlu0 %5901, %v76
  %v5903 = vpop.permute.xlu0 %5902
  %5905 = vset.pattern.permute.xlu0 24
  %5906 = vperm.xlu0 %5905, %v77
  %v5907 = vpop.permute.xlu0 %5906
  %5909 = vset.pattern.permute.xlu0 24
  %5910 = vperm.xlu0 %5909, %v78
  %v5911 = vpop.permute.xlu0 %5910
  %5913 = vset.pattern.permute.xlu0 24
  %5914 = vperm.xlu0 %5913, %v79
  %v5915 = vpop.permute.xlu0 %5914
  %5917 = vset.pattern.permute.xlu0 24
  %5918 = vperm.xlu0 %5917, %v80
  %v5919 = vpop.permute.xlu0 %5918
  %5921 = vset.pattern.permute.xlu0 24
  %5922 = vperm.xlu0 %5921, %v81
  %v5923 = vpop.permute.xlu0 %5922
  %v5925 = vmul.f32 %v5717, %v5863
  %v5926 = vmul.f32 %v5718, %v5867
  %v5927 = vmul.f32 %v5719, %v5871
  %v5928 = vmul.f32 %v5720, %v5875
  %v5929 = vmul.f32 %v5721, %v5879
  %v5930 = vmul.f32 %v5722, %v5883
  %v5931 = vmul.f32 %v5723, %v5887
  %v5932 = vmul.f32 %v5724, %v5891
  %v5933 = vmul.f32 %v5725, %v5895
  %v5934 = vmul.f32 %v5726, %v5899
  %v5935 = vmul.f32 %v5727, %v5903
  %v5936 = vmul.f32 %v5728, %v5907
  %v5937 = vmul.f32 %v5729, %v5911
  %v5938 = vmul.f32 %v5730, %v5915
  %v5939 = vmul.f32 %v5731, %v5919
  %v5940 = vmul.f32 %v5732, %v5923
  %v5941 = vadd.f32 %v5845, %v5925
  %v5942 = vadd.f32 %v5846, %v5926
  %v5943 = vadd.f32 %v5847, %v5927
  %v5944 = vadd.f32 %v5848, %v5928
  %v5945 = vadd.f32 %v5849, %v5929
  %v5946 = vadd.f32 %v5850, %v5930
  %v5947 = vadd.f32 %v5851, %v5931
  %v5948 = vadd.f32 %v5852, %v5932
  %v5949 = vadd.f32 %v5853, %v5933
  %v5950 = vadd.f32 %v5854, %v5934
  %v5951 = vadd.f32 %v5855, %v5935
  %v5952 = vadd.f32 %v5856, %v5936
  %v5953 = vadd.f32 %v5857, %v5937
  %v5954 = vadd.f32 %v5858, %v5938
  %v5955 = vadd.f32 %v5859, %v5939
  %v5956 = vadd.f32 %v5860, %v5940
  %v5957 = vrot.slane %v5717, 1
  %v5958 = vrot.slane %v5718, 1
  %v5959 = vrot.slane %v5719, 1
  %v5960 = vrot.slane %v5720, 1
  %v5961 = vrot.slane %v5721, 1
  %v5962 = vrot.slane %v5722, 1
  %v5963 = vrot.slane %v5723, 1
  %v5964 = vrot.slane %v5724, 1
  %v5965 = vrot.slane %v5725, 1
  %v5966 = vrot.slane %v5726, 1
  %v5967 = vrot.slane %v5727, 1
  %v5968 = vrot.slane %v5728, 1
  %v5969 = vrot.slane %v5729, 1
  %v5970 = vrot.slane %v5730, 1
  %v5971 = vrot.slane %v5731, 1
  %v5972 = vrot.slane %v5732, 1
  %v5973 = vsel %vm3220, %v5971, %v5972
  %v5974 = vsel %vm3220, %v5970, %v5971
  %v5975 = vsel %vm3220, %v5969, %v5970
  %v5976 = vsel %vm3220, %v5968, %v5969
  %v5977 = vsel %vm3220, %v5967, %v5968
  %v5978 = vsel %vm3220, %v5966, %v5967
  %v5979 = vsel %vm3220, %v5965, %v5966
  %v5980 = vsel %vm3220, %v5964, %v5965
  %v5981 = vsel %vm3220, %v5963, %v5964
  %v5982 = vsel %vm3220, %v5962, %v5963
  %v5983 = vsel %vm3220, %v5961, %v5962
  %v5984 = vsel %vm3220, %v5960, %v5961
  %v5985 = vsel %vm3220, %v5959, %v5960
  %v5986 = vsel %vm3220, %v5958, %v5959
  %v5987 = vsel %vm3220, %v5957, %v5958
  %v5988 = vsel %vm3220, %v5972, %v5957
  %5989 = vset.pattern.permute.xlu0 25
  %5990 = vperm.xlu0 %5989, %v66
  %v5991 = vpop.permute.xlu0 %5990
  %5993 = vset.pattern.permute.xlu0 25
  %5994 = vperm.xlu0 %5993, %v67
  %v5995 = vpop.permute.xlu0 %5994
  %5997 = vset.pattern.permute.xlu0 25
  %5998 = vperm.xlu0 %5997, %v68
  %v5999 = vpop.permute.xlu0 %5998
  %6001 = vset.pattern.permute.xlu0 25
  %6002 = vperm.xlu0 %6001, %v69
  %v6003 = vpop.permute.xlu0 %6002
  %6005 = vset.pattern.permute.xlu0 25
  %6006 = vperm.xlu0 %6005, %v70
  %v6007 = vpop.permute.xlu0 %6006
  %6009 = vset.pattern.permute.xlu0 25
  %6010 = vperm.xlu0 %6009, %v71
  %v6011 = vpop.permute.xlu0 %6010
  %6013 = vset.pattern.permute.xlu0 25
  %6014 = vperm.xlu0 %6013, %v72
  %v6015 = vpop.permute.xlu0 %6014
  %6017 = vset.pattern.permute.xlu0 25
  %6018 = vperm.xlu0 %6017, %v73
  %v6019 = vpop.permute.xlu0 %6018
  %6021 = vset.pattern.permute.xlu0 25
  %6022 = vperm.xlu0 %6021, %v74
  %v6023 = vpop.permute.xlu0 %6022
  %6025 = vset.pattern.permute.xlu0 25
  %6026 = vperm.xlu0 %6025, %v75
  %v6027 = vpop.permute.xlu0 %6026
  %6029 = vset.pattern.permute.xlu0 25
  %6030 = vperm.xlu0 %6029, %v76
  %v6031 = vpop.permute.xlu0 %6030
  %6033 = vset.pattern.permute.xlu0 25
  %6034 = vperm.xlu0 %6033, %v77
  %v6035 = vpop.permute.xlu0 %6034
  %6037 = vset.pattern.permute.xlu0 25
  %6038 = vperm.xlu0 %6037, %v78
  %v6039 = vpop.permute.xlu0 %6038
  %6041 = vset.pattern.permute.xlu0 25
  %6042 = vperm.xlu0 %6041, %v79
  %v6043 = vpop.permute.xlu0 %6042
  %6045 = vset.pattern.permute.xlu0 25
  %6046 = vperm.xlu0 %6045, %v80
  %v6047 = vpop.permute.xlu0 %6046
  %6049 = vset.pattern.permute.xlu0 25
  %6050 = vperm.xlu0 %6049, %v81
  %v6051 = vpop.permute.xlu0 %6050
  %v6053 = vmul.f32 %v5987, %v5991
  %v6054 = vmul.f32 %v5986, %v5995
  %v6055 = vmul.f32 %v5985, %v5999
  %v6056 = vmul.f32 %v5984, %v6003
  %v6057 = vmul.f32 %v5983, %v6007
  %v6058 = vmul.f32 %v5982, %v6011
  %v6059 = vmul.f32 %v5981, %v6015
  %v6060 = vmul.f32 %v5980, %v6019
  %v6061 = vmul.f32 %v5979, %v6023
  %v6062 = vmul.f32 %v5978, %v6027
  %v6063 = vmul.f32 %v5977, %v6031
  %v6064 = vmul.f32 %v5976, %v6035
  %v6065 = vmul.f32 %v5975, %v6039
  %v6066 = vmul.f32 %v5974, %v6043
  %v6067 = vmul.f32 %v5973, %v6047
  %v6068 = vmul.f32 %v5988, %v6051
  %v6069 = vadd.f32 %v5941, %v6053
  %v6070 = vadd.f32 %v5942, %v6054
  %v6071 = vadd.f32 %v5943, %v6055
  %v6072 = vadd.f32 %v5944, %v6056
  %v6073 = vadd.f32 %v5945, %v6057
  %v6074 = vadd.f32 %v5946, %v6058
  %v6075 = vadd.f32 %v5947, %v6059
  %v6076 = vadd.f32 %v5948, %v6060
  %v6077 = vadd.f32 %v5949, %v6061
  %v6078 = vadd.f32 %v5950, %v6062
  %v6079 = vadd.f32 %v5951, %v6063
  %v6080 = vadd.f32 %v5952, %v6064
  %v6081 = vadd.f32 %v5953, %v6065
  %v6082 = vadd.f32 %v5954, %v6066
  %v6083 = vadd.f32 %v5955, %v6067
  %v6084 = vadd.f32 %v5956, %v6068
  %6085 = vrot.lane.b32.xlu0 %v2803, 119
  %v6086 = vpop.permute.xlu0 %6085
  %6087 = vrot.lane.b32.xlu0 %v2806, 119
  %v6088 = vpop.permute.xlu0 %6087
  %6089 = vrot.lane.b32.xlu0 %v2811, 119
  %v6090 = vpop.permute.xlu0 %6089
  %6091 = vrot.lane.b32.xlu0 %v2814, 119
  %v6092 = vpop.permute.xlu0 %6091
  %6093 = vrot.lane.b32.xlu0 %v2819, 119
  %v6094 = vpop.permute.xlu0 %6093
  %6095 = vrot.lane.b32.xlu0 %v2822, 119
  %v6096 = vpop.permute.xlu0 %6095
  %6097 = vrot.lane.b32.xlu0 %v2827, 119
  %v6098 = vpop.permute.xlu0 %6097
  %6099 = vrot.lane.b32.xlu0 %v2830, 119
  %v6100 = vpop.permute.xlu0 %6099
  %6101 = vrot.lane.b32.xlu0 %v2835, 119
  %v6102 = vpop.permute.xlu0 %6101
  %6103 = vrot.lane.b32.xlu0 %v2838, 119
  %v6104 = vpop.permute.xlu0 %6103
  %6105 = vrot.lane.b32.xlu0 %v2843, 119
  %v6106 = vpop.permute.xlu0 %6105
  %6107 = vrot.lane.b32.xlu0 %v2846, 119
  %v6108 = vpop.permute.xlu0 %6107
  %6109 = vrot.lane.b32.xlu0 %v2851, 119
  %v6110 = vpop.permute.xlu0 %6109
  %6111 = vrot.lane.b32.xlu0 %v2854, 119
  %v6112 = vpop.permute.xlu0 %6111
  %6113 = vrot.lane.b32.xlu0 %v2859, 119
  %v6114 = vpop.permute.xlu0 %6113
  %6115 = vrot.lane.b32.xlu0 %v2862, 119
  %v6116 = vpop.permute.xlu0 %6115
  %v6117 = vmul.f32 %v6086, %v1469
  %v6118 = vmul.f32 %v6088, %v1469
  %v6119 = vmul.f32 %v6090, %v1469
  %v6120 = vmul.f32 %v6092, %v1469
  %v6121 = vmul.f32 %v6094, %v1469
  %v6122 = vmul.f32 %v6096, %v1469
  %v6123 = vmul.f32 %v6098, %v1469
  %v6124 = vmul.f32 %v6100, %v1469
  %v6125 = vmul.f32 %v6102, %v1469
  %v6126 = vmul.f32 %v6104, %v1469
  %v6127 = vmul.f32 %v6106, %v1469
  %v6128 = vmul.f32 %v6108, %v1469
  %v6129 = vmul.f32 %v6110, %v1469
  %v6130 = vmul.f32 %v6112, %v1469
  %v6131 = vmul.f32 %v6114, %v1469
  %v6132 = vmul.f32 %v6116, %v1469
  %v6133 = vrot.slane %v6117, 7
  %v6134 = vrot.slane %v6118, 7
  %v6135 = vrot.slane %v6119, 7
  %v6136 = vrot.slane %v6120, 7
  %v6137 = vrot.slane %v6121, 7
  %v6138 = vrot.slane %v6122, 7
  %v6139 = vrot.slane %v6123, 7
  %v6140 = vrot.slane %v6124, 7
  %v6141 = vrot.slane %v6125, 7
  %v6142 = vrot.slane %v6126, 7
  %v6143 = vrot.slane %v6127, 7
  %v6144 = vrot.slane %v6128, 7
  %v6145 = vrot.slane %v6129, 7
  %v6146 = vrot.slane %v6130, 7
  %v6147 = vrot.slane %v6131, 7
  %v6148 = vrot.slane %v6132, 7
  %v6149 = vsel %vm2931, %v6147, %v6148
  %v6150 = vsel %vm2931, %v6146, %v6147
  %v6151 = vsel %vm2931, %v6145, %v6146
  %v6152 = vsel %vm2931, %v6144, %v6145
  %v6153 = vsel %vm2931, %v6143, %v6144
  %v6154 = vsel %vm2931, %v6142, %v6143
  %v6155 = vsel %vm2931, %v6141, %v6142
  %v6156 = vsel %vm2931, %v6140, %v6141
  %v6157 = vsel %vm2931, %v6139, %v6140
  %v6158 = vsel %vm2931, %v6138, %v6139
  %v6159 = vsel %vm2931, %v6137, %v6138
  %v6160 = vsel %vm2931, %v6136, %v6137
  %v6161 = vsel %vm2931, %v6135, %v6136
  %v6162 = vsel %vm2931, %v6134, %v6135
  %v6163 = vsel %vm2931, %v6133, %v6134
  %v6164 = vsel %vm2931, %v6148, %v6133
  %6165 = vset.pattern.permute.xlu0 26
  %6166 = vperm.xlu0 %6165, %v66
  %v6167 = vpop.permute.xlu0 %6166
  %6169 = vset.pattern.permute.xlu0 26
  %6170 = vperm.xlu0 %6169, %v67
  %v6171 = vpop.permute.xlu0 %6170
  %6173 = vset.pattern.permute.xlu0 26
  %6174 = vperm.xlu0 %6173, %v68
  %v6175 = vpop.permute.xlu0 %6174
  %6177 = vset.pattern.permute.xlu0 26
  %6178 = vperm.xlu0 %6177, %v69
  %v6179 = vpop.permute.xlu0 %6178
  %6181 = vset.pattern.permute.xlu0 26
  %6182 = vperm.xlu0 %6181, %v70
  %v6183 = vpop.permute.xlu0 %6182
  %6185 = vset.pattern.permute.xlu0 26
  %6186 = vperm.xlu0 %6185, %v71
  %v6187 = vpop.permute.xlu0 %6186
  %6189 = vset.pattern.permute.xlu0 26
  %6190 = vperm.xlu0 %6189, %v72
  %v6191 = vpop.permute.xlu0 %6190
  %6193 = vset.pattern.permute.xlu0 26
  %6194 = vperm.xlu0 %6193, %v73
  %v6195 = vpop.permute.xlu0 %6194
  %6197 = vset.pattern.permute.xlu0 26
  %6198 = vperm.xlu0 %6197, %v74
  %v6199 = vpop.permute.xlu0 %6198
  %6201 = vset.pattern.permute.xlu0 26
  %6202 = vperm.xlu0 %6201, %v75
  %v6203 = vpop.permute.xlu0 %6202
  %6205 = vset.pattern.permute.xlu0 26
  %6206 = vperm.xlu0 %6205, %v76
  %v6207 = vpop.permute.xlu0 %6206
  %6209 = vset.pattern.permute.xlu0 26
  %6210 = vperm.xlu0 %6209, %v77
  %v6211 = vpop.permute.xlu0 %6210
  %6213 = vset.pattern.permute.xlu0 26
  %6214 = vperm.xlu0 %6213, %v78
  %v6215 = vpop.permute.xlu0 %6214
  %6217 = vset.pattern.permute.xlu0 26
  %6218 = vperm.xlu0 %6217, %v79
  %v6219 = vpop.permute.xlu0 %6218
  %6221 = vset.pattern.permute.xlu0 26
  %6222 = vperm.xlu0 %6221, %v80
  %v6223 = vpop.permute.xlu0 %6222
  %6225 = vset.pattern.permute.xlu0 26
  %6226 = vperm.xlu0 %6225, %v81
  %v6227 = vpop.permute.xlu0 %6226
  %v6229 = vmul.f32 %v6164, %v6167
  %v6230 = vmul.f32 %v6163, %v6171
  %v6231 = vmul.f32 %v6162, %v6175
  %v6232 = vmul.f32 %v6161, %v6179
  %v6233 = vmul.f32 %v6160, %v6183
  %v6234 = vmul.f32 %v6159, %v6187
  %v6235 = vmul.f32 %v6158, %v6191
  %v6236 = vmul.f32 %v6157, %v6195
  %v6237 = vmul.f32 %v6156, %v6199
  %v6238 = vmul.f32 %v6155, %v6203
  %v6239 = vmul.f32 %v6154, %v6207
  %v6240 = vmul.f32 %v6153, %v6211
  %v6241 = vmul.f32 %v6152, %v6215
  %v6242 = vmul.f32 %v6151, %v6219
  %v6243 = vmul.f32 %v6150, %v6223
  %v6244 = vmul.f32 %v6149, %v6227
  %v6245 = vadd.f32 %v6069, %v6229
  %v6246 = vadd.f32 %v6070, %v6230
  %v6247 = vadd.f32 %v6071, %v6231
  %v6248 = vadd.f32 %v6072, %v6232
  %v6249 = vadd.f32 %v6073, %v6233
  %v6250 = vadd.f32 %v6074, %v6234
  %v6251 = vadd.f32 %v6075, %v6235
  %v6252 = vadd.f32 %v6076, %v6236
  %v6253 = vadd.f32 %v6077, %v6237
  %v6254 = vadd.f32 %v6078, %v6238
  %v6255 = vadd.f32 %v6079, %v6239
  %v6256 = vadd.f32 %v6080, %v6240
  %v6257 = vadd.f32 %v6081, %v6241
  %v6258 = vadd.f32 %v6082, %v6242
  %v6259 = vadd.f32 %v6083, %v6243
  %v6260 = vadd.f32 %v6084, %v6244
  %6261 = vset.pattern.permute.xlu0 27
  %6262 = vperm.xlu0 %6261, %v66
  %v6263 = vpop.permute.xlu0 %6262
  %6265 = vset.pattern.permute.xlu0 27
  %6266 = vperm.xlu0 %6265, %v67
  %v6267 = vpop.permute.xlu0 %6266
  %6269 = vset.pattern.permute.xlu0 27
  %6270 = vperm.xlu0 %6269, %v68
  %v6271 = vpop.permute.xlu0 %6270
  %6273 = vset.pattern.permute.xlu0 27
  %6274 = vperm.xlu0 %6273, %v69
  %v6275 = vpop.permute.xlu0 %6274
  %6277 = vset.pattern.permute.xlu0 27
  %6278 = vperm.xlu0 %6277, %v70
  %v6279 = vpop.permute.xlu0 %6278
  %6281 = vset.pattern.permute.xlu0 27
  %6282 = vperm.xlu0 %6281, %v71
  %v6283 = vpop.permute.xlu0 %6282
  %6285 = vset.pattern.permute.xlu0 27
  %6286 = vperm.xlu0 %6285, %v72
  %v6287 = vpop.permute.xlu0 %6286
  %6289 = vset.pattern.permute.xlu0 27
  %6290 = vperm.xlu0 %6289, %v73
  %v6291 = vpop.permute.xlu0 %6290
  %6293 = vset.pattern.permute.xlu0 27
  %6294 = vperm.xlu0 %6293, %v74
  %v6295 = vpop.permute.xlu0 %6294
  %6297 = vset.pattern.permute.xlu0 27
  %6298 = vperm.xlu0 %6297, %v75
  %v6299 = vpop.permute.xlu0 %6298
  %6301 = vset.pattern.permute.xlu0 27
  %6302 = vperm.xlu0 %6301, %v76
  %v6303 = vpop.permute.xlu0 %6302
  %6305 = vset.pattern.permute.xlu0 27
  %6306 = vperm.xlu0 %6305, %v77
  %v6307 = vpop.permute.xlu0 %6306
  %6309 = vset.pattern.permute.xlu0 27
  %6310 = vperm.xlu0 %6309, %v78
  %v6311 = vpop.permute.xlu0 %6310
  %6313 = vset.pattern.permute.xlu0 27
  %6314 = vperm.xlu0 %6313, %v79
  %v6315 = vpop.permute.xlu0 %6314
  %6317 = vset.pattern.permute.xlu0 27
  %6318 = vperm.xlu0 %6317, %v80
  %v6319 = vpop.permute.xlu0 %6318
  %6321 = vset.pattern.permute.xlu0 27
  %6322 = vperm.xlu0 %6321, %v81
  %v6323 = vpop.permute.xlu0 %6322
  %v6325 = vmul.f32 %v6117, %v6263
  %v6326 = vmul.f32 %v6118, %v6267
  %v6327 = vmul.f32 %v6119, %v6271
  %v6328 = vmul.f32 %v6120, %v6275
  %v6329 = vmul.f32 %v6121, %v6279
  %v6330 = vmul.f32 %v6122, %v6283
  %v6331 = vmul.f32 %v6123, %v6287
  %v6332 = vmul.f32 %v6124, %v6291
  %v6333 = vmul.f32 %v6125, %v6295
  %v6334 = vmul.f32 %v6126, %v6299
  %v6335 = vmul.f32 %v6127, %v6303
  %v6336 = vmul.f32 %v6128, %v6307
  %v6337 = vmul.f32 %v6129, %v6311
  %v6338 = vmul.f32 %v6130, %v6315
  %v6339 = vmul.f32 %v6131, %v6319
  %v6340 = vmul.f32 %v6132, %v6323
  %v6341 = vadd.f32 %v6245, %v6325
  %v6342 = vadd.f32 %v6246, %v6326
  %v6343 = vadd.f32 %v6247, %v6327
  %v6344 = vadd.f32 %v6248, %v6328
  %v6345 = vadd.f32 %v6249, %v6329
  %v6346 = vadd.f32 %v6250, %v6330
  %v6347 = vadd.f32 %v6251, %v6331
  %v6348 = vadd.f32 %v6252, %v6332
  %v6349 = vadd.f32 %v6253, %v6333
  %v6350 = vadd.f32 %v6254, %v6334
  %v6351 = vadd.f32 %v6255, %v6335
  %v6352 = vadd.f32 %v6256, %v6336
  %v6353 = vadd.f32 %v6257, %v6337
  %v6354 = vadd.f32 %v6258, %v6338
  %v6355 = vadd.f32 %v6259, %v6339
  %v6356 = vadd.f32 %v6260, %v6340
  %v6357 = vrot.slane %v6117, 1
  %v6358 = vrot.slane %v6118, 1
  %v6359 = vrot.slane %v6119, 1
  %v6360 = vrot.slane %v6120, 1
  %v6361 = vrot.slane %v6121, 1
  %v6362 = vrot.slane %v6122, 1
  %v6363 = vrot.slane %v6123, 1
  %v6364 = vrot.slane %v6124, 1
  %v6365 = vrot.slane %v6125, 1
  %v6366 = vrot.slane %v6126, 1
  %v6367 = vrot.slane %v6127, 1
  %v6368 = vrot.slane %v6128, 1
  %v6369 = vrot.slane %v6129, 1
  %v6370 = vrot.slane %v6130, 1
  %v6371 = vrot.slane %v6131, 1
  %v6372 = vrot.slane %v6132, 1
  %v6373 = vsel %vm3220, %v6371, %v6372
  %v6374 = vsel %vm3220, %v6370, %v6371
  %v6375 = vsel %vm3220, %v6369, %v6370
  %v6376 = vsel %vm3220, %v6368, %v6369
  %v6377 = vsel %vm3220, %v6367, %v6368
  %v6378 = vsel %vm3220, %v6366, %v6367
  %v6379 = vsel %vm3220, %v6365, %v6366
  %v6380 = vsel %vm3220, %v6364, %v6365
  %v6381 = vsel %vm3220, %v6363, %v6364
  %v6382 = vsel %vm3220, %v6362, %v6363
  %v6383 = vsel %vm3220, %v6361, %v6362
  %v6384 = vsel %vm3220, %v6360, %v6361
  %v6385 = vsel %vm3220, %v6359, %v6360
  %v6386 = vsel %vm3220, %v6358, %v6359
  %v6387 = vsel %vm3220, %v6357, %v6358
  %v6388 = vsel %vm3220, %v6372, %v6357
  %6389 = vset.pattern.permute.xlu0 28
  %6390 = vperm.xlu0 %6389, %v66
  %v6391 = vpop.permute.xlu0 %6390
  %6393 = vset.pattern.permute.xlu0 28
  %6394 = vperm.xlu0 %6393, %v67
  %v6395 = vpop.permute.xlu0 %6394
  %6397 = vset.pattern.permute.xlu0 28
  %6398 = vperm.xlu0 %6397, %v68
  %v6399 = vpop.permute.xlu0 %6398
  %6401 = vset.pattern.permute.xlu0 28
  %6402 = vperm.xlu0 %6401, %v69
  %v6403 = vpop.permute.xlu0 %6402
  %6405 = vset.pattern.permute.xlu0 28
  %6406 = vperm.xlu0 %6405, %v70
  %v6407 = vpop.permute.xlu0 %6406
  %6409 = vset.pattern.permute.xlu0 28
  %6410 = vperm.xlu0 %6409, %v71
  %v6411 = vpop.permute.xlu0 %6410
  %6413 = vset.pattern.permute.xlu0 28
  %6414 = vperm.xlu0 %6413, %v72
  %v6415 = vpop.permute.xlu0 %6414
  %6417 = vset.pattern.permute.xlu0 28
  %6418 = vperm.xlu0 %6417, %v73
  %v6419 = vpop.permute.xlu0 %6418
  %6421 = vset.pattern.permute.xlu0 28
  %6422 = vperm.xlu0 %6421, %v74
  %v6423 = vpop.permute.xlu0 %6422
  %6425 = vset.pattern.permute.xlu0 28
  %6426 = vperm.xlu0 %6425, %v75
  %v6427 = vpop.permute.xlu0 %6426
  %6429 = vset.pattern.permute.xlu0 28
  %6430 = vperm.xlu0 %6429, %v76
  %v6431 = vpop.permute.xlu0 %6430
  %6433 = vset.pattern.permute.xlu0 28
  %6434 = vperm.xlu0 %6433, %v77
  %v6435 = vpop.permute.xlu0 %6434
  %6437 = vset.pattern.permute.xlu0 28
  %6438 = vperm.xlu0 %6437, %v78
  %v6439 = vpop.permute.xlu0 %6438
  %6441 = vset.pattern.permute.xlu0 28
  %6442 = vperm.xlu0 %6441, %v79
  %v6443 = vpop.permute.xlu0 %6442
  %6445 = vset.pattern.permute.xlu0 28
  %6446 = vperm.xlu0 %6445, %v80
  %v6447 = vpop.permute.xlu0 %6446
  %6449 = vset.pattern.permute.xlu0 28
  %6450 = vperm.xlu0 %6449, %v81
  %v6451 = vpop.permute.xlu0 %6450
  %v6453 = vmul.f32 %v6387, %v6391
  %v6454 = vmul.f32 %v6386, %v6395
  %v6455 = vmul.f32 %v6385, %v6399
  %v6456 = vmul.f32 %v6384, %v6403
  %v6457 = vmul.f32 %v6383, %v6407
  %v6458 = vmul.f32 %v6382, %v6411
  %v6459 = vmul.f32 %v6381, %v6415
  %v6460 = vmul.f32 %v6380, %v6419
  %v6461 = vmul.f32 %v6379, %v6423
  %v6462 = vmul.f32 %v6378, %v6427
  %v6463 = vmul.f32 %v6377, %v6431
  %v6464 = vmul.f32 %v6376, %v6435
  %v6465 = vmul.f32 %v6375, %v6439
  %v6466 = vmul.f32 %v6374, %v6443
  %v6467 = vmul.f32 %v6373, %v6447
  %v6468 = vmul.f32 %v6388, %v6451
  %v6469 = vadd.f32 %v6341, %v6453
  %v6470 = vadd.f32 %v6342, %v6454
  %v6471 = vadd.f32 %v6343, %v6455
  %v6472 = vadd.f32 %v6344, %v6456
  %v6473 = vadd.f32 %v6345, %v6457
  %v6474 = vadd.f32 %v6346, %v6458
  %v6475 = vadd.f32 %v6347, %v6459
  %v6476 = vadd.f32 %v6348, %v6460
  %v6477 = vadd.f32 %v6349, %v6461
  %v6478 = vadd.f32 %v6350, %v6462
  %v6479 = vadd.f32 %v6351, %v6463
  %v6480 = vadd.f32 %v6352, %v6464
  %v6481 = vadd.f32 %v6353, %v6465
  %v6482 = vadd.f32 %v6354, %v6466
  %v6483 = vadd.f32 %v6355, %v6467
  %v6484 = vadd.f32 %v6356, %v6468
  %v6485 = vmul.f32 %v6469, 0.5
  %v6486 = vmul.f32 %v6470, 0.5
  %v6487 = vmul.f32 %v6471, 0.5
  %v6488 = vmul.f32 %v6472, 0.5
  %v6489 = vmul.f32 %v6473, 0.5
  %v6490 = vmul.f32 %v6474, 0.5
  %v6491 = vmul.f32 %v6475, 0.5
  %v6492 = vmul.f32 %v6476, 0.5
  %v6493 = vmul.f32 %v6469, 0.70710677
  %v6494 = vmul.f32 %v6470, 0.70710677
  %v6495 = vmul.f32 %v6471, 0.70710677
  %v6496 = vmul.f32 %v6472, 0.70710677
  %v6497 = vmul.f32 %v6473, 0.70710677
  %v6498 = vmul.f32 %v6474, 0.70710677
  %v6499 = vmul.f32 %v6475, 0.70710677
  %v6500 = vmul.f32 %v6476, 0.70710677
  %v6501 = verf.f32.pop %v6493
  %v6502 = verf.f32.pop %v6494
  %v6503 = verf.f32.pop %v6495
  %v6504 = verf.f32.pop %v6496
  %v6505 = verf.f32.pop %v6497
  %v6506 = verf.f32.pop %v6498
  %v6507 = verf.f32.pop %v6499
  %v6508 = verf.f32.pop %v6500
  %v6509 = vadd.f32 %v6501, 1.0
  %v6510 = vadd.f32 %v6502, 1.0
  %v6511 = vadd.f32 %v6503, 1.0
  %v6512 = vadd.f32 %v6504, 1.0
  %v6513 = vadd.f32 %v6505, 1.0
  %v6514 = vadd.f32 %v6506, 1.0
  %v6515 = vadd.f32 %v6507, 1.0
  %v6516 = vadd.f32 %v6508, 1.0
  %v6517 = vmul.f32 %v6485, %v6509
  %v6518 = vmul.f32 %v6486, %v6510
  %v6519 = vmul.f32 %v6487, %v6511
  %v6520 = vmul.f32 %v6488, %v6512
  %v6521 = vmul.f32 %v6489, %v6513
  %v6522 = vmul.f32 %v6490, %v6514
  %v6523 = vmul.f32 %v6491, %v6515
  %v6524 = vmul.f32 %v6492, %v6516
  %v6525 = vmul.f32 %v6517, %v6477
  %v6526 = vmul.f32 %v6518, %v6478
  %v6527 = vmul.f32 %v6519, %v6479
  %v6528 = vmul.f32 %v6520, %v6480
  %v6529 = vmul.f32 %v6521, %v6481
  %v6530 = vmul.f32 %v6522, %v6482
  %v6531 = vmul.f32 %v6523, %v6483
  %v6532 = vmul.f32 %v6524, %v6484
  %v6533 = vld [vmem:[%s11] sm:$0xf]
  %v6534 = vld [vmem:[%s11 + $0x4] sm:$0xf]
  %v6535 = vld [vmem:[%s11 + $0x8] sm:$0xf]
  %v6536 = vld [vmem:[%s11 + $0xc] sm:$0xf]
  %v6537 = vpack.c.bf16 %v6526, %v6525
  %v6538 = vpack.c.bf16 %v6528, %v6527
  %v6539 = vpack.c.bf16 %v6530, %v6529
  %v6540 = vpack.c.bf16 %v6532, %v6531
  %6541 = vset.pattern.permute.xlu0 5
  %6542 = vperm.xlu0 %6541, %v50
  %v6543 = vpop.permute.xlu0 %6542
  %6545 = vset.pattern.permute.xlu0 5
  %6546 = vperm.xlu0 %6545, %v51
  %v6547 = vpop.permute.xlu0 %6546
  %6549 = vset.pattern.permute.xlu0 5
  %6550 = vperm.xlu0 %6549, %v52
  %v6551 = vpop.permute.xlu0 %6550
  %6553 = vset.pattern.permute.xlu0 5
  %6554 = vperm.xlu0 %6553, %v53
  %v6555 = vpop.permute.xlu0 %6554
  %v6561 = vunpack.c.l.b16 %v6533
  %v6562 = vunpack.c.l.b16 %v6534
  %v6563 = vunpack.c.l.b16 %v6535
  %v6564 = vunpack.c.l.b16 %v6536
  %v6565 = vpack.c.b16 %v6562, %v6561
  %v6566 = vpack.c.b16 %v6564, %v6563
  %v6568 = vsel %vm1754, %v6565, 0
  %v6571 = vsel %vm1754, %v6566, 0
  %6573 = vmatprep.subr.bf16.mxu0 0
  %6574 = vmatpush1.bf16.msra.mxu0 0
  %6575 = vmatprep.subr.bf16.mxu0 0
  %6576 = vmatpush1.bf16.msra.mxu0 0
  %6577 = vmatprep.subr.bf16.mxu0 0
  %6578 = vmatpush1.bf16.msra.mxu0 0
  %6579 = vmatprep.subr.bf16.mxu0 0
  %6580 = vmatpush1.bf16.msra.mxu0 0
  %6581 = vmatprep.subr.bf16.mxu0 0
  %6582 = vmatpush1.bf16.msra.mxu0 %v6540
  %6583 = vmatprep.subr.bf16.mxu0 0
  %6584 = vmatpush1.bf16.msra.mxu0 %v6539
  %6585 = vmatprep.subr.bf16.mxu0 0
  %6586 = vmatpush1.bf16.msra.mxu0 %v6538
  %6587 = vmatprep.subr.bf16.mxu0 0
  %6588 = vmatpush1.bf16.msra.mxu0 %v6537
  %6589 = vmatprep.subr.bf16.mxu0 0
  %6590 = vmatpush2.bf16.msra.mxu0 0
  %6591 = vmatprep.subr.bf16.mxu0 0
  %6592 = vmatpush2.bf16.msra.mxu0 0
  %6593 = vmatprep.subr.bf16.mxu0 0
  %6594 = vmatpush2.bf16.msra.mxu0 0
  %6595 = vmatprep.subr.bf16.mxu0 0
  %6596 = vmatpush2.bf16.msra.mxu0 0
  %6597 = vmatprep.subr.bf16.mxu0 0
  %6598 = vmatpush2.bf16.msra.mxu0 0
  %6599 = vmatprep.subr.bf16.mxu0 0
  %6600 = vmatpush2.bf16.msra.mxu0 0
  %6601 = vmatprep.subr.bf16.mxu0 0
  %6602 = vmatpush2.bf16.msra.mxu0 0
  %6603 = vmatprep.subr.bf16.mxu0 0
  %6604 = vmatpush2.bf16.msra.mxu0 0
  %6605 = vmatprep.mubr.bf16.mxu0 0
  %6606 = vmatmul.mubr.bf16.gmra.mxu0 %v6568
  %v6607 = vpop.f32.mrf.mxu0
  %v6608 = vadd.f32 %v6543, %v6607
  %v6609 = vpop.f32.mrf.mxu0
  %v6610 = vpop.f32.mrf.mxu0
  %v6611 = vadd.f32 %v6547, %v6610
  %v6612 = vpop.f32.mrf.mxu0
  %6613 = vmatprep.mubr.bf16.mxu0 0
  %6614 = vmatmul.mubr.bf16.gmra.mxu0 %v6571
  %v6615 = vpop.f32.mrf.mxu0
  %v6616 = vadd.f32 %v6551, %v6615
  %v6617 = vpop.f32.mrf.mxu0
  %v6618 = vpop.f32.mrf.mxu0
  %v6619 = vadd.f32 %v6555, %v6618
  %v6620 = vpop.f32.mrf.mxu0
  %6621 = vdwg.mxu0
  %v6622 = vadd.f32 %v2602, %v6608
  %v6623 = vadd.f32 %v2603, %v6611
  %v6624 = vadd.f32 %v2604, %v6616
  %v6625 = vadd.f32 %v2605, %v6619
  %6626 = vst [vmem:[%s12] sm:$0xff] %v6622
  %6627 = vst [vmem:[%s12 + $0x8] sm:$0xff] %v6623
  %6628 = vst [vmem:[%s12 + $0x10] sm:$0xff] %v6624
  %6629 = vst [vmem:[%s12 + $0x18] sm:$0xff] %v6625
  // Predicated region
  $region50: #{transformer_block_forward.1} parent=0 // pred_check
    _
  $region51: #{transformer_block_forward.1} parent=0 // pred_check_branch
    %6631 = sbr.rel (0) target = $region53
  $region52: #{transformer_block_forward.1} parent=0 // pred_region
    _
  $region53: #{transformer_block_forward.1} parent=0 // pred_fallthru
    _
  // Predicated region
  $region54: #{transformer_block_forward.1} parent=0 // pred_check
    _
  $region55: #{transformer_block_forward.1} parent=0 // pred_check_branch
    %6633 = sbr.rel (0) target = $region57
  $region56: #{transformer_block_forward.1} parent=0 // pred_region
    _
  $region57: #{transformer_block_forward.1} parent=0 // pred_fallthru
    _

</llo_original>
